<compile_context>
chip_gen: v5e
topology: v5e:2x2
jax: 0.10.0
libtpu: 0.0.40
codegen_flags: <defaults>
</compile_context>

<pallas_src>
import functools

import jax
import jax.numpy as jnp
from jax.experimental import pallas as pl
from jax.experimental.pallas import tpu as pltpu

CP = 128                 # padded (lane-dense) channel width used everywhere
C_IN = 4                 # logical input channels
C_FEAT = 32              # logical encoder feature channels
PROJ_HIDDEN = 64         # logical projection hidden width
PROJ_OUT = 32            # logical projection output width


# ----------------------------------------------------------------------------
# Fused kernel: stem conv + BasicBlock (conv1, conv2, residual) + GAP + MLP
# ----------------------------------------------------------------------------
def _conv3x3_longk(pad_sc, col_sc, w_ref, H, W):
    """3x3 conv as ONE long-K MXU matmul.

    pad_sc: (H+2, W+2, CP) bf16 halo-padded activation (border already zero).
    col_sc: (H*W, 9*CP)   bf16 im2col scratch (all columns overwritten).
    w_ref : (9*CP, CP)    bf16 resident weight, row = tap*CP + cin.
    Returns (H*W, CP) f32.
    """
    HW = H * W
    for dy in range(3):
        for dx in range(3):
            k = dy * 3 + dx
            col_sc[:, k * CP:(k + 1) * CP] = (
                pad_sc[dy:dy + H, dx:dx + W, :].reshape(HW, CP))
    return jnp.dot(col_sc[...], w_ref[...], preferred_element_type=jnp.float32)


def _simclr_fused_kernel(x_ref,
                         w_stem_ref, s_stem_ref, b_stem_ref,
                         w_c1_ref, s_c1_ref, b_c1_ref,
                         w_c2_ref, s_c2_ref, b_c2_ref,
                         w_p1_ref, b_p1_ref, w_p2_ref, b_p2_ref,
                         o_ref,
                         pad_sc, col_sc, resid_sc, *, H, W):
    HW = H * W

    # --- stem conv (taps pre-folded into lanes) + folded BN + ReLU ----------
    acc = jnp.dot(x_ref[0], w_stem_ref[...], preferred_element_type=jnp.float32)
    h = jnp.maximum(acc * s_stem_ref[...] + b_stem_ref[...], 0.0)      # (HW,CP) f32
    resid_sc[...] = h                                                  # block residual

    # --- conv1 + folded BN + ReLU (activation never leaves VMEM) ------------
    pad_sc[...] = jnp.zeros_like(pad_sc)                  # zero halo border (cheap)
    pad_sc[1:H + 1, 1:W + 1, :] = h.astype(jnp.bfloat16).reshape(H, W, CP)
    acc = _conv3x3_longk(pad_sc, col_sc, w_c1_ref, H, W)
    h = jnp.maximum(acc * s_c1_ref[...] + b_c1_ref[...], 0.0)

    # --- conv2 + folded BN (halo border is still zero) ----------------------
    pad_sc[1:H + 1, 1:W + 1, :] = h.astype(jnp.bfloat16).reshape(H, W, CP)
    acc = _conv3x3_longk(pad_sc, col_sc, w_c2_ref, H, W)
    y = acc * s_c2_ref[...] + b_c2_ref[...]

    # --- residual add + ReLU + global average pool --------------------------
    y = jnp.maximum(y + resid_sc[...], 0.0)
    feat = jnp.sum(y, axis=0, keepdims=True) * (1.0 / HW)              # (1, CP)

    # --- projection MLP: Linear -> ReLU -> Linear ---------------------------
    hid = jnp.dot(feat.astype(jnp.bfloat16), w_p1_ref[...],
                  preferred_element_type=jnp.float32) + b_p1_ref[...]
    hid = jnp.maximum(hid, 0.0)
    out = jnp.dot(hid.astype(jnp.bfloat16), w_p2_ref[...],
                  preferred_element_type=jnp.float32) + b_p2_ref[...]
    o_ref[...] = out.reshape(1, 1, CP)


# ----------------------------------------------------------------------------
# Wrapper
# ----------------------------------------------------------------------------
def _resident(shape):
    zeros = (0,) * len(shape)
    return pl.BlockSpec(shape, lambda i, _z=zeros: _z)   # stays resident in VMEM


def _simclr_fused(xcol, p, *, H, W):
    n, HW, cp = xcol.shape
    args = (xcol,
            p["w_stem"], p["s_stem"], p["b_stem"],
            p["w_c1"], p["s_c1"], p["b_c1"],
            p["w_c2"], p["s_c2"], p["b_c2"],
            p["w_p1"], p["b_p1"], p["w_p2"], p["b_p2"])
    # Cost hint on LOGICAL channel counts (padded dims would overstate it).
    flops = 2 * n * (HW * 9 * C_IN * C_FEAT
                     + 2 * HW * 9 * C_FEAT * C_FEAT
                     + C_FEAT * PROJ_HIDDEN + PROJ_HIDDEN * PROJ_OUT)
    bytes_accessed = (sum(int(a.size) * a.dtype.itemsize for a in args)
                      + n * cp * 4)
    in_specs = [pl.BlockSpec((1, HW, cp), lambda i: (i, 0, 0))]
    in_specs += [_resident(a.shape) for a in args[1:]]
    out = pl.pallas_call(
        functools.partial(_simclr_fused_kernel, H=H, W=W),
        out_shape=jax.ShapeDtypeStruct((n, 1, cp), jnp.float32),
        grid=(n,),
        in_specs=in_specs,
        out_specs=pl.BlockSpec((1, 1, cp), lambda i: (i, 0, 0)),
        scratch_shapes=[
            pltpu.VMEM((H + 2, W + 2, cp), jnp.bfloat16),   # halo-padded activation
            pltpu.VMEM((HW, 9 * cp), jnp.bfloat16),         # in-VMEM im2col buffer
            pltpu.VMEM((HW, cp), jnp.float32),              # residual (stem output)
        ],
        compiler_params=pltpu.CompilerParams(
            # batch axis: megacore-sharded on v7x, plain serial loop on v5e/v6e
            dimension_semantics=("parallel",),
            vmem_limit_bytes=16 * 1024 * 1024),             # real footprint ~2.3 MB
        cost_estimate=pl.CostEstimate(flops=flops, transcendentals=0,
                                      bytes_accessed=bytes_accessed),
    )(*args)
    return out.reshape(n, cp)


# ----------------------------------------------------------------------------
# Forward: out = projection(encoder(x))
# ----------------------------------------------------------------------------
def simclr_forward(p, x_nchw):
    n, c, H, W = x_nchw.shape
    x = jnp.transpose(x_nchw, (0, 2, 3, 1))                       # NCHW -> NHWC
    # Fold the stem's 3x3 taps into the lane dim (9*C_IN = 36 lanes, padded to
    # 128) so the stem becomes a single K=128 matmul inside the kernel
    # (instead of 9 matmuls with 97%-zero K).  Input crosses HBM as bf16.
    xp = jnp.pad(x, ((0, 0), (1, 1), (1, 1), (0, 0)))
    taps = [xp[:, dy:dy + H, dx:dx + W, :] for dy in range(3) for dx in range(3)]
    xcol = jnp.concatenate(taps, axis=-1).reshape(n, H * W, 9 * c)
    xcol = jnp.pad(xcol, ((0, 0), (0, 0), (0, CP - 9 * c))).astype(jnp.bfloat16)
    out = _simclr_fused(xcol, p, H=H, W=W)
    return out[:, :PROJ_OUT]      # drop padded lanes (encoder.linear == Identity)


# ----------------------------------------------------------------------------
# Parameters (logical sizes, then padded / re-laid-out for the kernel)
# ----------------------------------------------------------------------------
def _fold_bn(gamma, beta, mean, var, eps=1e-5):
    scale = gamma / jnp.sqrt(var + eps)
    return scale, beta - mean * scale


def _conv_w9(w_oihw):
    """PyTorch conv weight (Cout, Cin, 3, 3) -> (9, Cin, Cout), tap k = dy*3+dx."""
    cout, cin = w_oihw.shape[0], w_oihw.shape[1]
    return jnp.transpose(w_oihw, (2, 3, 1, 0)).reshape(9, cin, cout)


def _stem_w_folded(w9):
    """(9, Cin, Cout) -> (CP, CP); row index = tap*Cin + cin (tap-folded stem)."""
    k, cin, cout = w9.shape
    w = w9.reshape(k * cin, cout)
    return jnp.pad(w, ((0, CP - k * cin), (0, CP - cout)))


def _conv_w_longk(w9):
    """(9, Cin, Cout) -> (9*CP, CP); row index = tap*CP + cin (long-K im2col)."""
    k, cin, cout = w9.shape
    w = jnp.pad(w9, ((0, 0), (0, CP - cin), (0, CP - cout)))
    return w.reshape(k * CP, CP)


def _pad_mat(w):
    return jnp.pad(w, ((0, CP - w.shape[0]), (0, CP - w.shape[1])))


def _pad_vec(v):
    return jnp.pad(v, (0, CP - v.shape[0])).reshape(1, CP)


def init_params(key):
    ks = jax.random.split(key, 7)
    lp = {}
    lp["w_stem"] = _conv_w9(jax.random.normal(ks[0], (C_FEAT, C_IN, 3, 3), jnp.float32) * 0.1)
    lp["s_stem"], lp["b_stem"] = _fold_bn(jnp.ones((C_FEAT,)), jnp.zeros((C_FEAT,)),
                                          jnp.zeros((C_FEAT,)), jnp.ones((C_FEAT,)))
    lp["w_c1"] = _conv_w9(jax.random.normal(ks[1], (C_FEAT, C_FEAT, 3, 3), jnp.float32) * 0.1)
    lp["s_c1"], lp["b_c1"] = _fold_bn(jnp.ones((C_FEAT,)), jnp.zeros((C_FEAT,)),
                                      jnp.zeros((C_FEAT,)), jnp.ones((C_FEAT,)))
    lp["w_c2"] = _conv_w9(jax.random.normal(ks[2], (C_FEAT, C_FEAT, 3, 3), jnp.float32) * 0.1)
    lp["s_c2"], lp["b_c2"] = _fold_bn(jnp.ones((C_FEAT,)), jnp.zeros((C_FEAT,)),
                                      jnp.zeros((C_FEAT,)), jnp.ones((C_FEAT,)))
    lp["w_p1"] = jax.random.normal(ks[3], (C_FEAT, PROJ_HIDDEN), jnp.float32) * 0.1
    lp["b_p1"] = jax.random.normal(ks[4], (PROJ_HIDDEN,), jnp.float32) * 0.01
    lp["w_p2"] = jax.random.normal(ks[5], (PROJ_HIDDEN, PROJ_OUT), jnp.float32) * 0.1
    lp["b_p2"] = jax.random.normal(ks[6], (PROJ_OUT,), jnp.float32) * 0.01

    pp = {
        "w_stem": _stem_w_folded(lp["w_stem"]).astype(jnp.bfloat16),
        "s_stem": _pad_vec(lp["s_stem"]), "b_stem": _pad_vec(lp["b_stem"]),
        "w_c1": _conv_w_longk(lp["w_c1"]).astype(jnp.bfloat16),
        "s_c1": _pad_vec(lp["s_c1"]), "b_c1": _pad_vec(lp["b_c1"]),
        "w_c2": _conv_w_longk(lp["w_c2"]).astype(jnp.bfloat16),
        "s_c2": _pad_vec(lp["s_c2"]), "b_c2": _pad_vec(lp["b_c2"]),
        "w_p1": _pad_mat(lp["w_p1"]).astype(jnp.bfloat16), "b_p1": _pad_vec(lp["b_p1"]),
        "w_p2": _pad_mat(lp["w_p2"]).astype(jnp.bfloat16), "b_p2": _pad_vec(lp["b_p2"]),
    }
    return lp, pp


# ----------------------------------------------------------------------------
# Pure-JAX reference on the logical (unpadded) parameters (bf16 matmul
# operands, f32 accumulation — same numerics as the kernel).
# ----------------------------------------------------------------------------
def _reference_forward(lp, x_nchw):
    def conv(x, w9, s, b, relu):
        n, h, w, c = x.shape
        xp = jnp.pad(x, ((0, 0), (1, 1), (1, 1), (0, 0)))
        acc = jnp.zeros((n * h * w, w9.shape[2]), jnp.float32)
        for dy in range(3):
            for dx in range(3):
                xs = xp[:, dy:dy + h, dx:dx + w, :].reshape(n * h * w, c)
                acc = acc + jnp.dot(xs.astype(jnp.bfloat16),
                                    w9[dy * 3 + dx].astype(jnp.bfloat16),
                                    preferred_element_type=jnp.float32)
        y = acc * s + b
        if relu:
            y = jnp.maximum(y, 0.0)
        return y.reshape(n, h, w, -1)

    x = jnp.transpose(x_nchw, (0, 2, 3, 1))
    h = conv(x, lp["w_stem"], lp["s_stem"], lp["b_stem"], True)
    r = h
    h = conv(h, lp["w_c1"], lp["s_c1"], lp["b_c1"], True)
    h = conv(h, lp["w_c2"], lp["s_c2"], lp["b_c2"], False)
    h = jnp.maximum(h + r, 0.0)
    feat = jnp.mean(h, axis=(1, 2))
    hid = jnp.maximum(jnp.dot(feat.astype(jnp.bfloat16), lp["w_p1"].astype(jnp.bfloat16),
                              preferred_element_type=jnp.float32) + lp["b_p1"], 0.0)
    return jnp.dot(hid.astype(jnp.bfloat16), lp["w_p2"].astype(jnp.bfloat16),
                   preferred_element_type=jnp.float32) + lp["b_p2"]


if __name__ == "__main__":
    key = jax.random.PRNGKey(0)
    kx, kp = jax.random.split(key)
    x = jax.random.normal(kx, (2, C_IN, 16, 16), jnp.float32)   # NCHW input
    logical_params, padded_params = init_params(kp)

    out = jax.jit(simclr_forward)(padded_params, x)
    out = jax.block_until_ready(out)

    ref = _reference_forward(logical_params, x)
    assert out.shape == (2, PROJ_OUT), out.shape
    assert jnp.allclose(out, ref, atol=1e-2, rtol=1e-2), \
        f"mismatch vs reference (max abs err {jnp.max(jnp.abs(out - ref))})"
    print("KERNEL_OK")
</pallas_src>

<mosaic_0001>
module attributes {stable_mosaic.version = 11 : i64} {
  func.func @_simclr_fused_kernel(%arg0: i32, %arg1: memref<1x256x128xbf16, #tpu.memory_space<vmem>>, %arg2: memref<128x128xbf16, #tpu.memory_space<vmem>>, %arg3: memref<1x128xf32, #tpu.memory_space<vmem>>, %arg4: memref<1x128xf32, #tpu.memory_space<vmem>>, %arg5: memref<1152x128xbf16, #tpu.memory_space<vmem>>, %arg6: memref<1x128xf32, #tpu.memory_space<vmem>>, %arg7: memref<1x128xf32, #tpu.memory_space<vmem>>, %arg8: memref<1152x128xbf16, #tpu.memory_space<vmem>>, %arg9: memref<1x128xf32, #tpu.memory_space<vmem>>, %arg10: memref<1x128xf32, #tpu.memory_space<vmem>>, %arg11: memref<128x128xbf16, #tpu.memory_space<vmem>>, %arg12: memref<1x128xf32, #tpu.memory_space<vmem>>, %arg13: memref<128x128xbf16, #tpu.memory_space<vmem>>, %arg14: memref<1x128xf32, #tpu.memory_space<vmem>>, %arg15: memref<1x1x128xf32, #tpu.memory_space<vmem>>, %arg16: memref<18x18x128xbf16, #tpu.memory_space<vmem>>, %arg17: memref<256x1152xbf16, #tpu.memory_space<vmem>>, %arg18: memref<256x128xf32, #tpu.memory_space<vmem>>) attributes {dimension_semantics = [#tpu.dimension_semantics<parallel>], iteration_bounds = array<i64: 2>, scalar_prefetch = 0 : i64, scratch_operands = 3 : i64, tpu.core_type = #tpu.core_type<tc>, window_params = [{transform_indices = @transform_0, window_bounds = array<i64: 1, 256, 128>}, {pipeline_mode = #tpu.pipeline_mode<synchronous>, transform_indices = @transform_1, window_bounds = array<i64: 128, 128>}, {pipeline_mode = #tpu.pipeline_mode<synchronous>, transform_indices = @transform_2, window_bounds = array<i64: 1, 128>}, {pipeline_mode = #tpu.pipeline_mode<synchronous>, transform_indices = @transform_3, window_bounds = array<i64: 1, 128>}, {pipeline_mode = #tpu.pipeline_mode<synchronous>, transform_indices = @transform_4, window_bounds = array<i64: 1152, 128>}, {pipeline_mode = #tpu.pipeline_mode<synchronous>, transform_indices = @transform_5, window_bounds = array<i64: 1, 128>}, {pipeline_mode = #tpu.pipeline_mode<synchronous>, transform_indices = @transform_6, window_bounds = array<i64: 1, 128>}, {pipeline_mode = #tpu.pipeline_mode<synchronous>, transform_indices = @transform_7, window_bounds = array<i64: 1152, 128>}, {pipeline_mode = #tpu.pipeline_mode<synchronous>, transform_indices = @transform_8, window_bounds = array<i64: 1, 128>}, {pipeline_mode = #tpu.pipeline_mode<synchronous>, transform_indices = @transform_9, window_bounds = array<i64: 1, 128>}, {pipeline_mode = #tpu.pipeline_mode<synchronous>, transform_indices = @transform_10, window_bounds = array<i64: 128, 128>}, {pipeline_mode = #tpu.pipeline_mode<synchronous>, transform_indices = @transform_11, window_bounds = array<i64: 1, 128>}, {pipeline_mode = #tpu.pipeline_mode<synchronous>, transform_indices = @transform_12, window_bounds = array<i64: 128, 128>}, {pipeline_mode = #tpu.pipeline_mode<synchronous>, transform_indices = @transform_13, window_bounds = array<i64: 1, 128>}, {transform_indices = @transform_14, window_bounds = array<i64: 1, 1, 128>}]} {
    %c0 = arith.constant 0 : index
    %c0_0 = arith.constant 0 : index
    %c0_1 = arith.constant 0 : index
    %0 = vector.load %arg1[%c0, %c0_0, %c0_1] : memref<1x256x128xbf16, #tpu.memory_space<vmem>>, vector<1x256x128xbf16>
    %1 = vector.shape_cast %0 : vector<1x256x128xbf16> to vector<256x128xbf16>
    %c0_2 = arith.constant 0 : index
    %c0_3 = arith.constant 0 : index
    %2 = vector.load %arg2[%c0_2, %c0_3] : memref<128x128xbf16, #tpu.memory_space<vmem>>, vector<128x128xbf16>
    %cst = arith.constant dense<0.000000e+00> : vector<256x128xf32>
    %3 = tpu.matmul %1, %2, %cst {dimension_numbers = #tpu.dot_dimension_numbers<[1], [0], [0], [1], [0, 0, 1, 1], [], []>} : vector<256x128xbf16>, vector<128x128xbf16>, vector<256x128xf32> -> vector<256x128xf32>
    %c0_4 = arith.constant 0 : index
    %c0_5 = arith.constant 0 : index
    %4 = vector.load %arg3[%c0_4, %c0_5] : memref<1x128xf32, #tpu.memory_space<vmem>>, vector<1x128xf32>
    %5 = vector.broadcast %4 : vector<1x128xf32> to vector<256x128xf32>
    %6 = arith.mulf %3, %5 : vector<256x128xf32>
    %c0_6 = arith.constant 0 : index
    %c0_7 = arith.constant 0 : index
    %7 = vector.load %arg4[%c0_6, %c0_7] : memref<1x128xf32, #tpu.memory_space<vmem>>, vector<1x128xf32>
    %8 = vector.broadcast %7 : vector<1x128xf32> to vector<256x128xf32>
    %9 = arith.addf %6, %8 : vector<256x128xf32>
    %cst_8 = arith.constant 0.000000e+00 : f32
    %10 = vector.broadcast %cst_8 : f32 to vector<256x128xf32>
    %11 = arith.maximumf %9, %10 : vector<256x128xf32>
    %c0_9 = arith.constant 0 : index
    %c0_10 = arith.constant 0 : index
    %12 = vector.load %arg18[%c0_9, %c0_10] : memref<256x128xf32, #tpu.memory_space<vmem>>, vector<256x128xf32>
    tpu.vector_store %arg18[%c0_9, %c0_10], %11 {strides = array<i32>} : memref<256x128xf32, #tpu.memory_space<vmem>>, vector<256x128xf32>,
    %cst_11 = arith.constant 0.000000e+00 : bf16
    %13 = vector.broadcast %cst_11 : bf16 to vector<18x18x128xbf16>
    %c0_12 = arith.constant 0 : index
    %c0_13 = arith.constant 0 : index
    %c0_14 = arith.constant 0 : index
    %14 = vector.load %arg16[%c0_12, %c0_13, %c0_14] : memref<18x18x128xbf16, #tpu.memory_space<vmem>>, vector<18x18x128xbf16>
    tpu.vector_store %arg16[%c0_12, %c0_13, %c0_14], %13 {strides = array<i32>} : memref<18x18x128xbf16, #tpu.memory_space<vmem>>, vector<18x18x128xbf16>,
    %15 = arith.truncf %11 : vector<256x128xf32> to vector<256x128xbf16>
    %16 = vector.shape_cast %15 : vector<256x128xbf16> to vector<16x16x128xbf16>
    %c1 = arith.constant 1 : index
    %c1_15 = arith.constant 1 : index
    %c0_16 = arith.constant 0 : index
    %17 = vector.load %arg16[%c1, %c1_15, %c0_16] : memref<18x18x128xbf16, #tpu.memory_space<vmem>>, vector<16x16x128xbf16>
    tpu.vector_store %arg16[%c1, %c1_15, %c0_16], %16 {strides = array<i32>} : memref<18x18x128xbf16, #tpu.memory_space<vmem>>, vector<16x16x128xbf16>,
    %c0_17 = arith.constant 0 : index
    %c0_18 = arith.constant 0 : index
    %c0_19 = arith.constant 0 : index
    %18 = vector.load %arg16[%c0_17, %c0_18, %c0_19] : memref<18x18x128xbf16, #tpu.memory_space<vmem>>, vector<16x16x128xbf16>
    %19 = vector.shape_cast %18 : vector<16x16x128xbf16> to vector<256x128xbf16>
    %c0_20 = arith.constant 0 : index
    %c0_21 = arith.constant 0 : index
    %20 = vector.load %arg17[%c0_20, %c0_21] : memref<256x1152xbf16, #tpu.memory_space<vmem>>, vector<256x128xbf16>
    tpu.vector_store %arg17[%c0_20, %c0_21], %19 {strides = array<i32>} : memref<256x1152xbf16, #tpu.memory_space<vmem>>, vector<256x128xbf16>,
    %c0_22 = arith.constant 0 : index
    %c1_23 = arith.constant 1 : index
    %c0_24 = arith.constant 0 : index
    %21 = vector.load %arg16[%c0_22, %c1_23, %c0_24] : memref<18x18x128xbf16, #tpu.memory_space<vmem>>, vector<16x16x128xbf16>
    %22 = vector.shape_cast %21 : vector<16x16x128xbf16> to vector<256x128xbf16>
    %c0_25 = arith.constant 0 : index
    %c128 = arith.constant 128 : index
    %23 = vector.load %arg17[%c0_25, %c128] : memref<256x1152xbf16, #tpu.memory_space<vmem>>, vector<256x128xbf16>
    tpu.vector_store %arg17[%c0_25, %c128], %22 {strides = array<i32>} : memref<256x1152xbf16, #tpu.memory_space<vmem>>, vector<256x128xbf16>,
    %c0_26 = arith.constant 0 : index
    %c2 = arith.constant 2 : index
    %c0_27 = arith.constant 0 : index
    %24 = vector.load %arg16[%c0_26, %c2, %c0_27] : memref<18x18x128xbf16, #tpu.memory_space<vmem>>, vector<16x16x128xbf16>
    %25 = vector.shape_cast %24 : vector<16x16x128xbf16> to vector<256x128xbf16>
    %c0_28 = arith.constant 0 : index
    %c256 = arith.constant 256 : index
    %26 = vector.load %arg17[%c0_28, %c256] : memref<256x1152xbf16, #tpu.memory_space<vmem>>, vector<256x128xbf16>
    tpu.vector_store %arg17[%c0_28, %c256], %25 {strides = array<i32>} : memref<256x1152xbf16, #tpu.memory_space<vmem>>, vector<256x128xbf16>,
    %c1_29 = arith.constant 1 : index
    %c0_30 = arith.constant 0 : index
    %c0_31 = arith.constant 0 : index
    %27 = vector.load %arg16[%c1_29, %c0_30, %c0_31] : memref<18x18x128xbf16, #tpu.memory_space<vmem>>, vector<16x16x128xbf16>
    %28 = vector.shape_cast %27 : vector<16x16x128xbf16> to vector<256x128xbf16>
    %c0_32 = arith.constant 0 : index
    %c384 = arith.constant 384 : index
    %29 = vector.load %arg17[%c0_32, %c384] : memref<256x1152xbf16, #tpu.memory_space<vmem>>, vector<256x128xbf16>
    tpu.vector_store %arg17[%c0_32, %c384], %28 {strides = array<i32>} : memref<256x1152xbf16, #tpu.memory_space<vmem>>, vector<256x128xbf16>,
    %c1_33 = arith.constant 1 : index
    %c1_34 = arith.constant 1 : index
    %c0_35 = arith.constant 0 : index
    %30 = vector.load %arg16[%c1_33, %c1_34, %c0_35] : memref<18x18x128xbf16, #tpu.memory_space<vmem>>, vector<16x16x128xbf16>
    %31 = vector.shape_cast %30 : vector<16x16x128xbf16> to vector<256x128xbf16>
    %c0_36 = arith.constant 0 : index
    %c512 = arith.constant 512 : index
    %32 = vector.load %arg17[%c0_36, %c512] : memref<256x1152xbf16, #tpu.memory_space<vmem>>, vector<256x128xbf16>
    tpu.vector_store %arg17[%c0_36, %c512], %31 {strides = array<i32>} : memref<256x1152xbf16, #tpu.memory_space<vmem>>, vector<256x128xbf16>,
    %c1_37 = arith.constant 1 : index
    %c2_38 = arith.constant 2 : index
    %c0_39 = arith.constant 0 : index
    %33 = vector.load %arg16[%c1_37, %c2_38, %c0_39] : memref<18x18x128xbf16, #tpu.memory_space<vmem>>, vector<16x16x128xbf16>
    %34 = vector.shape_cast %33 : vector<16x16x128xbf16> to vector<256x128xbf16>
    %c0_40 = arith.constant 0 : index
    %c640 = arith.constant 640 : index
    %35 = vector.load %arg17[%c0_40, %c640] : memref<256x1152xbf16, #tpu.memory_space<vmem>>, vector<256x128xbf16>
    tpu.vector_store %arg17[%c0_40, %c640], %34 {strides = array<i32>} : memref<256x1152xbf16, #tpu.memory_space<vmem>>, vector<256x128xbf16>,
    %c2_41 = arith.constant 2 : index
    %c0_42 = arith.constant 0 : index
    %c0_43 = arith.constant 0 : index
    %36 = vector.load %arg16[%c2_41, %c0_42, %c0_43] : memref<18x18x128xbf16, #tpu.memory_space<vmem>>, vector<16x16x128xbf16>
    %37 = vector.shape_cast %36 : vector<16x16x128xbf16> to vector<256x128xbf16>
    %c0_44 = arith.constant 0 : index
    %c768 = arith.constant 768 : index
    %38 = vector.load %arg17[%c0_44, %c768] : memref<256x1152xbf16, #tpu.memory_space<vmem>>, vector<256x128xbf16>
    tpu.vector_store %arg17[%c0_44, %c768], %37 {strides = array<i32>} : memref<256x1152xbf16, #tpu.memory_space<vmem>>, vector<256x128xbf16>,
    %c2_45 = arith.constant 2 : index
    %c1_46 = arith.constant 1 : index
    %c0_47 = arith.constant 0 : index
    %39 = vector.load %arg16[%c2_45, %c1_46, %c0_47] : memref<18x18x128xbf16, #tpu.memory_space<vmem>>, vector<16x16x128xbf16>
    %40 = vector.shape_cast %39 : vector<16x16x128xbf16> to vector<256x128xbf16>
    %c0_48 = arith.constant 0 : index
    %c896 = arith.constant 896 : index
    %41 = vector.load %arg17[%c0_48, %c896] : memref<256x1152xbf16, #tpu.memory_space<vmem>>, vector<256x128xbf16>
    tpu.vector_store %arg17[%c0_48, %c896], %40 {strides = array<i32>} : memref<256x1152xbf16, #tpu.memory_space<vmem>>, vector<256x128xbf16>,
    %c2_49 = arith.constant 2 : index
    %c2_50 = arith.constant 2 : index
    %c0_51 = arith.constant 0 : index
    %42 = vector.load %arg16[%c2_49, %c2_50, %c0_51] : memref<18x18x128xbf16, #tpu.memory_space<vmem>>, vector<16x16x128xbf16>
    %43 = vector.shape_cast %42 : vector<16x16x128xbf16> to vector<256x128xbf16>
    %c0_52 = arith.constant 0 : index
    %c1024 = arith.constant 1024 : index
    %44 = vector.load %arg17[%c0_52, %c1024] : memref<256x1152xbf16, #tpu.memory_space<vmem>>, vector<256x128xbf16>
    tpu.vector_store %arg17[%c0_52, %c1024], %43 {strides = array<i32>} : memref<256x1152xbf16, #tpu.memory_space<vmem>>, vector<256x128xbf16>,
    %c0_53 = arith.constant 0 : index
    %c0_54 = arith.constant 0 : index
    %45 = vector.load %arg17[%c0_53, %c0_54] : memref<256x1152xbf16, #tpu.memory_space<vmem>>, vector<256x1152xbf16>
    %c0_55 = arith.constant 0 : index
    %c0_56 = arith.constant 0 : index
    %46 = vector.load %arg5[%c0_55, %c0_56] : memref<1152x128xbf16, #tpu.memory_space<vmem>>, vector<1152x128xbf16>
    %cst_57 = arith.constant dense<0.000000e+00> : vector<256x128xf32>
    %47 = tpu.matmul %45, %46, %cst_57 {dimension_numbers = #tpu.dot_dimension_numbers<[1], [0], [0], [1], [0, 0, 1, 1], [], []>} : vector<256x1152xbf16>, vector<1152x128xbf16>, vector<256x128xf32> -> vector<256x128xf32>
    %c0_58 = arith.constant 0 : index
    %c0_59 = arith.constant 0 : index
    %48 = vector.load %arg6[%c0_58, %c0_59] : memref<1x128xf32, #tpu.memory_space<vmem>>, vector<1x128xf32>
    %49 = vector.broadcast %48 : vector<1x128xf32> to vector<256x128xf32>
    %50 = arith.mulf %47, %49 : vector<256x128xf32>
    %c0_60 = arith.constant 0 : index
    %c0_61 = arith.constant 0 : index
    %51 = vector.load %arg7[%c0_60, %c0_61] : memref<1x128xf32, #tpu.memory_space<vmem>>, vector<1x128xf32>
    %52 = vector.broadcast %51 : vector<1x128xf32> to vector<256x128xf32>
    %53 = arith.addf %50, %52 : vector<256x128xf32>
    %cst_62 = arith.constant 0.000000e+00 : f32
    %54 = vector.broadcast %cst_62 : f32 to vector<256x128xf32>
    %55 = arith.maximumf %53, %54 : vector<256x128xf32>
    %56 = arith.truncf %55 : vector<256x128xf32> to vector<256x128xbf16>
    %57 = vector.shape_cast %56 : vector<256x128xbf16> to vector<16x16x128xbf16>
    %c1_63 = arith.constant 1 : index
    %c1_64 = arith.constant 1 : index
    %c0_65 = arith.constant 0 : index
    %58 = vector.load %arg16[%c1_63, %c1_64, %c0_65] : memref<18x18x128xbf16, #tpu.memory_space<vmem>>, vector<16x16x128xbf16>
    tpu.vector_store %arg16[%c1_63, %c1_64, %c0_65], %57 {strides = array<i32>} : memref<18x18x128xbf16, #tpu.memory_space<vmem>>, vector<16x16x128xbf16>,
    %c0_66 = arith.constant 0 : index
    %c0_67 = arith.constant 0 : index
    %c0_68 = arith.constant 0 : index
    %59 = vector.load %arg16[%c0_66, %c0_67, %c0_68] : memref<18x18x128xbf16, #tpu.memory_space<vmem>>, vector<16x16x128xbf16>
    %60 = vector.shape_cast %59 : vector<16x16x128xbf16> to vector<256x128xbf16>
    %c0_69 = arith.constant 0 : index
    %c0_70 = arith.constant 0 : index
    %61 = vector.load %arg17[%c0_69, %c0_70] : memref<256x1152xbf16, #tpu.memory_space<vmem>>, vector<256x128xbf16>
    tpu.vector_store %arg17[%c0_69, %c0_70], %60 {strides = array<i32>} : memref<256x1152xbf16, #tpu.memory_space<vmem>>, vector<256x128xbf16>,
    %c0_71 = arith.constant 0 : index
    %c1_72 = arith.constant 1 : index
    %c0_73 = arith.constant 0 : index
    %62 = vector.load %arg16[%c0_71, %c1_72, %c0_73] : memref<18x18x128xbf16, #tpu.memory_space<vmem>>, vector<16x16x128xbf16>
    %63 = vector.shape_cast %62 : vector<16x16x128xbf16> to vector<256x128xbf16>
    %c0_74 = arith.constant 0 : index
    %c128_75 = arith.constant 128 : index
    %64 = vector.load %arg17[%c0_74, %c128_75] : memref<256x1152xbf16, #tpu.memory_space<vmem>>, vector<256x128xbf16>
    tpu.vector_store %arg17[%c0_74, %c128_75], %63 {strides = array<i32>} : memref<256x1152xbf16, #tpu.memory_space<vmem>>, vector<256x128xbf16>,
    %c0_76 = arith.constant 0 : index
    %c2_77 = arith.constant 2 : index
    %c0_78 = arith.constant 0 : index
    %65 = vector.load %arg16[%c0_76, %c2_77, %c0_78] : memref<18x18x128xbf16, #tpu.memory_space<vmem>>, vector<16x16x128xbf16>
    %66 = vector.shape_cast %65 : vector<16x16x128xbf16> to vector<256x128xbf16>
    %c0_79 = arith.constant 0 : index
    %c256_80 = arith.constant 256 : index
    %67 = vector.load %arg17[%c0_79, %c256_80] : memref<256x1152xbf16, #tpu.memory_space<vmem>>, vector<256x128xbf16>
    tpu.vector_store %arg17[%c0_79, %c256_80], %66 {strides = array<i32>} : memref<256x1152xbf16, #tpu.memory_space<vmem>>, vector<256x128xbf16>,
    %c1_81 = arith.constant 1 : index
    %c0_82 = arith.constant 0 : index
    %c0_83 = arith.constant 0 : index
    %68 = vector.load %arg16[%c1_81, %c0_82, %c0_83] : memref<18x18x128xbf16, #tpu.memory_space<vmem>>, vector<16x16x128xbf16>
    %69 = vector.shape_cast %68 : vector<16x16x128xbf16> to vector<256x128xbf16>
    %c0_84 = arith.constant 0 : index
    %c384_85 = arith.constant 384 : index
    %70 = vector.load %arg17[%c0_84, %c384_85] : memref<256x1152xbf16, #tpu.memory_space<vmem>>, vector<256x128xbf16>
    tpu.vector_store %arg17[%c0_84, %c384_85], %69 {strides = array<i32>} : memref<256x1152xbf16, #tpu.memory_space<vmem>>, vector<256x128xbf16>,
    %c1_86 = arith.constant 1 : index
    %c1_87 = arith.constant 1 : index
    %c0_88 = arith.constant 0 : index
    %71 = vector.load %arg16[%c1_86, %c1_87, %c0_88] : memref<18x18x128xbf16, #tpu.memory_space<vmem>>, vector<16x16x128xbf16>
    %72 = vector.shape_cast %71 : vector<16x16x128xbf16> to vector<256x128xbf16>
    %c0_89 = arith.constant 0 : index
    %c512_90 = arith.constant 512 : index
    %73 = vector.load %arg17[%c0_89, %c512_90] : memref<256x1152xbf16, #tpu.memory_space<vmem>>, vector<256x128xbf16>
    tpu.vector_store %arg17[%c0_89, %c512_90], %72 {strides = array<i32>} : memref<256x1152xbf16, #tpu.memory_space<vmem>>, vector<256x128xbf16>,
    %c1_91 = arith.constant 1 : index
    %c2_92 = arith.constant 2 : index
    %c0_93 = arith.constant 0 : index
    %74 = vector.load %arg16[%c1_91, %c2_92, %c0_93] : memref<18x18x128xbf16, #tpu.memory_space<vmem>>, vector<16x16x128xbf16>
    %75 = vector.shape_cast %74 : vector<16x16x128xbf16> to vector<256x128xbf16>
    %c0_94 = arith.constant 0 : index
    %c640_95 = arith.constant 640 : index
    %76 = vector.load %arg17[%c0_94, %c640_95] : memref<256x1152xbf16, #tpu.memory_space<vmem>>, vector<256x128xbf16>
    tpu.vector_store %arg17[%c0_94, %c640_95], %75 {strides = array<i32>} : memref<256x1152xbf16, #tpu.memory_space<vmem>>, vector<256x128xbf16>,
    %c2_96 = arith.constant 2 : index
    %c0_97 = arith.constant 0 : index
    %c0_98 = arith.constant 0 : index
    %77 = vector.load %arg16[%c2_96, %c0_97, %c0_98] : memref<18x18x128xbf16, #tpu.memory_space<vmem>>, vector<16x16x128xbf16>
    %78 = vector.shape_cast %77 : vector<16x16x128xbf16> to vector<256x128xbf16>
    %c0_99 = arith.constant 0 : index
    %c768_100 = arith.constant 768 : index
    %79 = vector.load %arg17[%c0_99, %c768_100] : memref<256x1152xbf16, #tpu.memory_space<vmem>>, vector<256x128xbf16>
    tpu.vector_store %arg17[%c0_99, %c768_100], %78 {strides = array<i32>} : memref<256x1152xbf16, #tpu.memory_space<vmem>>, vector<256x128xbf16>,
    %c2_101 = arith.constant 2 : index
    %c1_102 = arith.constant 1 : index
    %c0_103 = arith.constant 0 : index
    %80 = vector.load %arg16[%c2_101, %c1_102, %c0_103] : memref<18x18x128xbf16, #tpu.memory_space<vmem>>, vector<16x16x128xbf16>
    %81 = vector.shape_cast %80 : vector<16x16x128xbf16> to vector<256x128xbf16>
    %c0_104 = arith.constant 0 : index
    %c896_105 = arith.constant 896 : index
    %82 = vector.load %arg17[%c0_104, %c896_105] : memref<256x1152xbf16, #tpu.memory_space<vmem>>, vector<256x128xbf16>
    tpu.vector_store %arg17[%c0_104, %c896_105], %81 {strides = array<i32>} : memref<256x1152xbf16, #tpu.memory_space<vmem>>, vector<256x128xbf16>,
    %c2_106 = arith.constant 2 : index
    %c2_107 = arith.constant 2 : index
    %c0_108 = arith.constant 0 : index
    %83 = vector.load %arg16[%c2_106, %c2_107, %c0_108] : memref<18x18x128xbf16, #tpu.memory_space<vmem>>, vector<16x16x128xbf16>
    %84 = vector.shape_cast %83 : vector<16x16x128xbf16> to vector<256x128xbf16>
    %c0_109 = arith.constant 0 : index
    %c1024_110 = arith.constant 1024 : index
    %85 = vector.load %arg17[%c0_109, %c1024_110] : memref<256x1152xbf16, #tpu.memory_space<vmem>>, vector<256x128xbf16>
    tpu.vector_store %arg17[%c0_109, %c1024_110], %84 {strides = array<i32>} : memref<256x1152xbf16, #tpu.memory_space<vmem>>, vector<256x128xbf16>,
    %c0_111 = arith.constant 0 : index
    %c0_112 = arith.constant 0 : index
    %86 = vector.load %arg17[%c0_111, %c0_112] : memref<256x1152xbf16, #tpu.memory_space<vmem>>, vector<256x1152xbf16>
    %c0_113 = arith.constant 0 : index
    %c0_114 = arith.constant 0 : index
    %87 = vector.load %arg8[%c0_113, %c0_114] : memref<1152x128xbf16, #tpu.memory_space<vmem>>, vector<1152x128xbf16>
    %cst_115 = arith.constant dense<0.000000e+00> : vector<256x128xf32>
    %88 = tpu.matmul %86, %87, %cst_115 {dimension_numbers = #tpu.dot_dimension_numbers<[1], [0], [0], [1], [0, 0, 1, 1], [], []>} : vector<256x1152xbf16>, vector<1152x128xbf16>, vector<256x128xf32> -> vector<256x128xf32>
    %c0_116 = arith.constant 0 : index
    %c0_117 = arith.constant 0 : index
    %89 = vector.load %arg9[%c0_116, %c0_117] : memref<1x128xf32, #tpu.memory_space<vmem>>, vector<1x128xf32>
    %90 = vector.broadcast %89 : vector<1x128xf32> to vector<256x128xf32>
    %91 = arith.mulf %88, %90 : vector<256x128xf32>
    %c0_118 = arith.constant 0 : index
    %c0_119 = arith.constant 0 : index
    %92 = vector.load %arg10[%c0_118, %c0_119] : memref<1x128xf32, #tpu.memory_space<vmem>>, vector<1x128xf32>
    %93 = vector.broadcast %92 : vector<1x128xf32> to vector<256x128xf32>
    %94 = arith.addf %91, %93 : vector<256x128xf32>
    %c0_120 = arith.constant 0 : index
    %c0_121 = arith.constant 0 : index
    %95 = vector.load %arg18[%c0_120, %c0_121] : memref<256x128xf32, #tpu.memory_space<vmem>>, vector<256x128xf32>
    %96 = arith.addf %94, %95 : vector<256x128xf32>
    %cst_122 = arith.constant 0.000000e+00 : f32
    %97 = vector.broadcast %cst_122 : f32 to vector<256x128xf32>
    %98 = arith.maximumf %96, %97 : vector<256x128xf32>
    %cst_123 = arith.constant dense<0.000000e+00> : vector<128xf32>
    %99 = vector.multi_reduction <add>, %98, %cst_123 [0] : vector<256x128xf32> to vector<128xf32>
    %100 = vector.shape_cast %99 : vector<128xf32> to vector<1x128xf32>
    %cst_124 = arith.constant 3.906250e-03 : f32
    %101 = vector.broadcast %cst_124 : f32 to vector<1x128xf32>
    %102 = arith.mulf %100, %101 : vector<1x128xf32>
    %103 = arith.truncf %102 : vector<1x128xf32> to vector<1x128xbf16>
    %c0_125 = arith.constant 0 : index
    %c0_126 = arith.constant 0 : index
    %104 = vector.load %arg11[%c0_125, %c0_126] : memref<128x128xbf16, #tpu.memory_space<vmem>>, vector<128x128xbf16>
    %cst_127 = arith.constant dense<0.000000e+00> : vector<1x128xf32>
    %105 = tpu.matmul %103, %104, %cst_127 {dimension_numbers = #tpu.dot_dimension_numbers<[1], [0], [0], [1], [0, 0, 1, 1], [], []>} : vector<1x128xbf16>, vector<128x128xbf16>, vector<1x128xf32> -> vector<1x128xf32>
    %c0_128 = arith.constant 0 : index
    %c0_129 = arith.constant 0 : index
    %106 = vector.load %arg12[%c0_128, %c0_129] : memref<1x128xf32, #tpu.memory_space<vmem>>, vector<1x128xf32>
    %107 = arith.addf %105, %106 : vector<1x128xf32>
    %cst_130 = arith.constant 0.000000e+00 : f32
    %108 = vector.broadcast %cst_130 : f32 to vector<1x128xf32>
    %109 = arith.maximumf %107, %108 : vector<1x128xf32>
    %110 = arith.truncf %109 : vector<1x128xf32> to vector<1x128xbf16>
    %c0_131 = arith.constant 0 : index
    %c0_132 = arith.constant 0 : index
    %111 = vector.load %arg13[%c0_131, %c0_132] : memref<128x128xbf16, #tpu.memory_space<vmem>>, vector<128x128xbf16>
    %cst_133 = arith.constant dense<0.000000e+00> : vector<1x128xf32>
    %112 = tpu.matmul %110, %111, %cst_133 {dimension_numbers = #tpu.dot_dimension_numbers<[1], [0], [0], [1], [0, 0, 1, 1], [], []>} : vector<1x128xbf16>, vector<128x128xbf16>, vector<1x128xf32> -> vector<1x128xf32>
    %c0_134 = arith.constant 0 : index
    %c0_135 = arith.constant 0 : index
    %113 = vector.load %arg14[%c0_134, %c0_135] : memref<1x128xf32, #tpu.memory_space<vmem>>, vector<1x128xf32>
    %114 = arith.addf %112, %113 : vector<1x128xf32>
    %115 = vector.shape_cast %114 : vector<1x128xf32> to vector<1x1x128xf32>
    %c0_136 = arith.constant 0 : index
    %c0_137 = arith.constant 0 : index
    %c0_138 = arith.constant 0 : index
    %116 = vector.load %arg15[%c0_136, %c0_137, %c0_138] : memref<1x1x128xf32, #tpu.memory_space<vmem>>, vector<1x1x128xf32>
    tpu.vector_store %arg15[%c0_136, %c0_137, %c0_138], %115 {strides = array<i32>} : memref<1x1x128xf32, #tpu.memory_space<vmem>>, vector<1x1x128xf32>,
    return
  }
  func.func @transform_0(%arg0: i32) -> (i32, i32, i32) {
    %c0_i32 = arith.constant 0 : i32
    %c0_i32_0 = arith.constant 0 : i32
    %c0_i32_1 = arith.constant 0 : i32
    return %arg0, %c0_i32, %c0_i32_0 : i32, i32, i32
  }
  func.func @transform_1(%arg0: i32) -> (i32, i32) {
    %c0_i32 = arith.constant 0 : i32
    %c0_i32_0 = arith.constant 0 : i32
    %c0_i32_1 = arith.constant 0 : i32
    return %c0_i32, %c0_i32_0 : i32, i32
  }
  func.func @transform_2(%arg0: i32) -> (i32, i32) {
    %c0_i32 = arith.constant 0 : i32
    %c0_i32_0 = arith.constant 0 : i32
    %c0_i32_1 = arith.constant 0 : i32
    return %c0_i32, %c0_i32_0 : i32, i32
  }
  func.func @transform_3(%arg0: i32) -> (i32, i32) {
    %c0_i32 = arith.constant 0 : i32
    %c0_i32_0 = arith.constant 0 : i32
    %c0_i32_1 = arith.constant 0 : i32
    return %c0_i32, %c0_i32_0 : i32, i32
  }
  func.func @transform_4(%arg0: i32) -> (i32, i32) {
    %c0_i32 = arith.constant 0 : i32
    %c0_i32_0 = arith.constant 0 : i32
    %c0_i32_1 = arith.constant 0 : i32
    return %c0_i32, %c0_i32_0 : i32, i32
  }
  func.func @transform_5(%arg0: i32) -> (i32, i32) {
    %c0_i32 = arith.constant 0 : i32
    %c0_i32_0 = arith.constant 0 : i32
    %c0_i32_1 = arith.constant 0 : i32
    return %c0_i32, %c0_i32_0 : i32, i32
  }
  func.func @transform_6(%arg0: i32) -> (i32, i32) {
    %c0_i32 = arith.constant 0 : i32
    %c0_i32_0 = arith.constant 0 : i32
    %c0_i32_1 = arith.constant 0 : i32
    return %c0_i32, %c0_i32_0 : i32, i32
  }
  func.func @transform_7(%arg0: i32) -> (i32, i32) {
    %c0_i32 = arith.constant 0 : i32
    %c0_i32_0 = arith.constant 0 : i32
    %c0_i32_1 = arith.constant 0 : i32
    return %c0_i32, %c0_i32_0 : i32, i32
  }
  func.func @transform_8(%arg0: i32) -> (i32, i32) {
    %c0_i32 = arith.constant 0 : i32
    %c0_i32_0 = arith.constant 0 : i32
    %c0_i32_1 = arith.constant 0 : i32
    return %c0_i32, %c0_i32_0 : i32, i32
  }
  func.func @transform_9(%arg0: i32) -> (i32, i32) {
    %c0_i32 = arith.constant 0 : i32
    %c0_i32_0 = arith.constant 0 : i32
    %c0_i32_1 = arith.constant 0 : i32
    return %c0_i32, %c0_i32_0 : i32, i32
  }
  func.func @transform_10(%arg0: i32) -> (i32, i32) {
    %c0_i32 = arith.constant 0 : i32
    %c0_i32_0 = arith.constant 0 : i32
    %c0_i32_1 = arith.constant 0 : i32
    return %c0_i32, %c0_i32_0 : i32, i32
  }
  func.func @transform_11(%arg0: i32) -> (i32, i32) {
    %c0_i32 = arith.constant 0 : i32
    %c0_i32_0 = arith.constant 0 : i32
    %c0_i32_1 = arith.constant 0 : i32
    return %c0_i32, %c0_i32_0 : i32, i32
  }
  func.func @transform_12(%arg0: i32) -> (i32, i32) {
    %c0_i32 = arith.constant 0 : i32
    %c0_i32_0 = arith.constant 0 : i32
    %c0_i32_1 = arith.constant 0 : i32
    return %c0_i32, %c0_i32_0 : i32, i32
  }
  func.func @transform_13(%arg0: i32) -> (i32, i32) {
    %c0_i32 = arith.constant 0 : i32
    %c0_i32_0 = arith.constant 0 : i32
    %c0_i32_1 = arith.constant 0 : i32
    return %c0_i32, %c0_i32_0 : i32, i32
  }
  func.func @transform_14(%arg0: i32) -> (i32, i32, i32) {
    %c0_i32 = arith.constant 0 : i32
    %c0_i32_0 = arith.constant 0 : i32
    %c0_i32_1 = arith.constant 0 : i32
    return %arg0, %c0_i32, %c0_i32_0 : i32, i32, i32
  }
}

</mosaic_0001>

<llo_original>
// kernel: simclr_forward.1
$region0: #{simclr_forward.1}
  #allocation0 [shape = 'u32[]', space=smem, size = 0x4, offset = 0x4, fixed_abs, tag = 'smem constant byte address 0x4 - core index']
  #allocation1 [shape = 'u32[72,128]{1,0:T(1,128)}', space=vmem, size = 0x9000, scoped, tag = 'internal scratch']
  #allocation2 [shape = 'bf16[18,18,128]{2,1,0:T(8,128)(2,1)}', space=vmem, size = 0x1b000, scoped, tag = 'scratch operand']
  #allocation3 [shape = 'bf16[256,1152]{1,0:T(8,128)(2,1)}', space=vmem, size = 0x90000, scoped, tag = 'scratch operand']
  #allocation4 [shape = 'f32[256,128]{1,0:T(8,128)}', space=vmem, size = 0x20000, scoped, tag = 'scratch operand']
  %s0 = inlined_call_operand.vmem [shape: bf16[2,256,128], index: 0, kind: input, shape index: {}]
  %s1 = inlined_call_operand.vmem [shape: bf16[128,128], index: 1, kind: input, shape index: {}]
  %s2 = inlined_call_operand.vmem [shape: f32[1,128], index: 2, kind: input, shape index: {}]
  %s3 = inlined_call_operand.vmem [shape: f32[1,128], index: 3, kind: input, shape index: {}]
  %s4 = inlined_call_operand.vmem [shape: bf16[1152,128], index: 4, kind: input, shape index: {}]
  %s5 = inlined_call_operand.vmem [shape: f32[1,128], index: 5, kind: input, shape index: {}]
  %s6 = inlined_call_operand.vmem [shape: f32[1,128], index: 6, kind: input, shape index: {}]
  %s7 = inlined_call_operand.vmem [shape: bf16[1152,128], index: 7, kind: input, shape index: {}]
  %s8 = inlined_call_operand.vmem [shape: f32[1,128], index: 8, kind: input, shape index: {}]
  %s9 = inlined_call_operand.vmem [shape: f32[1,128], index: 9, kind: input, shape index: {}]
  %s10 = inlined_call_operand.vmem [shape: bf16[128,128], index: 10, kind: input, shape index: {}]
  %s11 = inlined_call_operand.vmem [shape: f32[1,128], index: 11, kind: input, shape index: {}]
  %s12 = inlined_call_operand.vmem [shape: bf16[128,128], index: 12, kind: input, shape index: {}]
  %s13 = inlined_call_operand.vmem [shape: f32[1,128], index: 13, kind: input, shape index: {}]
  %s14 = inlined_call_operand.hbm [shape: f32[2,1,128], index: 14, kind: output, shape index: {}]
  %s15 = sld [smem:[#allocation0]]
  $region89: #{simclr_forward.1} parent=0
    _
  %s17 = ssub.s32 1, %s15
  %s18 = scalar_select 0, %s17, %s15
  $region1: #{simclr_forward.1} parent=0
    #allocation5 [shape = 'u8[1024]{0}', space=vmem, size = 0x400, scoped, tag = 'output window, operand 0']
    #allocation6 [shape = 's32[2]{0}', space=sflag, size = 0x8, scoped, tag = 'scoped memory for simclr_forward.1']
    %19 = vsyncpa [#allocation6], 0
    %s20 = scalar_lea.sflag [#allocation6], 1
    %21 = vsyncpa %s20, 0
    loop: start=0, step=1, limit=4
    $region2: #{simclr_forward.1} parent=1 // loop_pre_header
      _
    $region3: #{simclr_forward.1} parent=1 // loop_header
      %s23 = sphi 0, %s27
      %p24 = scmp.ge.s32.totalorder %s23, 4
      %s33 = sphi 0, %s35
      %s36 = sphi 0, %s33
      %s37 = sphi 0, %s36
      %s53 = sphi 0, %s37
      %s57 = sphi 0, %s57
      %s59 = sphi 0, %s57
      %s60 = sphi 0, %s59
      %s74 = sphi 0, %s60
      %s78 = sphi 0, %s78
      %s80 = sphi 0, %s78
      %s81 = sphi 0, %s80
      %s95 = sphi 0, %s81
      %s99 = sphi 0, %s99
      %s101 = sphi 0, %s99
      %s102 = sphi 0, %s101
      %s116 = sphi 0, %s102
      %s120 = sphi 0, %s120
      %s122 = sphi 0, %s120
      %s123 = sphi 0, %s122
      %s137 = sphi 0, %s123
      %s141 = sphi 0, %s141
      %s143 = sphi 0, %s141
      %s144 = sphi 0, %s143
      %s158 = sphi 0, %s144
      %s162 = sphi 0, %s162
      %s164 = sphi 0, %s162
      %s165 = sphi 0, %s164
      %s179 = sphi 0, %s165
      %s183 = sphi 0, %s183
      %s185 = sphi 0, %s183
      %s186 = sphi 0, %s185
      %s200 = sphi 0, %s186
      %s204 = sphi 0, %s204
      %s206 = sphi 0, %s204
      %s207 = sphi 0, %s206
      %s221 = sphi 0, %s207
      %s225 = sphi 0, %s225
      %s227 = sphi 0, %s225
      %s228 = sphi 0, %s227
      %s242 = sphi 0, %s228
      %s246 = sphi 0, %s246
      %s248 = sphi 0, %s246
      %s249 = sphi 0, %s248
      %s263 = sphi 0, %s249
      %s267 = sphi 0, %s267
      %s269 = sphi 0, %s267
      %s270 = sphi 0, %s269
      %s284 = sphi 0, %s270
      %s288 = sphi 0, %s288
      %s290 = sphi 0, %s288
      %s291 = sphi 0, %s290
      %s305 = sphi 0, %s291
      %s309 = sphi 0, %s309
      %s311 = sphi 0, %s309
      %s312 = sphi 0, %s311
      %s326 = sphi 0, %s312
      %s332 = sphi 0, %s334
      %s335 = sphi 0, %s332
      %s336 = sphi 0, %s335
      %s352 = sphi 0, %s336
    $region4: #{simclr_forward.1} parent=1 // loop_header_branch
      %26 = sbr.rel (%p24) target = $region8
    $region5: #{simclr_forward.1} parent=1 // loop_body
      %s28 = ssub.s32 %s23, 1
      %s29 = ssub.s32 %s23, 2
      %s30 = sadd.s32 %s23, 1
      %s31 = ssub.s32 %s23, %s30
      %p32 = scmp.eq.s32.totalorder %s31, 0
      %s34 = sadd.s32 %s33, 1
      %s35 = scalar_select %p32, %s33, %s34
      %p38 = pneg %p32
      %p39 = scmp.eq.s32.totalorder %s23, 1
      %p40 = por %p38, %p39
      %p41 = scmp.ne.s32.totalorder %s33, %s36
      %p42 = scmp.eq.s32.totalorder %s23, 0
      %p43 = por %p41, %p42
      %p44 = scmp.ne.s32.totalorder %s33, %s36
      %p45 = scmp.eq.s32.totalorder %s28, 1
      %p46 = por %p44, %p45
      %p47 = scmp.ne.s32.totalorder %s36, %s37
      %p48 = scmp.eq.s32.totalorder %s28, 0
      %p49 = por %p47, %p48
      %p50 = scmp.ne.s32.totalorder %s36, %s37
      %p51 = scmp.eq.s32.totalorder %s29, 1
      %p52 = por %p50, %p51
      %p54 = scmp.ne.s32.totalorder %s37, %s53
      %p55 = scmp.eq.s32.totalorder %s29, 0
      %p56 = por %p54, %p55
      %s58 = sadd.s32 %s57, 1
      %p61 = scmp.eq.s32.totalorder %s23, 1
      %p62 = scmp.ne.s32.totalorder %s57, %s59
      %p63 = scmp.eq.s32.totalorder %s23, 0
      %p64 = por %p62, %p63
      %p65 = scmp.ne.s32.totalorder %s57, %s59
      %p66 = scmp.eq.s32.totalorder %s28, 1
      %p67 = por %p65, %p66
      %p68 = scmp.ne.s32.totalorder %s59, %s60
      %p69 = scmp.eq.s32.totalorder %s28, 0
      %p70 = por %p68, %p69
      %p71 = scmp.ne.s32.totalorder %s59, %s60
      %p72 = scmp.eq.s32.totalorder %s29, 1
      %p73 = por %p71, %p72
      %p75 = scmp.ne.s32.totalorder %s60, %s74
      %p76 = scmp.eq.s32.totalorder %s29, 0
      %p77 = por %p75, %p76
      %s79 = sadd.s32 %s78, 1
      %p82 = scmp.eq.s32.totalorder %s23, 1
      %p83 = scmp.ne.s32.totalorder %s78, %s80
      %p84 = scmp.eq.s32.totalorder %s23, 0
      %p85 = por %p83, %p84
      %p86 = scmp.ne.s32.totalorder %s78, %s80
      %p87 = scmp.eq.s32.totalorder %s28, 1
      %p88 = por %p86, %p87
      %p89 = scmp.ne.s32.totalorder %s80, %s81
      %p90 = scmp.eq.s32.totalorder %s28, 0
      %p91 = por %p89, %p90
      %p92 = scmp.ne.s32.totalorder %s80, %s81
      %p93 = scmp.eq.s32.totalorder %s29, 1
      %p94 = por %p92, %p93
      %p96 = scmp.ne.s32.totalorder %s81, %s95
      %p97 = scmp.eq.s32.totalorder %s29, 0
      %p98 = por %p96, %p97
      %s100 = sadd.s32 %s99, 1
      %p103 = scmp.eq.s32.totalorder %s23, 1
      %p104 = scmp.ne.s32.totalorder %s99, %s101
      %p105 = scmp.eq.s32.totalorder %s23, 0
      %p106 = por %p104, %p105
      %p107 = scmp.ne.s32.totalorder %s99, %s101
      %p108 = scmp.eq.s32.totalorder %s28, 1
      %p109 = por %p107, %p108
      %p110 = scmp.ne.s32.totalorder %s101, %s102
      %p111 = scmp.eq.s32.totalorder %s28, 0
      %p112 = por %p110, %p111
      %p113 = scmp.ne.s32.totalorder %s101, %s102
      %p114 = scmp.eq.s32.totalorder %s29, 1
      %p115 = por %p113, %p114
      %p117 = scmp.ne.s32.totalorder %s102, %s116
      %p118 = scmp.eq.s32.totalorder %s29, 0
      %p119 = por %p117, %p118
      %s121 = sadd.s32 %s120, 1
      %p124 = scmp.eq.s32.totalorder %s23, 1
      %p125 = scmp.ne.s32.totalorder %s120, %s122
      %p126 = scmp.eq.s32.totalorder %s23, 0
      %p127 = por %p125, %p126
      %p128 = scmp.ne.s32.totalorder %s120, %s122
      %p129 = scmp.eq.s32.totalorder %s28, 1
      %p130 = por %p128, %p129
      %p131 = scmp.ne.s32.totalorder %s122, %s123
      %p132 = scmp.eq.s32.totalorder %s28, 0
      %p133 = por %p131, %p132
      %p134 = scmp.ne.s32.totalorder %s122, %s123
      %p135 = scmp.eq.s32.totalorder %s29, 1
      %p136 = por %p134, %p135
      %p138 = scmp.ne.s32.totalorder %s123, %s137
      %p139 = scmp.eq.s32.totalorder %s29, 0
      %p140 = por %p138, %p139
      %s142 = sadd.s32 %s141, 1
      %p145 = scmp.eq.s32.totalorder %s23, 1
      %p146 = scmp.ne.s32.totalorder %s141, %s143
      %p147 = scmp.eq.s32.totalorder %s23, 0
      %p148 = por %p146, %p147
      %p149 = scmp.ne.s32.totalorder %s141, %s143
      %p150 = scmp.eq.s32.totalorder %s28, 1
      %p151 = por %p149, %p150
      %p152 = scmp.ne.s32.totalorder %s143, %s144
      %p153 = scmp.eq.s32.totalorder %s28, 0
      %p154 = por %p152, %p153
      %p155 = scmp.ne.s32.totalorder %s143, %s144
      %p156 = scmp.eq.s32.totalorder %s29, 1
      %p157 = por %p155, %p156
      %p159 = scmp.ne.s32.totalorder %s144, %s158
      %p160 = scmp.eq.s32.totalorder %s29, 0
      %p161 = por %p159, %p160
      %s163 = sadd.s32 %s162, 1
      %p166 = scmp.eq.s32.totalorder %s23, 1
      %p167 = scmp.ne.s32.totalorder %s162, %s164
      %p168 = scmp.eq.s32.totalorder %s23, 0
      %p169 = por %p167, %p168
      %p170 = scmp.ne.s32.totalorder %s162, %s164
      %p171 = scmp.eq.s32.totalorder %s28, 1
      %p172 = por %p170, %p171
      %p173 = scmp.ne.s32.totalorder %s164, %s165
      %p174 = scmp.eq.s32.totalorder %s28, 0
      %p175 = por %p173, %p174
      %p176 = scmp.ne.s32.totalorder %s164, %s165
      %p177 = scmp.eq.s32.totalorder %s29, 1
      %p178 = por %p176, %p177
      %p180 = scmp.ne.s32.totalorder %s165, %s179
      %p181 = scmp.eq.s32.totalorder %s29, 0
      %p182 = por %p180, %p181
      %s184 = sadd.s32 %s183, 1
      %p187 = scmp.eq.s32.totalorder %s23, 1
      %p188 = scmp.ne.s32.totalorder %s183, %s185
      %p189 = scmp.eq.s32.totalorder %s23, 0
      %p190 = por %p188, %p189
      %p191 = scmp.ne.s32.totalorder %s183, %s185
      %p192 = scmp.eq.s32.totalorder %s28, 1
      %p193 = por %p191, %p192
      %p194 = scmp.ne.s32.totalorder %s185, %s186
      %p195 = scmp.eq.s32.totalorder %s28, 0
      %p196 = por %p194, %p195
      %p197 = scmp.ne.s32.totalorder %s185, %s186
      %p198 = scmp.eq.s32.totalorder %s29, 1
      %p199 = por %p197, %p198
      %p201 = scmp.ne.s32.totalorder %s186, %s200
      %p202 = scmp.eq.s32.totalorder %s29, 0
      %p203 = por %p201, %p202
      %s205 = sadd.s32 %s204, 1
      %p208 = scmp.eq.s32.totalorder %s23, 1
      %p209 = scmp.ne.s32.totalorder %s204, %s206
      %p210 = scmp.eq.s32.totalorder %s23, 0
      %p211 = por %p209, %p210
      %p212 = scmp.ne.s32.totalorder %s204, %s206
      %p213 = scmp.eq.s32.totalorder %s28, 1
      %p214 = por %p212, %p213
      %p215 = scmp.ne.s32.totalorder %s206, %s207
      %p216 = scmp.eq.s32.totalorder %s28, 0
      %p217 = por %p215, %p216
      %p218 = scmp.ne.s32.totalorder %s206, %s207
      %p219 = scmp.eq.s32.totalorder %s29, 1
      %p220 = por %p218, %p219
      %p222 = scmp.ne.s32.totalorder %s207, %s221
      %p223 = scmp.eq.s32.totalorder %s29, 0
      %p224 = por %p222, %p223
      %s226 = sadd.s32 %s225, 1
      %p229 = scmp.eq.s32.totalorder %s23, 1
      %p230 = scmp.ne.s32.totalorder %s225, %s227
      %p231 = scmp.eq.s32.totalorder %s23, 0
      %p232 = por %p230, %p231
      %p233 = scmp.ne.s32.totalorder %s225, %s227
      %p234 = scmp.eq.s32.totalorder %s28, 1
      %p235 = por %p233, %p234
      %p236 = scmp.ne.s32.totalorder %s227, %s228
      %p237 = scmp.eq.s32.totalorder %s28, 0
      %p238 = por %p236, %p237
      %p239 = scmp.ne.s32.totalorder %s227, %s228
      %p240 = scmp.eq.s32.totalorder %s29, 1
      %p241 = por %p239, %p240
      %p243 = scmp.ne.s32.totalorder %s228, %s242
      %p244 = scmp.eq.s32.totalorder %s29, 0
      %p245 = por %p243, %p244
      %s247 = sadd.s32 %s246, 1
      %p250 = scmp.eq.s32.totalorder %s23, 1
      %p251 = scmp.ne.s32.totalorder %s246, %s248
      %p252 = scmp.eq.s32.totalorder %s23, 0
      %p253 = por %p251, %p252
      %p254 = scmp.ne.s32.totalorder %s246, %s248
      %p255 = scmp.eq.s32.totalorder %s28, 1
      %p256 = por %p254, %p255
      %p257 = scmp.ne.s32.totalorder %s248, %s249
      %p258 = scmp.eq.s32.totalorder %s28, 0
      %p259 = por %p257, %p258
      %p260 = scmp.ne.s32.totalorder %s248, %s249
      %p261 = scmp.eq.s32.totalorder %s29, 1
      %p262 = por %p260, %p261
      %p264 = scmp.ne.s32.totalorder %s249, %s263
      %p265 = scmp.eq.s32.totalorder %s29, 0
      %p266 = por %p264, %p265
      %s268 = sadd.s32 %s267, 1
      %p271 = scmp.eq.s32.totalorder %s23, 1
      %p272 = scmp.ne.s32.totalorder %s267, %s269
      %p273 = scmp.eq.s32.totalorder %s23, 0
      %p274 = por %p272, %p273
      %p275 = scmp.ne.s32.totalorder %s267, %s269
      %p276 = scmp.eq.s32.totalorder %s28, 1
      %p277 = por %p275, %p276
      %p278 = scmp.ne.s32.totalorder %s269, %s270
      %p279 = scmp.eq.s32.totalorder %s28, 0
      %p280 = por %p278, %p279
      %p281 = scmp.ne.s32.totalorder %s269, %s270
      %p282 = scmp.eq.s32.totalorder %s29, 1
      %p283 = por %p281, %p282
      %p285 = scmp.ne.s32.totalorder %s270, %s284
      %p286 = scmp.eq.s32.totalorder %s29, 0
      %p287 = por %p285, %p286
      %s289 = sadd.s32 %s288, 1
      %p292 = scmp.eq.s32.totalorder %s23, 1
      %p293 = scmp.ne.s32.totalorder %s288, %s290
      %p294 = scmp.eq.s32.totalorder %s23, 0
      %p295 = por %p293, %p294
      %p296 = scmp.ne.s32.totalorder %s288, %s290
      %p297 = scmp.eq.s32.totalorder %s28, 1
      %p298 = por %p296, %p297
      %p299 = scmp.ne.s32.totalorder %s290, %s291
      %p300 = scmp.eq.s32.totalorder %s28, 0
      %p301 = por %p299, %p300
      %p302 = scmp.ne.s32.totalorder %s290, %s291
      %p303 = scmp.eq.s32.totalorder %s29, 1
      %p304 = por %p302, %p303
      %p306 = scmp.ne.s32.totalorder %s291, %s305
      %p307 = scmp.eq.s32.totalorder %s29, 0
      %p308 = por %p306, %p307
      %s310 = sadd.s32 %s309, 1
      %p313 = scmp.eq.s32.totalorder %s23, 1
      %p314 = scmp.ne.s32.totalorder %s309, %s311
      %p315 = scmp.eq.s32.totalorder %s23, 0
      %p316 = por %p314, %p315
      %p317 = scmp.ne.s32.totalorder %s309, %s311
      %p318 = scmp.eq.s32.totalorder %s28, 1
      %p319 = por %p317, %p318
      %p320 = scmp.ne.s32.totalorder %s311, %s312
      %p321 = scmp.eq.s32.totalorder %s28, 0
      %p322 = por %p320, %p321
      %p323 = scmp.ne.s32.totalorder %s311, %s312
      %p324 = scmp.eq.s32.totalorder %s29, 1
      %p325 = por %p323, %p324
      %p327 = scmp.ne.s32.totalorder %s312, %s326
      %p328 = scmp.eq.s32.totalorder %s29, 0
      %p329 = por %p327, %p328
      %s330 = ssub.s32 %s23, %s30
      %p331 = scmp.eq.s32.totalorder %s330, 0
      %s333 = sadd.s32 %s332, 1
      %s334 = scalar_select %p331, %s332, %s333
      %p337 = pneg %p331
      %p338 = scmp.eq.s32.totalorder %s23, 1
      %p339 = por %p337, %p338
      %p340 = scmp.ne.s32.totalorder %s332, %s335
      %p341 = scmp.eq.s32.totalorder %s23, 0
      %p342 = por %p340, %p341
      %p343 = scmp.ne.s32.totalorder %s332, %s335
      %p344 = scmp.eq.s32.totalorder %s28, 1
      %p345 = por %p343, %p344
      %p346 = scmp.ne.s32.totalorder %s335, %s336
      %p347 = scmp.eq.s32.totalorder %s28, 0
      %p348 = por %p346, %p347
      %p349 = scmp.ne.s32.totalorder %s335, %s336
      %p350 = scmp.eq.s32.totalorder %s29, 1
      %p351 = por %p349, %p350
      %p353 = scmp.ne.s32.totalorder %s336, %s352
      %p354 = scmp.eq.s32.totalorder %s29, 0
      %p355 = por %p353, %p354
      %p356 = scmp.le.s32.totalorder 1, %s23
      %p357 = scmp.lt.s32.totalorder %s23, 3
      %p358 = pnand %p356, %p357
      %p359 = pneg %p358
      // Predicated region
      $region9: #{simclr_forward.1} parent=5 // pred_check
        _
      $region10: #{simclr_forward.1} parent=5 // pred_check_branch
        %361 = sbr.rel (%p358) target = $region12
      $region11: #{simclr_forward.1} parent=5 // pred_region
        %s362 = ssub.s32 %s23, 1
        // Predicated region
        $region13: #{simclr_forward.1} parent=11 // pred_check
          %p363 = pneg %p70
        $region14: #{simclr_forward.1} parent=11 // pred_check_branch
          %365 = sbr.rel (%p363) target = $region16
        $region15: #{simclr_forward.1} parent=11 // pred_region
          _
        $region16: #{simclr_forward.1} parent=11 // pred_fallthru
          _
        // Predicated region
        $region17: #{simclr_forward.1} parent=11 // pred_check
          %p366 = pneg %p91
        $region18: #{simclr_forward.1} parent=11 // pred_check_branch
          %368 = sbr.rel (%p366) target = $region20
        $region19: #{simclr_forward.1} parent=11 // pred_region
          _
        $region20: #{simclr_forward.1} parent=11 // pred_fallthru
          _
        // Predicated region
        $region21: #{simclr_forward.1} parent=11 // pred_check
          %p369 = pneg %p112
        $region22: #{simclr_forward.1} parent=11 // pred_check_branch
          %371 = sbr.rel (%p369) target = $region24
        $region23: #{simclr_forward.1} parent=11 // pred_region
          _
        $region24: #{simclr_forward.1} parent=11 // pred_fallthru
          _
        // Predicated region
        $region25: #{simclr_forward.1} parent=11 // pred_check
          %p372 = pneg %p133
        $region26: #{simclr_forward.1} parent=11 // pred_check_branch
          %374 = sbr.rel (%p372) target = $region28
        $region27: #{simclr_forward.1} parent=11 // pred_region
          _
        $region28: #{simclr_forward.1} parent=11 // pred_fallthru
          _
        // Predicated region
        $region29: #{simclr_forward.1} parent=11 // pred_check
          %p375 = pneg %p154
        $region30: #{simclr_forward.1} parent=11 // pred_check_branch
          %377 = sbr.rel (%p375) target = $region32
        $region31: #{simclr_forward.1} parent=11 // pred_region
          _
        $region32: #{simclr_forward.1} parent=11 // pred_fallthru
          _
        // Predicated region
        $region33: #{simclr_forward.1} parent=11 // pred_check
          %p378 = pneg %p175
        $region34: #{simclr_forward.1} parent=11 // pred_check_branch
          %380 = sbr.rel (%p378) target = $region36
        $region35: #{simclr_forward.1} parent=11 // pred_region
          _
        $region36: #{simclr_forward.1} parent=11 // pred_fallthru
          _
        // Predicated region
        $region37: #{simclr_forward.1} parent=11 // pred_check
          %p381 = pneg %p196
        $region38: #{simclr_forward.1} parent=11 // pred_check_branch
          %383 = sbr.rel (%p381) target = $region40
        $region39: #{simclr_forward.1} parent=11 // pred_region
          _
        $region40: #{simclr_forward.1} parent=11 // pred_fallthru
          _
        // Predicated region
        $region41: #{simclr_forward.1} parent=11 // pred_check
          %p384 = pneg %p217
        $region42: #{simclr_forward.1} parent=11 // pred_check_branch
          %386 = sbr.rel (%p384) target = $region44
        $region43: #{simclr_forward.1} parent=11 // pred_region
          _
        $region44: #{simclr_forward.1} parent=11 // pred_fallthru
          _
        // Predicated region
        $region45: #{simclr_forward.1} parent=11 // pred_check
          %p387 = pneg %p238
        $region46: #{simclr_forward.1} parent=11 // pred_check_branch
          %389 = sbr.rel (%p387) target = $region48
        $region47: #{simclr_forward.1} parent=11 // pred_region
          _
        $region48: #{simclr_forward.1} parent=11 // pred_fallthru
          _
        // Predicated region
        $region49: #{simclr_forward.1} parent=11 // pred_check
          %p390 = pneg %p259
        $region50: #{simclr_forward.1} parent=11 // pred_check_branch
          %392 = sbr.rel (%p390) target = $region52
        $region51: #{simclr_forward.1} parent=11 // pred_region
          _
        $region52: #{simclr_forward.1} parent=11 // pred_fallthru
          _
        // Predicated region
        $region53: #{simclr_forward.1} parent=11 // pred_check
          %p393 = pneg %p280
        $region54: #{simclr_forward.1} parent=11 // pred_check_branch
          %395 = sbr.rel (%p393) target = $region56
        $region55: #{simclr_forward.1} parent=11 // pred_region
          _
        $region56: #{simclr_forward.1} parent=11 // pred_fallthru
          _
        // Predicated region
        $region57: #{simclr_forward.1} parent=11 // pred_check
          %p396 = pneg %p301
        $region58: #{simclr_forward.1} parent=11 // pred_check_branch
          %398 = sbr.rel (%p396) target = $region60
        $region59: #{simclr_forward.1} parent=11 // pred_region
          _
        $region60: #{simclr_forward.1} parent=11 // pred_fallthru
          _
        // Predicated region
        $region61: #{simclr_forward.1} parent=11 // pred_check
          %p399 = pneg %p322
        $region62: #{simclr_forward.1} parent=11 // pred_check_branch
          %401 = sbr.rel (%p399) target = $region64
        $region63: #{simclr_forward.1} parent=11 // pred_region
          _
        $region64: #{simclr_forward.1} parent=11 // pred_fallthru
          _
      $region12: #{simclr_forward.1} parent=5 // pred_fallthru
        _
      %p402 = scmp.lt.s32.totalorder %s23, 2
      // Predicated region
      $region65: #{simclr_forward.1} parent=5 // pred_check
        %p403 = pneg %p402
      $region66: #{simclr_forward.1} parent=5 // pred_check_branch
        %405 = sbr.rel (%p403) target = $region68
      $region67: #{simclr_forward.1} parent=5 // pred_region
        // Predicated region
        $region69: #{simclr_forward.1} parent=67 // pred_check
          %p406 = pneg %p43
        $region70: #{simclr_forward.1} parent=67 // pred_check_branch
          %408 = sbr.rel (%p406) target = $region72
        $region71: #{simclr_forward.1} parent=67 // pred_region
          %p409 = scmp.lt.s32.totalorder %s23, 1
          %s410 = scalar_select %p409, %s23, 1
          %s411 = smul.addr %s410, 32
          %s412 = smul.addr %s411, 4
          %s413 = scalar_lea.vmem %s0, %s412
        $region72: #{simclr_forward.1} parent=67 // pred_fallthru
          _
      $region68: #{simclr_forward.1} parent=5 // pred_fallthru
        _
      %p414 = scmp.le.s32.totalorder 1, %s23
      %p415 = scmp.lt.s32.totalorder %s23, 3
      %p416 = pnand %p414, %p415
      %p417 = pneg %p416
      // Predicated region
      $region73: #{simclr_forward.1} parent=5 // pred_check
        _
      $region74: #{simclr_forward.1} parent=5 // pred_check_branch
        %419 = sbr.rel (%p416) target = $region76
      $region75: #{simclr_forward.1} parent=5 // pred_region
        %s420 = ssub.s32 %s23, 1
        %p421 = scmp.lt.s32.totalorder %s28, 1
        %s422 = scalar_select %p421, %s28, 1
        %s423 = smul.addr %s422, 32
        %s424 = smul.addr %s423, 4
        %s425 = scalar_lea.vmem %s0, %s424
        %p426 = pneg %p49
        %p427 = pneg %p46
        %p428 = pneg %p70
        %p429 = pneg %p67
        %p430 = pneg %p91
        %p431 = pneg %p88
        %p432 = pneg %p112
        %p433 = pneg %p109
        %p434 = pneg %p133
        %p435 = pneg %p130
        %p436 = pneg %p154
        %p437 = pneg %p151
        %p438 = pneg %p175
        %p439 = pneg %p172
        %p440 = pneg %p196
        %p441 = pneg %p193
        %p442 = pneg %p217
        %p443 = pneg %p214
        %p444 = pneg %p238
        %p445 = pneg %p235
        %p446 = pneg %p259
        %p447 = pneg %p256
        %p448 = pneg %p280
        %p449 = pneg %p277
        %p450 = pneg %p301
        %p451 = pneg %p298
        %p452 = pneg %p322
        %p453 = pneg %p319
        %p454 = pneg %p348
        %p455 = pneg %p345
        %s456 = sand.u32 %s335, 1
        %s457 = scalar_lea.sflag [#allocation6], %s456
        %s458 = sand.u32 %s335, 1
        %s459 = scalar_lea.vmem [#allocation5], %s458
        %p460 = scmp.lt.s32.totalorder %s28, 1
        %s461 = scalar_select %p460, %s28, 1
        %s462 = smul.addr %s461, 32
        %s463 = smul.addr %s462, 4
        %s464 = scalar_lea.vmem %s0, %s463
        %v466 = vld [vmem:[%s464] sm:$0xf]
        %v467 = vld [vmem:[%s464 + $0x4] sm:$0xf]
        %v468 = vld [vmem:[%s464 + $0x8] sm:$0xf]
        %v469 = vld [vmem:[%s464 + $0xc] sm:$0xf]
        %v470 = vld [vmem:[%s464 + $0x10] sm:$0xf]
        %v471 = vld [vmem:[%s464 + $0x14] sm:$0xf]
        %v472 = vld [vmem:[%s464 + $0x18] sm:$0xf]
        %v473 = vld [vmem:[%s464 + $0x1c] sm:$0xf]
        %v474 = vld [vmem:[%s464 + $0x20] sm:$0xf]
        %v475 = vld [vmem:[%s464 + $0x24] sm:$0xf]
        %v476 = vld [vmem:[%s464 + $0x28] sm:$0xf]
        %v477 = vld [vmem:[%s464 + $0x2c] sm:$0xf]
        %v478 = vld [vmem:[%s464 + $0x30] sm:$0xf]
        %v479 = vld [vmem:[%s464 + $0x34] sm:$0xf]
        %v480 = vld [vmem:[%s464 + $0x38] sm:$0xf]
        %v481 = vld [vmem:[%s464 + $0x3c] sm:$0xf]
        %v482 = vld [vmem:[%s464 + $0x40] sm:$0xf]
        %v483 = vld [vmem:[%s464 + $0x44] sm:$0xf]
        %v484 = vld [vmem:[%s464 + $0x48] sm:$0xf]
        %v485 = vld [vmem:[%s464 + $0x4c] sm:$0xf]
        %v486 = vld [vmem:[%s464 + $0x50] sm:$0xf]
        %v487 = vld [vmem:[%s464 + $0x54] sm:$0xf]
        %v488 = vld [vmem:[%s464 + $0x58] sm:$0xf]
        %v489 = vld [vmem:[%s464 + $0x5c] sm:$0xf]
        %v490 = vld [vmem:[%s464 + $0x60] sm:$0xf]
        %v491 = vld [vmem:[%s464 + $0x64] sm:$0xf]
        %v492 = vld [vmem:[%s464 + $0x68] sm:$0xf]
        %v493 = vld [vmem:[%s464 + $0x6c] sm:$0xf]
        %v494 = vld [vmem:[%s464 + $0x70] sm:$0xf]
        %v495 = vld [vmem:[%s464 + $0x74] sm:$0xf]
        %v496 = vld [vmem:[%s464 + $0x78] sm:$0xf]
        %v497 = vld [vmem:[%s464 + $0x7c] sm:$0xf]
        %v498 = vld [vmem:[%s1] sm:$0xf]
        %v499 = vld [vmem:[%s1 + $0x4] sm:$0xf]
        %v500 = vld [vmem:[%s1 + $0x8] sm:$0xf]
        %v501 = vld [vmem:[%s1 + $0xc] sm:$0xf]
        %v502 = vld [vmem:[%s1 + $0x10] sm:$0xf]
        %v503 = vld [vmem:[%s1 + $0x14] sm:$0xf]
        %v504 = vld [vmem:[%s1 + $0x18] sm:$0xf]
        %v505 = vld [vmem:[%s1 + $0x1c] sm:$0xf]
        %v506 = vld [vmem:[%s1 + $0x20] sm:$0xf]
        %v507 = vld [vmem:[%s1 + $0x24] sm:$0xf]
        %v508 = vld [vmem:[%s1 + $0x28] sm:$0xf]
        %v509 = vld [vmem:[%s1 + $0x2c] sm:$0xf]
        %v510 = vld [vmem:[%s1 + $0x30] sm:$0xf]
        %v511 = vld [vmem:[%s1 + $0x34] sm:$0xf]
        %v512 = vld [vmem:[%s1 + $0x38] sm:$0xf]
        %v513 = vld [vmem:[%s1 + $0x3c] sm:$0xf]
        %v546 = vunpack.c.l.b16 %v466
        %v547 = vunpack.c.l.b16 %v467
        %v548 = vunpack.c.l.b16 %v468
        %v549 = vunpack.c.l.b16 %v469
        %v550 = vunpack.c.l.b16 %v470
        %v551 = vunpack.c.l.b16 %v471
        %v552 = vunpack.c.l.b16 %v472
        %v553 = vunpack.c.l.b16 %v473
        %v554 = vunpack.c.l.b16 %v474
        %v555 = vunpack.c.l.b16 %v475
        %v556 = vunpack.c.l.b16 %v476
        %v557 = vunpack.c.l.b16 %v477
        %v558 = vunpack.c.l.b16 %v478
        %v559 = vunpack.c.l.b16 %v479
        %v560 = vunpack.c.l.b16 %v480
        %v561 = vunpack.c.l.b16 %v481
        %v562 = vunpack.c.l.b16 %v482
        %v563 = vunpack.c.l.b16 %v483
        %v564 = vunpack.c.l.b16 %v484
        %v565 = vunpack.c.l.b16 %v485
        %v566 = vunpack.c.l.b16 %v486
        %v567 = vunpack.c.l.b16 %v487
        %v568 = vunpack.c.l.b16 %v488
        %v569 = vunpack.c.l.b16 %v489
        %v570 = vunpack.c.l.b16 %v490
        %v571 = vunpack.c.l.b16 %v491
        %v572 = vunpack.c.l.b16 %v492
        %v573 = vunpack.c.l.b16 %v493
        %v574 = vunpack.c.l.b16 %v494
        %v575 = vunpack.c.l.b16 %v495
        %v576 = vunpack.c.l.b16 %v496
        %v577 = vunpack.c.l.b16 %v497
        %v578 = vpack.c.b16 %v547, %v546
        %v579 = vpack.c.b16 %v549, %v548
        %v580 = vpack.c.b16 %v551, %v550
        %v581 = vpack.c.b16 %v553, %v552
        %v582 = vpack.c.b16 %v555, %v554
        %v583 = vpack.c.b16 %v557, %v556
        %v584 = vpack.c.b16 %v559, %v558
        %v585 = vpack.c.b16 %v561, %v560
        %v586 = vpack.c.b16 %v563, %v562
        %v587 = vpack.c.b16 %v565, %v564
        %v588 = vpack.c.b16 %v567, %v566
        %v589 = vpack.c.b16 %v569, %v568
        %v590 = vpack.c.b16 %v571, %v570
        %v591 = vpack.c.b16 %v573, %v572
        %v592 = vpack.c.b16 %v575, %v574
        %v593 = vpack.c.b16 %v577, %v576
        %v626 = vunpack.c.l.b16 %v498
        %v627 = vunpack.c.l.b16 %v499
        %v628 = vunpack.c.l.b16 %v500
        %v629 = vunpack.c.l.b16 %v501
        %v630 = vunpack.c.l.b16 %v502
        %v631 = vunpack.c.l.b16 %v503
        %v632 = vunpack.c.l.b16 %v504
        %v633 = vunpack.c.l.b16 %v505
        %v634 = vunpack.c.l.b16 %v506
        %v635 = vunpack.c.l.b16 %v507
        %v636 = vunpack.c.l.b16 %v508
        %v637 = vunpack.c.l.b16 %v509
        %v638 = vunpack.c.l.b16 %v510
        %v639 = vunpack.c.l.b16 %v511
        %v640 = vunpack.c.l.b16 %v512
        %v641 = vunpack.c.l.b16 %v513
        %v642 = vpack.c.b16 %v627, %v626
        %v643 = vpack.c.b16 %v629, %v628
        %v644 = vpack.c.b16 %v631, %v630
        %v645 = vpack.c.b16 %v633, %v632
        %v646 = vpack.c.b16 %v635, %v634
        %v647 = vpack.c.b16 %v637, %v636
        %v648 = vpack.c.b16 %v639, %v638
        %v649 = vpack.c.b16 %v641, %v640
        %658 = vmatpush.bf16.msra.mxu0 %v649
        %659 = vmatpush.bf16.msra.mxu0 %v648
        %660 = vmatpush.bf16.msra.mxu0 %v647
        %661 = vmatpush.bf16.msra.mxu0 %v646
        %662 = vmatpush.bf16.msra.mxu0 %v645
        %663 = vmatpush.bf16.msra.mxu0 %v644
        %664 = vmatpush.bf16.msra.mxu0 %v643
        %665 = vmatpush.bf16.msra.mxu0 %v642
        %666 = vmatmul.bf16.gmra.mxu0 %v578
        %v667 = vpop.f32.mrf.mxu0
        %v668 = vadd.f32 0.0, %v667
        %v669 = vpop.f32.mrf.mxu0
        %v670 = vadd.f32 0.0, %v669
        %671 = vmatmul.bf16.gmra.mxu0 %v579
        %v672 = vpop.f32.mrf.mxu0
        %v673 = vadd.f32 0.0, %v672
        %v674 = vpop.f32.mrf.mxu0
        %v675 = vadd.f32 0.0, %v674
        %676 = vmatmul.bf16.gmra.mxu0 %v580
        %v677 = vpop.f32.mrf.mxu0
        %v678 = vadd.f32 0.0, %v677
        %v679 = vpop.f32.mrf.mxu0
        %v680 = vadd.f32 0.0, %v679
        %681 = vmatmul.bf16.gmra.mxu0 %v581
        %v682 = vpop.f32.mrf.mxu0
        %v683 = vadd.f32 0.0, %v682
        %v684 = vpop.f32.mrf.mxu0
        %v685 = vadd.f32 0.0, %v684
        %686 = vmatmul.bf16.gmra.mxu0 %v582
        %v687 = vpop.f32.mrf.mxu0
        %v688 = vadd.f32 0.0, %v687
        %v689 = vpop.f32.mrf.mxu0
        %v690 = vadd.f32 0.0, %v689
        %691 = vmatmul.bf16.gmra.mxu0 %v583
        %v692 = vpop.f32.mrf.mxu0
        %v693 = vadd.f32 0.0, %v692
        %v694 = vpop.f32.mrf.mxu0
        %v695 = vadd.f32 0.0, %v694
        %696 = vmatmul.bf16.gmra.mxu0 %v584
        %v697 = vpop.f32.mrf.mxu0
        %v698 = vadd.f32 0.0, %v697
        %v699 = vpop.f32.mrf.mxu0
        %v700 = vadd.f32 0.0, %v699
        %701 = vmatmul.bf16.gmra.mxu0 %v585
        %v702 = vpop.f32.mrf.mxu0
        %v703 = vadd.f32 0.0, %v702
        %v704 = vpop.f32.mrf.mxu0
        %v705 = vadd.f32 0.0, %v704
        %706 = vmatmul.bf16.gmra.mxu0 %v586
        %v707 = vpop.f32.mrf.mxu0
        %v708 = vadd.f32 0.0, %v707
        %v709 = vpop.f32.mrf.mxu0
        %v710 = vadd.f32 0.0, %v709
        %711 = vmatmul.bf16.gmra.mxu0 %v587
        %v712 = vpop.f32.mrf.mxu0
        %v713 = vadd.f32 0.0, %v712
        %v714 = vpop.f32.mrf.mxu0
        %v715 = vadd.f32 0.0, %v714
        %716 = vmatmul.bf16.gmra.mxu0 %v588
        %v717 = vpop.f32.mrf.mxu0
        %v718 = vadd.f32 0.0, %v717
        %v719 = vpop.f32.mrf.mxu0
        %v720 = vadd.f32 0.0, %v719
        %721 = vmatmul.bf16.gmra.mxu0 %v589
        %v722 = vpop.f32.mrf.mxu0
        %v723 = vadd.f32 0.0, %v722
        %v724 = vpop.f32.mrf.mxu0
        %v725 = vadd.f32 0.0, %v724
        %726 = vmatmul.bf16.gmra.mxu0 %v590
        %v727 = vpop.f32.mrf.mxu0
        %v728 = vadd.f32 0.0, %v727
        %v729 = vpop.f32.mrf.mxu0
        %v730 = vadd.f32 0.0, %v729
        %731 = vmatmul.bf16.gmra.mxu0 %v591
        %v732 = vpop.f32.mrf.mxu0
        %v733 = vadd.f32 0.0, %v732
        %v734 = vpop.f32.mrf.mxu0
        %v735 = vadd.f32 0.0, %v734
        %736 = vmatmul.bf16.gmra.mxu0 %v592
        %v737 = vpop.f32.mrf.mxu0
        %v738 = vadd.f32 0.0, %v737
        %v739 = vpop.f32.mrf.mxu0
        %v740 = vadd.f32 0.0, %v739
        %741 = vmatmul.bf16.gmra.mxu0 %v593
        %v742 = vpop.f32.mrf.mxu0
        %v743 = vadd.f32 0.0, %v742
        %v744 = vpop.f32.mrf.mxu0
        %v745 = vadd.f32 0.0, %v744
        %746 = vdwg.mxu0
        %v747 = vld [vmem:[%s2] sm:$0x1]
        %v749 = vperm.slane %v747, 0
        %v751 = vmul.f32 %v668, %v749
        %v752 = vmul.f32 %v670, %v749
        %v753 = vmul.f32 %v673, %v749
        %v754 = vmul.f32 %v675, %v749
        %v755 = vmul.f32 %v678, %v749
        %v756 = vmul.f32 %v680, %v749
        %v757 = vmul.f32 %v683, %v749
        %v758 = vmul.f32 %v685, %v749
        %v759 = vmul.f32 %v688, %v749
        %v760 = vmul.f32 %v690, %v749
        %v761 = vmul.f32 %v693, %v749
        %v762 = vmul.f32 %v695, %v749
        %v763 = vmul.f32 %v698, %v749
        %v764 = vmul.f32 %v700, %v749
        %v765 = vmul.f32 %v703, %v749
        %v766 = vmul.f32 %v705, %v749
        %v767 = vmul.f32 %v708, %v749
        %v768 = vmul.f32 %v710, %v749
        %v769 = vmul.f32 %v713, %v749
        %v770 = vmul.f32 %v715, %v749
        %v771 = vmul.f32 %v718, %v749
        %v772 = vmul.f32 %v720, %v749
        %v773 = vmul.f32 %v723, %v749
        %v774 = vmul.f32 %v725, %v749
        %v775 = vmul.f32 %v728, %v749
        %v776 = vmul.f32 %v730, %v749
        %v777 = vmul.f32 %v733, %v749
        %v778 = vmul.f32 %v735, %v749
        %v779 = vmul.f32 %v738, %v749
        %v780 = vmul.f32 %v740, %v749
        %v781 = vmul.f32 %v743, %v749
        %v782 = vmul.f32 %v745, %v749
        %v783 = vld [vmem:[%s3] sm:$0x1]
        %v785 = vperm.slane %v783, 0
        %v787 = vadd.f32 %v751, %v785
        %v788 = vadd.f32 %v752, %v785
        %v789 = vadd.f32 %v753, %v785
        %v790 = vadd.f32 %v754, %v785
        %v791 = vadd.f32 %v755, %v785
        %v792 = vadd.f32 %v756, %v785
        %v793 = vadd.f32 %v757, %v785
        %v794 = vadd.f32 %v758, %v785
        %v795 = vadd.f32 %v759, %v785
        %v796 = vadd.f32 %v760, %v785
        %v797 = vadd.f32 %v761, %v785
        %v798 = vadd.f32 %v762, %v785
        %v799 = vadd.f32 %v763, %v785
        %v800 = vadd.f32 %v764, %v785
        %v801 = vadd.f32 %v765, %v785
        %v802 = vadd.f32 %v766, %v785
        %v803 = vadd.f32 %v767, %v785
        %v804 = vadd.f32 %v768, %v785
        %v805 = vadd.f32 %v769, %v785
        %v806 = vadd.f32 %v770, %v785
        %v807 = vadd.f32 %v771, %v785
        %v808 = vadd.f32 %v772, %v785
        %v809 = vadd.f32 %v773, %v785
        %v810 = vadd.f32 %v774, %v785
        %v811 = vadd.f32 %v775, %v785
        %v812 = vadd.f32 %v776, %v785
        %v813 = vadd.f32 %v777, %v785
        %v814 = vadd.f32 %v778, %v785
        %v815 = vadd.f32 %v779, %v785
        %v816 = vadd.f32 %v780, %v785
        %v817 = vadd.f32 %v781, %v785
        %v818 = vadd.f32 %v782, %v785
        %v819 = vmax.f32 %v787, 0.0
        %v820 = vmax.f32 %v788, 0.0
        %v821 = vmax.f32 %v789, 0.0
        %v822 = vmax.f32 %v790, 0.0
        %v823 = vmax.f32 %v791, 0.0
        %v824 = vmax.f32 %v792, 0.0
        %v825 = vmax.f32 %v793, 0.0
        %v826 = vmax.f32 %v794, 0.0
        %v827 = vmax.f32 %v795, 0.0
        %v828 = vmax.f32 %v796, 0.0
        %v829 = vmax.f32 %v797, 0.0
        %v830 = vmax.f32 %v798, 0.0
        %v831 = vmax.f32 %v799, 0.0
        %v832 = vmax.f32 %v800, 0.0
        %v833 = vmax.f32 %v801, 0.0
        %v834 = vmax.f32 %v802, 0.0
        %v835 = vmax.f32 %v803, 0.0
        %v836 = vmax.f32 %v804, 0.0
        %v837 = vmax.f32 %v805, 0.0
        %v838 = vmax.f32 %v806, 0.0
        %v839 = vmax.f32 %v807, 0.0
        %v840 = vmax.f32 %v808, 0.0
        %v841 = vmax.f32 %v809, 0.0
        %v842 = vmax.f32 %v810, 0.0
        %v843 = vmax.f32 %v811, 0.0
        %v844 = vmax.f32 %v812, 0.0
        %v845 = vmax.f32 %v813, 0.0
        %v846 = vmax.f32 %v814, 0.0
        %v847 = vmax.f32 %v815, 0.0
        %v848 = vmax.f32 %v816, 0.0
        %v849 = vmax.f32 %v817, 0.0
        %v850 = vmax.f32 %v818, 0.0
        %851 = vst [vmem:[#allocation4] sm:$0xff] %v819
        %852 = vst [vmem:[#allocation4 + $0x8] sm:$0xff] %v820
        %853 = vst [vmem:[#allocation4 + $0x10] sm:$0xff] %v821
        %854 = vst [vmem:[#allocation4 + $0x18] sm:$0xff] %v822
        %855 = vst [vmem:[#allocation4 + $0x20] sm:$0xff] %v823
        %856 = vst [vmem:[#allocation4 + $0x28] sm:$0xff] %v824
        %857 = vst [vmem:[#allocation4 + $0x30] sm:$0xff] %v825
        %858 = vst [vmem:[#allocation4 + $0x38] sm:$0xff] %v826
        %859 = vst [vmem:[#allocation4 + $0x40] sm:$0xff] %v827
        %860 = vst [vmem:[#allocation4 + $0x48] sm:$0xff] %v828
        %861 = vst [vmem:[#allocation4 + $0x50] sm:$0xff] %v829
        %862 = vst [vmem:[#allocation4 + $0x58] sm:$0xff] %v830
        %863 = vst [vmem:[#allocation4 + $0x60] sm:$0xff] %v831
        %864 = vst [vmem:[#allocation4 + $0x68] sm:$0xff] %v832
        %865 = vst [vmem:[#allocation4 + $0x70] sm:$0xff] %v833
        %866 = vst [vmem:[#allocation4 + $0x78] sm:$0xff] %v834
        %867 = vst [vmem:[#allocation4 + $0x80] sm:$0xff] %v835
        %868 = vst [vmem:[#allocation4 + $0x88] sm:$0xff] %v836
        %869 = vst [vmem:[#allocation4 + $0x90] sm:$0xff] %v837
        %870 = vst [vmem:[#allocation4 + $0x98] sm:$0xff] %v838
        %871 = vst [vmem:[#allocation4 + $0xa0] sm:$0xff] %v839
        %872 = vst [vmem:[#allocation4 + $0xa8] sm:$0xff] %v840
        %873 = vst [vmem:[#allocation4 + $0xb0] sm:$0xff] %v841
        %874 = vst [vmem:[#allocation4 + $0xb8] sm:$0xff] %v842
        %875 = vst [vmem:[#allocation4 + $0xc0] sm:$0xff] %v843
        %876 = vst [vmem:[#allocation4 + $0xc8] sm:$0xff] %v844
        %877 = vst [vmem:[#allocation4 + $0xd0] sm:$0xff] %v845
        %878 = vst [vmem:[#allocation4 + $0xd8] sm:$0xff] %v846
        %879 = vst [vmem:[#allocation4 + $0xe0] sm:$0xff] %v847
        %880 = vst [vmem:[#allocation4 + $0xe8] sm:$0xff] %v848
        %881 = vst [vmem:[#allocation4 + $0xf0] sm:$0xff] %v849
        %882 = vst [vmem:[#allocation4 + $0xf8] sm:$0xff] %v850
        %883 = vst [vmem:[#allocation2] sm:$0xf] 0
        %884 = vst [vmem:[#allocation2 + $0x4] sm:$0xf] 0
        %885 = vst [vmem:[#allocation2 + $0x8] sm:$0x1] 0
        %886 = vst [vmem:[#allocation2 + $0xc] sm:$0xf] 0
        %887 = vst [vmem:[#allocation2 + $0x10] sm:$0xf] 0
        %888 = vst [vmem:[#allocation2 + $0x14] sm:$0x1] 0
        %889 = vst [vmem:[#allocation2 + $0x18] sm:$0xf] 0
        %890 = vst [vmem:[#allocation2 + $0x1c] sm:$0xf] 0
        %891 = vst [vmem:[#allocation2 + $0x20] sm:$0x1] 0
        %892 = vst [vmem:[#allocation2 + $0x24] sm:$0xf] 0
        %893 = vst [vmem:[#allocation2 + $0x28] sm:$0xf] 0
        %894 = vst [vmem:[#allocation2 + $0x2c] sm:$0x1] 0
        %895 = vst [vmem:[#allocation2 + $0x30] sm:$0xf] 0
        %896 = vst [vmem:[#allocation2 + $0x34] sm:$0xf] 0
        %897 = vst [vmem:[#allocation2 + $0x38] sm:$0x1] 0
        %898 = vst [vmem:[#allocation2 + $0x3c] sm:$0xf] 0
        %899 = vst [vmem:[#allocation2 + $0x40] sm:$0xf] 0
        %900 = vst [vmem:[#allocation2 + $0x44] sm:$0x1] 0
        %901 = vst [vmem:[#allocation2 + $0x48] sm:$0xf] 0
        %902 = vst [vmem:[#allocation2 + $0x4c] sm:$0xf] 0
        %903 = vst [vmem:[#allocation2 + $0x50] sm:$0x1] 0
        %904 = vst [vmem:[#allocation2 + $0x54] sm:$0xf] 0
        %905 = vst [vmem:[#allocation2 + $0x58] sm:$0xf] 0
        %906 = vst [vmem:[#allocation2 + $0x5c] sm:$0x1] 0
        %907 = vst [vmem:[#allocation2 + $0x60] sm:$0xf] 0
        %908 = vst [vmem:[#allocation2 + $0x64] sm:$0xf] 0
        %909 = vst [vmem:[#allocation2 + $0x68] sm:$0x1] 0
        %910 = vst [vmem:[#allocation2 + $0x6c] sm:$0xf] 0
        %911 = vst [vmem:[#allocation2 + $0x70] sm:$0xf] 0
        %912 = vst [vmem:[#allocation2 + $0x74] sm:$0x1] 0
        %913 = vst [vmem:[#allocation2 + $0x78] sm:$0xf] 0
        %914 = vst [vmem:[#allocation2 + $0x7c] sm:$0xf] 0
        %915 = vst [vmem:[#allocation2 + $0x80] sm:$0x1] 0
        %916 = vst [vmem:[#allocation2 + $0x84] sm:$0xf] 0
        %917 = vst [vmem:[#allocation2 + $0x88] sm:$0xf] 0
        %918 = vst [vmem:[#allocation2 + $0x8c] sm:$0x1] 0
        %919 = vst [vmem:[#allocation2 + $0x90] sm:$0xf] 0
        %920 = vst [vmem:[#allocation2 + $0x94] sm:$0xf] 0
        %921 = vst [vmem:[#allocation2 + $0x98] sm:$0x1] 0
        %922 = vst [vmem:[#allocation2 + $0x9c] sm:$0xf] 0
        %923 = vst [vmem:[#allocation2 + $0xa0] sm:$0xf] 0
        %924 = vst [vmem:[#allocation2 + $0xa4] sm:$0x1] 0
        %925 = vst [vmem:[#allocation2 + $0xa8] sm:$0xf] 0
        %926 = vst [vmem:[#allocation2 + $0xac] sm:$0xf] 0
        %927 = vst [vmem:[#allocation2 + $0xb0] sm:$0x1] 0
        %928 = vst [vmem:[#allocation2 + $0xb4] sm:$0xf] 0
        %929 = vst [vmem:[#allocation2 + $0xb8] sm:$0xf] 0
        %930 = vst [vmem:[#allocation2 + $0xbc] sm:$0x1] 0
        %931 = vst [vmem:[#allocation2 + $0xc0] sm:$0xf] 0
        %932 = vst [vmem:[#allocation2 + $0xc4] sm:$0xf] 0
        %933 = vst [vmem:[#allocation2 + $0xc8] sm:$0x1] 0
        %934 = vst [vmem:[#allocation2 + $0xcc] sm:$0xf] 0
        %935 = vst [vmem:[#allocation2 + $0xd0] sm:$0xf] 0
        %936 = vst [vmem:[#allocation2 + $0xd4] sm:$0x1] 0
        %v937 = vpack.c.bf16 %v819, %v819
        %v938 = vpack.c.bf16 %v820, %v820
        %v939 = vpack.c.bf16 %v821, %v821
        %v940 = vpack.c.bf16 %v822, %v822
        %v941 = vpack.c.bf16 %v823, %v823
        %v942 = vpack.c.bf16 %v824, %v824
        %v943 = vpack.c.bf16 %v825, %v825
        %v944 = vpack.c.bf16 %v826, %v826
        %v945 = vpack.c.bf16 %v827, %v827
        %v946 = vpack.c.bf16 %v828, %v828
        %v947 = vpack.c.bf16 %v829, %v829
        %v948 = vpack.c.bf16 %v830, %v830
        %v949 = vpack.c.bf16 %v831, %v831
        %v950 = vpack.c.bf16 %v832, %v832
        %v951 = vpack.c.bf16 %v833, %v833
        %v952 = vpack.c.bf16 %v834, %v834
        %v953 = vpack.c.bf16 %v835, %v835
        %v954 = vpack.c.bf16 %v836, %v836
        %v955 = vpack.c.bf16 %v837, %v837
        %v956 = vpack.c.bf16 %v838, %v838
        %v957 = vpack.c.bf16 %v839, %v839
        %v958 = vpack.c.bf16 %v840, %v840
        %v959 = vpack.c.bf16 %v841, %v841
        %v960 = vpack.c.bf16 %v842, %v842
        %v961 = vpack.c.bf16 %v843, %v843
        %v962 = vpack.c.bf16 %v844, %v844
        %v963 = vpack.c.bf16 %v845, %v845
        %v964 = vpack.c.bf16 %v846, %v846
        %v965 = vpack.c.bf16 %v847, %v847
        %v966 = vpack.c.bf16 %v848, %v848
        %v967 = vpack.c.bf16 %v849, %v849
        %v968 = vpack.c.bf16 %v850, %v850
        %vm969 = vsmask.f32 256
        %vm970 = vsmask.f32 4368
        %vm971 = vmor %vm969, %vm970
        %v973 = vshrl.u32 %v937, 16
        %v975 = vrot.slane %v973, 7
        %v976 = vshll.u32 %v937, 16
        %v978 = vor.u32 %v975, %v976
        %v979 = vrot.slane %v975, 4
        %v981 = vshrl.u32 %v938, 16
        %v983 = vrot.slane %v981, 7
        %v984 = vshll.u32 %v938, 16
        %v986 = vor.u32 %v983, %v984
        %v987 = vsel %vm971, %v979, %v986
        %v988 = vrot.slane %v983, 4
        %v990 = vshrl.u32 %v939, 16
        %v992 = vrot.slane %v990, 7
        %v993 = vshll.u32 %v939, 16
        %v995 = vor.u32 %v992, %v993
        %v996 = vrot.slane %v992, 4
        %v998 = vshrl.u32 %v940, 16
        %v1000 = vrot.slane %v998, 7
        %v1001 = vshll.u32 %v940, 16
        %v1003 = vor.u32 %v1000, %v1001
        %v1004 = vsel %vm971, %v996, %v1003
        %v1005 = vrot.slane %v1000, 4
        %v1007 = vshrl.u32 %v941, 16
        %v1009 = vrot.slane %v1007, 7
        %v1010 = vshll.u32 %v941, 16
        %v1012 = vor.u32 %v1009, %v1010
        %v1013 = vrot.slane %v1009, 4
        %v1015 = vshrl.u32 %v942, 16
        %v1017 = vrot.slane %v1015, 7
        %v1018 = vshll.u32 %v942, 16
        %v1020 = vor.u32 %v1017, %v1018
        %v1021 = vsel %vm971, %v1013, %v1020
        %v1022 = vrot.slane %v1017, 4
        %v1024 = vshrl.u32 %v943, 16
        %v1026 = vrot.slane %v1024, 7
        %v1027 = vshll.u32 %v943, 16
        %v1029 = vor.u32 %v1026, %v1027
        %v1030 = vrot.slane %v1026, 4
        %v1032 = vshrl.u32 %v944, 16
        %v1034 = vrot.slane %v1032, 7
        %v1035 = vshll.u32 %v944, 16
        %v1037 = vor.u32 %v1034, %v1035
        %v1038 = vsel %vm971, %v1030, %v1037
        %v1039 = vrot.slane %v1034, 4
        %v1041 = vshrl.u32 %v945, 16
        %v1043 = vrot.slane %v1041, 7
        %v1044 = vshll.u32 %v945, 16
        %v1046 = vor.u32 %v1043, %v1044
        %v1047 = vrot.slane %v1043, 4
        %v1049 = vshrl.u32 %v946, 16
        %v1051 = vrot.slane %v1049, 7
        %v1052 = vshll.u32 %v946, 16
        %v1054 = vor.u32 %v1051, %v1052
        %v1055 = vsel %vm971, %v1047, %v1054
        %v1056 = vrot.slane %v1051, 4
        %v1058 = vshrl.u32 %v947, 16
        %v1060 = vrot.slane %v1058, 7
        %v1061 = vshll.u32 %v947, 16
        %v1063 = vor.u32 %v1060, %v1061
        %v1064 = vrot.slane %v1060, 4
        %v1066 = vshrl.u32 %v948, 16
        %v1068 = vrot.slane %v1066, 7
        %v1069 = vshll.u32 %v948, 16
        %v1071 = vor.u32 %v1068, %v1069
        %v1072 = vsel %vm971, %v1064, %v1071
        %v1073 = vrot.slane %v1068, 4
        %v1075 = vshrl.u32 %v949, 16
        %v1077 = vrot.slane %v1075, 7
        %v1078 = vshll.u32 %v949, 16
        %v1080 = vor.u32 %v1077, %v1078
        %v1081 = vrot.slane %v1077, 4
        %v1083 = vshrl.u32 %v950, 16
        %v1085 = vrot.slane %v1083, 7
        %v1086 = vshll.u32 %v950, 16
        %v1088 = vor.u32 %v1085, %v1086
        %v1089 = vsel %vm971, %v1081, %v1088
        %v1090 = vrot.slane %v1085, 4
        %v1092 = vshrl.u32 %v951, 16
        %v1094 = vrot.slane %v1092, 7
        %v1095 = vshll.u32 %v951, 16
        %v1097 = vor.u32 %v1094, %v1095
        %v1098 = vrot.slane %v1094, 4
        %v1100 = vshrl.u32 %v952, 16
        %v1102 = vrot.slane %v1100, 7
        %v1103 = vshll.u32 %v952, 16
        %v1105 = vor.u32 %v1102, %v1103
        %v1106 = vsel %vm971, %v1098, %v1105
        %v1107 = vrot.slane %v1102, 4
        %v1109 = vshrl.u32 %v953, 16
        %v1111 = vrot.slane %v1109, 7
        %v1112 = vshll.u32 %v953, 16
        %v1114 = vor.u32 %v1111, %v1112
        %v1115 = vrot.slane %v1111, 4
        %v1117 = vshrl.u32 %v954, 16
        %v1119 = vrot.slane %v1117, 7
        %v1120 = vshll.u32 %v954, 16
        %v1122 = vor.u32 %v1119, %v1120
        %v1123 = vsel %vm971, %v1115, %v1122
        %v1124 = vrot.slane %v1119, 4
        %v1126 = vshrl.u32 %v955, 16
        %v1128 = vrot.slane %v1126, 7
        %v1129 = vshll.u32 %v955, 16
        %v1131 = vor.u32 %v1128, %v1129
        %v1132 = vrot.slane %v1128, 4
        %v1134 = vshrl.u32 %v956, 16
        %v1136 = vrot.slane %v1134, 7
        %v1137 = vshll.u32 %v956, 16
        %v1139 = vor.u32 %v1136, %v1137
        %v1140 = vsel %vm971, %v1132, %v1139
        %v1141 = vrot.slane %v1136, 4
        %v1143 = vshrl.u32 %v957, 16
        %v1145 = vrot.slane %v1143, 7
        %v1146 = vshll.u32 %v957, 16
        %v1148 = vor.u32 %v1145, %v1146
        %v1149 = vrot.slane %v1145, 4
        %v1151 = vshrl.u32 %v958, 16
        %v1153 = vrot.slane %v1151, 7
        %v1154 = vshll.u32 %v958, 16
        %v1156 = vor.u32 %v1153, %v1154
        %v1157 = vsel %vm971, %v1149, %v1156
        %v1158 = vrot.slane %v1153, 4
        %v1160 = vshrl.u32 %v959, 16
        %v1162 = vrot.slane %v1160, 7
        %v1163 = vshll.u32 %v959, 16
        %v1165 = vor.u32 %v1162, %v1163
        %v1166 = vrot.slane %v1162, 4
        %v1168 = vshrl.u32 %v960, 16
        %v1170 = vrot.slane %v1168, 7
        %v1171 = vshll.u32 %v960, 16
        %v1173 = vor.u32 %v1170, %v1171
        %v1174 = vsel %vm971, %v1166, %v1173
        %v1175 = vrot.slane %v1170, 4
        %v1177 = vshrl.u32 %v961, 16
        %v1179 = vrot.slane %v1177, 7
        %v1180 = vshll.u32 %v961, 16
        %v1182 = vor.u32 %v1179, %v1180
        %v1183 = vrot.slane %v1179, 4
        %v1185 = vshrl.u32 %v962, 16
        %v1187 = vrot.slane %v1185, 7
        %v1188 = vshll.u32 %v962, 16
        %v1190 = vor.u32 %v1187, %v1188
        %v1191 = vsel %vm971, %v1183, %v1190
        %v1192 = vrot.slane %v1187, 4
        %v1194 = vshrl.u32 %v963, 16
        %v1196 = vrot.slane %v1194, 7
        %v1197 = vshll.u32 %v963, 16
        %v1199 = vor.u32 %v1196, %v1197
        %v1200 = vrot.slane %v1196, 4
        %v1202 = vshrl.u32 %v964, 16
        %v1204 = vrot.slane %v1202, 7
        %v1205 = vshll.u32 %v964, 16
        %v1207 = vor.u32 %v1204, %v1205
        %v1208 = vsel %vm971, %v1200, %v1207
        %v1209 = vrot.slane %v1204, 4
        %v1211 = vshrl.u32 %v965, 16
        %v1213 = vrot.slane %v1211, 7
        %v1214 = vshll.u32 %v965, 16
        %v1216 = vor.u32 %v1213, %v1214
        %v1217 = vrot.slane %v1213, 4
        %v1219 = vshrl.u32 %v966, 16
        %v1221 = vrot.slane %v1219, 7
        %v1222 = vshll.u32 %v966, 16
        %v1224 = vor.u32 %v1221, %v1222
        %v1225 = vsel %vm971, %v1217, %v1224
        %v1226 = vrot.slane %v1221, 4
        %v1228 = vshrl.u32 %v967, 16
        %v1230 = vrot.slane %v1228, 7
        %v1231 = vshll.u32 %v967, 16
        %v1233 = vor.u32 %v1230, %v1231
        %v1234 = vrot.slane %v1230, 4
        %v1236 = vshrl.u32 %v968, 16
        %v1238 = vrot.slane %v1236, 7
        %v1239 = vshll.u32 %v968, 16
        %v1241 = vor.u32 %v1238, %v1239
        %v1242 = vsel %vm971, %v1234, %v1241
        %v1243 = vrot.slane %v1238, 4
        %s1292 = scalar_lea.vmem [#allocation2], 12
        %vm1293 = vcmask 1043456
        %vm1294 = vsmask.f32 7938
        %vm1295 = vmand %vm1293, %vm1294
        %v1296 = vld [vmem:[%s1292] sm:$0xf]
        %v1297 = vsel %vm1295, %v978, %v1296
        %1298 = vst [vmem:[%s1292] sm:$0xf] %v1297
        %1299 = vst [vmem:[%s1292 + $0x4] sm:$0xf] %v987
        %vm1300 = vcmask 1040384
        %vm1301 = vmand %vm1300, %vm969
        %v1302 = vld [vmem:[%s1292 + $0x8] sm:$0x1]
        %v1303 = vsel %vm1301, %v988, %v1302
        %1304 = vst [vmem:[%s1292 + $0x8] sm:$0x1] %v1303
        %v1305 = vld [vmem:[%s1292 + $0xc] sm:$0xf]
        %v1306 = vsel %vm1295, %v995, %v1305
        %1307 = vst [vmem:[%s1292 + $0xc] sm:$0xf] %v1306
        %1308 = vst [vmem:[%s1292 + $0x10] sm:$0xf] %v1004
        %v1309 = vld [vmem:[%s1292 + $0x14] sm:$0x1]
        %v1310 = vsel %vm1301, %v1005, %v1309
        %1311 = vst [vmem:[%s1292 + $0x14] sm:$0x1] %v1310
        %v1312 = vld [vmem:[%s1292 + $0x18] sm:$0xf]
        %v1313 = vsel %vm1295, %v1012, %v1312
        %1314 = vst [vmem:[%s1292 + $0x18] sm:$0xf] %v1313
        %1315 = vst [vmem:[%s1292 + $0x1c] sm:$0xf] %v1021
        %v1316 = vld [vmem:[%s1292 + $0x20] sm:$0x1]
        %v1317 = vsel %vm1301, %v1022, %v1316
        %1318 = vst [vmem:[%s1292 + $0x20] sm:$0x1] %v1317
        %v1319 = vld [vmem:[%s1292 + $0x24] sm:$0xf]
        %v1320 = vsel %vm1295, %v1029, %v1319
        %1321 = vst [vmem:[%s1292 + $0x24] sm:$0xf] %v1320
        %1322 = vst [vmem:[%s1292 + $0x28] sm:$0xf] %v1038
        %v1323 = vld [vmem:[%s1292 + $0x2c] sm:$0x1]
        %v1324 = vsel %vm1301, %v1039, %v1323
        %1325 = vst [vmem:[%s1292 + $0x2c] sm:$0x1] %v1324
        %v1326 = vld [vmem:[%s1292 + $0x30] sm:$0xf]
        %v1327 = vsel %vm1295, %v1046, %v1326
        %1328 = vst [vmem:[%s1292 + $0x30] sm:$0xf] %v1327
        %1329 = vst [vmem:[%s1292 + $0x34] sm:$0xf] %v1055
        %v1330 = vld [vmem:[%s1292 + $0x38] sm:$0x1]
        %v1331 = vsel %vm1301, %v1056, %v1330
        %1332 = vst [vmem:[%s1292 + $0x38] sm:$0x1] %v1331
        %v1333 = vld [vmem:[%s1292 + $0x3c] sm:$0xf]
        %v1334 = vsel %vm1295, %v1063, %v1333
        %1335 = vst [vmem:[%s1292 + $0x3c] sm:$0xf] %v1334
        %1336 = vst [vmem:[%s1292 + $0x40] sm:$0xf] %v1072
        %v1337 = vld [vmem:[%s1292 + $0x44] sm:$0x1]
        %v1338 = vsel %vm1301, %v1073, %v1337
        %1339 = vst [vmem:[%s1292 + $0x44] sm:$0x1] %v1338
        %v1340 = vld [vmem:[%s1292 + $0x48] sm:$0xf]
        %v1341 = vsel %vm1295, %v1080, %v1340
        %1342 = vst [vmem:[%s1292 + $0x48] sm:$0xf] %v1341
        %1343 = vst [vmem:[%s1292 + $0x4c] sm:$0xf] %v1089
        %v1344 = vld [vmem:[%s1292 + $0x50] sm:$0x1]
        %v1345 = vsel %vm1301, %v1090, %v1344
        %1346 = vst [vmem:[%s1292 + $0x50] sm:$0x1] %v1345
        %v1347 = vld [vmem:[%s1292 + $0x54] sm:$0xf]
        %v1348 = vsel %vm1295, %v1097, %v1347
        %1349 = vst [vmem:[%s1292 + $0x54] sm:$0xf] %v1348
        %1350 = vst [vmem:[%s1292 + $0x58] sm:$0xf] %v1106
        %v1351 = vld [vmem:[%s1292 + $0x5c] sm:$0x1]
        %v1352 = vsel %vm1301, %v1107, %v1351
        %1353 = vst [vmem:[%s1292 + $0x5c] sm:$0x1] %v1352
        %v1354 = vld [vmem:[%s1292 + $0x60] sm:$0xf]
        %v1355 = vsel %vm1295, %v1114, %v1354
        %1356 = vst [vmem:[%s1292 + $0x60] sm:$0xf] %v1355
        %1357 = vst [vmem:[%s1292 + $0x64] sm:$0xf] %v1123
        %v1358 = vld [vmem:[%s1292 + $0x68] sm:$0x1]
        %v1359 = vsel %vm1301, %v1124, %v1358
        %1360 = vst [vmem:[%s1292 + $0x68] sm:$0x1] %v1359
        %v1361 = vld [vmem:[%s1292 + $0x6c] sm:$0xf]
        %v1362 = vsel %vm1295, %v1131, %v1361
        %1363 = vst [vmem:[%s1292 + $0x6c] sm:$0xf] %v1362
        %1364 = vst [vmem:[%s1292 + $0x70] sm:$0xf] %v1140
        %v1365 = vld [vmem:[%s1292 + $0x74] sm:$0x1]
        %v1366 = vsel %vm1301, %v1141, %v1365
        %1367 = vst [vmem:[%s1292 + $0x74] sm:$0x1] %v1366
        %v1368 = vld [vmem:[%s1292 + $0x78] sm:$0xf]
        %v1369 = vsel %vm1295, %v1148, %v1368
        %1370 = vst [vmem:[%s1292 + $0x78] sm:$0xf] %v1369
        %1371 = vst [vmem:[%s1292 + $0x7c] sm:$0xf] %v1157
        %v1372 = vld [vmem:[%s1292 + $0x80] sm:$0x1]
        %v1373 = vsel %vm1301, %v1158, %v1372
        %1374 = vst [vmem:[%s1292 + $0x80] sm:$0x1] %v1373
        %v1375 = vld [vmem:[%s1292 + $0x84] sm:$0xf]
        %v1376 = vsel %vm1295, %v1165, %v1375
        %1377 = vst [vmem:[%s1292 + $0x84] sm:$0xf] %v1376
        %1378 = vst [vmem:[%s1292 + $0x88] sm:$0xf] %v1174
        %v1379 = vld [vmem:[%s1292 + $0x8c] sm:$0x1]
        %v1380 = vsel %vm1301, %v1175, %v1379
        %1381 = vst [vmem:[%s1292 + $0x8c] sm:$0x1] %v1380
        %v1382 = vld [vmem:[%s1292 + $0x90] sm:$0xf]
        %v1383 = vsel %vm1295, %v1182, %v1382
        %1384 = vst [vmem:[%s1292 + $0x90] sm:$0xf] %v1383
        %1385 = vst [vmem:[%s1292 + $0x94] sm:$0xf] %v1191
        %v1386 = vld [vmem:[%s1292 + $0x98] sm:$0x1]
        %v1387 = vsel %vm1301, %v1192, %v1386
        %1388 = vst [vmem:[%s1292 + $0x98] sm:$0x1] %v1387
        %v1389 = vld [vmem:[%s1292 + $0x9c] sm:$0xf]
        %v1390 = vsel %vm1295, %v1199, %v1389
        %1391 = vst [vmem:[%s1292 + $0x9c] sm:$0xf] %v1390
        %1392 = vst [vmem:[%s1292 + $0xa0] sm:$0xf] %v1208
        %v1393 = vld [vmem:[%s1292 + $0xa4] sm:$0x1]
        %v1394 = vsel %vm1301, %v1209, %v1393
        %1395 = vst [vmem:[%s1292 + $0xa4] sm:$0x1] %v1394
        %v1396 = vld [vmem:[%s1292 + $0xa8] sm:$0xf]
        %v1397 = vsel %vm1295, %v1216, %v1396
        %1398 = vst [vmem:[%s1292 + $0xa8] sm:$0xf] %v1397
        %1399 = vst [vmem:[%s1292 + $0xac] sm:$0xf] %v1225
        %v1400 = vld [vmem:[%s1292 + $0xb0] sm:$0x1]
        %v1401 = vsel %vm1301, %v1226, %v1400
        %1402 = vst [vmem:[%s1292 + $0xb0] sm:$0x1] %v1401
        %v1403 = vld [vmem:[%s1292 + $0xb4] sm:$0xf]
        %v1404 = vsel %vm1295, %v1233, %v1403
        %1405 = vst [vmem:[%s1292 + $0xb4] sm:$0xf] %v1404
        %1406 = vst [vmem:[%s1292 + $0xb8] sm:$0xf] %v1242
        %v1407 = vld [vmem:[%s1292 + $0xbc] sm:$0x1]
        %v1408 = vsel %vm1301, %v1243, %v1407
        %1409 = vst [vmem:[%s1292 + $0xbc] sm:$0x1] %v1408
        %v1410 = vld [vmem:[#allocation2] sm:$0xf]
        %v1411 = vld [vmem:[#allocation2 + $0x4] sm:$0xf]
        %v1412 = vld [vmem:[#allocation2 + $0xc] sm:$0xf]
        %v1413 = vld [vmem:[#allocation2 + $0x10] sm:$0xf]
        %v1414 = vld [vmem:[#allocation2 + $0x18] sm:$0xf]
        %v1415 = vld [vmem:[#allocation2 + $0x1c] sm:$0xf]
        %v1416 = vld [vmem:[#allocation2 + $0x24] sm:$0xf]
        %v1417 = vld [vmem:[#allocation2 + $0x28] sm:$0xf]
        %v1418 = vld [vmem:[#allocation2 + $0x30] sm:$0xf]
        %v1419 = vld [vmem:[#allocation2 + $0x34] sm:$0xf]
        %v1420 = vld [vmem:[#allocation2 + $0x3c] sm:$0xf]
        %v1421 = vld [vmem:[#allocation2 + $0x40] sm:$0xf]
        %v1422 = vld [vmem:[#allocation2 + $0x48] sm:$0xf]
        %v1423 = vld [vmem:[#allocation2 + $0x4c] sm:$0xf]
        %v1424 = vld [vmem:[#allocation2 + $0x54] sm:$0xf]
        %v1425 = vld [vmem:[#allocation2 + $0x58] sm:$0xf]
        %v1426 = vld [vmem:[#allocation2 + $0x60] sm:$0xf]
        %v1427 = vld [vmem:[#allocation2 + $0x64] sm:$0xf]
        %v1428 = vld [vmem:[#allocation2 + $0x6c] sm:$0xf]
        %v1429 = vld [vmem:[#allocation2 + $0x70] sm:$0xf]
        %v1430 = vld [vmem:[#allocation2 + $0x78] sm:$0xf]
        %v1431 = vld [vmem:[#allocation2 + $0x7c] sm:$0xf]
        %v1432 = vld [vmem:[#allocation2 + $0x84] sm:$0xf]
        %v1433 = vld [vmem:[#allocation2 + $0x88] sm:$0xf]
        %v1434 = vld [vmem:[#allocation2 + $0x90] sm:$0xf]
        %v1435 = vld [vmem:[#allocation2 + $0x94] sm:$0xf]
        %v1436 = vld [vmem:[#allocation2 + $0x9c] sm:$0xf]
        %v1437 = vld [vmem:[#allocation2 + $0xa0] sm:$0xf]
        %v1438 = vld [vmem:[#allocation2 + $0xa8] sm:$0xf]
        %v1439 = vld [vmem:[#allocation2 + $0xac] sm:$0xf]
        %v1440 = vld [vmem:[#allocation2 + $0xb4] sm:$0xf]
        %v1441 = vld [vmem:[#allocation2 + $0xb8] sm:$0xf]
        %1442 = vst [vmem:[#allocation3] sm:$0xf] %v1410
        %1443 = vst [vmem:[#allocation3 + $0x24] sm:$0xf] %v1411
        %1444 = vst [vmem:[#allocation3 + $0x48] sm:$0xf] %v1412
        %1445 = vst [vmem:[#allocation3 + $0x6c] sm:$0xf] %v1413
        %1446 = vst [vmem:[#allocation3 + $0x90] sm:$0xf] %v1414
        %1447 = vst [vmem:[#allocation3 + $0xb4] sm:$0xf] %v1415
        %1448 = vst [vmem:[#allocation3 + $0xd8] sm:$0xf] %v1416
        %1449 = vst [vmem:[#allocation3 + $0xfc] sm:$0xf] %v1417
        %1450 = vst [vmem:[#allocation3 + $0x120] sm:$0xf] %v1418
        %1451 = vst [vmem:[#allocation3 + $0x144] sm:$0xf] %v1419
        %1452 = vst [vmem:[#allocation3 + $0x168] sm:$0xf] %v1420
        %1453 = vst [vmem:[#allocation3 + $0x18c] sm:$0xf] %v1421
        %1454 = vst [vmem:[#allocation3 + $0x1b0] sm:$0xf] %v1422
        %1455 = vst [vmem:[#allocation3 + $0x1d4] sm:$0xf] %v1423
        %1456 = vst [vmem:[#allocation3 + $0x1f8] sm:$0xf] %v1424
        %1457 = vst [vmem:[#allocation3 + $0x21c] sm:$0xf] %v1425
        %1458 = vst [vmem:[#allocation3 + $0x240] sm:$0xf] %v1426
        %1459 = vst [vmem:[#allocation3 + $0x264] sm:$0xf] %v1427
        %1460 = vst [vmem:[#allocation3 + $0x288] sm:$0xf] %v1428
        %1461 = vst [vmem:[#allocation3 + $0x2ac] sm:$0xf] %v1429
        %1462 = vst [vmem:[#allocation3 + $0x2d0] sm:$0xf] %v1430
        %1463 = vst [vmem:[#allocation3 + $0x2f4] sm:$0xf] %v1431
        %1464 = vst [vmem:[#allocation3 + $0x318] sm:$0xf] %v1432
        %1465 = vst [vmem:[#allocation3 + $0x33c] sm:$0xf] %v1433
        %1466 = vst [vmem:[#allocation3 + $0x360] sm:$0xf] %v1434
        %1467 = vst [vmem:[#allocation3 + $0x384] sm:$0xf] %v1435
        %1468 = vst [vmem:[#allocation3 + $0x3a8] sm:$0xf] %v1436
        %1469 = vst [vmem:[#allocation3 + $0x3cc] sm:$0xf] %v1437
        %1470 = vst [vmem:[#allocation3 + $0x3f0] sm:$0xf] %v1438
        %1471 = vst [vmem:[#allocation3 + $0x414] sm:$0xf] %v1439
        %1472 = vst [vmem:[#allocation3 + $0x438] sm:$0xf] %v1440
        %1473 = vst [vmem:[#allocation3 + $0x45c] sm:$0xf] %v1441
        %v1474 = vld [vmem:[#allocation2] sm:$0xf]
        %v1475 = vld [vmem:[#allocation2 + $0x4] sm:$0xf]
        %v1476 = vld [vmem:[#allocation2 + $0x8] sm:$0x1]
        %v1477 = vld [vmem:[#allocation2 + $0xc] sm:$0xf]
        %v1478 = vld [vmem:[#allocation2 + $0x10] sm:$0xf]
        %v1479 = vld [vmem:[#allocation2 + $0x14] sm:$0x1]
        %v1480 = vld [vmem:[#allocation2 + $0x18] sm:$0xf]
        %v1481 = vld [vmem:[#allocation2 + $0x1c] sm:$0xf]
        %v1482 = vld [vmem:[#allocation2 + $0x20] sm:$0x1]
        %v1483 = vld [vmem:[#allocation2 + $0x24] sm:$0xf]
        %v1484 = vld [vmem:[#allocation2 + $0x28] sm:$0xf]
        %v1485 = vld [vmem:[#allocation2 + $0x2c] sm:$0x1]
        %v1486 = vld [vmem:[#allocation2 + $0x30] sm:$0xf]
        %v1487 = vld [vmem:[#allocation2 + $0x34] sm:$0xf]
        %v1488 = vld [vmem:[#allocation2 + $0x38] sm:$0x1]
        %v1489 = vld [vmem:[#allocation2 + $0x3c] sm:$0xf]
        %v1490 = vld [vmem:[#allocation2 + $0x40] sm:$0xf]
        %v1491 = vld [vmem:[#allocation2 + $0x44] sm:$0x1]
        %v1492 = vld [vmem:[#allocation2 + $0x48] sm:$0xf]
        %v1493 = vld [vmem:[#allocation2 + $0x4c] sm:$0xf]
        %v1494 = vld [vmem:[#allocation2 + $0x50] sm:$0x1]
        %v1495 = vld [vmem:[#allocation2 + $0x54] sm:$0xf]
        %v1496 = vld [vmem:[#allocation2 + $0x58] sm:$0xf]
        %v1497 = vld [vmem:[#allocation2 + $0x5c] sm:$0x1]
        %v1498 = vld [vmem:[#allocation2 + $0x60] sm:$0xf]
        %v1499 = vld [vmem:[#allocation2 + $0x64] sm:$0xf]
        %v1500 = vld [vmem:[#allocation2 + $0x68] sm:$0x1]
        %v1501 = vld [vmem:[#allocation2 + $0x6c] sm:$0xf]
        %v1502 = vld [vmem:[#allocation2 + $0x70] sm:$0xf]
        %v1503 = vld [vmem:[#allocation2 + $0x74] sm:$0x1]
        %v1504 = vld [vmem:[#allocation2 + $0x78] sm:$0xf]
        %v1505 = vld [vmem:[#allocation2 + $0x7c] sm:$0xf]
        %v1506 = vld [vmem:[#allocation2 + $0x80] sm:$0x1]
        %v1507 = vld [vmem:[#allocation2 + $0x84] sm:$0xf]
        %v1508 = vld [vmem:[#allocation2 + $0x88] sm:$0xf]
        %v1509 = vld [vmem:[#allocation2 + $0x8c] sm:$0x1]
        %v1510 = vld [vmem:[#allocation2 + $0x90] sm:$0xf]
        %v1511 = vld [vmem:[#allocation2 + $0x94] sm:$0xf]
        %v1512 = vld [vmem:[#allocation2 + $0x98] sm:$0x1]
        %v1513 = vld [vmem:[#allocation2 + $0x9c] sm:$0xf]
        %v1514 = vld [vmem:[#allocation2 + $0xa0] sm:$0xf]
        %v1515 = vld [vmem:[#allocation2 + $0xa4] sm:$0x1]
        %v1516 = vld [vmem:[#allocation2 + $0xa8] sm:$0xf]
        %v1517 = vld [vmem:[#allocation2 + $0xac] sm:$0xf]
        %v1518 = vld [vmem:[#allocation2 + $0xb0] sm:$0x1]
        %v1519 = vld [vmem:[#allocation2 + $0xb4] sm:$0xf]
        %v1520 = vld [vmem:[#allocation2 + $0xb8] sm:$0xf]
        %v1521 = vld [vmem:[#allocation2 + $0xbc] sm:$0x1]
        %vm1522 = vsmask.f32 3328
        %vm1523 = vsmask.f32 7440
        %vm1524 = vmor %vm1522, %vm1523
        %v1526 = vshrl.u32 %v1474, 16
        %v1528 = vrot.slane %v1526, 4
        %v1529 = vshll.u32 %v1474, 16
        %v1531 = vrot.slane %v1529, 5
        %v1532 = vor.u32 %v1528, %v1531
        %v1533 = vrot.slane %v1532, 4
        %v1535 = vshll.u32 %v1475, 16
        %v1537 = vrot.slane %v1535, 5
        %v1538 = vsel %vm1524, %v1533, %v1537
        %v1539 = vshrl.u32 %v1475, 16
        %v1541 = vrot.slane %v1539, 4
        %v1542 = vor.u32 %v1541, %v1537
        %v1543 = vrot.slane %v1542, 4
        %v1545 = vshll.u32 %v1476, 16
        %v1547 = vrot.slane %v1545, 5
        %v1548 = vsel %vm1524, %v1543, %v1547
        %v1550 = vshrl.u32 %v1477, 16
        %v1552 = vrot.slane %v1550, 4
        %v1553 = vshll.u32 %v1477, 16
        %v1555 = vrot.slane %v1553, 5
        %v1556 = vor.u32 %v1552, %v1555
        %v1557 = vrot.slane %v1556, 4
        %v1559 = vshll.u32 %v1478, 16
        %v1561 = vrot.slane %v1559, 5
        %v1562 = vsel %vm1524, %v1557, %v1561
        %v1563 = vshrl.u32 %v1478, 16
        %v1565 = vrot.slane %v1563, 4
        %v1566 = vor.u32 %v1565, %v1561
        %v1567 = vrot.slane %v1566, 4
        %v1569 = vshll.u32 %v1479, 16
        %v1571 = vrot.slane %v1569, 5
        %v1572 = vsel %vm1524, %v1567, %v1571
        %v1574 = vshrl.u32 %v1480, 16
        %v1576 = vrot.slane %v1574, 4
        %v1577 = vshll.u32 %v1480, 16
        %v1579 = vrot.slane %v1577, 5
        %v1580 = vor.u32 %v1576, %v1579
        %v1581 = vrot.slane %v1580, 4
        %v1583 = vshll.u32 %v1481, 16
        %v1585 = vrot.slane %v1583, 5
        %v1586 = vsel %vm1524, %v1581, %v1585
        %v1587 = vshrl.u32 %v1481, 16
        %v1589 = vrot.slane %v1587, 4
        %v1590 = vor.u32 %v1589, %v1585
        %v1591 = vrot.slane %v1590, 4
        %v1593 = vshll.u32 %v1482, 16
        %v1595 = vrot.slane %v1593, 5
        %v1596 = vsel %vm1524, %v1591, %v1595
        %v1598 = vshrl.u32 %v1483, 16
        %v1600 = vrot.slane %v1598, 4
        %v1601 = vshll.u32 %v1483, 16
        %v1603 = vrot.slane %v1601, 5
        %v1604 = vor.u32 %v1600, %v1603
        %v1605 = vrot.slane %v1604, 4
        %v1607 = vshll.u32 %v1484, 16
        %v1609 = vrot.slane %v1607, 5
        %v1610 = vsel %vm1524, %v1605, %v1609
        %v1611 = vshrl.u32 %v1484, 16
        %v1613 = vrot.slane %v1611, 4
        %v1614 = vor.u32 %v1613, %v1609
        %v1615 = vrot.slane %v1614, 4
        %v1617 = vshll.u32 %v1485, 16
        %v1619 = vrot.slane %v1617, 5
        %v1620 = vsel %vm1524, %v1615, %v1619
        %v1622 = vshrl.u32 %v1486, 16
        %v1624 = vrot.slane %v1622, 4
        %v1625 = vshll.u32 %v1486, 16
        %v1627 = vrot.slane %v1625, 5
        %v1628 = vor.u32 %v1624, %v1627
        %v1629 = vrot.slane %v1628, 4
        %v1631 = vshll.u32 %v1487, 16
        %v1633 = vrot.slane %v1631, 5
        %v1634 = vsel %vm1524, %v1629, %v1633
        %v1635 = vshrl.u32 %v1487, 16
        %v1637 = vrot.slane %v1635, 4
        %v1638 = vor.u32 %v1637, %v1633
        %v1639 = vrot.slane %v1638, 4
        %v1641 = vshll.u32 %v1488, 16
        %v1643 = vrot.slane %v1641, 5
        %v1644 = vsel %vm1524, %v1639, %v1643
        %v1646 = vshrl.u32 %v1489, 16
        %v1648 = vrot.slane %v1646, 4
        %v1649 = vshll.u32 %v1489, 16
        %v1651 = vrot.slane %v1649, 5
        %v1652 = vor.u32 %v1648, %v1651
        %v1653 = vrot.slane %v1652, 4
        %v1655 = vshll.u32 %v1490, 16
        %v1657 = vrot.slane %v1655, 5
        %v1658 = vsel %vm1524, %v1653, %v1657
        %v1659 = vshrl.u32 %v1490, 16
        %v1661 = vrot.slane %v1659, 4
        %v1662 = vor.u32 %v1661, %v1657
        %v1663 = vrot.slane %v1662, 4
        %v1665 = vshll.u32 %v1491, 16
        %v1667 = vrot.slane %v1665, 5
        %v1668 = vsel %vm1524, %v1663, %v1667
        %v1670 = vshrl.u32 %v1492, 16
        %v1672 = vrot.slane %v1670, 4
        %v1673 = vshll.u32 %v1492, 16
        %v1675 = vrot.slane %v1673, 5
        %v1676 = vor.u32 %v1672, %v1675
        %v1677 = vrot.slane %v1676, 4
        %v1679 = vshll.u32 %v1493, 16
        %v1681 = vrot.slane %v1679, 5
        %v1682 = vsel %vm1524, %v1677, %v1681
        %v1683 = vshrl.u32 %v1493, 16
        %v1685 = vrot.slane %v1683, 4
        %v1686 = vor.u32 %v1685, %v1681
        %v1687 = vrot.slane %v1686, 4
        %v1689 = vshll.u32 %v1494, 16
        %v1691 = vrot.slane %v1689, 5
        %v1692 = vsel %vm1524, %v1687, %v1691
        %v1694 = vshrl.u32 %v1495, 16
        %v1696 = vrot.slane %v1694, 4
        %v1697 = vshll.u32 %v1495, 16
        %v1699 = vrot.slane %v1697, 5
        %v1700 = vor.u32 %v1696, %v1699
        %v1701 = vrot.slane %v1700, 4
        %v1703 = vshll.u32 %v1496, 16
        %v1705 = vrot.slane %v1703, 5
        %v1706 = vsel %vm1524, %v1701, %v1705
        %v1707 = vshrl.u32 %v1496, 16
        %v1709 = vrot.slane %v1707, 4
        %v1710 = vor.u32 %v1709, %v1705
        %v1711 = vrot.slane %v1710, 4
        %v1713 = vshll.u32 %v1497, 16
        %v1715 = vrot.slane %v1713, 5
        %v1716 = vsel %vm1524, %v1711, %v1715
        %v1718 = vshrl.u32 %v1498, 16
        %v1720 = vrot.slane %v1718, 4
        %v1721 = vshll.u32 %v1498, 16
        %v1723 = vrot.slane %v1721, 5
        %v1724 = vor.u32 %v1720, %v1723
        %v1725 = vrot.slane %v1724, 4
        %v1727 = vshll.u32 %v1499, 16
        %v1729 = vrot.slane %v1727, 5
        %v1730 = vsel %vm1524, %v1725, %v1729
        %v1731 = vshrl.u32 %v1499, 16
        %v1733 = vrot.slane %v1731, 4
        %v1734 = vor.u32 %v1733, %v1729
        %v1735 = vrot.slane %v1734, 4
        %v1737 = vshll.u32 %v1500, 16
        %v1739 = vrot.slane %v1737, 5
        %v1740 = vsel %vm1524, %v1735, %v1739
        %v1742 = vshrl.u32 %v1501, 16
        %v1744 = vrot.slane %v1742, 4
        %v1745 = vshll.u32 %v1501, 16
        %v1747 = vrot.slane %v1745, 5
        %v1748 = vor.u32 %v1744, %v1747
        %v1749 = vrot.slane %v1748, 4
        %v1751 = vshll.u32 %v1502, 16
        %v1753 = vrot.slane %v1751, 5
        %v1754 = vsel %vm1524, %v1749, %v1753
        %v1755 = vshrl.u32 %v1502, 16
        %v1757 = vrot.slane %v1755, 4
        %v1758 = vor.u32 %v1757, %v1753
        %v1759 = vrot.slane %v1758, 4
        %v1761 = vshll.u32 %v1503, 16
        %v1763 = vrot.slane %v1761, 5
        %v1764 = vsel %vm1524, %v1759, %v1763
        %v1766 = vshrl.u32 %v1504, 16
        %v1768 = vrot.slane %v1766, 4
        %v1769 = vshll.u32 %v1504, 16
        %v1771 = vrot.slane %v1769, 5
        %v1772 = vor.u32 %v1768, %v1771
        %v1773 = vrot.slane %v1772, 4
        %v1775 = vshll.u32 %v1505, 16
        %v1777 = vrot.slane %v1775, 5
        %v1778 = vsel %vm1524, %v1773, %v1777
        %v1779 = vshrl.u32 %v1505, 16
        %v1781 = vrot.slane %v1779, 4
        %v1782 = vor.u32 %v1781, %v1777
        %v1783 = vrot.slane %v1782, 4
        %v1785 = vshll.u32 %v1506, 16
        %v1787 = vrot.slane %v1785, 5
        %v1788 = vsel %vm1524, %v1783, %v1787
        %v1790 = vshrl.u32 %v1507, 16
        %v1792 = vrot.slane %v1790, 4
        %v1793 = vshll.u32 %v1507, 16
        %v1795 = vrot.slane %v1793, 5
        %v1796 = vor.u32 %v1792, %v1795
        %v1797 = vrot.slane %v1796, 4
        %v1799 = vshll.u32 %v1508, 16
        %v1801 = vrot.slane %v1799, 5
        %v1802 = vsel %vm1524, %v1797, %v1801
        %v1803 = vshrl.u32 %v1508, 16
        %v1805 = vrot.slane %v1803, 4
        %v1806 = vor.u32 %v1805, %v1801
        %v1807 = vrot.slane %v1806, 4
        %v1809 = vshll.u32 %v1509, 16
        %v1811 = vrot.slane %v1809, 5
        %v1812 = vsel %vm1524, %v1807, %v1811
        %v1814 = vshrl.u32 %v1510, 16
        %v1816 = vrot.slane %v1814, 4
        %v1817 = vshll.u32 %v1510, 16
        %v1819 = vrot.slane %v1817, 5
        %v1820 = vor.u32 %v1816, %v1819
        %v1821 = vrot.slane %v1820, 4
        %v1823 = vshll.u32 %v1511, 16
        %v1825 = vrot.slane %v1823, 5
        %v1826 = vsel %vm1524, %v1821, %v1825
        %v1827 = vshrl.u32 %v1511, 16
        %v1829 = vrot.slane %v1827, 4
        %v1830 = vor.u32 %v1829, %v1825
        %v1831 = vrot.slane %v1830, 4
        %v1833 = vshll.u32 %v1512, 16
        %v1835 = vrot.slane %v1833, 5
        %v1836 = vsel %vm1524, %v1831, %v1835
        %v1838 = vshrl.u32 %v1513, 16
        %v1840 = vrot.slane %v1838, 4
        %v1841 = vshll.u32 %v1513, 16
        %v1843 = vrot.slane %v1841, 5
        %v1844 = vor.u32 %v1840, %v1843
        %v1845 = vrot.slane %v1844, 4
        %v1847 = vshll.u32 %v1514, 16
        %v1849 = vrot.slane %v1847, 5
        %v1850 = vsel %vm1524, %v1845, %v1849
        %v1851 = vshrl.u32 %v1514, 16
        %v1853 = vrot.slane %v1851, 4
        %v1854 = vor.u32 %v1853, %v1849
        %v1855 = vrot.slane %v1854, 4
        %v1857 = vshll.u32 %v1515, 16
        %v1859 = vrot.slane %v1857, 5
        %v1860 = vsel %vm1524, %v1855, %v1859
        %v1862 = vshrl.u32 %v1516, 16
        %v1864 = vrot.slane %v1862, 4
        %v1865 = vshll.u32 %v1516, 16
        %v1867 = vrot.slane %v1865, 5
        %v1868 = vor.u32 %v1864, %v1867
        %v1869 = vrot.slane %v1868, 4
        %v1871 = vshll.u32 %v1517, 16
        %v1873 = vrot.slane %v1871, 5
        %v1874 = vsel %vm1524, %v1869, %v1873
        %v1875 = vshrl.u32 %v1517, 16
        %v1877 = vrot.slane %v1875, 4
        %v1878 = vor.u32 %v1877, %v1873
        %v1879 = vrot.slane %v1878, 4
        %v1881 = vshll.u32 %v1518, 16
        %v1883 = vrot.slane %v1881, 5
        %v1884 = vsel %vm1524, %v1879, %v1883
        %v1886 = vshrl.u32 %v1519, 16
        %v1888 = vrot.slane %v1886, 4
        %v1889 = vshll.u32 %v1519, 16
        %v1891 = vrot.slane %v1889, 5
        %v1892 = vor.u32 %v1888, %v1891
        %v1893 = vrot.slane %v1892, 4
        %v1895 = vshll.u32 %v1520, 16
        %v1897 = vrot.slane %v1895, 5
        %v1898 = vsel %vm1524, %v1893, %v1897
        %v1899 = vshrl.u32 %v1520, 16
        %v1901 = vrot.slane %v1899, 4
        %v1902 = vor.u32 %v1901, %v1897
        %v1903 = vrot.slane %v1902, 4
        %v1905 = vshll.u32 %v1521, 16
        %v1907 = vrot.slane %v1905, 5
        %v1908 = vsel %vm1524, %v1903, %v1907
        %1941 = vst [vmem:[#allocation3 + $0x4] sm:$0xf] %v1538
        %1942 = vst [vmem:[#allocation3 + $0x28] sm:$0xf] %v1548
        %1943 = vst [vmem:[#allocation3 + $0x4c] sm:$0xf] %v1562
        %1944 = vst [vmem:[#allocation3 + $0x70] sm:$0xf] %v1572
        %1945 = vst [vmem:[#allocation3 + $0x94] sm:$0xf] %v1586
        %1946 = vst [vmem:[#allocation3 + $0xb8] sm:$0xf] %v1596
        %1947 = vst [vmem:[#allocation3 + $0xdc] sm:$0xf] %v1610
        %1948 = vst [vmem:[#allocation3 + $0x100] sm:$0xf] %v1620
        %1949 = vst [vmem:[#allocation3 + $0x124] sm:$0xf] %v1634
        %1950 = vst [vmem:[#allocation3 + $0x148] sm:$0xf] %v1644
        %1951 = vst [vmem:[#allocation3 + $0x16c] sm:$0xf] %v1658
        %1952 = vst [vmem:[#allocation3 + $0x190] sm:$0xf] %v1668
        %1953 = vst [vmem:[#allocation3 + $0x1b4] sm:$0xf] %v1682
        %1954 = vst [vmem:[#allocation3 + $0x1d8] sm:$0xf] %v1692
        %1955 = vst [vmem:[#allocation3 + $0x1fc] sm:$0xf] %v1706
        %1956 = vst [vmem:[#allocation3 + $0x220] sm:$0xf] %v1716
        %1957 = vst [vmem:[#allocation3 + $0x244] sm:$0xf] %v1730
        %1958 = vst [vmem:[#allocation3 + $0x268] sm:$0xf] %v1740
        %1959 = vst [vmem:[#allocation3 + $0x28c] sm:$0xf] %v1754
        %1960 = vst [vmem:[#allocation3 + $0x2b0] sm:$0xf] %v1764
        %1961 = vst [vmem:[#allocation3 + $0x2d4] sm:$0xf] %v1778
        %1962 = vst [vmem:[#allocation3 + $0x2f8] sm:$0xf] %v1788
        %1963 = vst [vmem:[#allocation3 + $0x31c] sm:$0xf] %v1802
        %1964 = vst [vmem:[#allocation3 + $0x340] sm:$0xf] %v1812
        %1965 = vst [vmem:[#allocation3 + $0x364] sm:$0xf] %v1826
        %1966 = vst [vmem:[#allocation3 + $0x388] sm:$0xf] %v1836
        %1967 = vst [vmem:[#allocation3 + $0x3ac] sm:$0xf] %v1850
        %1968 = vst [vmem:[#allocation3 + $0x3d0] sm:$0xf] %v1860
        %1969 = vst [vmem:[#allocation3 + $0x3f4] sm:$0xf] %v1874
        %1970 = vst [vmem:[#allocation3 + $0x418] sm:$0xf] %v1884
        %1971 = vst [vmem:[#allocation3 + $0x43c] sm:$0xf] %v1898
        %1972 = vst [vmem:[#allocation3 + $0x460] sm:$0xf] %v1908
        %v1973 = vld [vmem:[#allocation2] sm:$0xe]
        %v1974 = vld [vmem:[#allocation2 + $0x4] sm:$0xf]
        %v1975 = vld [vmem:[#allocation2 + $0x8] sm:$0x1]
        %v1976 = vld [vmem:[#allocation2 + $0xc] sm:$0xe]
        %v1977 = vld [vmem:[#allocation2 + $0x10] sm:$0xf]
        %v1978 = vld [vmem:[#allocation2 + $0x14] sm:$0x1]
        %v1979 = vld [vmem:[#allocation2 + $0x18] sm:$0xe]
        %v1980 = vld [vmem:[#allocation2 + $0x1c] sm:$0xf]
        %v1981 = vld [vmem:[#allocation2 + $0x20] sm:$0x1]
        %v1982 = vld [vmem:[#allocation2 + $0x24] sm:$0xe]
        %v1983 = vld [vmem:[#allocation2 + $0x28] sm:$0xf]
        %v1984 = vld [vmem:[#allocation2 + $0x2c] sm:$0x1]
        %v1985 = vld [vmem:[#allocation2 + $0x30] sm:$0xe]
        %v1986 = vld [vmem:[#allocation2 + $0x34] sm:$0xf]
        %v1987 = vld [vmem:[#allocation2 + $0x38] sm:$0x1]
        %v1988 = vld [vmem:[#allocation2 + $0x3c] sm:$0xe]
        %v1989 = vld [vmem:[#allocation2 + $0x40] sm:$0xf]
        %v1990 = vld [vmem:[#allocation2 + $0x44] sm:$0x1]
        %v1991 = vld [vmem:[#allocation2 + $0x48] sm:$0xe]
        %v1992 = vld [vmem:[#allocation2 + $0x4c] sm:$0xf]
        %v1993 = vld [vmem:[#allocation2 + $0x50] sm:$0x1]
        %v1994 = vld [vmem:[#allocation2 + $0x54] sm:$0xe]
        %v1995 = vld [vmem:[#allocation2 + $0x58] sm:$0xf]
        %v1996 = vld [vmem:[#allocation2 + $0x5c] sm:$0x1]
        %v1997 = vld [vmem:[#allocation2 + $0x60] sm:$0xe]
        %v1998 = vld [vmem:[#allocation2 + $0x64] sm:$0xf]
        %v1999 = vld [vmem:[#allocation2 + $0x68] sm:$0x1]
        %v2000 = vld [vmem:[#allocation2 + $0x6c] sm:$0xe]
        %v2001 = vld [vmem:[#allocation2 + $0x70] sm:$0xf]
        %v2002 = vld [vmem:[#allocation2 + $0x74] sm:$0x1]
        %v2003 = vld [vmem:[#allocation2 + $0x78] sm:$0xe]
        %v2004 = vld [vmem:[#allocation2 + $0x7c] sm:$0xf]
        %v2005 = vld [vmem:[#allocation2 + $0x80] sm:$0x1]
        %v2006 = vld [vmem:[#allocation2 + $0x84] sm:$0xe]
        %v2007 = vld [vmem:[#allocation2 + $0x88] sm:$0xf]
        %v2008 = vld [vmem:[#allocation2 + $0x8c] sm:$0x1]
        %v2009 = vld [vmem:[#allocation2 + $0x90] sm:$0xe]
        %v2010 = vld [vmem:[#allocation2 + $0x94] sm:$0xf]
        %v2011 = vld [vmem:[#allocation2 + $0x98] sm:$0x1]
        %v2012 = vld [vmem:[#allocation2 + $0x9c] sm:$0xe]
        %v2013 = vld [vmem:[#allocation2 + $0xa0] sm:$0xf]
        %v2014 = vld [vmem:[#allocation2 + $0xa4] sm:$0x1]
        %v2015 = vld [vmem:[#allocation2 + $0xa8] sm:$0xe]
        %v2016 = vld [vmem:[#allocation2 + $0xac] sm:$0xf]
        %v2017 = vld [vmem:[#allocation2 + $0xb0] sm:$0x1]
        %v2018 = vld [vmem:[#allocation2 + $0xb4] sm:$0xe]
        %v2019 = vld [vmem:[#allocation2 + $0xb8] sm:$0xf]
        %v2020 = vld [vmem:[#allocation2 + $0xbc] sm:$0x1]
        %vm2069 = vcmask 1042432
        %vm2070 = vcmask 1046532
        %vm2071 = vmor %vm2069, %vm2070
        %v2072 = vrot.slane %v1973, 5
        %v2073 = vrot.slane %v2072, 4
        %v2074 = vrot.slane %v1974, 5
        %v2075 = vsel %vm2071, %v2073, %v2074
        %v2076 = vrot.slane %v2074, 4
        %v2077 = vrot.slane %v1975, 5
        %v2078 = vsel %vm2071, %v2076, %v2077
        %v2079 = vrot.slane %v1976, 5
        %v2080 = vrot.slane %v2079, 4
        %v2081 = vrot.slane %v1977, 5
        %v2082 = vsel %vm2071, %v2080, %v2081
        %v2083 = vrot.slane %v2081, 4
        %v2084 = vrot.slane %v1978, 5
        %v2085 = vsel %vm2071, %v2083, %v2084
        %v2086 = vrot.slane %v1979, 5
        %v2087 = vrot.slane %v2086, 4
        %v2088 = vrot.slane %v1980, 5
        %v2089 = vsel %vm2071, %v2087, %v2088
        %v2090 = vrot.slane %v2088, 4
        %v2091 = vrot.slane %v1981, 5
        %v2092 = vsel %vm2071, %v2090, %v2091
        %v2093 = vrot.slane %v1982, 5
        %v2094 = vrot.slane %v2093, 4
        %v2095 = vrot.slane %v1983, 5
        %v2096 = vsel %vm2071, %v2094, %v2095
        %v2097 = vrot.slane %v2095, 4
        %v2098 = vrot.slane %v1984, 5
        %v2099 = vsel %vm2071, %v2097, %v2098
        %v2100 = vrot.slane %v1985, 5
        %v2101 = vrot.slane %v2100, 4
        %v2102 = vrot.slane %v1986, 5
        %v2103 = vsel %vm2071, %v2101, %v2102
        %v2104 = vrot.slane %v2102, 4
        %v2105 = vrot.slane %v1987, 5
        %v2106 = vsel %vm2071, %v2104, %v2105
        %v2107 = vrot.slane %v1988, 5
        %v2108 = vrot.slane %v2107, 4
        %v2109 = vrot.slane %v1989, 5
        %v2110 = vsel %vm2071, %v2108, %v2109
        %v2111 = vrot.slane %v2109, 4
        %v2112 = vrot.slane %v1990, 5
        %v2113 = vsel %vm2071, %v2111, %v2112
        %v2114 = vrot.slane %v1991, 5
        %v2115 = vrot.slane %v2114, 4
        %v2116 = vrot.slane %v1992, 5
        %v2117 = vsel %vm2071, %v2115, %v2116
        %v2118 = vrot.slane %v2116, 4
        %v2119 = vrot.slane %v1993, 5
        %v2120 = vsel %vm2071, %v2118, %v2119
        %v2121 = vrot.slane %v1994, 5
        %v2122 = vrot.slane %v2121, 4
        %v2123 = vrot.slane %v1995, 5
        %v2124 = vsel %vm2071, %v2122, %v2123
        %v2125 = vrot.slane %v2123, 4
        %v2126 = vrot.slane %v1996, 5
        %v2127 = vsel %vm2071, %v2125, %v2126
        %v2128 = vrot.slane %v1997, 5
        %v2129 = vrot.slane %v2128, 4
        %v2130 = vrot.slane %v1998, 5
        %v2131 = vsel %vm2071, %v2129, %v2130
        %v2132 = vrot.slane %v2130, 4
        %v2133 = vrot.slane %v1999, 5
        %v2134 = vsel %vm2071, %v2132, %v2133
        %v2135 = vrot.slane %v2000, 5
        %v2136 = vrot.slane %v2135, 4
        %v2137 = vrot.slane %v2001, 5
        %v2138 = vsel %vm2071, %v2136, %v2137
        %v2139 = vrot.slane %v2137, 4
        %v2140 = vrot.slane %v2002, 5
        %v2141 = vsel %vm2071, %v2139, %v2140
        %v2142 = vrot.slane %v2003, 5
        %v2143 = vrot.slane %v2142, 4
        %v2144 = vrot.slane %v2004, 5
        %v2145 = vsel %vm2071, %v2143, %v2144
        %v2146 = vrot.slane %v2144, 4
        %v2147 = vrot.slane %v2005, 5
        %v2148 = vsel %vm2071, %v2146, %v2147
        %v2149 = vrot.slane %v2006, 5
        %v2150 = vrot.slane %v2149, 4
        %v2151 = vrot.slane %v2007, 5
        %v2152 = vsel %vm2071, %v2150, %v2151
        %v2153 = vrot.slane %v2151, 4
        %v2154 = vrot.slane %v2008, 5
        %v2155 = vsel %vm2071, %v2153, %v2154
        %v2156 = vrot.slane %v2009, 5
        %v2157 = vrot.slane %v2156, 4
        %v2158 = vrot.slane %v2010, 5
        %v2159 = vsel %vm2071, %v2157, %v2158
        %v2160 = vrot.slane %v2158, 4
        %v2161 = vrot.slane %v2011, 5
        %v2162 = vsel %vm2071, %v2160, %v2161
        %v2163 = vrot.slane %v2012, 5
        %v2164 = vrot.slane %v2163, 4
        %v2165 = vrot.slane %v2013, 5
        %v2166 = vsel %vm2071, %v2164, %v2165
        %v2167 = vrot.slane %v2165, 4
        %v2168 = vrot.slane %v2014, 5
        %v2169 = vsel %vm2071, %v2167, %v2168
        %v2170 = vrot.slane %v2015, 5
        %v2171 = vrot.slane %v2170, 4
        %v2172 = vrot.slane %v2016, 5
        %v2173 = vsel %vm2071, %v2171, %v2172
        %v2174 = vrot.slane %v2172, 4
        %v2175 = vrot.slane %v2017, 5
        %v2176 = vsel %vm2071, %v2174, %v2175
        %v2177 = vrot.slane %v2018, 5
        %v2178 = vrot.slane %v2177, 4
        %v2179 = vrot.slane %v2019, 5
        %v2180 = vsel %vm2071, %v2178, %v2179
        %v2181 = vrot.slane %v2179, 4
        %v2182 = vrot.slane %v2020, 5
        %v2183 = vsel %vm2071, %v2181, %v2182
        %2216 = vst [vmem:[#allocation3 + $0x8] sm:$0xf] %v2075
        %2217 = vst [vmem:[#allocation3 + $0x2c] sm:$0xf] %v2078
        %2218 = vst [vmem:[#allocation3 + $0x50] sm:$0xf] %v2082
        %2219 = vst [vmem:[#allocation3 + $0x74] sm:$0xf] %v2085
        %2220 = vst [vmem:[#allocation3 + $0x98] sm:$0xf] %v2089
        %2221 = vst [vmem:[#allocation3 + $0xbc] sm:$0xf] %v2092
        %2222 = vst [vmem:[#allocation3 + $0xe0] sm:$0xf] %v2096
        %2223 = vst [vmem:[#allocation3 + $0x104] sm:$0xf] %v2099
        %2224 = vst [vmem:[#allocation3 + $0x128] sm:$0xf] %v2103
        %2225 = vst [vmem:[#allocation3 + $0x14c] sm:$0xf] %v2106
        %2226 = vst [vmem:[#allocation3 + $0x170] sm:$0xf] %v2110
        %2227 = vst [vmem:[#allocation3 + $0x194] sm:$0xf] %v2113
        %2228 = vst [vmem:[#allocation3 + $0x1b8] sm:$0xf] %v2117
        %2229 = vst [vmem:[#allocation3 + $0x1dc] sm:$0xf] %v2120
        %2230 = vst [vmem:[#allocation3 + $0x200] sm:$0xf] %v2124
        %2231 = vst [vmem:[#allocation3 + $0x224] sm:$0xf] %v2127
        %2232 = vst [vmem:[#allocation3 + $0x248] sm:$0xf] %v2131
        %2233 = vst [vmem:[#allocation3 + $0x26c] sm:$0xf] %v2134
        %2234 = vst [vmem:[#allocation3 + $0x290] sm:$0xf] %v2138
        %2235 = vst [vmem:[#allocation3 + $0x2b4] sm:$0xf] %v2141
        %2236 = vst [vmem:[#allocation3 + $0x2d8] sm:$0xf] %v2145
        %2237 = vst [vmem:[#allocation3 + $0x2fc] sm:$0xf] %v2148
        %2238 = vst [vmem:[#allocation3 + $0x320] sm:$0xf] %v2152
        %2239 = vst [vmem:[#allocation3 + $0x344] sm:$0xf] %v2155
        %2240 = vst [vmem:[#allocation3 + $0x368] sm:$0xf] %v2159
        %2241 = vst [vmem:[#allocation3 + $0x38c] sm:$0xf] %v2162
        %2242 = vst [vmem:[#allocation3 + $0x3b0] sm:$0xf] %v2166
        %2243 = vst [vmem:[#allocation3 + $0x3d4] sm:$0xf] %v2169
        %2244 = vst [vmem:[#allocation3 + $0x3f8] sm:$0xf] %v2173
        %2245 = vst [vmem:[#allocation3 + $0x41c] sm:$0xf] %v2176
        %2246 = vst [vmem:[#allocation3 + $0x440] sm:$0xf] %v2180
        %2247 = vst [vmem:[#allocation3 + $0x464] sm:$0xf] %v2183
        %v2248 = vld [vmem:[%s1292] sm:$0xf]
        %v2249 = vld [vmem:[%s1292 + $0x4] sm:$0xf]
        %v2250 = vld [vmem:[%s1292 + $0xc] sm:$0xf]
        %v2251 = vld [vmem:[%s1292 + $0x10] sm:$0xf]
        %v2252 = vld [vmem:[%s1292 + $0x18] sm:$0xf]
        %v2253 = vld [vmem:[%s1292 + $0x1c] sm:$0xf]
        %v2254 = vld [vmem:[%s1292 + $0x24] sm:$0xf]
        %v2255 = vld [vmem:[%s1292 + $0x28] sm:$0xf]
        %v2256 = vld [vmem:[%s1292 + $0x30] sm:$0xf]
        %v2257 = vld [vmem:[%s1292 + $0x34] sm:$0xf]
        %v2258 = vld [vmem:[%s1292 + $0x3c] sm:$0xf]
        %v2259 = vld [vmem:[%s1292 + $0x40] sm:$0xf]
        %v2260 = vld [vmem:[%s1292 + $0x48] sm:$0xf]
        %v2261 = vld [vmem:[%s1292 + $0x4c] sm:$0xf]
        %v2262 = vld [vmem:[%s1292 + $0x54] sm:$0xf]
        %v2263 = vld [vmem:[%s1292 + $0x58] sm:$0xf]
        %v2264 = vld [vmem:[%s1292 + $0x60] sm:$0xf]
        %v2265 = vld [vmem:[%s1292 + $0x64] sm:$0xf]
        %v2266 = vld [vmem:[%s1292 + $0x6c] sm:$0xf]
        %v2267 = vld [vmem:[%s1292 + $0x70] sm:$0xf]
        %v2268 = vld [vmem:[%s1292 + $0x78] sm:$0xf]
        %v2269 = vld [vmem:[%s1292 + $0x7c] sm:$0xf]
        %v2270 = vld [vmem:[%s1292 + $0x84] sm:$0xf]
        %v2271 = vld [vmem:[%s1292 + $0x88] sm:$0xf]
        %v2272 = vld [vmem:[%s1292 + $0x90] sm:$0xf]
        %v2273 = vld [vmem:[%s1292 + $0x94] sm:$0xf]
        %v2274 = vld [vmem:[%s1292 + $0x9c] sm:$0xf]
        %v2275 = vld [vmem:[%s1292 + $0xa0] sm:$0xf]
        %v2276 = vld [vmem:[%s1292 + $0xa8] sm:$0xf]
        %v2277 = vld [vmem:[%s1292 + $0xac] sm:$0xf]
        %v2278 = vld [vmem:[%s1292 + $0xb4] sm:$0xf]
        %v2279 = vld [vmem:[%s1292 + $0xb8] sm:$0xf]
        %2280 = vst [vmem:[#allocation3 + $0xc] sm:$0xf] %v2248
        %2281 = vst [vmem:[#allocation3 + $0x30] sm:$0xf] %v2249
        %2282 = vst [vmem:[#allocation3 + $0x54] sm:$0xf] %v2250
        %2283 = vst [vmem:[#allocation3 + $0x78] sm:$0xf] %v2251
        %2284 = vst [vmem:[#allocation3 + $0x9c] sm:$0xf] %v2252
        %2285 = vst [vmem:[#allocation3 + $0xc0] sm:$0xf] %v2253
        %2286 = vst [vmem:[#allocation3 + $0xe4] sm:$0xf] %v2254
        %2287 = vst [vmem:[#allocation3 + $0x108] sm:$0xf] %v2255
        %2288 = vst [vmem:[#allocation3 + $0x12c] sm:$0xf] %v2256
        %2289 = vst [vmem:[#allocation3 + $0x150] sm:$0xf] %v2257
        %2290 = vst [vmem:[#allocation3 + $0x174] sm:$0xf] %v2258
        %2291 = vst [vmem:[#allocation3 + $0x198] sm:$0xf] %v2259
        %2292 = vst [vmem:[#allocation3 + $0x1bc] sm:$0xf] %v2260
        %2293 = vst [vmem:[#allocation3 + $0x1e0] sm:$0xf] %v2261
        %2294 = vst [vmem:[#allocation3 + $0x204] sm:$0xf] %v2262
        %2295 = vst [vmem:[#allocation3 + $0x228] sm:$0xf] %v2263
        %2296 = vst [vmem:[#allocation3 + $0x24c] sm:$0xf] %v2264
        %2297 = vst [vmem:[#allocation3 + $0x270] sm:$0xf] %v2265
        %2298 = vst [vmem:[#allocation3 + $0x294] sm:$0xf] %v2266
        %2299 = vst [vmem:[#allocation3 + $0x2b8] sm:$0xf] %v2267
        %2300 = vst [vmem:[#allocation3 + $0x2dc] sm:$0xf] %v2268
        %2301 = vst [vmem:[#allocation3 + $0x300] sm:$0xf] %v2269
        %2302 = vst [vmem:[#allocation3 + $0x324] sm:$0xf] %v2270
        %2303 = vst [vmem:[#allocation3 + $0x348] sm:$0xf] %v2271
        %2304 = vst [vmem:[#allocation3 + $0x36c] sm:$0xf] %v2272
        %2305 = vst [vmem:[#allocation3 + $0x390] sm:$0xf] %v2273
        %2306 = vst [vmem:[#allocation3 + $0x3b4] sm:$0xf] %v2274
        %2307 = vst [vmem:[#allocation3 + $0x3d8] sm:$0xf] %v2275
        %2308 = vst [vmem:[#allocation3 + $0x3fc] sm:$0xf] %v2276
        %2309 = vst [vmem:[#allocation3 + $0x420] sm:$0xf] %v2277
        %2310 = vst [vmem:[#allocation3 + $0x444] sm:$0xf] %v2278
        %2311 = vst [vmem:[#allocation3 + $0x468] sm:$0xf] %v2279
        %v2312 = vld [vmem:[%s1292] sm:$0xf]
        %v2313 = vld [vmem:[%s1292 + $0x4] sm:$0xf]
        %v2314 = vld [vmem:[%s1292 + $0x8] sm:$0x1]
        %v2315 = vld [vmem:[%s1292 + $0xc] sm:$0xf]
        %v2316 = vld [vmem:[%s1292 + $0x10] sm:$0xf]
        %v2317 = vld [vmem:[%s1292 + $0x14] sm:$0x1]
        %v2318 = vld [vmem:[%s1292 + $0x18] sm:$0xf]
        %v2319 = vld [vmem:[%s1292 + $0x1c] sm:$0xf]
        %v2320 = vld [vmem:[%s1292 + $0x20] sm:$0x1]
        %v2321 = vld [vmem:[%s1292 + $0x24] sm:$0xf]
        %v2322 = vld [vmem:[%s1292 + $0x28] sm:$0xf]
        %v2323 = vld [vmem:[%s1292 + $0x2c] sm:$0x1]
        %v2324 = vld [vmem:[%s1292 + $0x30] sm:$0xf]
        %v2325 = vld [vmem:[%s1292 + $0x34] sm:$0xf]
        %v2326 = vld [vmem:[%s1292 + $0x38] sm:$0x1]
        %v2327 = vld [vmem:[%s1292 + $0x3c] sm:$0xf]
        %v2328 = vld [vmem:[%s1292 + $0x40] sm:$0xf]
        %v2329 = vld [vmem:[%s1292 + $0x44] sm:$0x1]
        %v2330 = vld [vmem:[%s1292 + $0x48] sm:$0xf]
        %v2331 = vld [vmem:[%s1292 + $0x4c] sm:$0xf]
        %v2332 = vld [vmem:[%s1292 + $0x50] sm:$0x1]
        %v2333 = vld [vmem:[%s1292 + $0x54] sm:$0xf]
        %v2334 = vld [vmem:[%s1292 + $0x58] sm:$0xf]
        %v2335 = vld [vmem:[%s1292 + $0x5c] sm:$0x1]
        %v2336 = vld [vmem:[%s1292 + $0x60] sm:$0xf]
        %v2337 = vld [vmem:[%s1292 + $0x64] sm:$0xf]
        %v2338 = vld [vmem:[%s1292 + $0x68] sm:$0x1]
        %v2339 = vld [vmem:[%s1292 + $0x6c] sm:$0xf]
        %v2340 = vld [vmem:[%s1292 + $0x70] sm:$0xf]
        %v2341 = vld [vmem:[%s1292 + $0x74] sm:$0x1]
        %v2342 = vld [vmem:[%s1292 + $0x78] sm:$0xf]
        %v2343 = vld [vmem:[%s1292 + $0x7c] sm:$0xf]
        %v2344 = vld [vmem:[%s1292 + $0x80] sm:$0x1]
        %v2345 = vld [vmem:[%s1292 + $0x84] sm:$0xf]
        %v2346 = vld [vmem:[%s1292 + $0x88] sm:$0xf]
        %v2347 = vld [vmem:[%s1292 + $0x8c] sm:$0x1]
        %v2348 = vld [vmem:[%s1292 + $0x90] sm:$0xf]
        %v2349 = vld [vmem:[%s1292 + $0x94] sm:$0xf]
        %v2350 = vld [vmem:[%s1292 + $0x98] sm:$0x1]
        %v2351 = vld [vmem:[%s1292 + $0x9c] sm:$0xf]
        %v2352 = vld [vmem:[%s1292 + $0xa0] sm:$0xf]
        %v2353 = vld [vmem:[%s1292 + $0xa4] sm:$0x1]
        %v2354 = vld [vmem:[%s1292 + $0xa8] sm:$0xf]
        %v2355 = vld [vmem:[%s1292 + $0xac] sm:$0xf]
        %v2356 = vld [vmem:[%s1292 + $0xb0] sm:$0x1]
        %v2357 = vld [vmem:[%s1292 + $0xb4] sm:$0xf]
        %v2358 = vld [vmem:[%s1292 + $0xb8] sm:$0xf]
        %v2359 = vld [vmem:[%s1292 + $0xbc] sm:$0x1]
        %v2361 = vshrl.u32 %v2312, 16
        %v2363 = vrot.slane %v2361, 4
        %v2364 = vshll.u32 %v2312, 16
        %v2366 = vrot.slane %v2364, 5
        %v2367 = vor.u32 %v2363, %v2366
        %v2368 = vrot.slane %v2367, 4
        %v2370 = vshll.u32 %v2313, 16
        %v2372 = vrot.slane %v2370, 5
        %v2373 = vsel %vm1524, %v2368, %v2372
        %v2374 = vshrl.u32 %v2313, 16
        %v2376 = vrot.slane %v2374, 4
        %v2377 = vor.u32 %v2376, %v2372
        %v2378 = vrot.slane %v2377, 4
        %v2380 = vshll.u32 %v2314, 16
        %v2382 = vrot.slane %v2380, 5
        %v2383 = vsel %vm1524, %v2378, %v2382
        %v2385 = vshrl.u32 %v2315, 16
        %v2387 = vrot.slane %v2385, 4
        %v2388 = vshll.u32 %v2315, 16
        %v2390 = vrot.slane %v2388, 5
        %v2391 = vor.u32 %v2387, %v2390
        %v2392 = vrot.slane %v2391, 4
        %v2394 = vshll.u32 %v2316, 16
        %v2396 = vrot.slane %v2394, 5
        %v2397 = vsel %vm1524, %v2392, %v2396
        %v2398 = vshrl.u32 %v2316, 16
        %v2400 = vrot.slane %v2398, 4
        %v2401 = vor.u32 %v2400, %v2396
        %v2402 = vrot.slane %v2401, 4
        %v2404 = vshll.u32 %v2317, 16
        %v2406 = vrot.slane %v2404, 5
        %v2407 = vsel %vm1524, %v2402, %v2406
        %v2409 = vshrl.u32 %v2318, 16
        %v2411 = vrot.slane %v2409, 4
        %v2412 = vshll.u32 %v2318, 16
        %v2414 = vrot.slane %v2412, 5
        %v2415 = vor.u32 %v2411, %v2414
        %v2416 = vrot.slane %v2415, 4
        %v2418 = vshll.u32 %v2319, 16
        %v2420 = vrot.slane %v2418, 5
        %v2421 = vsel %vm1524, %v2416, %v2420
        %v2422 = vshrl.u32 %v2319, 16
        %v2424 = vrot.slane %v2422, 4
        %v2425 = vor.u32 %v2424, %v2420
        %v2426 = vrot.slane %v2425, 4
        %v2428 = vshll.u32 %v2320, 16
        %v2430 = vrot.slane %v2428, 5
        %v2431 = vsel %vm1524, %v2426, %v2430
        %v2433 = vshrl.u32 %v2321, 16
        %v2435 = vrot.slane %v2433, 4
        %v2436 = vshll.u32 %v2321, 16
        %v2438 = vrot.slane %v2436, 5
        %v2439 = vor.u32 %v2435, %v2438
        %v2440 = vrot.slane %v2439, 4
        %v2442 = vshll.u32 %v2322, 16
        %v2444 = vrot.slane %v2442, 5
        %v2445 = vsel %vm1524, %v2440, %v2444
        %v2446 = vshrl.u32 %v2322, 16
        %v2448 = vrot.slane %v2446, 4
        %v2449 = vor.u32 %v2448, %v2444
        %v2450 = vrot.slane %v2449, 4
        %v2452 = vshll.u32 %v2323, 16
        %v2454 = vrot.slane %v2452, 5
        %v2455 = vsel %vm1524, %v2450, %v2454
        %v2457 = vshrl.u32 %v2324, 16
        %v2459 = vrot.slane %v2457, 4
        %v2460 = vshll.u32 %v2324, 16
        %v2462 = vrot.slane %v2460, 5
        %v2463 = vor.u32 %v2459, %v2462
        %v2464 = vrot.slane %v2463, 4
        %v2466 = vshll.u32 %v2325, 16
        %v2468 = vrot.slane %v2466, 5
        %v2469 = vsel %vm1524, %v2464, %v2468
        %v2470 = vshrl.u32 %v2325, 16
        %v2472 = vrot.slane %v2470, 4
        %v2473 = vor.u32 %v2472, %v2468
        %v2474 = vrot.slane %v2473, 4
        %v2476 = vshll.u32 %v2326, 16
        %v2478 = vrot.slane %v2476, 5
        %v2479 = vsel %vm1524, %v2474, %v2478
        %v2481 = vshrl.u32 %v2327, 16
        %v2483 = vrot.slane %v2481, 4
        %v2484 = vshll.u32 %v2327, 16
        %v2486 = vrot.slane %v2484, 5
        %v2487 = vor.u32 %v2483, %v2486
        %v2488 = vrot.slane %v2487, 4
        %v2490 = vshll.u32 %v2328, 16
        %v2492 = vrot.slane %v2490, 5
        %v2493 = vsel %vm1524, %v2488, %v2492
        %v2494 = vshrl.u32 %v2328, 16
        %v2496 = vrot.slane %v2494, 4
        %v2497 = vor.u32 %v2496, %v2492
        %v2498 = vrot.slane %v2497, 4
        %v2500 = vshll.u32 %v2329, 16
        %v2502 = vrot.slane %v2500, 5
        %v2503 = vsel %vm1524, %v2498, %v2502
        %v2505 = vshrl.u32 %v2330, 16
        %v2507 = vrot.slane %v2505, 4
        %v2508 = vshll.u32 %v2330, 16
        %v2510 = vrot.slane %v2508, 5
        %v2511 = vor.u32 %v2507, %v2510
        %v2512 = vrot.slane %v2511, 4
        %v2514 = vshll.u32 %v2331, 16
        %v2516 = vrot.slane %v2514, 5
        %v2517 = vsel %vm1524, %v2512, %v2516
        %v2518 = vshrl.u32 %v2331, 16
        %v2520 = vrot.slane %v2518, 4
        %v2521 = vor.u32 %v2520, %v2516
        %v2522 = vrot.slane %v2521, 4
        %v2524 = vshll.u32 %v2332, 16
        %v2526 = vrot.slane %v2524, 5
        %v2527 = vsel %vm1524, %v2522, %v2526
        %v2529 = vshrl.u32 %v2333, 16
        %v2531 = vrot.slane %v2529, 4
        %v2532 = vshll.u32 %v2333, 16
        %v2534 = vrot.slane %v2532, 5
        %v2535 = vor.u32 %v2531, %v2534
        %v2536 = vrot.slane %v2535, 4
        %v2538 = vshll.u32 %v2334, 16
        %v2540 = vrot.slane %v2538, 5
        %v2541 = vsel %vm1524, %v2536, %v2540
        %v2542 = vshrl.u32 %v2334, 16
        %v2544 = vrot.slane %v2542, 4
        %v2545 = vor.u32 %v2544, %v2540
        %v2546 = vrot.slane %v2545, 4
        %v2548 = vshll.u32 %v2335, 16
        %v2550 = vrot.slane %v2548, 5
        %v2551 = vsel %vm1524, %v2546, %v2550
        %v2553 = vshrl.u32 %v2336, 16
        %v2555 = vrot.slane %v2553, 4
        %v2556 = vshll.u32 %v2336, 16
        %v2558 = vrot.slane %v2556, 5
        %v2559 = vor.u32 %v2555, %v2558
        %v2560 = vrot.slane %v2559, 4
        %v2562 = vshll.u32 %v2337, 16
        %v2564 = vrot.slane %v2562, 5
        %v2565 = vsel %vm1524, %v2560, %v2564
        %v2566 = vshrl.u32 %v2337, 16
        %v2568 = vrot.slane %v2566, 4
        %v2569 = vor.u32 %v2568, %v2564
        %v2570 = vrot.slane %v2569, 4
        %v2572 = vshll.u32 %v2338, 16
        %v2574 = vrot.slane %v2572, 5
        %v2575 = vsel %vm1524, %v2570, %v2574
        %v2577 = vshrl.u32 %v2339, 16
        %v2579 = vrot.slane %v2577, 4
        %v2580 = vshll.u32 %v2339, 16
        %v2582 = vrot.slane %v2580, 5
        %v2583 = vor.u32 %v2579, %v2582
        %v2584 = vrot.slane %v2583, 4
        %v2586 = vshll.u32 %v2340, 16
        %v2588 = vrot.slane %v2586, 5
        %v2589 = vsel %vm1524, %v2584, %v2588
        %v2590 = vshrl.u32 %v2340, 16
        %v2592 = vrot.slane %v2590, 4
        %v2593 = vor.u32 %v2592, %v2588
        %v2594 = vrot.slane %v2593, 4
        %v2596 = vshll.u32 %v2341, 16
        %v2598 = vrot.slane %v2596, 5
        %v2599 = vsel %vm1524, %v2594, %v2598
        %v2601 = vshrl.u32 %v2342, 16
        %v2603 = vrot.slane %v2601, 4
        %v2604 = vshll.u32 %v2342, 16
        %v2606 = vrot.slane %v2604, 5
        %v2607 = vor.u32 %v2603, %v2606
        %v2608 = vrot.slane %v2607, 4
        %v2610 = vshll.u32 %v2343, 16
        %v2612 = vrot.slane %v2610, 5
        %v2613 = vsel %vm1524, %v2608, %v2612
        %v2614 = vshrl.u32 %v2343, 16
        %v2616 = vrot.slane %v2614, 4
        %v2617 = vor.u32 %v2616, %v2612
        %v2618 = vrot.slane %v2617, 4
        %v2620 = vshll.u32 %v2344, 16
        %v2622 = vrot.slane %v2620, 5
        %v2623 = vsel %vm1524, %v2618, %v2622
        %v2625 = vshrl.u32 %v2345, 16
        %v2627 = vrot.slane %v2625, 4
        %v2628 = vshll.u32 %v2345, 16
        %v2630 = vrot.slane %v2628, 5
        %v2631 = vor.u32 %v2627, %v2630
        %v2632 = vrot.slane %v2631, 4
        %v2634 = vshll.u32 %v2346, 16
        %v2636 = vrot.slane %v2634, 5
        %v2637 = vsel %vm1524, %v2632, %v2636
        %v2638 = vshrl.u32 %v2346, 16
        %v2640 = vrot.slane %v2638, 4
        %v2641 = vor.u32 %v2640, %v2636
        %v2642 = vrot.slane %v2641, 4
        %v2644 = vshll.u32 %v2347, 16
        %v2646 = vrot.slane %v2644, 5
        %v2647 = vsel %vm1524, %v2642, %v2646
        %v2649 = vshrl.u32 %v2348, 16
        %v2651 = vrot.slane %v2649, 4
        %v2652 = vshll.u32 %v2348, 16
        %v2654 = vrot.slane %v2652, 5
        %v2655 = vor.u32 %v2651, %v2654
        %v2656 = vrot.slane %v2655, 4
        %v2658 = vshll.u32 %v2349, 16
        %v2660 = vrot.slane %v2658, 5
        %v2661 = vsel %vm1524, %v2656, %v2660
        %v2662 = vshrl.u32 %v2349, 16
        %v2664 = vrot.slane %v2662, 4
        %v2665 = vor.u32 %v2664, %v2660
        %v2666 = vrot.slane %v2665, 4
        %v2668 = vshll.u32 %v2350, 16
        %v2670 = vrot.slane %v2668, 5
        %v2671 = vsel %vm1524, %v2666, %v2670
        %v2673 = vshrl.u32 %v2351, 16
        %v2675 = vrot.slane %v2673, 4
        %v2676 = vshll.u32 %v2351, 16
        %v2678 = vrot.slane %v2676, 5
        %v2679 = vor.u32 %v2675, %v2678
        %v2680 = vrot.slane %v2679, 4
        %v2682 = vshll.u32 %v2352, 16
        %v2684 = vrot.slane %v2682, 5
        %v2685 = vsel %vm1524, %v2680, %v2684
        %v2686 = vshrl.u32 %v2352, 16
        %v2688 = vrot.slane %v2686, 4
        %v2689 = vor.u32 %v2688, %v2684
        %v2690 = vrot.slane %v2689, 4
        %v2692 = vshll.u32 %v2353, 16
        %v2694 = vrot.slane %v2692, 5
        %v2695 = vsel %vm1524, %v2690, %v2694
        %v2697 = vshrl.u32 %v2354, 16
        %v2699 = vrot.slane %v2697, 4
        %v2700 = vshll.u32 %v2354, 16
        %v2702 = vrot.slane %v2700, 5
        %v2703 = vor.u32 %v2699, %v2702
        %v2704 = vrot.slane %v2703, 4
        %v2706 = vshll.u32 %v2355, 16
        %v2708 = vrot.slane %v2706, 5
        %v2709 = vsel %vm1524, %v2704, %v2708
        %v2710 = vshrl.u32 %v2355, 16
        %v2712 = vrot.slane %v2710, 4
        %v2713 = vor.u32 %v2712, %v2708
        %v2714 = vrot.slane %v2713, 4
        %v2716 = vshll.u32 %v2356, 16
        %v2718 = vrot.slane %v2716, 5
        %v2719 = vsel %vm1524, %v2714, %v2718
        %v2721 = vshrl.u32 %v2357, 16
        %v2723 = vrot.slane %v2721, 4
        %v2724 = vshll.u32 %v2357, 16
        %v2726 = vrot.slane %v2724, 5
        %v2727 = vor.u32 %v2723, %v2726
        %v2728 = vrot.slane %v2727, 4
        %v2730 = vshll.u32 %v2358, 16
        %v2732 = vrot.slane %v2730, 5
        %v2733 = vsel %vm1524, %v2728, %v2732
        %v2734 = vshrl.u32 %v2358, 16
        %v2736 = vrot.slane %v2734, 4
        %v2737 = vor.u32 %v2736, %v2732
        %v2738 = vrot.slane %v2737, 4
        %v2740 = vshll.u32 %v2359, 16
        %v2742 = vrot.slane %v2740, 5
        %v2743 = vsel %vm1524, %v2738, %v2742
        %2776 = vst [vmem:[#allocation3 + $0x10] sm:$0xf] %v2373
        %2777 = vst [vmem:[#allocation3 + $0x34] sm:$0xf] %v2383
        %2778 = vst [vmem:[#allocation3 + $0x58] sm:$0xf] %v2397
        %2779 = vst [vmem:[#allocation3 + $0x7c] sm:$0xf] %v2407
        %2780 = vst [vmem:[#allocation3 + $0xa0] sm:$0xf] %v2421
        %2781 = vst [vmem:[#allocation3 + $0xc4] sm:$0xf] %v2431
        %2782 = vst [vmem:[#allocation3 + $0xe8] sm:$0xf] %v2445
        %2783 = vst [vmem:[#allocation3 + $0x10c] sm:$0xf] %v2455
        %2784 = vst [vmem:[#allocation3 + $0x130] sm:$0xf] %v2469
        %2785 = vst [vmem:[#allocation3 + $0x154] sm:$0xf] %v2479
        %2786 = vst [vmem:[#allocation3 + $0x178] sm:$0xf] %v2493
        %2787 = vst [vmem:[#allocation3 + $0x19c] sm:$0xf] %v2503
        %2788 = vst [vmem:[#allocation3 + $0x1c0] sm:$0xf] %v2517
        %2789 = vst [vmem:[#allocation3 + $0x1e4] sm:$0xf] %v2527
        %2790 = vst [vmem:[#allocation3 + $0x208] sm:$0xf] %v2541
        %2791 = vst [vmem:[#allocation3 + $0x22c] sm:$0xf] %v2551
        %2792 = vst [vmem:[#allocation3 + $0x250] sm:$0xf] %v2565
        %2793 = vst [vmem:[#allocation3 + $0x274] sm:$0xf] %v2575
        %2794 = vst [vmem:[#allocation3 + $0x298] sm:$0xf] %v2589
        %2795 = vst [vmem:[#allocation3 + $0x2bc] sm:$0xf] %v2599
        %2796 = vst [vmem:[#allocation3 + $0x2e0] sm:$0xf] %v2613
        %2797 = vst [vmem:[#allocation3 + $0x304] sm:$0xf] %v2623
        %2798 = vst [vmem:[#allocation3 + $0x328] sm:$0xf] %v2637
        %2799 = vst [vmem:[#allocation3 + $0x34c] sm:$0xf] %v2647
        %2800 = vst [vmem:[#allocation3 + $0x370] sm:$0xf] %v2661
        %2801 = vst [vmem:[#allocation3 + $0x394] sm:$0xf] %v2671
        %2802 = vst [vmem:[#allocation3 + $0x3b8] sm:$0xf] %v2685
        %2803 = vst [vmem:[#allocation3 + $0x3dc] sm:$0xf] %v2695
        %2804 = vst [vmem:[#allocation3 + $0x400] sm:$0xf] %v2709
        %2805 = vst [vmem:[#allocation3 + $0x424] sm:$0xf] %v2719
        %2806 = vst [vmem:[#allocation3 + $0x448] sm:$0xf] %v2733
        %2807 = vst [vmem:[#allocation3 + $0x46c] sm:$0xf] %v2743
        %v2808 = vld [vmem:[%s1292] sm:$0xe]
        %v2809 = vld [vmem:[%s1292 + $0x4] sm:$0xf]
        %v2810 = vld [vmem:[%s1292 + $0x8] sm:$0x1]
        %v2811 = vld [vmem:[%s1292 + $0xc] sm:$0xe]
        %v2812 = vld [vmem:[%s1292 + $0x10] sm:$0xf]
        %v2813 = vld [vmem:[%s1292 + $0x14] sm:$0x1]
        %v2814 = vld [vmem:[%s1292 + $0x18] sm:$0xe]
        %v2815 = vld [vmem:[%s1292 + $0x1c] sm:$0xf]
        %v2816 = vld [vmem:[%s1292 + $0x20] sm:$0x1]
        %v2817 = vld [vmem:[%s1292 + $0x24] sm:$0xe]
        %v2818 = vld [vmem:[%s1292 + $0x28] sm:$0xf]
        %v2819 = vld [vmem:[%s1292 + $0x2c] sm:$0x1]
        %v2820 = vld [vmem:[%s1292 + $0x30] sm:$0xe]
        %v2821 = vld [vmem:[%s1292 + $0x34] sm:$0xf]
        %v2822 = vld [vmem:[%s1292 + $0x38] sm:$0x1]
        %v2823 = vld [vmem:[%s1292 + $0x3c] sm:$0xe]
        %v2824 = vld [vmem:[%s1292 + $0x40] sm:$0xf]
        %v2825 = vld [vmem:[%s1292 + $0x44] sm:$0x1]
        %v2826 = vld [vmem:[%s1292 + $0x48] sm:$0xe]
        %v2827 = vld [vmem:[%s1292 + $0x4c] sm:$0xf]
        %v2828 = vld [vmem:[%s1292 + $0x50] sm:$0x1]
        %v2829 = vld [vmem:[%s1292 + $0x54] sm:$0xe]
        %v2830 = vld [vmem:[%s1292 + $0x58] sm:$0xf]
        %v2831 = vld [vmem:[%s1292 + $0x5c] sm:$0x1]
        %v2832 = vld [vmem:[%s1292 + $0x60] sm:$0xe]
        %v2833 = vld [vmem:[%s1292 + $0x64] sm:$0xf]
        %v2834 = vld [vmem:[%s1292 + $0x68] sm:$0x1]
        %v2835 = vld [vmem:[%s1292 + $0x6c] sm:$0xe]
        %v2836 = vld [vmem:[%s1292 + $0x70] sm:$0xf]
        %v2837 = vld [vmem:[%s1292 + $0x74] sm:$0x1]
        %v2838 = vld [vmem:[%s1292 + $0x78] sm:$0xe]
        %v2839 = vld [vmem:[%s1292 + $0x7c] sm:$0xf]
        %v2840 = vld [vmem:[%s1292 + $0x80] sm:$0x1]
        %v2841 = vld [vmem:[%s1292 + $0x84] sm:$0xe]
        %v2842 = vld [vmem:[%s1292 + $0x88] sm:$0xf]
        %v2843 = vld [vmem:[%s1292 + $0x8c] sm:$0x1]
        %v2844 = vld [vmem:[%s1292 + $0x90] sm:$0xe]
        %v2845 = vld [vmem:[%s1292 + $0x94] sm:$0xf]
        %v2846 = vld [vmem:[%s1292 + $0x98] sm:$0x1]
        %v2847 = vld [vmem:[%s1292 + $0x9c] sm:$0xe]
        %v2848 = vld [vmem:[%s1292 + $0xa0] sm:$0xf]
        %v2849 = vld [vmem:[%s1292 + $0xa4] sm:$0x1]
        %v2850 = vld [vmem:[%s1292 + $0xa8] sm:$0xe]
        %v2851 = vld [vmem:[%s1292 + $0xac] sm:$0xf]
        %v2852 = vld [vmem:[%s1292 + $0xb0] sm:$0x1]
        %v2853 = vld [vmem:[%s1292 + $0xb4] sm:$0xe]
        %v2854 = vld [vmem:[%s1292 + $0xb8] sm:$0xf]
        %v2855 = vld [vmem:[%s1292 + $0xbc] sm:$0x1]
        %v2904 = vrot.slane %v2808, 5
        %v2905 = vrot.slane %v2904, 4
        %v2906 = vrot.slane %v2809, 5
        %v2907 = vsel %vm2071, %v2905, %v2906
        %v2908 = vrot.slane %v2906, 4
        %v2909 = vrot.slane %v2810, 5
        %v2910 = vsel %vm2071, %v2908, %v2909
        %v2911 = vrot.slane %v2811, 5
        %v2912 = vrot.slane %v2911, 4
        %v2913 = vrot.slane %v2812, 5
        %v2914 = vsel %vm2071, %v2912, %v2913
        %v2915 = vrot.slane %v2913, 4
        %v2916 = vrot.slane %v2813, 5
        %v2917 = vsel %vm2071, %v2915, %v2916
        %v2918 = vrot.slane %v2814, 5
        %v2919 = vrot.slane %v2918, 4
        %v2920 = vrot.slane %v2815, 5
        %v2921 = vsel %vm2071, %v2919, %v2920
        %v2922 = vrot.slane %v2920, 4
        %v2923 = vrot.slane %v2816, 5
        %v2924 = vsel %vm2071, %v2922, %v2923
        %v2925 = vrot.slane %v2817, 5
        %v2926 = vrot.slane %v2925, 4
        %v2927 = vrot.slane %v2818, 5
        %v2928 = vsel %vm2071, %v2926, %v2927
        %v2929 = vrot.slane %v2927, 4
        %v2930 = vrot.slane %v2819, 5
        %v2931 = vsel %vm2071, %v2929, %v2930
        %v2932 = vrot.slane %v2820, 5
        %v2933 = vrot.slane %v2932, 4
        %v2934 = vrot.slane %v2821, 5
        %v2935 = vsel %vm2071, %v2933, %v2934
        %v2936 = vrot.slane %v2934, 4
        %v2937 = vrot.slane %v2822, 5
        %v2938 = vsel %vm2071, %v2936, %v2937
        %v2939 = vrot.slane %v2823, 5
        %v2940 = vrot.slane %v2939, 4
        %v2941 = vrot.slane %v2824, 5
        %v2942 = vsel %vm2071, %v2940, %v2941
        %v2943 = vrot.slane %v2941, 4
        %v2944 = vrot.slane %v2825, 5
        %v2945 = vsel %vm2071, %v2943, %v2944
        %v2946 = vrot.slane %v2826, 5
        %v2947 = vrot.slane %v2946, 4
        %v2948 = vrot.slane %v2827, 5
        %v2949 = vsel %vm2071, %v2947, %v2948
        %v2950 = vrot.slane %v2948, 4
        %v2951 = vrot.slane %v2828, 5
        %v2952 = vsel %vm2071, %v2950, %v2951
        %v2953 = vrot.slane %v2829, 5
        %v2954 = vrot.slane %v2953, 4
        %v2955 = vrot.slane %v2830, 5
        %v2956 = vsel %vm2071, %v2954, %v2955
        %v2957 = vrot.slane %v2955, 4
        %v2958 = vrot.slane %v2831, 5
        %v2959 = vsel %vm2071, %v2957, %v2958
        %v2960 = vrot.slane %v2832, 5
        %v2961 = vrot.slane %v2960, 4
        %v2962 = vrot.slane %v2833, 5
        %v2963 = vsel %vm2071, %v2961, %v2962
        %v2964 = vrot.slane %v2962, 4
        %v2965 = vrot.slane %v2834, 5
        %v2966 = vsel %vm2071, %v2964, %v2965
        %v2967 = vrot.slane %v2835, 5
        %v2968 = vrot.slane %v2967, 4
        %v2969 = vrot.slane %v2836, 5
        %v2970 = vsel %vm2071, %v2968, %v2969
        %v2971 = vrot.slane %v2969, 4
        %v2972 = vrot.slane %v2837, 5
        %v2973 = vsel %vm2071, %v2971, %v2972
        %v2974 = vrot.slane %v2838, 5
        %v2975 = vrot.slane %v2974, 4
        %v2976 = vrot.slane %v2839, 5
        %v2977 = vsel %vm2071, %v2975, %v2976
        %v2978 = vrot.slane %v2976, 4
        %v2979 = vrot.slane %v2840, 5
        %v2980 = vsel %vm2071, %v2978, %v2979
        %v2981 = vrot.slane %v2841, 5
        %v2982 = vrot.slane %v2981, 4
        %v2983 = vrot.slane %v2842, 5
        %v2984 = vsel %vm2071, %v2982, %v2983
        %v2985 = vrot.slane %v2983, 4
        %v2986 = vrot.slane %v2843, 5
        %v2987 = vsel %vm2071, %v2985, %v2986
        %v2988 = vrot.slane %v2844, 5
        %v2989 = vrot.slane %v2988, 4
        %v2990 = vrot.slane %v2845, 5
        %v2991 = vsel %vm2071, %v2989, %v2990
        %v2992 = vrot.slane %v2990, 4
        %v2993 = vrot.slane %v2846, 5
        %v2994 = vsel %vm2071, %v2992, %v2993
        %v2995 = vrot.slane %v2847, 5
        %v2996 = vrot.slane %v2995, 4
        %v2997 = vrot.slane %v2848, 5
        %v2998 = vsel %vm2071, %v2996, %v2997
        %v2999 = vrot.slane %v2997, 4
        %v3000 = vrot.slane %v2849, 5
        %v3001 = vsel %vm2071, %v2999, %v3000
        %v3002 = vrot.slane %v2850, 5
        %v3003 = vrot.slane %v3002, 4
        %v3004 = vrot.slane %v2851, 5
        %v3005 = vsel %vm2071, %v3003, %v3004
        %v3006 = vrot.slane %v3004, 4
        %v3007 = vrot.slane %v2852, 5
        %v3008 = vsel %vm2071, %v3006, %v3007
        %v3009 = vrot.slane %v2853, 5
        %v3010 = vrot.slane %v3009, 4
        %v3011 = vrot.slane %v2854, 5
        %v3012 = vsel %vm2071, %v3010, %v3011
        %v3013 = vrot.slane %v3011, 4
        %v3014 = vrot.slane %v2855, 5
        %v3015 = vsel %vm2071, %v3013, %v3014
        %3048 = vst [vmem:[#allocation3 + $0x14] sm:$0xf] %v2907
        %3049 = vst [vmem:[#allocation3 + $0x38] sm:$0xf] %v2910
        %3050 = vst [vmem:[#allocation3 + $0x5c] sm:$0xf] %v2914
        %3051 = vst [vmem:[#allocation3 + $0x80] sm:$0xf] %v2917
        %3052 = vst [vmem:[#allocation3 + $0xa4] sm:$0xf] %v2921
        %3053 = vst [vmem:[#allocation3 + $0xc8] sm:$0xf] %v2924
        %3054 = vst [vmem:[#allocation3 + $0xec] sm:$0xf] %v2928
        %3055 = vst [vmem:[#allocation3 + $0x110] sm:$0xf] %v2931
        %3056 = vst [vmem:[#allocation3 + $0x134] sm:$0xf] %v2935
        %3057 = vst [vmem:[#allocation3 + $0x158] sm:$0xf] %v2938
        %3058 = vst [vmem:[#allocation3 + $0x17c] sm:$0xf] %v2942
        %3059 = vst [vmem:[#allocation3 + $0x1a0] sm:$0xf] %v2945
        %3060 = vst [vmem:[#allocation3 + $0x1c4] sm:$0xf] %v2949
        %3061 = vst [vmem:[#allocation3 + $0x1e8] sm:$0xf] %v2952
        %3062 = vst [vmem:[#allocation3 + $0x20c] sm:$0xf] %v2956
        %3063 = vst [vmem:[#allocation3 + $0x230] sm:$0xf] %v2959
        %3064 = vst [vmem:[#allocation3 + $0x254] sm:$0xf] %v2963
        %3065 = vst [vmem:[#allocation3 + $0x278] sm:$0xf] %v2966
        %3066 = vst [vmem:[#allocation3 + $0x29c] sm:$0xf] %v2970
        %3067 = vst [vmem:[#allocation3 + $0x2c0] sm:$0xf] %v2973
        %3068 = vst [vmem:[#allocation3 + $0x2e4] sm:$0xf] %v2977
        %3069 = vst [vmem:[#allocation3 + $0x308] sm:$0xf] %v2980
        %3070 = vst [vmem:[#allocation3 + $0x32c] sm:$0xf] %v2984
        %3071 = vst [vmem:[#allocation3 + $0x350] sm:$0xf] %v2987
        %3072 = vst [vmem:[#allocation3 + $0x374] sm:$0xf] %v2991
        %3073 = vst [vmem:[#allocation3 + $0x398] sm:$0xf] %v2994
        %3074 = vst [vmem:[#allocation3 + $0x3bc] sm:$0xf] %v2998
        %3075 = vst [vmem:[#allocation3 + $0x3e0] sm:$0xf] %v3001
        %3076 = vst [vmem:[#allocation3 + $0x404] sm:$0xf] %v3005
        %3077 = vst [vmem:[#allocation3 + $0x428] sm:$0xf] %v3008
        %3078 = vst [vmem:[#allocation3 + $0x44c] sm:$0xf] %v3012
        %3079 = vst [vmem:[#allocation3 + $0x470] sm:$0xf] %v3015
        %s3080 = scalar_lea.vmem [#allocation2], 24
        %v3081 = vld [vmem:[%s3080] sm:$0xf]
        %v3082 = vld [vmem:[%s3080 + $0x4] sm:$0xf]
        %v3083 = vld [vmem:[%s3080 + $0xc] sm:$0xf]
        %v3084 = vld [vmem:[%s3080 + $0x10] sm:$0xf]
        %v3085 = vld [vmem:[%s3080 + $0x18] sm:$0xf]
        %v3086 = vld [vmem:[%s3080 + $0x1c] sm:$0xf]
        %v3087 = vld [vmem:[%s3080 + $0x24] sm:$0xf]
        %v3088 = vld [vmem:[%s3080 + $0x28] sm:$0xf]
        %v3089 = vld [vmem:[%s3080 + $0x30] sm:$0xf]
        %v3090 = vld [vmem:[%s3080 + $0x34] sm:$0xf]
        %v3091 = vld [vmem:[%s3080 + $0x3c] sm:$0xf]
        %v3092 = vld [vmem:[%s3080 + $0x40] sm:$0xf]
        %v3093 = vld [vmem:[%s3080 + $0x48] sm:$0xf]
        %v3094 = vld [vmem:[%s3080 + $0x4c] sm:$0xf]
        %v3095 = vld [vmem:[%s3080 + $0x54] sm:$0xf]
        %v3096 = vld [vmem:[%s3080 + $0x58] sm:$0xf]
        %v3097 = vld [vmem:[%s3080 + $0x60] sm:$0xf]
        %v3098 = vld [vmem:[%s3080 + $0x64] sm:$0xf]
        %v3099 = vld [vmem:[%s3080 + $0x6c] sm:$0xf]
        %v3100 = vld [vmem:[%s3080 + $0x70] sm:$0xf]
        %v3101 = vld [vmem:[%s3080 + $0x78] sm:$0xf]
        %v3102 = vld [vmem:[%s3080 + $0x7c] sm:$0xf]
        %v3103 = vld [vmem:[%s3080 + $0x84] sm:$0xf]
        %v3104 = vld [vmem:[%s3080 + $0x88] sm:$0xf]
        %v3105 = vld [vmem:[%s3080 + $0x90] sm:$0xf]
        %v3106 = vld [vmem:[%s3080 + $0x94] sm:$0xf]
        %v3107 = vld [vmem:[%s3080 + $0x9c] sm:$0xf]
        %v3108 = vld [vmem:[%s3080 + $0xa0] sm:$0xf]
        %v3109 = vld [vmem:[%s3080 + $0xa8] sm:$0xf]
        %v3110 = vld [vmem:[%s3080 + $0xac] sm:$0xf]
        %v3111 = vld [vmem:[%s3080 + $0xb4] sm:$0xf]
        %v3112 = vld [vmem:[%s3080 + $0xb8] sm:$0xf]
        %3113 = vst [vmem:[#allocation3 + $0x18] sm:$0xf] %v3081
        %3114 = vst [vmem:[#allocation3 + $0x3c] sm:$0xf] %v3082
        %3115 = vst [vmem:[#allocation3 + $0x60] sm:$0xf] %v3083
        %3116 = vst [vmem:[#allocation3 + $0x84] sm:$0xf] %v3084
        %3117 = vst [vmem:[#allocation3 + $0xa8] sm:$0xf] %v3085
        %3118 = vst [vmem:[#allocation3 + $0xcc] sm:$0xf] %v3086
        %3119 = vst [vmem:[#allocation3 + $0xf0] sm:$0xf] %v3087
        %3120 = vst [vmem:[#allocation3 + $0x114] sm:$0xf] %v3088
        %3121 = vst [vmem:[#allocation3 + $0x138] sm:$0xf] %v3089
        %3122 = vst [vmem:[#allocation3 + $0x15c] sm:$0xf] %v3090
        %3123 = vst [vmem:[#allocation3 + $0x180] sm:$0xf] %v3091
        %3124 = vst [vmem:[#allocation3 + $0x1a4] sm:$0xf] %v3092
        %3125 = vst [vmem:[#allocation3 + $0x1c8] sm:$0xf] %v3093
        %3126 = vst [vmem:[#allocation3 + $0x1ec] sm:$0xf] %v3094
        %3127 = vst [vmem:[#allocation3 + $0x210] sm:$0xf] %v3095
        %3128 = vst [vmem:[#allocation3 + $0x234] sm:$0xf] %v3096
        %3129 = vst [vmem:[#allocation3 + $0x258] sm:$0xf] %v3097
        %3130 = vst [vmem:[#allocation3 + $0x27c] sm:$0xf] %v3098
        %3131 = vst [vmem:[#allocation3 + $0x2a0] sm:$0xf] %v3099
        %3132 = vst [vmem:[#allocation3 + $0x2c4] sm:$0xf] %v3100
        %3133 = vst [vmem:[#allocation3 + $0x2e8] sm:$0xf] %v3101
        %3134 = vst [vmem:[#allocation3 + $0x30c] sm:$0xf] %v3102
        %3135 = vst [vmem:[#allocation3 + $0x330] sm:$0xf] %v3103
        %3136 = vst [vmem:[#allocation3 + $0x354] sm:$0xf] %v3104
        %3137 = vst [vmem:[#allocation3 + $0x378] sm:$0xf] %v3105
        %3138 = vst [vmem:[#allocation3 + $0x39c] sm:$0xf] %v3106
        %3139 = vst [vmem:[#allocation3 + $0x3c0] sm:$0xf] %v3107
        %3140 = vst [vmem:[#allocation3 + $0x3e4] sm:$0xf] %v3108
        %3141 = vst [vmem:[#allocation3 + $0x408] sm:$0xf] %v3109
        %3142 = vst [vmem:[#allocation3 + $0x42c] sm:$0xf] %v3110
        %3143 = vst [vmem:[#allocation3 + $0x450] sm:$0xf] %v3111
        %3144 = vst [vmem:[#allocation3 + $0x474] sm:$0xf] %v3112
        %v3145 = vld [vmem:[%s3080] sm:$0xf]
        %v3146 = vld [vmem:[%s3080 + $0x4] sm:$0xf]
        %v3147 = vld [vmem:[%s3080 + $0x8] sm:$0x1]
        %v3148 = vld [vmem:[%s3080 + $0xc] sm:$0xf]
        %v3149 = vld [vmem:[%s3080 + $0x10] sm:$0xf]
        %v3150 = vld [vmem:[%s3080 + $0x14] sm:$0x1]
        %v3151 = vld [vmem:[%s3080 + $0x18] sm:$0xf]
        %v3152 = vld [vmem:[%s3080 + $0x1c] sm:$0xf]
        %v3153 = vld [vmem:[%s3080 + $0x20] sm:$0x1]
        %v3154 = vld [vmem:[%s3080 + $0x24] sm:$0xf]
        %v3155 = vld [vmem:[%s3080 + $0x28] sm:$0xf]
        %v3156 = vld [vmem:[%s3080 + $0x2c] sm:$0x1]
        %v3157 = vld [vmem:[%s3080 + $0x30] sm:$0xf]
        %v3158 = vld [vmem:[%s3080 + $0x34] sm:$0xf]
        %v3159 = vld [vmem:[%s3080 + $0x38] sm:$0x1]
        %v3160 = vld [vmem:[%s3080 + $0x3c] sm:$0xf]
        %v3161 = vld [vmem:[%s3080 + $0x40] sm:$0xf]
        %v3162 = vld [vmem:[%s3080 + $0x44] sm:$0x1]
        %v3163 = vld [vmem:[%s3080 + $0x48] sm:$0xf]
        %v3164 = vld [vmem:[%s3080 + $0x4c] sm:$0xf]
        %v3165 = vld [vmem:[%s3080 + $0x50] sm:$0x1]
        %v3166 = vld [vmem:[%s3080 + $0x54] sm:$0xf]
        %v3167 = vld [vmem:[%s3080 + $0x58] sm:$0xf]
        %v3168 = vld [vmem:[%s3080 + $0x5c] sm:$0x1]
        %v3169 = vld [vmem:[%s3080 + $0x60] sm:$0xf]
        %v3170 = vld [vmem:[%s3080 + $0x64] sm:$0xf]
        %v3171 = vld [vmem:[%s3080 + $0x68] sm:$0x1]
        %v3172 = vld [vmem:[%s3080 + $0x6c] sm:$0xf]
        %v3173 = vld [vmem:[%s3080 + $0x70] sm:$0xf]
        %v3174 = vld [vmem:[%s3080 + $0x74] sm:$0x1]
        %v3175 = vld [vmem:[%s3080 + $0x78] sm:$0xf]
        %v3176 = vld [vmem:[%s3080 + $0x7c] sm:$0xf]
        %v3177 = vld [vmem:[%s3080 + $0x80] sm:$0x1]
        %v3178 = vld [vmem:[%s3080 + $0x84] sm:$0xf]
        %v3179 = vld [vmem:[%s3080 + $0x88] sm:$0xf]
        %v3180 = vld [vmem:[%s3080 + $0x8c] sm:$0x1]
        %v3181 = vld [vmem:[%s3080 + $0x90] sm:$0xf]
        %v3182 = vld [vmem:[%s3080 + $0x94] sm:$0xf]
        %v3183 = vld [vmem:[%s3080 + $0x98] sm:$0x1]
        %v3184 = vld [vmem:[%s3080 + $0x9c] sm:$0xf]
        %v3185 = vld [vmem:[%s3080 + $0xa0] sm:$0xf]
        %v3186 = vld [vmem:[%s3080 + $0xa4] sm:$0x1]
        %v3187 = vld [vmem:[%s3080 + $0xa8] sm:$0xf]
        %v3188 = vld [vmem:[%s3080 + $0xac] sm:$0xf]
        %v3189 = vld [vmem:[%s3080 + $0xb0] sm:$0x1]
        %v3190 = vld [vmem:[%s3080 + $0xb4] sm:$0xf]
        %v3191 = vld [vmem:[%s3080 + $0xb8] sm:$0xf]
        %v3192 = vld [vmem:[%s3080 + $0xbc] sm:$0x1]
        %v3194 = vshrl.u32 %v3145, 16
        %v3196 = vrot.slane %v3194, 4
        %v3197 = vshll.u32 %v3145, 16
        %v3199 = vrot.slane %v3197, 5
        %v3200 = vor.u32 %v3196, %v3199
        %v3201 = vrot.slane %v3200, 4
        %v3203 = vshll.u32 %v3146, 16
        %v3205 = vrot.slane %v3203, 5
        %v3206 = vsel %vm1524, %v3201, %v3205
        %v3207 = vshrl.u32 %v3146, 16
        %v3209 = vrot.slane %v3207, 4
        %v3210 = vor.u32 %v3209, %v3205
        %v3211 = vrot.slane %v3210, 4
        %v3213 = vshll.u32 %v3147, 16
        %v3215 = vrot.slane %v3213, 5
        %v3216 = vsel %vm1524, %v3211, %v3215
        %v3218 = vshrl.u32 %v3148, 16
        %v3220 = vrot.slane %v3218, 4
        %v3221 = vshll.u32 %v3148, 16
        %v3223 = vrot.slane %v3221, 5
        %v3224 = vor.u32 %v3220, %v3223
        %v3225 = vrot.slane %v3224, 4
        %v3227 = vshll.u32 %v3149, 16
        %v3229 = vrot.slane %v3227, 5
        %v3230 = vsel %vm1524, %v3225, %v3229
        %v3231 = vshrl.u32 %v3149, 16
        %v3233 = vrot.slane %v3231, 4
        %v3234 = vor.u32 %v3233, %v3229
        %v3235 = vrot.slane %v3234, 4
        %v3237 = vshll.u32 %v3150, 16
        %v3239 = vrot.slane %v3237, 5
        %v3240 = vsel %vm1524, %v3235, %v3239
        %v3242 = vshrl.u32 %v3151, 16
        %v3244 = vrot.slane %v3242, 4
        %v3245 = vshll.u32 %v3151, 16
        %v3247 = vrot.slane %v3245, 5
        %v3248 = vor.u32 %v3244, %v3247
        %v3249 = vrot.slane %v3248, 4
        %v3251 = vshll.u32 %v3152, 16
        %v3253 = vrot.slane %v3251, 5
        %v3254 = vsel %vm1524, %v3249, %v3253
        %v3255 = vshrl.u32 %v3152, 16
        %v3257 = vrot.slane %v3255, 4
        %v3258 = vor.u32 %v3257, %v3253
        %v3259 = vrot.slane %v3258, 4
        %v3261 = vshll.u32 %v3153, 16
        %v3263 = vrot.slane %v3261, 5
        %v3264 = vsel %vm1524, %v3259, %v3263
        %v3266 = vshrl.u32 %v3154, 16
        %v3268 = vrot.slane %v3266, 4
        %v3269 = vshll.u32 %v3154, 16
        %v3271 = vrot.slane %v3269, 5
        %v3272 = vor.u32 %v3268, %v3271
        %v3273 = vrot.slane %v3272, 4
        %v3275 = vshll.u32 %v3155, 16
        %v3277 = vrot.slane %v3275, 5
        %v3278 = vsel %vm1524, %v3273, %v3277
        %v3279 = vshrl.u32 %v3155, 16
        %v3281 = vrot.slane %v3279, 4
        %v3282 = vor.u32 %v3281, %v3277
        %v3283 = vrot.slane %v3282, 4
        %v3285 = vshll.u32 %v3156, 16
        %v3287 = vrot.slane %v3285, 5
        %v3288 = vsel %vm1524, %v3283, %v3287
        %v3290 = vshrl.u32 %v3157, 16
        %v3292 = vrot.slane %v3290, 4
        %v3293 = vshll.u32 %v3157, 16
        %v3295 = vrot.slane %v3293, 5
        %v3296 = vor.u32 %v3292, %v3295
        %v3297 = vrot.slane %v3296, 4
        %v3299 = vshll.u32 %v3158, 16
        %v3301 = vrot.slane %v3299, 5
        %v3302 = vsel %vm1524, %v3297, %v3301
        %v3303 = vshrl.u32 %v3158, 16
        %v3305 = vrot.slane %v3303, 4
        %v3306 = vor.u32 %v3305, %v3301
        %v3307 = vrot.slane %v3306, 4
        %v3309 = vshll.u32 %v3159, 16
        %v3311 = vrot.slane %v3309, 5
        %v3312 = vsel %vm1524, %v3307, %v3311
        %v3314 = vshrl.u32 %v3160, 16
        %v3316 = vrot.slane %v3314, 4
        %v3317 = vshll.u32 %v3160, 16
        %v3319 = vrot.slane %v3317, 5
        %v3320 = vor.u32 %v3316, %v3319
        %v3321 = vrot.slane %v3320, 4
        %v3323 = vshll.u32 %v3161, 16
        %v3325 = vrot.slane %v3323, 5
        %v3326 = vsel %vm1524, %v3321, %v3325
        %v3327 = vshrl.u32 %v3161, 16
        %v3329 = vrot.slane %v3327, 4
        %v3330 = vor.u32 %v3329, %v3325
        %v3331 = vrot.slane %v3330, 4
        %v3333 = vshll.u32 %v3162, 16
        %v3335 = vrot.slane %v3333, 5
        %v3336 = vsel %vm1524, %v3331, %v3335
        %v3338 = vshrl.u32 %v3163, 16
        %v3340 = vrot.slane %v3338, 4
        %v3341 = vshll.u32 %v3163, 16
        %v3343 = vrot.slane %v3341, 5
        %v3344 = vor.u32 %v3340, %v3343
        %v3345 = vrot.slane %v3344, 4
        %v3347 = vshll.u32 %v3164, 16
        %v3349 = vrot.slane %v3347, 5
        %v3350 = vsel %vm1524, %v3345, %v3349
        %v3351 = vshrl.u32 %v3164, 16
        %v3353 = vrot.slane %v3351, 4
        %v3354 = vor.u32 %v3353, %v3349
        %v3355 = vrot.slane %v3354, 4
        %v3357 = vshll.u32 %v3165, 16
        %v3359 = vrot.slane %v3357, 5
        %v3360 = vsel %vm1524, %v3355, %v3359
        %v3362 = vshrl.u32 %v3166, 16
        %v3364 = vrot.slane %v3362, 4
        %v3365 = vshll.u32 %v3166, 16
        %v3367 = vrot.slane %v3365, 5
        %v3368 = vor.u32 %v3364, %v3367
        %v3369 = vrot.slane %v3368, 4
        %v3371 = vshll.u32 %v3167, 16
        %v3373 = vrot.slane %v3371, 5
        %v3374 = vsel %vm1524, %v3369, %v3373
        %v3375 = vshrl.u32 %v3167, 16
        %v3377 = vrot.slane %v3375, 4
        %v3378 = vor.u32 %v3377, %v3373
        %v3379 = vrot.slane %v3378, 4
        %v3381 = vshll.u32 %v3168, 16
        %v3383 = vrot.slane %v3381, 5
        %v3384 = vsel %vm1524, %v3379, %v3383
        %v3386 = vshrl.u32 %v3169, 16
        %v3388 = vrot.slane %v3386, 4
        %v3389 = vshll.u32 %v3169, 16
        %v3391 = vrot.slane %v3389, 5
        %v3392 = vor.u32 %v3388, %v3391
        %v3393 = vrot.slane %v3392, 4
        %v3395 = vshll.u32 %v3170, 16
        %v3397 = vrot.slane %v3395, 5
        %v3398 = vsel %vm1524, %v3393, %v3397
        %v3399 = vshrl.u32 %v3170, 16
        %v3401 = vrot.slane %v3399, 4
        %v3402 = vor.u32 %v3401, %v3397
        %v3403 = vrot.slane %v3402, 4
        %v3405 = vshll.u32 %v3171, 16
        %v3407 = vrot.slane %v3405, 5
        %v3408 = vsel %vm1524, %v3403, %v3407
        %v3410 = vshrl.u32 %v3172, 16
        %v3412 = vrot.slane %v3410, 4
        %v3413 = vshll.u32 %v3172, 16
        %v3415 = vrot.slane %v3413, 5
        %v3416 = vor.u32 %v3412, %v3415
        %v3417 = vrot.slane %v3416, 4
        %v3419 = vshll.u32 %v3173, 16
        %v3421 = vrot.slane %v3419, 5
        %v3422 = vsel %vm1524, %v3417, %v3421
        %v3423 = vshrl.u32 %v3173, 16
        %v3425 = vrot.slane %v3423, 4
        %v3426 = vor.u32 %v3425, %v3421
        %v3427 = vrot.slane %v3426, 4
        %v3429 = vshll.u32 %v3174, 16
        %v3431 = vrot.slane %v3429, 5
        %v3432 = vsel %vm1524, %v3427, %v3431
        %v3434 = vshrl.u32 %v3175, 16
        %v3436 = vrot.slane %v3434, 4
        %v3437 = vshll.u32 %v3175, 16
        %v3439 = vrot.slane %v3437, 5
        %v3440 = vor.u32 %v3436, %v3439
        %v3441 = vrot.slane %v3440, 4
        %v3443 = vshll.u32 %v3176, 16
        %v3445 = vrot.slane %v3443, 5
        %v3446 = vsel %vm1524, %v3441, %v3445
        %v3447 = vshrl.u32 %v3176, 16
        %v3449 = vrot.slane %v3447, 4
        %v3450 = vor.u32 %v3449, %v3445
        %v3451 = vrot.slane %v3450, 4
        %v3453 = vshll.u32 %v3177, 16
        %v3455 = vrot.slane %v3453, 5
        %v3456 = vsel %vm1524, %v3451, %v3455
        %v3458 = vshrl.u32 %v3178, 16
        %v3460 = vrot.slane %v3458, 4
        %v3461 = vshll.u32 %v3178, 16
        %v3463 = vrot.slane %v3461, 5
        %v3464 = vor.u32 %v3460, %v3463
        %v3465 = vrot.slane %v3464, 4
        %v3467 = vshll.u32 %v3179, 16
        %v3469 = vrot.slane %v3467, 5
        %v3470 = vsel %vm1524, %v3465, %v3469
        %v3471 = vshrl.u32 %v3179, 16
        %v3473 = vrot.slane %v3471, 4
        %v3474 = vor.u32 %v3473, %v3469
        %v3475 = vrot.slane %v3474, 4
        %v3477 = vshll.u32 %v3180, 16
        %v3479 = vrot.slane %v3477, 5
        %v3480 = vsel %vm1524, %v3475, %v3479
        %v3482 = vshrl.u32 %v3181, 16
        %v3484 = vrot.slane %v3482, 4
        %v3485 = vshll.u32 %v3181, 16
        %v3487 = vrot.slane %v3485, 5
        %v3488 = vor.u32 %v3484, %v3487
        %v3489 = vrot.slane %v3488, 4
        %v3491 = vshll.u32 %v3182, 16
        %v3493 = vrot.slane %v3491, 5
        %v3494 = vsel %vm1524, %v3489, %v3493
        %v3495 = vshrl.u32 %v3182, 16
        %v3497 = vrot.slane %v3495, 4
        %v3498 = vor.u32 %v3497, %v3493
        %v3499 = vrot.slane %v3498, 4
        %v3501 = vshll.u32 %v3183, 16
        %v3503 = vrot.slane %v3501, 5
        %v3504 = vsel %vm1524, %v3499, %v3503
        %v3506 = vshrl.u32 %v3184, 16
        %v3508 = vrot.slane %v3506, 4
        %v3509 = vshll.u32 %v3184, 16
        %v3511 = vrot.slane %v3509, 5
        %v3512 = vor.u32 %v3508, %v3511
        %v3513 = vrot.slane %v3512, 4
        %v3515 = vshll.u32 %v3185, 16
        %v3517 = vrot.slane %v3515, 5
        %v3518 = vsel %vm1524, %v3513, %v3517
        %v3519 = vshrl.u32 %v3185, 16
        %v3521 = vrot.slane %v3519, 4
        %v3522 = vor.u32 %v3521, %v3517
        %v3523 = vrot.slane %v3522, 4
        %v3525 = vshll.u32 %v3186, 16
        %v3527 = vrot.slane %v3525, 5
        %v3528 = vsel %vm1524, %v3523, %v3527
        %v3530 = vshrl.u32 %v3187, 16
        %v3532 = vrot.slane %v3530, 4
        %v3533 = vshll.u32 %v3187, 16
        %v3535 = vrot.slane %v3533, 5
        %v3536 = vor.u32 %v3532, %v3535
        %v3537 = vrot.slane %v3536, 4
        %v3539 = vshll.u32 %v3188, 16
        %v3541 = vrot.slane %v3539, 5
        %v3542 = vsel %vm1524, %v3537, %v3541
        %v3543 = vshrl.u32 %v3188, 16
        %v3545 = vrot.slane %v3543, 4
        %v3546 = vor.u32 %v3545, %v3541
        %v3547 = vrot.slane %v3546, 4
        %v3549 = vshll.u32 %v3189, 16
        %v3551 = vrot.slane %v3549, 5
        %v3552 = vsel %vm1524, %v3547, %v3551
        %v3554 = vshrl.u32 %v3190, 16
        %v3556 = vrot.slane %v3554, 4
        %v3557 = vshll.u32 %v3190, 16
        %v3559 = vrot.slane %v3557, 5
        %v3560 = vor.u32 %v3556, %v3559
        %v3561 = vrot.slane %v3560, 4
        %v3563 = vshll.u32 %v3191, 16
        %v3565 = vrot.slane %v3563, 5
        %v3566 = vsel %vm1524, %v3561, %v3565
        %v3567 = vshrl.u32 %v3191, 16
        %v3569 = vrot.slane %v3567, 4
        %v3570 = vor.u32 %v3569, %v3565
        %v3571 = vrot.slane %v3570, 4
        %v3573 = vshll.u32 %v3192, 16
        %v3575 = vrot.slane %v3573, 5
        %v3576 = vsel %vm1524, %v3571, %v3575
        %3609 = vst [vmem:[#allocation3 + $0x1c] sm:$0xf] %v3206
        %3610 = vst [vmem:[#allocation3 + $0x40] sm:$0xf] %v3216
        %3611 = vst [vmem:[#allocation3 + $0x64] sm:$0xf] %v3230
        %3612 = vst [vmem:[#allocation3 + $0x88] sm:$0xf] %v3240
        %3613 = vst [vmem:[#allocation3 + $0xac] sm:$0xf] %v3254
        %3614 = vst [vmem:[#allocation3 + $0xd0] sm:$0xf] %v3264
        %3615 = vst [vmem:[#allocation3 + $0xf4] sm:$0xf] %v3278
        %3616 = vst [vmem:[#allocation3 + $0x118] sm:$0xf] %v3288
        %3617 = vst [vmem:[#allocation3 + $0x13c] sm:$0xf] %v3302
        %3618 = vst [vmem:[#allocation3 + $0x160] sm:$0xf] %v3312
        %3619 = vst [vmem:[#allocation3 + $0x184] sm:$0xf] %v3326
        %3620 = vst [vmem:[#allocation3 + $0x1a8] sm:$0xf] %v3336
        %3621 = vst [vmem:[#allocation3 + $0x1cc] sm:$0xf] %v3350
        %3622 = vst [vmem:[#allocation3 + $0x1f0] sm:$0xf] %v3360
        %3623 = vst [vmem:[#allocation3 + $0x214] sm:$0xf] %v3374
        %3624 = vst [vmem:[#allocation3 + $0x238] sm:$0xf] %v3384
        %3625 = vst [vmem:[#allocation3 + $0x25c] sm:$0xf] %v3398
        %3626 = vst [vmem:[#allocation3 + $0x280] sm:$0xf] %v3408
        %3627 = vst [vmem:[#allocation3 + $0x2a4] sm:$0xf] %v3422
        %3628 = vst [vmem:[#allocation3 + $0x2c8] sm:$0xf] %v3432
        %3629 = vst [vmem:[#allocation3 + $0x2ec] sm:$0xf] %v3446
        %3630 = vst [vmem:[#allocation3 + $0x310] sm:$0xf] %v3456
        %3631 = vst [vmem:[#allocation3 + $0x334] sm:$0xf] %v3470
        %3632 = vst [vmem:[#allocation3 + $0x358] sm:$0xf] %v3480
        %3633 = vst [vmem:[#allocation3 + $0x37c] sm:$0xf] %v3494
        %3634 = vst [vmem:[#allocation3 + $0x3a0] sm:$0xf] %v3504
        %3635 = vst [vmem:[#allocation3 + $0x3c4] sm:$0xf] %v3518
        %3636 = vst [vmem:[#allocation3 + $0x3e8] sm:$0xf] %v3528
        %3637 = vst [vmem:[#allocation3 + $0x40c] sm:$0xf] %v3542
        %3638 = vst [vmem:[#allocation3 + $0x430] sm:$0xf] %v3552
        %3639 = vst [vmem:[#allocation3 + $0x454] sm:$0xf] %v3566
        %3640 = vst [vmem:[#allocation3 + $0x478] sm:$0xf] %v3576
        %v3641 = vld [vmem:[%s3080] sm:$0xe]
        %v3642 = vld [vmem:[%s3080 + $0x4] sm:$0xf]
        %v3643 = vld [vmem:[%s3080 + $0x8] sm:$0x1]
        %v3644 = vld [vmem:[%s3080 + $0xc] sm:$0xe]
        %v3645 = vld [vmem:[%s3080 + $0x10] sm:$0xf]
        %v3646 = vld [vmem:[%s3080 + $0x14] sm:$0x1]
        %v3647 = vld [vmem:[%s3080 + $0x18] sm:$0xe]
        %v3648 = vld [vmem:[%s3080 + $0x1c] sm:$0xf]
        %v3649 = vld [vmem:[%s3080 + $0x20] sm:$0x1]
        %v3650 = vld [vmem:[%s3080 + $0x24] sm:$0xe]
        %v3651 = vld [vmem:[%s3080 + $0x28] sm:$0xf]
        %v3652 = vld [vmem:[%s3080 + $0x2c] sm:$0x1]
        %v3653 = vld [vmem:[%s3080 + $0x30] sm:$0xe]
        %v3654 = vld [vmem:[%s3080 + $0x34] sm:$0xf]
        %v3655 = vld [vmem:[%s3080 + $0x38] sm:$0x1]
        %v3656 = vld [vmem:[%s3080 + $0x3c] sm:$0xe]
        %v3657 = vld [vmem:[%s3080 + $0x40] sm:$0xf]
        %v3658 = vld [vmem:[%s3080 + $0x44] sm:$0x1]
        %v3659 = vld [vmem:[%s3080 + $0x48] sm:$0xe]
        %v3660 = vld [vmem:[%s3080 + $0x4c] sm:$0xf]
        %v3661 = vld [vmem:[%s3080 + $0x50] sm:$0x1]
        %v3662 = vld [vmem:[%s3080 + $0x54] sm:$0xe]
        %v3663 = vld [vmem:[%s3080 + $0x58] sm:$0xf]
        %v3664 = vld [vmem:[%s3080 + $0x5c] sm:$0x1]
        %v3665 = vld [vmem:[%s3080 + $0x60] sm:$0xe]
        %v3666 = vld [vmem:[%s3080 + $0x64] sm:$0xf]
        %v3667 = vld [vmem:[%s3080 + $0x68] sm:$0x1]
        %v3668 = vld [vmem:[%s3080 + $0x6c] sm:$0xe]
        %v3669 = vld [vmem:[%s3080 + $0x70] sm:$0xf]
        %v3670 = vld [vmem:[%s3080 + $0x74] sm:$0x1]
        %v3671 = vld [vmem:[%s3080 + $0x78] sm:$0xe]
        %v3672 = vld [vmem:[%s3080 + $0x7c] sm:$0xf]
        %v3673 = vld [vmem:[%s3080 + $0x80] sm:$0x1]
        %v3674 = vld [vmem:[%s3080 + $0x84] sm:$0xe]
        %v3675 = vld [vmem:[%s3080 + $0x88] sm:$0xf]
        %v3676 = vld [vmem:[%s3080 + $0x8c] sm:$0x1]
        %v3677 = vld [vmem:[%s3080 + $0x90] sm:$0xe]
        %v3678 = vld [vmem:[%s3080 + $0x94] sm:$0xf]
        %v3679 = vld [vmem:[%s3080 + $0x98] sm:$0x1]
        %v3680 = vld [vmem:[%s3080 + $0x9c] sm:$0xe]
        %v3681 = vld [vmem:[%s3080 + $0xa0] sm:$0xf]
        %v3682 = vld [vmem:[%s3080 + $0xa4] sm:$0x1]
        %v3683 = vld [vmem:[%s3080 + $0xa8] sm:$0xe]
        %v3684 = vld [vmem:[%s3080 + $0xac] sm:$0xf]
        %v3685 = vld [vmem:[%s3080 + $0xb0] sm:$0x1]
        %v3686 = vld [vmem:[%s3080 + $0xb4] sm:$0xe]
        %v3687 = vld [vmem:[%s3080 + $0xb8] sm:$0xf]
        %v3688 = vld [vmem:[%s3080 + $0xbc] sm:$0x1]
        %v3737 = vrot.slane %v3641, 5
        %v3738 = vrot.slane %v3737, 4
        %v3739 = vrot.slane %v3642, 5
        %v3740 = vsel %vm2071, %v3738, %v3739
        %v3741 = vrot.slane %v3739, 4
        %v3742 = vrot.slane %v3643, 5
        %v3743 = vsel %vm2071, %v3741, %v3742
        %v3744 = vrot.slane %v3644, 5
        %v3745 = vrot.slane %v3744, 4
        %v3746 = vrot.slane %v3645, 5
        %v3747 = vsel %vm2071, %v3745, %v3746
        %v3748 = vrot.slane %v3746, 4
        %v3749 = vrot.slane %v3646, 5
        %v3750 = vsel %vm2071, %v3748, %v3749
        %v3751 = vrot.slane %v3647, 5
        %v3752 = vrot.slane %v3751, 4
        %v3753 = vrot.slane %v3648, 5
        %v3754 = vsel %vm2071, %v3752, %v3753
        %v3755 = vrot.slane %v3753, 4
        %v3756 = vrot.slane %v3649, 5
        %v3757 = vsel %vm2071, %v3755, %v3756
        %v3758 = vrot.slane %v3650, 5
        %v3759 = vrot.slane %v3758, 4
        %v3760 = vrot.slane %v3651, 5
        %v3761 = vsel %vm2071, %v3759, %v3760
        %v3762 = vrot.slane %v3760, 4
        %v3763 = vrot.slane %v3652, 5
        %v3764 = vsel %vm2071, %v3762, %v3763
        %v3765 = vrot.slane %v3653, 5
        %v3766 = vrot.slane %v3765, 4
        %v3767 = vrot.slane %v3654, 5
        %v3768 = vsel %vm2071, %v3766, %v3767
        %v3769 = vrot.slane %v3767, 4
        %v3770 = vrot.slane %v3655, 5
        %v3771 = vsel %vm2071, %v3769, %v3770
        %v3772 = vrot.slane %v3656, 5
        %v3773 = vrot.slane %v3772, 4
        %v3774 = vrot.slane %v3657, 5
        %v3775 = vsel %vm2071, %v3773, %v3774
        %v3776 = vrot.slane %v3774, 4
        %v3777 = vrot.slane %v3658, 5
        %v3778 = vsel %vm2071, %v3776, %v3777
        %v3779 = vrot.slane %v3659, 5
        %v3780 = vrot.slane %v3779, 4
        %v3781 = vrot.slane %v3660, 5
        %v3782 = vsel %vm2071, %v3780, %v3781
        %v3783 = vrot.slane %v3781, 4
        %v3784 = vrot.slane %v3661, 5
        %v3785 = vsel %vm2071, %v3783, %v3784
        %v3786 = vrot.slane %v3662, 5
        %v3787 = vrot.slane %v3786, 4
        %v3788 = vrot.slane %v3663, 5
        %v3789 = vsel %vm2071, %v3787, %v3788
        %v3790 = vrot.slane %v3788, 4
        %v3791 = vrot.slane %v3664, 5
        %v3792 = vsel %vm2071, %v3790, %v3791
        %v3793 = vrot.slane %v3665, 5
        %v3794 = vrot.slane %v3793, 4
        %v3795 = vrot.slane %v3666, 5
        %v3796 = vsel %vm2071, %v3794, %v3795
        %v3797 = vrot.slane %v3795, 4
        %v3798 = vrot.slane %v3667, 5
        %v3799 = vsel %vm2071, %v3797, %v3798
        %v3800 = vrot.slane %v3668, 5
        %v3801 = vrot.slane %v3800, 4
        %v3802 = vrot.slane %v3669, 5
        %v3803 = vsel %vm2071, %v3801, %v3802
        %v3804 = vrot.slane %v3802, 4
        %v3805 = vrot.slane %v3670, 5
        %v3806 = vsel %vm2071, %v3804, %v3805
        %v3807 = vrot.slane %v3671, 5
        %v3808 = vrot.slane %v3807, 4
        %v3809 = vrot.slane %v3672, 5
        %v3810 = vsel %vm2071, %v3808, %v3809
        %v3811 = vrot.slane %v3809, 4
        %v3812 = vrot.slane %v3673, 5
        %v3813 = vsel %vm2071, %v3811, %v3812
        %v3814 = vrot.slane %v3674, 5
        %v3815 = vrot.slane %v3814, 4
        %v3816 = vrot.slane %v3675, 5
        %v3817 = vsel %vm2071, %v3815, %v3816
        %v3818 = vrot.slane %v3816, 4
        %v3819 = vrot.slane %v3676, 5
        %v3820 = vsel %vm2071, %v3818, %v3819
        %v3821 = vrot.slane %v3677, 5
        %v3822 = vrot.slane %v3821, 4
        %v3823 = vrot.slane %v3678, 5
        %v3824 = vsel %vm2071, %v3822, %v3823
        %v3825 = vrot.slane %v3823, 4
        %v3826 = vrot.slane %v3679, 5
        %v3827 = vsel %vm2071, %v3825, %v3826
        %v3828 = vrot.slane %v3680, 5
        %v3829 = vrot.slane %v3828, 4
        %v3830 = vrot.slane %v3681, 5
        %v3831 = vsel %vm2071, %v3829, %v3830
        %v3832 = vrot.slane %v3830, 4
        %v3833 = vrot.slane %v3682, 5
        %v3834 = vsel %vm2071, %v3832, %v3833
        %v3835 = vrot.slane %v3683, 5
        %v3836 = vrot.slane %v3835, 4
        %v3837 = vrot.slane %v3684, 5
        %v3838 = vsel %vm2071, %v3836, %v3837
        %v3839 = vrot.slane %v3837, 4
        %v3840 = vrot.slane %v3685, 5
        %v3841 = vsel %vm2071, %v3839, %v3840
        %v3842 = vrot.slane %v3686, 5
        %v3843 = vrot.slane %v3842, 4
        %v3844 = vrot.slane %v3687, 5
        %v3845 = vsel %vm2071, %v3843, %v3844
        %v3846 = vrot.slane %v3844, 4
        %v3847 = vrot.slane %v3688, 5
        %v3848 = vsel %vm2071, %v3846, %v3847
        %3881 = vst [vmem:[#allocation3 + $0x20] sm:$0xf] %v3740
        %3882 = vst [vmem:[#allocation3 + $0x44] sm:$0xf] %v3743
        %3883 = vst [vmem:[#allocation3 + $0x68] sm:$0xf] %v3747
        %3884 = vst [vmem:[#allocation3 + $0x8c] sm:$0xf] %v3750
        %3885 = vst [vmem:[#allocation3 + $0xb0] sm:$0xf] %v3754
        %3886 = vst [vmem:[#allocation3 + $0xd4] sm:$0xf] %v3757
        %3887 = vst [vmem:[#allocation3 + $0xf8] sm:$0xf] %v3761
        %3888 = vst [vmem:[#allocation3 + $0x11c] sm:$0xf] %v3764
        %3889 = vst [vmem:[#allocation3 + $0x140] sm:$0xf] %v3768
        %3890 = vst [vmem:[#allocation3 + $0x164] sm:$0xf] %v3771
        %3891 = vst [vmem:[#allocation3 + $0x188] sm:$0xf] %v3775
        %3892 = vst [vmem:[#allocation3 + $0x1ac] sm:$0xf] %v3778
        %3893 = vst [vmem:[#allocation3 + $0x1d0] sm:$0xf] %v3782
        %3894 = vst [vmem:[#allocation3 + $0x1f4] sm:$0xf] %v3785
        %3895 = vst [vmem:[#allocation3 + $0x218] sm:$0xf] %v3789
        %3896 = vst [vmem:[#allocation3 + $0x23c] sm:$0xf] %v3792
        %3897 = vst [vmem:[#allocation3 + $0x260] sm:$0xf] %v3796
        %3898 = vst [vmem:[#allocation3 + $0x284] sm:$0xf] %v3799
        %3899 = vst [vmem:[#allocation3 + $0x2a8] sm:$0xf] %v3803
        %3900 = vst [vmem:[#allocation3 + $0x2cc] sm:$0xf] %v3806
        %3901 = vst [vmem:[#allocation3 + $0x2f0] sm:$0xf] %v3810
        %3902 = vst [vmem:[#allocation3 + $0x314] sm:$0xf] %v3813
        %3903 = vst [vmem:[#allocation3 + $0x338] sm:$0xf] %v3817
        %3904 = vst [vmem:[#allocation3 + $0x35c] sm:$0xf] %v3820
        %3905 = vst [vmem:[#allocation3 + $0x380] sm:$0xf] %v3824
        %3906 = vst [vmem:[#allocation3 + $0x3a4] sm:$0xf] %v3827
        %3907 = vst [vmem:[#allocation3 + $0x3c8] sm:$0xf] %v3831
        %3908 = vst [vmem:[#allocation3 + $0x3ec] sm:$0xf] %v3834
        %3909 = vst [vmem:[#allocation3 + $0x410] sm:$0xf] %v3838
        %3910 = vst [vmem:[#allocation3 + $0x434] sm:$0xf] %v3841
        %3911 = vst [vmem:[#allocation3 + $0x458] sm:$0xf] %v3845
        %3912 = vst [vmem:[#allocation3 + $0x47c] sm:$0xf] %v3848
        %v3913 = vld [vmem:[#allocation3] sm:$0xff]
        %v3914 = vld [vmem:[#allocation3 + $0x8] sm:$0xff]
        %v3915 = vld [vmem:[#allocation3 + $0x10] sm:$0xff]
        %v3916 = vld [vmem:[#allocation3 + $0x18] sm:$0xff]
        %v3917 = vld [vmem:[#allocation3 + $0x20] sm:$0xf]
        %v3918 = vld [vmem:[#allocation3 + $0x24] sm:$0xff]
        %v3919 = vld [vmem:[#allocation3 + $0x2c] sm:$0xff]
        %v3920 = vld [vmem:[#allocation3 + $0x34] sm:$0xff]
        %v3921 = vld [vmem:[#allocation3 + $0x3c] sm:$0xff]
        %v3922 = vld [vmem:[#allocation3 + $0x44] sm:$0xf]
        %v3923 = vld [vmem:[#allocation3 + $0x48] sm:$0xff]
        %v3924 = vld [vmem:[#allocation3 + $0x50] sm:$0xff]
        %v3925 = vld [vmem:[#allocation3 + $0x58] sm:$0xff]
        %v3926 = vld [vmem:[#allocation3 + $0x60] sm:$0xff]
        %v3927 = vld [vmem:[#allocation3 + $0x68] sm:$0xf]
        %v3928 = vld [vmem:[#allocation3 + $0x6c] sm:$0xff]
        %v3929 = vld [vmem:[#allocation3 + $0x74] sm:$0xff]
        %v3930 = vld [vmem:[#allocation3 + $0x7c] sm:$0xff]
        %v3931 = vld [vmem:[#allocation3 + $0x84] sm:$0xff]
        %v3932 = vld [vmem:[#allocation3 + $0x8c] sm:$0xf]
        %v3933 = vld [vmem:[#allocation3 + $0x90] sm:$0xff]
        %v3934 = vld [vmem:[#allocation3 + $0x98] sm:$0xff]
        %v3935 = vld [vmem:[#allocation3 + $0xa0] sm:$0xff]
        %v3936 = vld [vmem:[#allocation3 + $0xa8] sm:$0xff]
        %v3937 = vld [vmem:[#allocation3 + $0xb0] sm:$0xf]
        %v3938 = vld [vmem:[#allocation3 + $0xb4] sm:$0xff]
        %v3939 = vld [vmem:[#allocation3 + $0xbc] sm:$0xff]
        %v3940 = vld [vmem:[#allocation3 + $0xc4] sm:$0xff]
        %v3941 = vld [vmem:[#allocation3 + $0xcc] sm:$0xff]
        %v3942 = vld [vmem:[#allocation3 + $0xd4] sm:$0xf]
        %v3943 = vld [vmem:[#allocation3 + $0xd8] sm:$0xff]
        %v3944 = vld [vmem:[#allocation3 + $0xe0] sm:$0xff]
        %v3945 = vld [vmem:[#allocation3 + $0xe8] sm:$0xff]
        %v3946 = vld [vmem:[#allocation3 + $0xf0] sm:$0xff]
        %v3947 = vld [vmem:[#allocation3 + $0xf8] sm:$0xf]
        %v3948 = vld [vmem:[#allocation3 + $0xfc] sm:$0xff]
        %v3949 = vld [vmem:[#allocation3 + $0x104] sm:$0xff]
        %v3950 = vld [vmem:[#allocation3 + $0x10c] sm:$0xff]
        %v3951 = vld [vmem:[#allocation3 + $0x114] sm:$0xff]
        %v3952 = vld [vmem:[#allocation3 + $0x11c] sm:$0xf]
        %v3953 = vld [vmem:[#allocation3 + $0x120] sm:$0xff]
        %v3954 = vld [vmem:[#allocation3 + $0x128] sm:$0xff]
        %v3955 = vld [vmem:[#allocation3 + $0x130] sm:$0xff]
        %v3956 = vld [vmem:[#allocation3 + $0x138] sm:$0xff]
        %v3957 = vld [vmem:[#allocation3 + $0x140] sm:$0xf]
        %v3958 = vld [vmem:[#allocation3 + $0x144] sm:$0xff]
        %v3959 = vld [vmem:[#allocation3 + $0x14c] sm:$0xff]
        %v3960 = vld [vmem:[#allocation3 + $0x154] sm:$0xff]
        %v3961 = vld [vmem:[#allocation3 + $0x15c] sm:$0xff]
        %v3962 = vld [vmem:[#allocation3 + $0x164] sm:$0xf]
        %v3963 = vld [vmem:[#allocation3 + $0x168] sm:$0xff]
        %v3964 = vld [vmem:[#allocation3 + $0x170] sm:$0xff]
        %v3965 = vld [vmem:[#allocation3 + $0x178] sm:$0xff]
        %v3966 = vld [vmem:[#allocation3 + $0x180] sm:$0xff]
        %v3967 = vld [vmem:[#allocation3 + $0x188] sm:$0xf]
        %v3968 = vld [vmem:[#allocation3 + $0x18c] sm:$0xff]
        %v3969 = vld [vmem:[#allocation3 + $0x194] sm:$0xff]
        %v3970 = vld [vmem:[#allocation3 + $0x19c] sm:$0xff]
        %v3971 = vld [vmem:[#allocation3 + $0x1a4] sm:$0xff]
        %v3972 = vld [vmem:[#allocation3 + $0x1ac] sm:$0xf]
        %v3973 = vld [vmem:[#allocation3 + $0x1b0] sm:$0xff]
        %v3974 = vld [vmem:[#allocation3 + $0x1b8] sm:$0xff]
        %v3975 = vld [vmem:[#allocation3 + $0x1c0] sm:$0xff]
        %v3976 = vld [vmem:[#allocation3 + $0x1c8] sm:$0xff]
        %v3977 = vld [vmem:[#allocation3 + $0x1d0] sm:$0xf]
        %v3978 = vld [vmem:[#allocation3 + $0x1d4] sm:$0xff]
        %v3979 = vld [vmem:[#allocation3 + $0x1dc] sm:$0xff]
        %v3980 = vld [vmem:[#allocation3 + $0x1e4] sm:$0xff]
        %v3981 = vld [vmem:[#allocation3 + $0x1ec] sm:$0xff]
        %v3982 = vld [vmem:[#allocation3 + $0x1f4] sm:$0xf]
        %v3983 = vld [vmem:[#allocation3 + $0x1f8] sm:$0xff]
        %v3984 = vld [vmem:[#allocation3 + $0x200] sm:$0xff]
        %v3985 = vld [vmem:[#allocation3 + $0x208] sm:$0xff]
        %v3986 = vld [vmem:[#allocation3 + $0x210] sm:$0xff]
        %v3987 = vld [vmem:[#allocation3 + $0x218] sm:$0xf]
        %v3988 = vld [vmem:[#allocation3 + $0x21c] sm:$0xff]
        %v3989 = vld [vmem:[#allocation3 + $0x224] sm:$0xff]
        %v3990 = vld [vmem:[#allocation3 + $0x22c] sm:$0xff]
        %v3991 = vld [vmem:[#allocation3 + $0x234] sm:$0xff]
        %v3992 = vld [vmem:[#allocation3 + $0x23c] sm:$0xf]
        %v3993 = vld [vmem:[#allocation3 + $0x240] sm:$0xff]
        %v3994 = vld [vmem:[#allocation3 + $0x248] sm:$0xff]
        %v3995 = vld [vmem:[#allocation3 + $0x250] sm:$0xff]
        %v3996 = vld [vmem:[#allocation3 + $0x258] sm:$0xff]
        %v3997 = vld [vmem:[#allocation3 + $0x260] sm:$0xf]
        %v3998 = vld [vmem:[#allocation3 + $0x264] sm:$0xff]
        %v3999 = vld [vmem:[#allocation3 + $0x26c] sm:$0xff]
        %v4000 = vld [vmem:[#allocation3 + $0x274] sm:$0xff]
        %v4001 = vld [vmem:[#allocation3 + $0x27c] sm:$0xff]
        %v4002 = vld [vmem:[#allocation3 + $0x284] sm:$0xf]
        %v4003 = vld [vmem:[#allocation3 + $0x288] sm:$0xff]
        %v4004 = vld [vmem:[#allocation3 + $0x290] sm:$0xff]
        %v4005 = vld [vmem:[#allocation3 + $0x298] sm:$0xff]
        %v4006 = vld [vmem:[#allocation3 + $0x2a0] sm:$0xff]
        %v4007 = vld [vmem:[#allocation3 + $0x2a8] sm:$0xf]
        %v4008 = vld [vmem:[#allocation3 + $0x2ac] sm:$0xff]
        %v4009 = vld [vmem:[#allocation3 + $0x2b4] sm:$0xff]
        %v4010 = vld [vmem:[#allocation3 + $0x2bc] sm:$0xff]
        %v4011 = vld [vmem:[#allocation3 + $0x2c4] sm:$0xff]
        %v4012 = vld [vmem:[#allocation3 + $0x2cc] sm:$0xf]
        %v4013 = vld [vmem:[#allocation3 + $0x2d0] sm:$0xff]
        %v4014 = vld [vmem:[#allocation3 + $0x2d8] sm:$0xff]
        %v4015 = vld [vmem:[#allocation3 + $0x2e0] sm:$0xff]
        %v4016 = vld [vmem:[#allocation3 + $0x2e8] sm:$0xff]
        %v4017 = vld [vmem:[#allocation3 + $0x2f0] sm:$0xf]
        %v4018 = vld [vmem:[#allocation3 + $0x2f4] sm:$0xff]
        %v4019 = vld [vmem:[#allocation3 + $0x2fc] sm:$0xff]
        %v4020 = vld [vmem:[#allocation3 + $0x304] sm:$0xff]
        %v4021 = vld [vmem:[#allocation3 + $0x30c] sm:$0xff]
        %v4022 = vld [vmem:[#allocation3 + $0x314] sm:$0xf]
        %v4023 = vld [vmem:[#allocation3 + $0x318] sm:$0xff]
        %v4024 = vld [vmem:[#allocation3 + $0x320] sm:$0xff]
        %v4025 = vld [vmem:[#allocation3 + $0x328] sm:$0xff]
        %v4026 = vld [vmem:[#allocation3 + $0x330] sm:$0xff]
        %v4027 = vld [vmem:[#allocation3 + $0x338] sm:$0xf]
        %v4028 = vld [vmem:[#allocation3 + $0x33c] sm:$0xff]
        %v4029 = vld [vmem:[#allocation3 + $0x344] sm:$0xff]
        %v4030 = vld [vmem:[#allocation3 + $0x34c] sm:$0xff]
        %v4031 = vld [vmem:[#allocation3 + $0x354] sm:$0xff]
        %v4032 = vld [vmem:[#allocation3 + $0x35c] sm:$0xf]
        %v4033 = vld [vmem:[#allocation3 + $0x360] sm:$0xff]
        %v4034 = vld [vmem:[#allocation3 + $0x368] sm:$0xff]
        %v4035 = vld [vmem:[#allocation3 + $0x370] sm:$0xff]
        %v4036 = vld [vmem:[#allocation3 + $0x378] sm:$0xff]
        %v4037 = vld [vmem:[#allocation3 + $0x380] sm:$0xf]
        %v4038 = vld [vmem:[#allocation3 + $0x384] sm:$0xff]
        %v4039 = vld [vmem:[#allocation3 + $0x38c] sm:$0xff]
        %v4040 = vld [vmem:[#allocation3 + $0x394] sm:$0xff]
        %v4041 = vld [vmem:[#allocation3 + $0x39c] sm:$0xff]
        %v4042 = vld [vmem:[#allocation3 + $0x3a4] sm:$0xf]
        %v4043 = vld [vmem:[#allocation3 + $0x3a8] sm:$0xff]
        %v4044 = vld [vmem:[#allocation3 + $0x3b0] sm:$0xff]
        %v4045 = vld [vmem:[#allocation3 + $0x3b8] sm:$0xff]
        %v4046 = vld [vmem:[#allocation3 + $0x3c0] sm:$0xff]
        %v4047 = vld [vmem:[#allocation3 + $0x3c8] sm:$0xf]
        %v4048 = vld [vmem:[#allocation3 + $0x3cc] sm:$0xff]
        %v4049 = vld [vmem:[#allocation3 + $0x3d4] sm:$0xff]
        %v4050 = vld [vmem:[#allocation3 + $0x3dc] sm:$0xff]
        %v4051 = vld [vmem:[#allocation3 + $0x3e4] sm:$0xff]
        %v4052 = vld [vmem:[#allocation3 + $0x3ec] sm:$0xf]
        %v4053 = vld [vmem:[#allocation3 + $0x3f0] sm:$0xff]
        %v4054 = vld [vmem:[#allocation3 + $0x3f8] sm:$0xff]
        %v4055 = vld [vmem:[#allocation3 + $0x400] sm:$0xff]
        %v4056 = vld [vmem:[#allocation3 + $0x408] sm:$0xff]
        %v4057 = vld [vmem:[#allocation3 + $0x410] sm:$0xf]
        %v4058 = vld [vmem:[#allocation3 + $0x414] sm:$0xff]
        %v4059 = vld [vmem:[#allocation3 + $0x41c] sm:$0xff]
        %v4060 = vld [vmem:[#allocation3 + $0x424] sm:$0xff]
        %v4061 = vld [vmem:[#allocation3 + $0x42c] sm:$0xff]
        %v4062 = vld [vmem:[#allocation3 + $0x434] sm:$0xf]
        %v4063 = vld [vmem:[#allocation3 + $0x438] sm:$0xff]
        %v4064 = vld [vmem:[#allocation3 + $0x440] sm:$0xff]
        %v4065 = vld [vmem:[#allocation3 + $0x448] sm:$0xff]
        %v4066 = vld [vmem:[#allocation3 + $0x450] sm:$0xff]
        %v4067 = vld [vmem:[#allocation3 + $0x458] sm:$0xf]
        %v4068 = vld [vmem:[#allocation3 + $0x45c] sm:$0xff]
        %v4069 = vld [vmem:[#allocation3 + $0x464] sm:$0xff]
        %v4070 = vld [vmem:[#allocation3 + $0x46c] sm:$0xff]
        %v4071 = vld [vmem:[#allocation3 + $0x474] sm:$0xff]
        %v4072 = vld [vmem:[#allocation3 + $0x47c] sm:$0xf]
        %v4073 = vld [vmem:[%s4] sm:$0xf]
        %v4074 = vld [vmem:[%s4 + $0x4] sm:$0xf]
        %v4075 = vld [vmem:[%s4 + $0x8] sm:$0xf]
        %v4076 = vld [vmem:[%s4 + $0xc] sm:$0xf]
        %v4077 = vld [vmem:[%s4 + $0x10] sm:$0xf]
        %v4078 = vld [vmem:[%s4 + $0x14] sm:$0xf]
        %v4079 = vld [vmem:[%s4 + $0x18] sm:$0xf]
        %v4080 = vld [vmem:[%s4 + $0x1c] sm:$0xf]
        %v4081 = vld [vmem:[%s4 + $0x20] sm:$0xf]
        %v4082 = vld [vmem:[%s4 + $0x24] sm:$0xf]
        %v4083 = vld [vmem:[%s4 + $0x28] sm:$0xf]
        %v4084 = vld [vmem:[%s4 + $0x2c] sm:$0xf]
        %v4085 = vld [vmem:[%s4 + $0x30] sm:$0xf]
        %v4086 = vld [vmem:[%s4 + $0x34] sm:$0xf]
        %v4087 = vld [vmem:[%s4 + $0x38] sm:$0xf]
        %v4088 = vld [vmem:[%s4 + $0x3c] sm:$0xf]
        %v4089 = vld [vmem:[%s4 + $0x40] sm:$0xf]
        %v4090 = vld [vmem:[%s4 + $0x44] sm:$0xf]
        %v4091 = vld [vmem:[%s4 + $0x48] sm:$0xf]
        %v4092 = vld [vmem:[%s4 + $0x4c] sm:$0xf]
        %v4093 = vld [vmem:[%s4 + $0x50] sm:$0xf]
        %v4094 = vld [vmem:[%s4 + $0x54] sm:$0xf]
        %v4095 = vld [vmem:[%s4 + $0x58] sm:$0xf]
        %v4096 = vld [vmem:[%s4 + $0x5c] sm:$0xf]
        %v4097 = vld [vmem:[%s4 + $0x60] sm:$0xf]
        %v4098 = vld [vmem:[%s4 + $0x64] sm:$0xf]
        %v4099 = vld [vmem:[%s4 + $0x68] sm:$0xf]
        %v4100 = vld [vmem:[%s4 + $0x6c] sm:$0xf]
        %v4101 = vld [vmem:[%s4 + $0x70] sm:$0xf]
        %v4102 = vld [vmem:[%s4 + $0x74] sm:$0xf]
        %v4103 = vld [vmem:[%s4 + $0x78] sm:$0xf]
        %v4104 = vld [vmem:[%s4 + $0x7c] sm:$0xf]
        %v4105 = vld [vmem:[%s4 + $0x80] sm:$0xf]
        %v4106 = vld [vmem:[%s4 + $0x84] sm:$0xf]
        %v4107 = vld [vmem:[%s4 + $0x88] sm:$0xf]
        %v4108 = vld [vmem:[%s4 + $0x8c] sm:$0xf]
        %v4109 = vld [vmem:[%s4 + $0x90] sm:$0xf]
        %v4110 = vld [vmem:[%s4 + $0x94] sm:$0xf]
        %v4111 = vld [vmem:[%s4 + $0x98] sm:$0xf]
        %v4112 = vld [vmem:[%s4 + $0x9c] sm:$0xf]
        %v4113 = vld [vmem:[%s4 + $0xa0] sm:$0xf]
        %v4114 = vld [vmem:[%s4 + $0xa4] sm:$0xf]
        %v4115 = vld [vmem:[%s4 + $0xa8] sm:$0xf]
        %v4116 = vld [vmem:[%s4 + $0xac] sm:$0xf]
        %v4117 = vld [vmem:[%s4 + $0xb0] sm:$0xf]
        %v4118 = vld [vmem:[%s4 + $0xb4] sm:$0xf]
        %v4119 = vld [vmem:[%s4 + $0xb8] sm:$0xf]
        %v4120 = vld [vmem:[%s4 + $0xbc] sm:$0xf]
        %v4121 = vld [vmem:[%s4 + $0xc0] sm:$0xf]
        %v4122 = vld [vmem:[%s4 + $0xc4] sm:$0xf]
        %v4123 = vld [vmem:[%s4 + $0xc8] sm:$0xf]
        %v4124 = vld [vmem:[%s4 + $0xcc] sm:$0xf]
        %v4125 = vld [vmem:[%s4 + $0xd0] sm:$0xf]
        %v4126 = vld [vmem:[%s4 + $0xd4] sm:$0xf]
        %v4127 = vld [vmem:[%s4 + $0xd8] sm:$0xf]
        %v4128 = vld [vmem:[%s4 + $0xdc] sm:$0xf]
        %v4129 = vld [vmem:[%s4 + $0xe0] sm:$0xf]
        %v4130 = vld [vmem:[%s4 + $0xe4] sm:$0xf]
        %v4131 = vld [vmem:[%s4 + $0xe8] sm:$0xf]
        %v4132 = vld [vmem:[%s4 + $0xec] sm:$0xf]
        %v4133 = vld [vmem:[%s4 + $0xf0] sm:$0xf]
        %v4134 = vld [vmem:[%s4 + $0xf4] sm:$0xf]
        %v4135 = vld [vmem:[%s4 + $0xf8] sm:$0xf]
        %v4136 = vld [vmem:[%s4 + $0xfc] sm:$0xf]
        %v4137 = vld [vmem:[%s4 + $0x100] sm:$0xf]
        %v4138 = vld [vmem:[%s4 + $0x104] sm:$0xf]
        %v4139 = vld [vmem:[%s4 + $0x108] sm:$0xf]
        %v4140 = vld [vmem:[%s4 + $0x10c] sm:$0xf]
        %v4141 = vld [vmem:[%s4 + $0x110] sm:$0xf]
        %v4142 = vld [vmem:[%s4 + $0x114] sm:$0xf]
        %v4143 = vld [vmem:[%s4 + $0x118] sm:$0xf]
        %v4144 = vld [vmem:[%s4 + $0x11c] sm:$0xf]
        %v4145 = vld [vmem:[%s4 + $0x120] sm:$0xf]
        %v4146 = vld [vmem:[%s4 + $0x124] sm:$0xf]
        %v4147 = vld [vmem:[%s4 + $0x128] sm:$0xf]
        %v4148 = vld [vmem:[%s4 + $0x12c] sm:$0xf]
        %v4149 = vld [vmem:[%s4 + $0x130] sm:$0xf]
        %v4150 = vld [vmem:[%s4 + $0x134] sm:$0xf]
        %v4151 = vld [vmem:[%s4 + $0x138] sm:$0xf]
        %v4152 = vld [vmem:[%s4 + $0x13c] sm:$0xf]
        %v4153 = vld [vmem:[%s4 + $0x140] sm:$0xf]
        %v4154 = vld [vmem:[%s4 + $0x144] sm:$0xf]
        %v4155 = vld [vmem:[%s4 + $0x148] sm:$0xf]
        %v4156 = vld [vmem:[%s4 + $0x14c] sm:$0xf]
        %v4157 = vld [vmem:[%s4 + $0x150] sm:$0xf]
        %v4158 = vld [vmem:[%s4 + $0x154] sm:$0xf]
        %v4159 = vld [vmem:[%s4 + $0x158] sm:$0xf]
        %v4160 = vld [vmem:[%s4 + $0x15c] sm:$0xf]
        %v4161 = vld [vmem:[%s4 + $0x160] sm:$0xf]
        %v4162 = vld [vmem:[%s4 + $0x164] sm:$0xf]
        %v4163 = vld [vmem:[%s4 + $0x168] sm:$0xf]
        %v4164 = vld [vmem:[%s4 + $0x16c] sm:$0xf]
        %v4165 = vld [vmem:[%s4 + $0x170] sm:$0xf]
        %v4166 = vld [vmem:[%s4 + $0x174] sm:$0xf]
        %v4167 = vld [vmem:[%s4 + $0x178] sm:$0xf]
        %v4168 = vld [vmem:[%s4 + $0x17c] sm:$0xf]
        %v4169 = vld [vmem:[%s4 + $0x180] sm:$0xf]
        %v4170 = vld [vmem:[%s4 + $0x184] sm:$0xf]
        %v4171 = vld [vmem:[%s4 + $0x188] sm:$0xf]
        %v4172 = vld [vmem:[%s4 + $0x18c] sm:$0xf]
        %v4173 = vld [vmem:[%s4 + $0x190] sm:$0xf]
        %v4174 = vld [vmem:[%s4 + $0x194] sm:$0xf]
        %v4175 = vld [vmem:[%s4 + $0x198] sm:$0xf]
        %v4176 = vld [vmem:[%s4 + $0x19c] sm:$0xf]
        %v4177 = vld [vmem:[%s4 + $0x1a0] sm:$0xf]
        %v4178 = vld [vmem:[%s4 + $0x1a4] sm:$0xf]
        %v4179 = vld [vmem:[%s4 + $0x1a8] sm:$0xf]
        %v4180 = vld [vmem:[%s4 + $0x1ac] sm:$0xf]
        %v4181 = vld [vmem:[%s4 + $0x1b0] sm:$0xf]
        %v4182 = vld [vmem:[%s4 + $0x1b4] sm:$0xf]
        %v4183 = vld [vmem:[%s4 + $0x1b8] sm:$0xf]
        %v4184 = vld [vmem:[%s4 + $0x1bc] sm:$0xf]
        %v4185 = vld [vmem:[%s4 + $0x1c0] sm:$0xf]
        %v4186 = vld [vmem:[%s4 + $0x1c4] sm:$0xf]
        %v4187 = vld [vmem:[%s4 + $0x1c8] sm:$0xf]
        %v4188 = vld [vmem:[%s4 + $0x1cc] sm:$0xf]
        %v4189 = vld [vmem:[%s4 + $0x1d0] sm:$0xf]
        %v4190 = vld [vmem:[%s4 + $0x1d4] sm:$0xf]
        %v4191 = vld [vmem:[%s4 + $0x1d8] sm:$0xf]
        %v4192 = vld [vmem:[%s4 + $0x1dc] sm:$0xf]
        %v4193 = vld [vmem:[%s4 + $0x1e0] sm:$0xf]
        %v4194 = vld [vmem:[%s4 + $0x1e4] sm:$0xf]
        %v4195 = vld [vmem:[%s4 + $0x1e8] sm:$0xf]
        %v4196 = vld [vmem:[%s4 + $0x1ec] sm:$0xf]
        %v4197 = vld [vmem:[%s4 + $0x1f0] sm:$0xf]
        %v4198 = vld [vmem:[%s4 + $0x1f4] sm:$0xf]
        %v4199 = vld [vmem:[%s4 + $0x1f8] sm:$0xf]
        %v4200 = vld [vmem:[%s4 + $0x1fc] sm:$0xf]
        %v4201 = vld [vmem:[%s4 + $0x200] sm:$0xf]
        %v4202 = vld [vmem:[%s4 + $0x204] sm:$0xf]
        %v4203 = vld [vmem:[%s4 + $0x208] sm:$0xf]
        %v4204 = vld [vmem:[%s4 + $0x20c] sm:$0xf]
        %v4205 = vld [vmem:[%s4 + $0x210] sm:$0xf]
        %v4206 = vld [vmem:[%s4 + $0x214] sm:$0xf]
        %v4207 = vld [vmem:[%s4 + $0x218] sm:$0xf]
        %v4208 = vld [vmem:[%s4 + $0x21c] sm:$0xf]
        %v4209 = vld [vmem:[%s4 + $0x220] sm:$0xf]
        %v4210 = vld [vmem:[%s4 + $0x224] sm:$0xf]
        %v4211 = vld [vmem:[%s4 + $0x228] sm:$0xf]
        %v4212 = vld [vmem:[%s4 + $0x22c] sm:$0xf]
        %v4213 = vld [vmem:[%s4 + $0x230] sm:$0xf]
        %v4214 = vld [vmem:[%s4 + $0x234] sm:$0xf]
        %v4215 = vld [vmem:[%s4 + $0x238] sm:$0xf]
        %v4216 = vld [vmem:[%s4 + $0x23c] sm:$0xf]
        %v4377 = vunpack.c.l.b16 %v3913
        %v4378 = vunpack.c.h.b16 %v3913
        %v4379 = vunpack.c.l.b16 %v3914
        %v4380 = vunpack.c.h.b16 %v3914
        %v4381 = vunpack.c.l.b16 %v3915
        %v4382 = vunpack.c.h.b16 %v3915
        %v4383 = vunpack.c.l.b16 %v3916
        %v4384 = vunpack.c.h.b16 %v3916
        %v4385 = vunpack.c.l.b16 %v3917
        %v4386 = vunpack.c.l.b16 %v3918
        %v4387 = vunpack.c.h.b16 %v3918
        %v4388 = vunpack.c.l.b16 %v3919
        %v4389 = vunpack.c.h.b16 %v3919
        %v4390 = vunpack.c.l.b16 %v3920
        %v4391 = vunpack.c.h.b16 %v3920
        %v4392 = vunpack.c.l.b16 %v3921
        %v4393 = vunpack.c.h.b16 %v3921
        %v4394 = vunpack.c.l.b16 %v3922
        %v4395 = vunpack.c.l.b16 %v3923
        %v4396 = vunpack.c.h.b16 %v3923
        %v4397 = vunpack.c.l.b16 %v3924
        %v4398 = vunpack.c.h.b16 %v3924
        %v4399 = vunpack.c.l.b16 %v3925
        %v4400 = vunpack.c.h.b16 %v3925
        %v4401 = vunpack.c.l.b16 %v3926
        %v4402 = vunpack.c.h.b16 %v3926
        %v4403 = vunpack.c.l.b16 %v3927
        %v4404 = vunpack.c.l.b16 %v3928
        %v4405 = vunpack.c.h.b16 %v3928
        %v4406 = vunpack.c.l.b16 %v3929
        %v4407 = vunpack.c.h.b16 %v3929
        %v4408 = vunpack.c.l.b16 %v3930
        %v4409 = vunpack.c.h.b16 %v3930
        %v4410 = vunpack.c.l.b16 %v3931
        %v4411 = vunpack.c.h.b16 %v3931
        %v4412 = vunpack.c.l.b16 %v3932
        %v4413 = vunpack.c.l.b16 %v3933
        %v4414 = vunpack.c.h.b16 %v3933
        %v4415 = vunpack.c.l.b16 %v3934
        %v4416 = vunpack.c.h.b16 %v3934
        %v4417 = vunpack.c.l.b16 %v3935
        %v4418 = vunpack.c.h.b16 %v3935
        %v4419 = vunpack.c.l.b16 %v3936
        %v4420 = vunpack.c.h.b16 %v3936
        %v4421 = vunpack.c.l.b16 %v3937
        %v4422 = vunpack.c.l.b16 %v3938
        %v4423 = vunpack.c.h.b16 %v3938
        %v4424 = vunpack.c.l.b16 %v3939
        %v4425 = vunpack.c.h.b16 %v3939
        %v4426 = vunpack.c.l.b16 %v3940
        %v4427 = vunpack.c.h.b16 %v3940
        %v4428 = vunpack.c.l.b16 %v3941
        %v4429 = vunpack.c.h.b16 %v3941
        %v4430 = vunpack.c.l.b16 %v3942
        %v4431 = vunpack.c.l.b16 %v3943
        %v4432 = vunpack.c.h.b16 %v3943
        %v4433 = vunpack.c.l.b16 %v3944
        %v4434 = vunpack.c.h.b16 %v3944
        %v4435 = vunpack.c.l.b16 %v3945
        %v4436 = vunpack.c.h.b16 %v3945
        %v4437 = vunpack.c.l.b16 %v3946
        %v4438 = vunpack.c.h.b16 %v3946
        %v4439 = vunpack.c.l.b16 %v3947
        %v4440 = vunpack.c.l.b16 %v3948
        %v4441 = vunpack.c.h.b16 %v3948
        %v4442 = vunpack.c.l.b16 %v3949
        %v4443 = vunpack.c.h.b16 %v3949
        %v4444 = vunpack.c.l.b16 %v3950
        %v4445 = vunpack.c.h.b16 %v3950
        %v4446 = vunpack.c.l.b16 %v3951
        %v4447 = vunpack.c.h.b16 %v3951
        %v4448 = vunpack.c.l.b16 %v3952
        %v4449 = vunpack.c.l.b16 %v3953
        %v4450 = vunpack.c.h.b16 %v3953
        %v4451 = vunpack.c.l.b16 %v3954
        %v4452 = vunpack.c.h.b16 %v3954
        %v4453 = vunpack.c.l.b16 %v3955
        %v4454 = vunpack.c.h.b16 %v3955
        %v4455 = vunpack.c.l.b16 %v3956
        %v4456 = vunpack.c.h.b16 %v3956
        %v4457 = vunpack.c.l.b16 %v3957
        %v4458 = vunpack.c.l.b16 %v3958
        %v4459 = vunpack.c.h.b16 %v3958
        %v4460 = vunpack.c.l.b16 %v3959
        %v4461 = vunpack.c.h.b16 %v3959
        %v4462 = vunpack.c.l.b16 %v3960
        %v4463 = vunpack.c.h.b16 %v3960
        %v4464 = vunpack.c.l.b16 %v3961
        %v4465 = vunpack.c.h.b16 %v3961
        %v4466 = vunpack.c.l.b16 %v3962
        %v4467 = vunpack.c.l.b16 %v3963
        %v4468 = vunpack.c.h.b16 %v3963
        %v4469 = vunpack.c.l.b16 %v3964
        %v4470 = vunpack.c.h.b16 %v3964
        %v4471 = vunpack.c.l.b16 %v3965
        %v4472 = vunpack.c.h.b16 %v3965
        %v4473 = vunpack.c.l.b16 %v3966
        %v4474 = vunpack.c.h.b16 %v3966
        %v4475 = vunpack.c.l.b16 %v3967
        %v4476 = vunpack.c.l.b16 %v3968
        %v4477 = vunpack.c.h.b16 %v3968
        %v4478 = vunpack.c.l.b16 %v3969
        %v4479 = vunpack.c.h.b16 %v3969
        %v4480 = vunpack.c.l.b16 %v3970
        %v4481 = vunpack.c.h.b16 %v3970
        %v4482 = vunpack.c.l.b16 %v3971
        %v4483 = vunpack.c.h.b16 %v3971
        %v4484 = vunpack.c.l.b16 %v3972
        %v4485 = vunpack.c.l.b16 %v3973
        %v4486 = vunpack.c.h.b16 %v3973
        %v4487 = vunpack.c.l.b16 %v3974
        %v4488 = vunpack.c.h.b16 %v3974
        %v4489 = vunpack.c.l.b16 %v3975
        %v4490 = vunpack.c.h.b16 %v3975
        %v4491 = vunpack.c.l.b16 %v3976
        %v4492 = vunpack.c.h.b16 %v3976
        %v4493 = vunpack.c.l.b16 %v3977
        %v4494 = vunpack.c.l.b16 %v3978
        %v4495 = vunpack.c.h.b16 %v3978
        %v4496 = vunpack.c.l.b16 %v3979
        %v4497 = vunpack.c.h.b16 %v3979
        %v4498 = vunpack.c.l.b16 %v3980
        %v4499 = vunpack.c.h.b16 %v3980
        %v4500 = vunpack.c.l.b16 %v3981
        %v4501 = vunpack.c.h.b16 %v3981
        %v4502 = vunpack.c.l.b16 %v3982
        %v4503 = vunpack.c.l.b16 %v3983
        %v4504 = vunpack.c.h.b16 %v3983
        %v4505 = vunpack.c.l.b16 %v3984
        %v4506 = vunpack.c.h.b16 %v3984
        %v4507 = vunpack.c.l.b16 %v3985
        %v4508 = vunpack.c.h.b16 %v3985
        %v4509 = vunpack.c.l.b16 %v3986
        %v4510 = vunpack.c.h.b16 %v3986
        %v4511 = vunpack.c.l.b16 %v3987
        %v4512 = vunpack.c.l.b16 %v3988
        %v4513 = vunpack.c.h.b16 %v3988
        %v4514 = vunpack.c.l.b16 %v3989
        %v4515 = vunpack.c.h.b16 %v3989
        %v4516 = vunpack.c.l.b16 %v3990
        %v4517 = vunpack.c.h.b16 %v3990
        %v4518 = vunpack.c.l.b16 %v3991
        %v4519 = vunpack.c.h.b16 %v3991
        %v4520 = vunpack.c.l.b16 %v3992
        %v4521 = vunpack.c.l.b16 %v3993
        %v4522 = vunpack.c.h.b16 %v3993
        %v4523 = vunpack.c.l.b16 %v3994
        %v4524 = vunpack.c.h.b16 %v3994
        %v4525 = vunpack.c.l.b16 %v3995
        %v4526 = vunpack.c.h.b16 %v3995
        %v4527 = vunpack.c.l.b16 %v3996
        %v4528 = vunpack.c.h.b16 %v3996
        %v4529 = vunpack.c.l.b16 %v3997
        %v4530 = vunpack.c.l.b16 %v3998
        %v4531 = vunpack.c.h.b16 %v3998
        %v4532 = vunpack.c.l.b16 %v3999
        %v4533 = vunpack.c.h.b16 %v3999
        %v4534 = vunpack.c.l.b16 %v4000
        %v4535 = vunpack.c.h.b16 %v4000
        %v4536 = vunpack.c.l.b16 %v4001
        %v4537 = vunpack.c.h.b16 %v4001
        %v4538 = vunpack.c.l.b16 %v4002
        %v4539 = vunpack.c.l.b16 %v4003
        %v4540 = vunpack.c.h.b16 %v4003
        %v4541 = vunpack.c.l.b16 %v4004
        %v4542 = vunpack.c.h.b16 %v4004
        %v4543 = vunpack.c.l.b16 %v4005
        %v4544 = vunpack.c.h.b16 %v4005
        %v4545 = vunpack.c.l.b16 %v4006
        %v4546 = vunpack.c.h.b16 %v4006
        %v4547 = vunpack.c.l.b16 %v4007
        %v4548 = vunpack.c.l.b16 %v4008
        %v4549 = vunpack.c.h.b16 %v4008
        %v4550 = vunpack.c.l.b16 %v4009
        %v4551 = vunpack.c.h.b16 %v4009
        %v4552 = vunpack.c.l.b16 %v4010
        %v4553 = vunpack.c.h.b16 %v4010
        %v4554 = vunpack.c.l.b16 %v4011
        %v4555 = vunpack.c.h.b16 %v4011
        %v4556 = vunpack.c.l.b16 %v4012
        %v4557 = vunpack.c.l.b16 %v4013
        %v4558 = vunpack.c.h.b16 %v4013
        %v4559 = vunpack.c.l.b16 %v4014
        %v4560 = vunpack.c.h.b16 %v4014
        %v4561 = vunpack.c.l.b16 %v4015
        %v4562 = vunpack.c.h.b16 %v4015
        %v4563 = vunpack.c.l.b16 %v4016
        %v4564 = vunpack.c.h.b16 %v4016
        %v4565 = vunpack.c.l.b16 %v4017
        %v4566 = vunpack.c.l.b16 %v4018
        %v4567 = vunpack.c.h.b16 %v4018
        %v4568 = vunpack.c.l.b16 %v4019
        %v4569 = vunpack.c.h.b16 %v4019
        %v4570 = vunpack.c.l.b16 %v4020
        %v4571 = vunpack.c.h.b16 %v4020
        %v4572 = vunpack.c.l.b16 %v4021
        %v4573 = vunpack.c.h.b16 %v4021
        %v4574 = vunpack.c.l.b16 %v4022
        %v4575 = vunpack.c.l.b16 %v4023
        %v4576 = vunpack.c.h.b16 %v4023
        %v4577 = vunpack.c.l.b16 %v4024
        %v4578 = vunpack.c.h.b16 %v4024
        %v4579 = vunpack.c.l.b16 %v4025
        %v4580 = vunpack.c.h.b16 %v4025
        %v4581 = vunpack.c.l.b16 %v4026
        %v4582 = vunpack.c.h.b16 %v4026
        %v4583 = vunpack.c.l.b16 %v4027
        %v4584 = vunpack.c.l.b16 %v4028
        %v4585 = vunpack.c.h.b16 %v4028
        %v4586 = vunpack.c.l.b16 %v4029
        %v4587 = vunpack.c.h.b16 %v4029
        %v4588 = vunpack.c.l.b16 %v4030
        %v4589 = vunpack.c.h.b16 %v4030
        %v4590 = vunpack.c.l.b16 %v4031
        %v4591 = vunpack.c.h.b16 %v4031
        %v4592 = vunpack.c.l.b16 %v4032
        %v4593 = vunpack.c.l.b16 %v4033
        %v4594 = vunpack.c.h.b16 %v4033
        %v4595 = vunpack.c.l.b16 %v4034
        %v4596 = vunpack.c.h.b16 %v4034
        %v4597 = vunpack.c.l.b16 %v4035
        %v4598 = vunpack.c.h.b16 %v4035
        %v4599 = vunpack.c.l.b16 %v4036
        %v4600 = vunpack.c.h.b16 %v4036
        %v4601 = vunpack.c.l.b16 %v4037
        %v4602 = vunpack.c.l.b16 %v4038
        %v4603 = vunpack.c.h.b16 %v4038
        %v4604 = vunpack.c.l.b16 %v4039
        %v4605 = vunpack.c.h.b16 %v4039
        %v4606 = vunpack.c.l.b16 %v4040
        %v4607 = vunpack.c.h.b16 %v4040
        %v4608 = vunpack.c.l.b16 %v4041
        %v4609 = vunpack.c.h.b16 %v4041
        %v4610 = vunpack.c.l.b16 %v4042
        %v4611 = vunpack.c.l.b16 %v4043
        %v4612 = vunpack.c.h.b16 %v4043
        %v4613 = vunpack.c.l.b16 %v4044
        %v4614 = vunpack.c.h.b16 %v4044
        %v4615 = vunpack.c.l.b16 %v4045
        %v4616 = vunpack.c.h.b16 %v4045
        %v4617 = vunpack.c.l.b16 %v4046
        %v4618 = vunpack.c.h.b16 %v4046
        %v4619 = vunpack.c.l.b16 %v4047
        %v4620 = vunpack.c.l.b16 %v4048
        %v4621 = vunpack.c.h.b16 %v4048
        %v4622 = vunpack.c.l.b16 %v4049
        %v4623 = vunpack.c.h.b16 %v4049
        %v4624 = vunpack.c.l.b16 %v4050
        %v4625 = vunpack.c.h.b16 %v4050
        %v4626 = vunpack.c.l.b16 %v4051
        %v4627 = vunpack.c.h.b16 %v4051
        %v4628 = vunpack.c.l.b16 %v4052
        %v4629 = vunpack.c.l.b16 %v4053
        %v4630 = vunpack.c.h.b16 %v4053
        %v4631 = vunpack.c.l.b16 %v4054
        %v4632 = vunpack.c.h.b16 %v4054
        %v4633 = vunpack.c.l.b16 %v4055
        %v4634 = vunpack.c.h.b16 %v4055
        %v4635 = vunpack.c.l.b16 %v4056
        %v4636 = vunpack.c.h.b16 %v4056
        %v4637 = vunpack.c.l.b16 %v4057
        %v4638 = vunpack.c.l.b16 %v4058
        %v4639 = vunpack.c.h.b16 %v4058
        %v4640 = vunpack.c.l.b16 %v4059
        %v4641 = vunpack.c.h.b16 %v4059
        %v4642 = vunpack.c.l.b16 %v4060
        %v4643 = vunpack.c.h.b16 %v4060
        %v4644 = vunpack.c.l.b16 %v4061
        %v4645 = vunpack.c.h.b16 %v4061
        %v4646 = vunpack.c.l.b16 %v4062
        %v4647 = vunpack.c.l.b16 %v4063
        %v4648 = vunpack.c.h.b16 %v4063
        %v4649 = vunpack.c.l.b16 %v4064
        %v4650 = vunpack.c.h.b16 %v4064
        %v4651 = vunpack.c.l.b16 %v4065
        %v4652 = vunpack.c.h.b16 %v4065
        %v4653 = vunpack.c.l.b16 %v4066
        %v4654 = vunpack.c.h.b16 %v4066
        %v4655 = vunpack.c.l.b16 %v4067
        %v4656 = vunpack.c.l.b16 %v4068
        %v4657 = vunpack.c.h.b16 %v4068
        %v4658 = vunpack.c.l.b16 %v4069
        %v4659 = vunpack.c.h.b16 %v4069
        %v4660 = vunpack.c.l.b16 %v4070
        %v4661 = vunpack.c.h.b16 %v4070
        %v4662 = vunpack.c.l.b16 %v4071
        %v4663 = vunpack.c.h.b16 %v4071
        %v4664 = vunpack.c.l.b16 %v4072
        %v4665 = vpack.c.b16 %v4386, %v4377
        %v4666 = vpack.c.b16 %v4387, %v4378
        %v4667 = vpack.c.b16 %v4388, %v4379
        %v4668 = vpack.c.b16 %v4389, %v4380
        %v4669 = vpack.c.b16 %v4390, %v4381
        %v4670 = vpack.c.b16 %v4391, %v4382
        %v4671 = vpack.c.b16 %v4392, %v4383
        %v4672 = vpack.c.b16 %v4393, %v4384
        %v4673 = vpack.c.b16 %v4394, %v4385
        %v4674 = vpack.c.b16 %v4404, %v4395
        %v4675 = vpack.c.b16 %v4405, %v4396
        %v4676 = vpack.c.b16 %v4406, %v4397
        %v4677 = vpack.c.b16 %v4407, %v4398
        %v4678 = vpack.c.b16 %v4408, %v4399
        %v4679 = vpack.c.b16 %v4409, %v4400
        %v4680 = vpack.c.b16 %v4410, %v4401
        %v4681 = vpack.c.b16 %v4411, %v4402
        %v4682 = vpack.c.b16 %v4412, %v4403
        %v4683 = vpack.c.b16 %v4422, %v4413
        %v4684 = vpack.c.b16 %v4423, %v4414
        %v4685 = vpack.c.b16 %v4424, %v4415
        %v4686 = vpack.c.b16 %v4425, %v4416
        %v4687 = vpack.c.b16 %v4426, %v4417
        %v4688 = vpack.c.b16 %v4427, %v4418
        %v4689 = vpack.c.b16 %v4428, %v4419
        %v4690 = vpack.c.b16 %v4429, %v4420
        %v4691 = vpack.c.b16 %v4430, %v4421
        %v4692 = vpack.c.b16 %v4440, %v4431
        %v4693 = vpack.c.b16 %v4441, %v4432
        %v4694 = vpack.c.b16 %v4442, %v4433
        %v4695 = vpack.c.b16 %v4443, %v4434
        %v4696 = vpack.c.b16 %v4444, %v4435
        %v4697 = vpack.c.b16 %v4445, %v4436
        %v4698 = vpack.c.b16 %v4446, %v4437
        %v4699 = vpack.c.b16 %v4447, %v4438
        %v4700 = vpack.c.b16 %v4448, %v4439
        %v4701 = vpack.c.b16 %v4458, %v4449
        %v4702 = vpack.c.b16 %v4459, %v4450
        %v4703 = vpack.c.b16 %v4460, %v4451
        %v4704 = vpack.c.b16 %v4461, %v4452
        %v4705 = vpack.c.b16 %v4462, %v4453
        %v4706 = vpack.c.b16 %v4463, %v4454
        %v4707 = vpack.c.b16 %v4464, %v4455
        %v4708 = vpack.c.b16 %v4465, %v4456
        %v4709 = vpack.c.b16 %v4466, %v4457
        %v4710 = vpack.c.b16 %v4476, %v4467
        %v4711 = vpack.c.b16 %v4477, %v4468
        %v4712 = vpack.c.b16 %v4478, %v4469
        %v4713 = vpack.c.b16 %v4479, %v4470
        %v4714 = vpack.c.b16 %v4480, %v4471
        %v4715 = vpack.c.b16 %v4481, %v4472
        %v4716 = vpack.c.b16 %v4482, %v4473
        %v4717 = vpack.c.b16 %v4483, %v4474
        %v4718 = vpack.c.b16 %v4484, %v4475
        %v4719 = vpack.c.b16 %v4494, %v4485
        %v4720 = vpack.c.b16 %v4495, %v4486
        %v4721 = vpack.c.b16 %v4496, %v4487
        %v4722 = vpack.c.b16 %v4497, %v4488
        %v4723 = vpack.c.b16 %v4498, %v4489
        %v4724 = vpack.c.b16 %v4499, %v4490
        %v4725 = vpack.c.b16 %v4500, %v4491
        %v4726 = vpack.c.b16 %v4501, %v4492
        %v4727 = vpack.c.b16 %v4502, %v4493
        %v4728 = vpack.c.b16 %v4512, %v4503
        %v4729 = vpack.c.b16 %v4513, %v4504
        %v4730 = vpack.c.b16 %v4514, %v4505
        %v4731 = vpack.c.b16 %v4515, %v4506
        %v4732 = vpack.c.b16 %v4516, %v4507
        %v4733 = vpack.c.b16 %v4517, %v4508
        %v4734 = vpack.c.b16 %v4518, %v4509
        %v4735 = vpack.c.b16 %v4519, %v4510
        %v4736 = vpack.c.b16 %v4520, %v4511
        %v4737 = vpack.c.b16 %v4530, %v4521
        %v4738 = vpack.c.b16 %v4531, %v4522
        %v4739 = vpack.c.b16 %v4532, %v4523
        %v4740 = vpack.c.b16 %v4533, %v4524
        %v4741 = vpack.c.b16 %v4534, %v4525
        %v4742 = vpack.c.b16 %v4535, %v4526
        %v4743 = vpack.c.b16 %v4536, %v4527
        %v4744 = vpack.c.b16 %v4537, %v4528
        %v4745 = vpack.c.b16 %v4538, %v4529
        %v4746 = vpack.c.b16 %v4548, %v4539
        %v4747 = vpack.c.b16 %v4549, %v4540
        %v4748 = vpack.c.b16 %v4550, %v4541
        %v4749 = vpack.c.b16 %v4551, %v4542
        %v4750 = vpack.c.b16 %v4552, %v4543
        %v4751 = vpack.c.b16 %v4553, %v4544
        %v4752 = vpack.c.b16 %v4554, %v4545
        %v4753 = vpack.c.b16 %v4555, %v4546
        %v4754 = vpack.c.b16 %v4556, %v4547
        %v4755 = vpack.c.b16 %v4566, %v4557
        %v4756 = vpack.c.b16 %v4567, %v4558
        %v4757 = vpack.c.b16 %v4568, %v4559
        %v4758 = vpack.c.b16 %v4569, %v4560
        %v4759 = vpack.c.b16 %v4570, %v4561
        %v4760 = vpack.c.b16 %v4571, %v4562
        %v4761 = vpack.c.b16 %v4572, %v4563
        %v4762 = vpack.c.b16 %v4573, %v4564
        %v4763 = vpack.c.b16 %v4574, %v4565
        %v4764 = vpack.c.b16 %v4584, %v4575
        %v4765 = vpack.c.b16 %v4585, %v4576
        %v4766 = vpack.c.b16 %v4586, %v4577
        %v4767 = vpack.c.b16 %v4587, %v4578
        %v4768 = vpack.c.b16 %v4588, %v4579
        %v4769 = vpack.c.b16 %v4589, %v4580
        %v4770 = vpack.c.b16 %v4590, %v4581
        %v4771 = vpack.c.b16 %v4591, %v4582
        %v4772 = vpack.c.b16 %v4592, %v4583
        %v4773 = vpack.c.b16 %v4602, %v4593
        %v4774 = vpack.c.b16 %v4603, %v4594
        %v4775 = vpack.c.b16 %v4604, %v4595
        %v4776 = vpack.c.b16 %v4605, %v4596
        %v4777 = vpack.c.b16 %v4606, %v4597
        %v4778 = vpack.c.b16 %v4607, %v4598
        %v4779 = vpack.c.b16 %v4608, %v4599
        %v4780 = vpack.c.b16 %v4609, %v4600
        %v4781 = vpack.c.b16 %v4610, %v4601
        %v4782 = vpack.c.b16 %v4620, %v4611
        %v4783 = vpack.c.b16 %v4621, %v4612
        %v4784 = vpack.c.b16 %v4622, %v4613
        %v4785 = vpack.c.b16 %v4623, %v4614
        %v4786 = vpack.c.b16 %v4624, %v4615
        %v4787 = vpack.c.b16 %v4625, %v4616
        %v4788 = vpack.c.b16 %v4626, %v4617
        %v4789 = vpack.c.b16 %v4627, %v4618
        %v4790 = vpack.c.b16 %v4628, %v4619
        %v4791 = vpack.c.b16 %v4638, %v4629
        %v4792 = vpack.c.b16 %v4639, %v4630
        %v4793 = vpack.c.b16 %v4640, %v4631
        %v4794 = vpack.c.b16 %v4641, %v4632
        %v4795 = vpack.c.b16 %v4642, %v4633
        %v4796 = vpack.c.b16 %v4643, %v4634
        %v4797 = vpack.c.b16 %v4644, %v4635
        %v4798 = vpack.c.b16 %v4645, %v4636
        %v4799 = vpack.c.b16 %v4646, %v4637
        %v4800 = vpack.c.b16 %v4656, %v4647
        %v4801 = vpack.c.b16 %v4657, %v4648
        %v4802 = vpack.c.b16 %v4658, %v4649
        %v4803 = vpack.c.b16 %v4659, %v4650
        %v4804 = vpack.c.b16 %v4660, %v4651
        %v4805 = vpack.c.b16 %v4661, %v4652
        %v4806 = vpack.c.b16 %v4662, %v4653
        %v4807 = vpack.c.b16 %v4663, %v4654
        %v4808 = vpack.c.b16 %v4664, %v4655
        %v5097 = vunpack.c.l.b16 %v4073
        %v5098 = vunpack.c.l.b16 %v4074
        %v5099 = vunpack.c.l.b16 %v4075
        %v5100 = vunpack.c.l.b16 %v4076
        %v5101 = vunpack.c.l.b16 %v4077
        %v5102 = vunpack.c.l.b16 %v4078
        %v5103 = vunpack.c.l.b16 %v4079
        %v5104 = vunpack.c.l.b16 %v4080
        %v5105 = vunpack.c.l.b16 %v4081
        %v5106 = vunpack.c.l.b16 %v4082
        %v5107 = vunpack.c.l.b16 %v4083
        %v5108 = vunpack.c.l.b16 %v4084
        %v5109 = vunpack.c.l.b16 %v4085
        %v5110 = vunpack.c.l.b16 %v4086
        %v5111 = vunpack.c.l.b16 %v4087
        %v5112 = vunpack.c.l.b16 %v4088
        %v5113 = vunpack.c.l.b16 %v4089
        %v5114 = vunpack.c.l.b16 %v4090
        %v5115 = vunpack.c.l.b16 %v4091
        %v5116 = vunpack.c.l.b16 %v4092
        %v5117 = vunpack.c.l.b16 %v4093
        %v5118 = vunpack.c.l.b16 %v4094
        %v5119 = vunpack.c.l.b16 %v4095
        %v5120 = vunpack.c.l.b16 %v4096
        %v5121 = vunpack.c.l.b16 %v4097
        %v5122 = vunpack.c.l.b16 %v4098
        %v5123 = vunpack.c.l.b16 %v4099
        %v5124 = vunpack.c.l.b16 %v4100
        %v5125 = vunpack.c.l.b16 %v4101
        %v5126 = vunpack.c.l.b16 %v4102
        %v5127 = vunpack.c.l.b16 %v4103
        %v5128 = vunpack.c.l.b16 %v4104
        %v5129 = vunpack.c.l.b16 %v4105
        %v5130 = vunpack.c.l.b16 %v4106
        %v5131 = vunpack.c.l.b16 %v4107
        %v5132 = vunpack.c.l.b16 %v4108
        %v5133 = vunpack.c.l.b16 %v4109
        %v5134 = vunpack.c.l.b16 %v4110
        %v5135 = vunpack.c.l.b16 %v4111
        %v5136 = vunpack.c.l.b16 %v4112
        %v5137 = vunpack.c.l.b16 %v4113
        %v5138 = vunpack.c.l.b16 %v4114
        %v5139 = vunpack.c.l.b16 %v4115
        %v5140 = vunpack.c.l.b16 %v4116
        %v5141 = vunpack.c.l.b16 %v4117
        %v5142 = vunpack.c.l.b16 %v4118
        %v5143 = vunpack.c.l.b16 %v4119
        %v5144 = vunpack.c.l.b16 %v4120
        %v5145 = vunpack.c.l.b16 %v4121
        %v5146 = vunpack.c.l.b16 %v4122
        %v5147 = vunpack.c.l.b16 %v4123
        %v5148 = vunpack.c.l.b16 %v4124
        %v5149 = vunpack.c.l.b16 %v4125
        %v5150 = vunpack.c.l.b16 %v4126
        %v5151 = vunpack.c.l.b16 %v4127
        %v5152 = vunpack.c.l.b16 %v4128
        %v5153 = vunpack.c.l.b16 %v4129
        %v5154 = vunpack.c.l.b16 %v4130
        %v5155 = vunpack.c.l.b16 %v4131
        %v5156 = vunpack.c.l.b16 %v4132
        %v5157 = vunpack.c.l.b16 %v4133
        %v5158 = vunpack.c.l.b16 %v4134
        %v5159 = vunpack.c.l.b16 %v4135
        %v5160 = vunpack.c.l.b16 %v4136
        %v5161 = vunpack.c.l.b16 %v4137
        %v5162 = vunpack.c.l.b16 %v4138
        %v5163 = vunpack.c.l.b16 %v4139
        %v5164 = vunpack.c.l.b16 %v4140
        %v5165 = vunpack.c.l.b16 %v4141
        %v5166 = vunpack.c.l.b16 %v4142
        %v5167 = vunpack.c.l.b16 %v4143
        %v5168 = vunpack.c.l.b16 %v4144
        %v5169 = vunpack.c.l.b16 %v4145
        %v5170 = vunpack.c.l.b16 %v4146
        %v5171 = vunpack.c.l.b16 %v4147
        %v5172 = vunpack.c.l.b16 %v4148
        %v5173 = vunpack.c.l.b16 %v4149
        %v5174 = vunpack.c.l.b16 %v4150
        %v5175 = vunpack.c.l.b16 %v4151
        %v5176 = vunpack.c.l.b16 %v4152
        %v5177 = vunpack.c.l.b16 %v4153
        %v5178 = vunpack.c.l.b16 %v4154
        %v5179 = vunpack.c.l.b16 %v4155
        %v5180 = vunpack.c.l.b16 %v4156
        %v5181 = vunpack.c.l.b16 %v4157
        %v5182 = vunpack.c.l.b16 %v4158
        %v5183 = vunpack.c.l.b16 %v4159
        %v5184 = vunpack.c.l.b16 %v4160
        %v5185 = vunpack.c.l.b16 %v4161
        %v5186 = vunpack.c.l.b16 %v4162
        %v5187 = vunpack.c.l.b16 %v4163
        %v5188 = vunpack.c.l.b16 %v4164
        %v5189 = vunpack.c.l.b16 %v4165
        %v5190 = vunpack.c.l.b16 %v4166
        %v5191 = vunpack.c.l.b16 %v4167
        %v5192 = vunpack.c.l.b16 %v4168
        %v5193 = vunpack.c.l.b16 %v4169
        %v5194 = vunpack.c.l.b16 %v4170
        %v5195 = vunpack.c.l.b16 %v4171
        %v5196 = vunpack.c.l.b16 %v4172
        %v5197 = vunpack.c.l.b16 %v4173
        %v5198 = vunpack.c.l.b16 %v4174
        %v5199 = vunpack.c.l.b16 %v4175
        %v5200 = vunpack.c.l.b16 %v4176
        %v5201 = vunpack.c.l.b16 %v4177
        %v5202 = vunpack.c.l.b16 %v4178
        %v5203 = vunpack.c.l.b16 %v4179
        %v5204 = vunpack.c.l.b16 %v4180
        %v5205 = vunpack.c.l.b16 %v4181
        %v5206 = vunpack.c.l.b16 %v4182
        %v5207 = vunpack.c.l.b16 %v4183
        %v5208 = vunpack.c.l.b16 %v4184
        %v5209 = vunpack.c.l.b16 %v4185
        %v5210 = vunpack.c.l.b16 %v4186
        %v5211 = vunpack.c.l.b16 %v4187
        %v5212 = vunpack.c.l.b16 %v4188
        %v5213 = vunpack.c.l.b16 %v4189
        %v5214 = vunpack.c.l.b16 %v4190
        %v5215 = vunpack.c.l.b16 %v4191
        %v5216 = vunpack.c.l.b16 %v4192
        %v5217 = vunpack.c.l.b16 %v4193
        %v5218 = vunpack.c.l.b16 %v4194
        %v5219 = vunpack.c.l.b16 %v4195
        %v5220 = vunpack.c.l.b16 %v4196
        %v5221 = vunpack.c.l.b16 %v4197
        %v5222 = vunpack.c.l.b16 %v4198
        %v5223 = vunpack.c.l.b16 %v4199
        %v5224 = vunpack.c.l.b16 %v4200
        %v5225 = vunpack.c.l.b16 %v4201
        %v5226 = vunpack.c.l.b16 %v4202
        %v5227 = vunpack.c.l.b16 %v4203
        %v5228 = vunpack.c.l.b16 %v4204
        %v5229 = vunpack.c.l.b16 %v4205
        %v5230 = vunpack.c.l.b16 %v4206
        %v5231 = vunpack.c.l.b16 %v4207
        %v5232 = vunpack.c.l.b16 %v4208
        %v5233 = vunpack.c.l.b16 %v4209
        %v5234 = vunpack.c.l.b16 %v4210
        %v5235 = vunpack.c.l.b16 %v4211
        %v5236 = vunpack.c.l.b16 %v4212
        %v5237 = vunpack.c.l.b16 %v4213
        %v5238 = vunpack.c.l.b16 %v4214
        %v5239 = vunpack.c.l.b16 %v4215
        %v5240 = vunpack.c.l.b16 %v4216
        %v5241 = vpack.c.b16 %v5098, %v5097
        %v5242 = vpack.c.b16 %v5100, %v5099
        %v5243 = vpack.c.b16 %v5102, %v5101
        %v5244 = vpack.c.b16 %v5104, %v5103
        %v5245 = vpack.c.b16 %v5106, %v5105
        %v5246 = vpack.c.b16 %v5108, %v5107
        %v5247 = vpack.c.b16 %v5110, %v5109
        %v5248 = vpack.c.b16 %v5112, %v5111
        %v5249 = vpack.c.b16 %v5114, %v5113
        %v5250 = vpack.c.b16 %v5116, %v5115
        %v5251 = vpack.c.b16 %v5118, %v5117
        %v5252 = vpack.c.b16 %v5120, %v5119
        %v5253 = vpack.c.b16 %v5122, %v5121
        %v5254 = vpack.c.b16 %v5124, %v5123
        %v5255 = vpack.c.b16 %v5126, %v5125
        %v5256 = vpack.c.b16 %v5128, %v5127
        %v5257 = vpack.c.b16 %v5130, %v5129
        %v5258 = vpack.c.b16 %v5132, %v5131
        %v5259 = vpack.c.b16 %v5134, %v5133
        %v5260 = vpack.c.b16 %v5136, %v5135
        %v5261 = vpack.c.b16 %v5138, %v5137
        %v5262 = vpack.c.b16 %v5140, %v5139
        %v5263 = vpack.c.b16 %v5142, %v5141
        %v5264 = vpack.c.b16 %v5144, %v5143
        %v5265 = vpack.c.b16 %v5146, %v5145
        %v5266 = vpack.c.b16 %v5148, %v5147
        %v5267 = vpack.c.b16 %v5150, %v5149
        %v5268 = vpack.c.b16 %v5152, %v5151
        %v5269 = vpack.c.b16 %v5154, %v5153
        %v5270 = vpack.c.b16 %v5156, %v5155
        %v5271 = vpack.c.b16 %v5158, %v5157
        %v5272 = vpack.c.b16 %v5160, %v5159
        %v5273 = vpack.c.b16 %v5162, %v5161
        %v5274 = vpack.c.b16 %v5164, %v5163
        %v5275 = vpack.c.b16 %v5166, %v5165
        %v5276 = vpack.c.b16 %v5168, %v5167
        %v5277 = vpack.c.b16 %v5170, %v5169
        %v5278 = vpack.c.b16 %v5172, %v5171
        %v5279 = vpack.c.b16 %v5174, %v5173
        %v5280 = vpack.c.b16 %v5176, %v5175
        %v5281 = vpack.c.b16 %v5178, %v5177
        %v5282 = vpack.c.b16 %v5180, %v5179
        %v5283 = vpack.c.b16 %v5182, %v5181
        %v5284 = vpack.c.b16 %v5184, %v5183
        %v5285 = vpack.c.b16 %v5186, %v5185
        %v5286 = vpack.c.b16 %v5188, %v5187
        %v5287 = vpack.c.b16 %v5190, %v5189
        %v5288 = vpack.c.b16 %v5192, %v5191
        %v5289 = vpack.c.b16 %v5194, %v5193
        %v5290 = vpack.c.b16 %v5196, %v5195
        %v5291 = vpack.c.b16 %v5198, %v5197
        %v5292 = vpack.c.b16 %v5200, %v5199
        %v5293 = vpack.c.b16 %v5202, %v5201
        %v5294 = vpack.c.b16 %v5204, %v5203
        %v5295 = vpack.c.b16 %v5206, %v5205
        %v5296 = vpack.c.b16 %v5208, %v5207
        %v5297 = vpack.c.b16 %v5210, %v5209
        %v5298 = vpack.c.b16 %v5212, %v5211
        %v5299 = vpack.c.b16 %v5214, %v5213
        %v5300 = vpack.c.b16 %v5216, %v5215
        %v5301 = vpack.c.b16 %v5218, %v5217
        %v5302 = vpack.c.b16 %v5220, %v5219
        %v5303 = vpack.c.b16 %v5222, %v5221
        %v5304 = vpack.c.b16 %v5224, %v5223
        %v5305 = vpack.c.b16 %v5226, %v5225
        %v5306 = vpack.c.b16 %v5228, %v5227
        %v5307 = vpack.c.b16 %v5230, %v5229
        %v5308 = vpack.c.b16 %v5232, %v5231
        %v5309 = vpack.c.b16 %v5234, %v5233
        %v5310 = vpack.c.b16 %v5236, %v5235
        %v5311 = vpack.c.b16 %v5238, %v5237
        %v5312 = vpack.c.b16 %v5240, %v5239
        %5385 = vmatpush.bf16.msra.mxu0 %v5248
        %5386 = vmatpush.bf16.msra.mxu0 %v5247
        %5387 = vmatpush.bf16.msra.mxu0 %v5246
        %5388 = vmatpush.bf16.msra.mxu0 %v5245
        %5389 = vmatpush.bf16.msra.mxu0 %v5244
        %5390 = vmatpush.bf16.msra.mxu0 %v5243
        %5391 = vmatpush.bf16.msra.mxu0 %v5242
        %5392 = vmatpush.bf16.msra.mxu0 %v5241
        %5393 = vmatmul.bf16.gmra.mxu0 %v4665
        %v5394 = vpop.f32.mrf.mxu0
        %v5395 = vadd.f32 0.0, %v5394
        %v5396 = vpop.f32.mrf.mxu0
        %v5397 = vadd.f32 0.0, %v5396
        %5398 = vmatmul.bf16.gmra.mxu0 %v4674
        %v5399 = vpop.f32.mrf.mxu0
        %v5400 = vadd.f32 0.0, %v5399
        %v5401 = vpop.f32.mrf.mxu0
        %v5402 = vadd.f32 0.0, %v5401
        %5403 = vmatmul.bf16.gmra.mxu0 %v4683
        %v5404 = vpop.f32.mrf.mxu0
        %v5405 = vadd.f32 0.0, %v5404
        %v5406 = vpop.f32.mrf.mxu0
        %v5407 = vadd.f32 0.0, %v5406
        %5408 = vmatmul.bf16.gmra.mxu0 %v4692
        %v5409 = vpop.f32.mrf.mxu0
        %v5410 = vadd.f32 0.0, %v5409
        %v5411 = vpop.f32.mrf.mxu0
        %v5412 = vadd.f32 0.0, %v5411
        %5413 = vmatmul.bf16.gmra.mxu0 %v4701
        %v5414 = vpop.f32.mrf.mxu0
        %v5415 = vadd.f32 0.0, %v5414
        %v5416 = vpop.f32.mrf.mxu0
        %v5417 = vadd.f32 0.0, %v5416
        %5418 = vmatmul.bf16.gmra.mxu0 %v4710
        %v5419 = vpop.f32.mrf.mxu0
        %v5420 = vadd.f32 0.0, %v5419
        %v5421 = vpop.f32.mrf.mxu0
        %v5422 = vadd.f32 0.0, %v5421
        %5423 = vmatmul.bf16.gmra.mxu0 %v4719
        %v5424 = vpop.f32.mrf.mxu0
        %v5425 = vadd.f32 0.0, %v5424
        %v5426 = vpop.f32.mrf.mxu0
        %v5427 = vadd.f32 0.0, %v5426
        %5428 = vmatmul.bf16.gmra.mxu0 %v4728
        %v5429 = vpop.f32.mrf.mxu0
        %v5430 = vadd.f32 0.0, %v5429
        %v5431 = vpop.f32.mrf.mxu0
        %v5432 = vadd.f32 0.0, %v5431
        %5433 = vmatmul.bf16.gmra.mxu0 %v4737
        %v5434 = vpop.f32.mrf.mxu0
        %v5435 = vadd.f32 0.0, %v5434
        %v5436 = vpop.f32.mrf.mxu0
        %v5437 = vadd.f32 0.0, %v5436
        %5438 = vmatmul.bf16.gmra.mxu0 %v4746
        %v5439 = vpop.f32.mrf.mxu0
        %v5440 = vadd.f32 0.0, %v5439
        %v5441 = vpop.f32.mrf.mxu0
        %v5442 = vadd.f32 0.0, %v5441
        %5443 = vmatmul.bf16.gmra.mxu0 %v4755
        %v5444 = vpop.f32.mrf.mxu0
        %v5445 = vadd.f32 0.0, %v5444
        %v5446 = vpop.f32.mrf.mxu0
        %v5447 = vadd.f32 0.0, %v5446
        %5448 = vmatmul.bf16.gmra.mxu0 %v4764
        %v5449 = vpop.f32.mrf.mxu0
        %v5450 = vadd.f32 0.0, %v5449
        %v5451 = vpop.f32.mrf.mxu0
        %v5452 = vadd.f32 0.0, %v5451
        %5453 = vmatmul.bf16.gmra.mxu0 %v4773
        %v5454 = vpop.f32.mrf.mxu0
        %v5455 = vadd.f32 0.0, %v5454
        %v5456 = vpop.f32.mrf.mxu0
        %v5457 = vadd.f32 0.0, %v5456
        %5458 = vmatmul.bf16.gmra.mxu0 %v4782
        %v5459 = vpop.f32.mrf.mxu0
        %v5460 = vadd.f32 0.0, %v5459
        %v5461 = vpop.f32.mrf.mxu0
        %v5462 = vadd.f32 0.0, %v5461
        %5463 = vmatmul.bf16.gmra.mxu0 %v4791
        %v5464 = vpop.f32.mrf.mxu0
        %v5465 = vadd.f32 0.0, %v5464
        %v5466 = vpop.f32.mrf.mxu0
        %v5467 = vadd.f32 0.0, %v5466
        %5468 = vmatmul.bf16.gmra.mxu0 %v4800
        %v5469 = vpop.f32.mrf.mxu0
        %v5470 = vadd.f32 0.0, %v5469
        %v5471 = vpop.f32.mrf.mxu0
        %v5472 = vadd.f32 0.0, %v5471
        %5473 = vdwg.mxu0
        %5474 = vmatpush.bf16.msra.mxu0 %v5256
        %5475 = vmatpush.bf16.msra.mxu0 %v5255
        %5476 = vmatpush.bf16.msra.mxu0 %v5254
        %5477 = vmatpush.bf16.msra.mxu0 %v5253
        %5478 = vmatpush.bf16.msra.mxu0 %v5252
        %5479 = vmatpush.bf16.msra.mxu0 %v5251
        %5480 = vmatpush.bf16.msra.mxu0 %v5250
        %5481 = vmatpush.bf16.msra.mxu0 %v5249
        %5482 = vmatmul.bf16.gmra.mxu0 %v4666
        %v5483 = vpop.f32.mrf.mxu0
        %v5484 = vadd.f32 %v5395, %v5483
        %v5485 = vpop.f32.mrf.mxu0
        %v5486 = vadd.f32 %v5397, %v5485
        %5487 = vmatmul.bf16.gmra.mxu0 %v4675
        %v5488 = vpop.f32.mrf.mxu0
        %v5489 = vadd.f32 %v5400, %v5488
        %v5490 = vpop.f32.mrf.mxu0
        %v5491 = vadd.f32 %v5402, %v5490
        %5492 = vmatmul.bf16.gmra.mxu0 %v4684
        %v5493 = vpop.f32.mrf.mxu0
        %v5494 = vadd.f32 %v5405, %v5493
        %v5495 = vpop.f32.mrf.mxu0
        %v5496 = vadd.f32 %v5407, %v5495
        %5497 = vmatmul.bf16.gmra.mxu0 %v4693
        %v5498 = vpop.f32.mrf.mxu0
        %v5499 = vadd.f32 %v5410, %v5498
        %v5500 = vpop.f32.mrf.mxu0
        %v5501 = vadd.f32 %v5412, %v5500
        %5502 = vmatmul.bf16.gmra.mxu0 %v4702
        %v5503 = vpop.f32.mrf.mxu0
        %v5504 = vadd.f32 %v5415, %v5503
        %v5505 = vpop.f32.mrf.mxu0
        %v5506 = vadd.f32 %v5417, %v5505
        %5507 = vmatmul.bf16.gmra.mxu0 %v4711
        %v5508 = vpop.f32.mrf.mxu0
        %v5509 = vadd.f32 %v5420, %v5508
        %v5510 = vpop.f32.mrf.mxu0
        %v5511 = vadd.f32 %v5422, %v5510
        %5512 = vmatmul.bf16.gmra.mxu0 %v4720
        %v5513 = vpop.f32.mrf.mxu0
        %v5514 = vadd.f32 %v5425, %v5513
        %v5515 = vpop.f32.mrf.mxu0
        %v5516 = vadd.f32 %v5427, %v5515
        %5517 = vmatmul.bf16.gmra.mxu0 %v4729
        %v5518 = vpop.f32.mrf.mxu0
        %v5519 = vadd.f32 %v5430, %v5518
        %v5520 = vpop.f32.mrf.mxu0
        %v5521 = vadd.f32 %v5432, %v5520
        %5522 = vmatmul.bf16.gmra.mxu0 %v4738
        %v5523 = vpop.f32.mrf.mxu0
        %v5524 = vadd.f32 %v5435, %v5523
        %v5525 = vpop.f32.mrf.mxu0
        %v5526 = vadd.f32 %v5437, %v5525
        %5527 = vmatmul.bf16.gmra.mxu0 %v4747
        %v5528 = vpop.f32.mrf.mxu0
        %v5529 = vadd.f32 %v5440, %v5528
        %v5530 = vpop.f32.mrf.mxu0
        %v5531 = vadd.f32 %v5442, %v5530
        %5532 = vmatmul.bf16.gmra.mxu0 %v4756
        %v5533 = vpop.f32.mrf.mxu0
        %v5534 = vadd.f32 %v5445, %v5533
        %v5535 = vpop.f32.mrf.mxu0
        %v5536 = vadd.f32 %v5447, %v5535
        %5537 = vmatmul.bf16.gmra.mxu0 %v4765
        %v5538 = vpop.f32.mrf.mxu0
        %v5539 = vadd.f32 %v5450, %v5538
        %v5540 = vpop.f32.mrf.mxu0
        %v5541 = vadd.f32 %v5452, %v5540
        %5542 = vmatmul.bf16.gmra.mxu0 %v4774
        %v5543 = vpop.f32.mrf.mxu0
        %v5544 = vadd.f32 %v5455, %v5543
        %v5545 = vpop.f32.mrf.mxu0
        %v5546 = vadd.f32 %v5457, %v5545
        %5547 = vmatmul.bf16.gmra.mxu0 %v4783
        %v5548 = vpop.f32.mrf.mxu0
        %v5549 = vadd.f32 %v5460, %v5548
        %v5550 = vpop.f32.mrf.mxu0
        %v5551 = vadd.f32 %v5462, %v5550
        %5552 = vmatmul.bf16.gmra.mxu0 %v4792
        %v5553 = vpop.f32.mrf.mxu0
        %v5554 = vadd.f32 %v5465, %v5553
        %v5555 = vpop.f32.mrf.mxu0
        %v5556 = vadd.f32 %v5467, %v5555
        %5557 = vmatmul.bf16.gmra.mxu0 %v4801
        %v5558 = vpop.f32.mrf.mxu0
        %v5559 = vadd.f32 %v5470, %v5558
        %v5560 = vpop.f32.mrf.mxu0
        %v5561 = vadd.f32 %v5472, %v5560
        %5562 = vdwg.mxu0
        %5563 = vmatpush.bf16.msra.mxu0 %v5264
        %5564 = vmatpush.bf16.msra.mxu0 %v5263
        %5565 = vmatpush.bf16.msra.mxu0 %v5262
        %5566 = vmatpush.bf16.msra.mxu0 %v5261
        %5567 = vmatpush.bf16.msra.mxu0 %v5260
        %5568 = vmatpush.bf16.msra.mxu0 %v5259
        %5569 = vmatpush.bf16.msra.mxu0 %v5258
        %5570 = vmatpush.bf16.msra.mxu0 %v5257
        %5571 = vmatmul.bf16.gmra.mxu0 %v4667
        %v5572 = vpop.f32.mrf.mxu0
        %v5573 = vadd.f32 %v5484, %v5572
        %v5574 = vpop.f32.mrf.mxu0
        %v5575 = vadd.f32 %v5486, %v5574
        %5576 = vmatmul.bf16.gmra.mxu0 %v4676
        %v5577 = vpop.f32.mrf.mxu0
        %v5578 = vadd.f32 %v5489, %v5577
        %v5579 = vpop.f32.mrf.mxu0
        %v5580 = vadd.f32 %v5491, %v5579
        %5581 = vmatmul.bf16.gmra.mxu0 %v4685
        %v5582 = vpop.f32.mrf.mxu0
        %v5583 = vadd.f32 %v5494, %v5582
        %v5584 = vpop.f32.mrf.mxu0
        %v5585 = vadd.f32 %v5496, %v5584
        %5586 = vmatmul.bf16.gmra.mxu0 %v4694
        %v5587 = vpop.f32.mrf.mxu0
        %v5588 = vadd.f32 %v5499, %v5587
        %v5589 = vpop.f32.mrf.mxu0
        %v5590 = vadd.f32 %v5501, %v5589
        %5591 = vmatmul.bf16.gmra.mxu0 %v4703
        %v5592 = vpop.f32.mrf.mxu0
        %v5593 = vadd.f32 %v5504, %v5592
        %v5594 = vpop.f32.mrf.mxu0
        %v5595 = vadd.f32 %v5506, %v5594
        %5596 = vmatmul.bf16.gmra.mxu0 %v4712
        %v5597 = vpop.f32.mrf.mxu0
        %v5598 = vadd.f32 %v5509, %v5597
        %v5599 = vpop.f32.mrf.mxu0
        %v5600 = vadd.f32 %v5511, %v5599
        %5601 = vmatmul.bf16.gmra.mxu0 %v4721
        %v5602 = vpop.f32.mrf.mxu0
        %v5603 = vadd.f32 %v5514, %v5602
        %v5604 = vpop.f32.mrf.mxu0
        %v5605 = vadd.f32 %v5516, %v5604
        %5606 = vmatmul.bf16.gmra.mxu0 %v4730
        %v5607 = vpop.f32.mrf.mxu0
        %v5608 = vadd.f32 %v5519, %v5607
        %v5609 = vpop.f32.mrf.mxu0
        %v5610 = vadd.f32 %v5521, %v5609
        %5611 = vmatmul.bf16.gmra.mxu0 %v4739
        %v5612 = vpop.f32.mrf.mxu0
        %v5613 = vadd.f32 %v5524, %v5612
        %v5614 = vpop.f32.mrf.mxu0
        %v5615 = vadd.f32 %v5526, %v5614
        %5616 = vmatmul.bf16.gmra.mxu0 %v4748
        %v5617 = vpop.f32.mrf.mxu0
        %v5618 = vadd.f32 %v5529, %v5617
        %v5619 = vpop.f32.mrf.mxu0
        %v5620 = vadd.f32 %v5531, %v5619
        %5621 = vmatmul.bf16.gmra.mxu0 %v4757
        %v5622 = vpop.f32.mrf.mxu0
        %v5623 = vadd.f32 %v5534, %v5622
        %v5624 = vpop.f32.mrf.mxu0
        %v5625 = vadd.f32 %v5536, %v5624
        %5626 = vmatmul.bf16.gmra.mxu0 %v4766
        %v5627 = vpop.f32.mrf.mxu0
        %v5628 = vadd.f32 %v5539, %v5627
        %v5629 = vpop.f32.mrf.mxu0
        %v5630 = vadd.f32 %v5541, %v5629
        %5631 = vmatmul.bf16.gmra.mxu0 %v4775
        %v5632 = vpop.f32.mrf.mxu0
        %v5633 = vadd.f32 %v5544, %v5632
        %v5634 = vpop.f32.mrf.mxu0
        %v5635 = vadd.f32 %v5546, %v5634
        %5636 = vmatmul.bf16.gmra.mxu0 %v4784
        %v5637 = vpop.f32.mrf.mxu0
        %v5638 = vadd.f32 %v5549, %v5637
        %v5639 = vpop.f32.mrf.mxu0
        %v5640 = vadd.f32 %v5551, %v5639
        %5641 = vmatmul.bf16.gmra.mxu0 %v4793
        %v5642 = vpop.f32.mrf.mxu0
        %v5643 = vadd.f32 %v5554, %v5642
        %v5644 = vpop.f32.mrf.mxu0
        %v5645 = vadd.f32 %v5556, %v5644
        %5646 = vmatmul.bf16.gmra.mxu0 %v4802
        %v5647 = vpop.f32.mrf.mxu0
        %v5648 = vadd.f32 %v5559, %v5647
        %v5649 = vpop.f32.mrf.mxu0
        %v5650 = vadd.f32 %v5561, %v5649
        %5651 = vdwg.mxu0
        %5652 = vmatpush.bf16.msra.mxu0 %v5272
        %5653 = vmatpush.bf16.msra.mxu0 %v5271
        %5654 = vmatpush.bf16.msra.mxu0 %v5270
        %5655 = vmatpush.bf16.msra.mxu0 %v5269
        %5656 = vmatpush.bf16.msra.mxu0 %v5268
        %5657 = vmatpush.bf16.msra.mxu0 %v5267
        %5658 = vmatpush.bf16.msra.mxu0 %v5266
        %5659 = vmatpush.bf16.msra.mxu0 %v5265
        %5660 = vmatmul.bf16.gmra.mxu0 %v4668
        %v5661 = vpop.f32.mrf.mxu0
        %v5662 = vadd.f32 %v5573, %v5661
        %v5663 = vpop.f32.mrf.mxu0
        %v5664 = vadd.f32 %v5575, %v5663
        %5665 = vmatmul.bf16.gmra.mxu0 %v4677
        %v5666 = vpop.f32.mrf.mxu0
        %v5667 = vadd.f32 %v5578, %v5666
        %v5668 = vpop.f32.mrf.mxu0
        %v5669 = vadd.f32 %v5580, %v5668
        %5670 = vmatmul.bf16.gmra.mxu0 %v4686
        %v5671 = vpop.f32.mrf.mxu0
        %v5672 = vadd.f32 %v5583, %v5671
        %v5673 = vpop.f32.mrf.mxu0
        %v5674 = vadd.f32 %v5585, %v5673
        %5675 = vmatmul.bf16.gmra.mxu0 %v4695
        %v5676 = vpop.f32.mrf.mxu0
        %v5677 = vadd.f32 %v5588, %v5676
        %v5678 = vpop.f32.mrf.mxu0
        %v5679 = vadd.f32 %v5590, %v5678
        %5680 = vmatmul.bf16.gmra.mxu0 %v4704
        %v5681 = vpop.f32.mrf.mxu0
        %v5682 = vadd.f32 %v5593, %v5681
        %v5683 = vpop.f32.mrf.mxu0
        %v5684 = vadd.f32 %v5595, %v5683
        %5685 = vmatmul.bf16.gmra.mxu0 %v4713
        %v5686 = vpop.f32.mrf.mxu0
        %v5687 = vadd.f32 %v5598, %v5686
        %v5688 = vpop.f32.mrf.mxu0
        %v5689 = vadd.f32 %v5600, %v5688
        %5690 = vmatmul.bf16.gmra.mxu0 %v4722
        %v5691 = vpop.f32.mrf.mxu0
        %v5692 = vadd.f32 %v5603, %v5691
        %v5693 = vpop.f32.mrf.mxu0
        %v5694 = vadd.f32 %v5605, %v5693
        %5695 = vmatmul.bf16.gmra.mxu0 %v4731
        %v5696 = vpop.f32.mrf.mxu0
        %v5697 = vadd.f32 %v5608, %v5696
        %v5698 = vpop.f32.mrf.mxu0
        %v5699 = vadd.f32 %v5610, %v5698
        %5700 = vmatmul.bf16.gmra.mxu0 %v4740
        %v5701 = vpop.f32.mrf.mxu0
        %v5702 = vadd.f32 %v5613, %v5701
        %v5703 = vpop.f32.mrf.mxu0
        %v5704 = vadd.f32 %v5615, %v5703
        %5705 = vmatmul.bf16.gmra.mxu0 %v4749
        %v5706 = vpop.f32.mrf.mxu0
        %v5707 = vadd.f32 %v5618, %v5706
        %v5708 = vpop.f32.mrf.mxu0
        %v5709 = vadd.f32 %v5620, %v5708
        %5710 = vmatmul.bf16.gmra.mxu0 %v4758
        %v5711 = vpop.f32.mrf.mxu0
        %v5712 = vadd.f32 %v5623, %v5711
        %v5713 = vpop.f32.mrf.mxu0
        %v5714 = vadd.f32 %v5625, %v5713
        %5715 = vmatmul.bf16.gmra.mxu0 %v4767
        %v5716 = vpop.f32.mrf.mxu0
        %v5717 = vadd.f32 %v5628, %v5716
        %v5718 = vpop.f32.mrf.mxu0
        %v5719 = vadd.f32 %v5630, %v5718
        %5720 = vmatmul.bf16.gmra.mxu0 %v4776
        %v5721 = vpop.f32.mrf.mxu0
        %v5722 = vadd.f32 %v5633, %v5721
        %v5723 = vpop.f32.mrf.mxu0
        %v5724 = vadd.f32 %v5635, %v5723
        %5725 = vmatmul.bf16.gmra.mxu0 %v4785
        %v5726 = vpop.f32.mrf.mxu0
        %v5727 = vadd.f32 %v5638, %v5726
        %v5728 = vpop.f32.mrf.mxu0
        %v5729 = vadd.f32 %v5640, %v5728
        %5730 = vmatmul.bf16.gmra.mxu0 %v4794
        %v5731 = vpop.f32.mrf.mxu0
        %v5732 = vadd.f32 %v5643, %v5731
        %v5733 = vpop.f32.mrf.mxu0
        %v5734 = vadd.f32 %v5645, %v5733
        %5735 = vmatmul.bf16.gmra.mxu0 %v4803
        %v5736 = vpop.f32.mrf.mxu0
        %v5737 = vadd.f32 %v5648, %v5736
        %v5738 = vpop.f32.mrf.mxu0
        %v5739 = vadd.f32 %v5650, %v5738
        %5740 = vdwg.mxu0
        %5741 = vmatpush.bf16.msra.mxu0 %v5280
        %5742 = vmatpush.bf16.msra.mxu0 %v5279
        %5743 = vmatpush.bf16.msra.mxu0 %v5278
        %5744 = vmatpush.bf16.msra.mxu0 %v5277
        %5745 = vmatpush.bf16.msra.mxu0 %v5276
        %5746 = vmatpush.bf16.msra.mxu0 %v5275
        %5747 = vmatpush.bf16.msra.mxu0 %v5274
        %5748 = vmatpush.bf16.msra.mxu0 %v5273
        %5749 = vmatmul.bf16.gmra.mxu0 %v4669
        %v5750 = vpop.f32.mrf.mxu0
        %v5751 = vadd.f32 %v5662, %v5750
        %v5752 = vpop.f32.mrf.mxu0
        %v5753 = vadd.f32 %v5664, %v5752
        %5754 = vmatmul.bf16.gmra.mxu0 %v4678
        %v5755 = vpop.f32.mrf.mxu0
        %v5756 = vadd.f32 %v5667, %v5755
        %v5757 = vpop.f32.mrf.mxu0
        %v5758 = vadd.f32 %v5669, %v5757
        %5759 = vmatmul.bf16.gmra.mxu0 %v4687
        %v5760 = vpop.f32.mrf.mxu0
        %v5761 = vadd.f32 %v5672, %v5760
        %v5762 = vpop.f32.mrf.mxu0
        %v5763 = vadd.f32 %v5674, %v5762
        %5764 = vmatmul.bf16.gmra.mxu0 %v4696
        %v5765 = vpop.f32.mrf.mxu0
        %v5766 = vadd.f32 %v5677, %v5765
        %v5767 = vpop.f32.mrf.mxu0
        %v5768 = vadd.f32 %v5679, %v5767
        %5769 = vmatmul.bf16.gmra.mxu0 %v4705
        %v5770 = vpop.f32.mrf.mxu0
        %v5771 = vadd.f32 %v5682, %v5770
        %v5772 = vpop.f32.mrf.mxu0
        %v5773 = vadd.f32 %v5684, %v5772
        %5774 = vmatmul.bf16.gmra.mxu0 %v4714
        %v5775 = vpop.f32.mrf.mxu0
        %v5776 = vadd.f32 %v5687, %v5775
        %v5777 = vpop.f32.mrf.mxu0
        %v5778 = vadd.f32 %v5689, %v5777
        %5779 = vmatmul.bf16.gmra.mxu0 %v4723
        %v5780 = vpop.f32.mrf.mxu0
        %v5781 = vadd.f32 %v5692, %v5780
        %v5782 = vpop.f32.mrf.mxu0
        %v5783 = vadd.f32 %v5694, %v5782
        %5784 = vmatmul.bf16.gmra.mxu0 %v4732
        %v5785 = vpop.f32.mrf.mxu0
        %v5786 = vadd.f32 %v5697, %v5785
        %v5787 = vpop.f32.mrf.mxu0
        %v5788 = vadd.f32 %v5699, %v5787
        %5789 = vmatmul.bf16.gmra.mxu0 %v4741
        %v5790 = vpop.f32.mrf.mxu0
        %v5791 = vadd.f32 %v5702, %v5790
        %v5792 = vpop.f32.mrf.mxu0
        %v5793 = vadd.f32 %v5704, %v5792
        %5794 = vmatmul.bf16.gmra.mxu0 %v4750
        %v5795 = vpop.f32.mrf.mxu0
        %v5796 = vadd.f32 %v5707, %v5795
        %v5797 = vpop.f32.mrf.mxu0
        %v5798 = vadd.f32 %v5709, %v5797
        %5799 = vmatmul.bf16.gmra.mxu0 %v4759
        %v5800 = vpop.f32.mrf.mxu0
        %v5801 = vadd.f32 %v5712, %v5800
        %v5802 = vpop.f32.mrf.mxu0
        %v5803 = vadd.f32 %v5714, %v5802
        %5804 = vmatmul.bf16.gmra.mxu0 %v4768
        %v5805 = vpop.f32.mrf.mxu0
        %v5806 = vadd.f32 %v5717, %v5805
        %v5807 = vpop.f32.mrf.mxu0
        %v5808 = vadd.f32 %v5719, %v5807
        %5809 = vmatmul.bf16.gmra.mxu0 %v4777
        %v5810 = vpop.f32.mrf.mxu0
        %v5811 = vadd.f32 %v5722, %v5810
        %v5812 = vpop.f32.mrf.mxu0
        %v5813 = vadd.f32 %v5724, %v5812
        %5814 = vmatmul.bf16.gmra.mxu0 %v4786
        %v5815 = vpop.f32.mrf.mxu0
        %v5816 = vadd.f32 %v5727, %v5815
        %v5817 = vpop.f32.mrf.mxu0
        %v5818 = vadd.f32 %v5729, %v5817
        %5819 = vmatmul.bf16.gmra.mxu0 %v4795
        %v5820 = vpop.f32.mrf.mxu0
        %v5821 = vadd.f32 %v5732, %v5820
        %v5822 = vpop.f32.mrf.mxu0
        %v5823 = vadd.f32 %v5734, %v5822
        %5824 = vmatmul.bf16.gmra.mxu0 %v4804
        %v5825 = vpop.f32.mrf.mxu0
        %v5826 = vadd.f32 %v5737, %v5825
        %v5827 = vpop.f32.mrf.mxu0
        %v5828 = vadd.f32 %v5739, %v5827
        %5829 = vdwg.mxu0
        %5830 = vmatpush.bf16.msra.mxu0 %v5288
        %5831 = vmatpush.bf16.msra.mxu0 %v5287
        %5832 = vmatpush.bf16.msra.mxu0 %v5286
        %5833 = vmatpush.bf16.msra.mxu0 %v5285
        %5834 = vmatpush.bf16.msra.mxu0 %v5284
        %5835 = vmatpush.bf16.msra.mxu0 %v5283
        %5836 = vmatpush.bf16.msra.mxu0 %v5282
        %5837 = vmatpush.bf16.msra.mxu0 %v5281
        %5838 = vmatmul.bf16.gmra.mxu0 %v4670
        %v5839 = vpop.f32.mrf.mxu0
        %v5840 = vadd.f32 %v5751, %v5839
        %v5841 = vpop.f32.mrf.mxu0
        %v5842 = vadd.f32 %v5753, %v5841
        %5843 = vmatmul.bf16.gmra.mxu0 %v4679
        %v5844 = vpop.f32.mrf.mxu0
        %v5845 = vadd.f32 %v5756, %v5844
        %v5846 = vpop.f32.mrf.mxu0
        %v5847 = vadd.f32 %v5758, %v5846
        %5848 = vmatmul.bf16.gmra.mxu0 %v4688
        %v5849 = vpop.f32.mrf.mxu0
        %v5850 = vadd.f32 %v5761, %v5849
        %v5851 = vpop.f32.mrf.mxu0
        %v5852 = vadd.f32 %v5763, %v5851
        %5853 = vmatmul.bf16.gmra.mxu0 %v4697
        %v5854 = vpop.f32.mrf.mxu0
        %v5855 = vadd.f32 %v5766, %v5854
        %v5856 = vpop.f32.mrf.mxu0
        %v5857 = vadd.f32 %v5768, %v5856
        %5858 = vmatmul.bf16.gmra.mxu0 %v4706
        %v5859 = vpop.f32.mrf.mxu0
        %v5860 = vadd.f32 %v5771, %v5859
        %v5861 = vpop.f32.mrf.mxu0
        %v5862 = vadd.f32 %v5773, %v5861
        %5863 = vmatmul.bf16.gmra.mxu0 %v4715
        %v5864 = vpop.f32.mrf.mxu0
        %v5865 = vadd.f32 %v5776, %v5864
        %v5866 = vpop.f32.mrf.mxu0
        %v5867 = vadd.f32 %v5778, %v5866
        %5868 = vmatmul.bf16.gmra.mxu0 %v4724
        %v5869 = vpop.f32.mrf.mxu0
        %v5870 = vadd.f32 %v5781, %v5869
        %v5871 = vpop.f32.mrf.mxu0
        %v5872 = vadd.f32 %v5783, %v5871
        %5873 = vmatmul.bf16.gmra.mxu0 %v4733
        %v5874 = vpop.f32.mrf.mxu0
        %v5875 = vadd.f32 %v5786, %v5874
        %v5876 = vpop.f32.mrf.mxu0
        %v5877 = vadd.f32 %v5788, %v5876
        %5878 = vmatmul.bf16.gmra.mxu0 %v4742
        %v5879 = vpop.f32.mrf.mxu0
        %v5880 = vadd.f32 %v5791, %v5879
        %v5881 = vpop.f32.mrf.mxu0
        %v5882 = vadd.f32 %v5793, %v5881
        %5883 = vmatmul.bf16.gmra.mxu0 %v4751
        %v5884 = vpop.f32.mrf.mxu0
        %v5885 = vadd.f32 %v5796, %v5884
        %v5886 = vpop.f32.mrf.mxu0
        %v5887 = vadd.f32 %v5798, %v5886
        %5888 = vmatmul.bf16.gmra.mxu0 %v4760
        %v5889 = vpop.f32.mrf.mxu0
        %v5890 = vadd.f32 %v5801, %v5889
        %v5891 = vpop.f32.mrf.mxu0
        %v5892 = vadd.f32 %v5803, %v5891
        %5893 = vmatmul.bf16.gmra.mxu0 %v4769
        %v5894 = vpop.f32.mrf.mxu0
        %v5895 = vadd.f32 %v5806, %v5894
        %v5896 = vpop.f32.mrf.mxu0
        %v5897 = vadd.f32 %v5808, %v5896
        %5898 = vmatmul.bf16.gmra.mxu0 %v4778
        %v5899 = vpop.f32.mrf.mxu0
        %v5900 = vadd.f32 %v5811, %v5899
        %v5901 = vpop.f32.mrf.mxu0
        %v5902 = vadd.f32 %v5813, %v5901
        %5903 = vmatmul.bf16.gmra.mxu0 %v4787
        %v5904 = vpop.f32.mrf.mxu0
        %v5905 = vadd.f32 %v5816, %v5904
        %v5906 = vpop.f32.mrf.mxu0
        %v5907 = vadd.f32 %v5818, %v5906
        %5908 = vmatmul.bf16.gmra.mxu0 %v4796
        %v5909 = vpop.f32.mrf.mxu0
        %v5910 = vadd.f32 %v5821, %v5909
        %v5911 = vpop.f32.mrf.mxu0
        %v5912 = vadd.f32 %v5823, %v5911
        %5913 = vmatmul.bf16.gmra.mxu0 %v4805
        %v5914 = vpop.f32.mrf.mxu0
        %v5915 = vadd.f32 %v5826, %v5914
        %v5916 = vpop.f32.mrf.mxu0
        %v5917 = vadd.f32 %v5828, %v5916
        %5918 = vdwg.mxu0
        %5919 = vmatpush.bf16.msra.mxu0 %v5296
        %5920 = vmatpush.bf16.msra.mxu0 %v5295
        %5921 = vmatpush.bf16.msra.mxu0 %v5294
        %5922 = vmatpush.bf16.msra.mxu0 %v5293
        %5923 = vmatpush.bf16.msra.mxu0 %v5292
        %5924 = vmatpush.bf16.msra.mxu0 %v5291
        %5925 = vmatpush.bf16.msra.mxu0 %v5290
        %5926 = vmatpush.bf16.msra.mxu0 %v5289
        %5927 = vmatmul.bf16.gmra.mxu0 %v4671
        %v5928 = vpop.f32.mrf.mxu0
        %v5929 = vadd.f32 %v5840, %v5928
        %v5930 = vpop.f32.mrf.mxu0
        %v5931 = vadd.f32 %v5842, %v5930
        %5932 = vmatmul.bf16.gmra.mxu0 %v4680
        %v5933 = vpop.f32.mrf.mxu0
        %v5934 = vadd.f32 %v5845, %v5933
        %v5935 = vpop.f32.mrf.mxu0
        %v5936 = vadd.f32 %v5847, %v5935
        %5937 = vmatmul.bf16.gmra.mxu0 %v4689
        %v5938 = vpop.f32.mrf.mxu0
        %v5939 = vadd.f32 %v5850, %v5938
        %v5940 = vpop.f32.mrf.mxu0
        %v5941 = vadd.f32 %v5852, %v5940
        %5942 = vmatmul.bf16.gmra.mxu0 %v4698
        %v5943 = vpop.f32.mrf.mxu0
        %v5944 = vadd.f32 %v5855, %v5943
        %v5945 = vpop.f32.mrf.mxu0
        %v5946 = vadd.f32 %v5857, %v5945
        %5947 = vmatmul.bf16.gmra.mxu0 %v4707
        %v5948 = vpop.f32.mrf.mxu0
        %v5949 = vadd.f32 %v5860, %v5948
        %v5950 = vpop.f32.mrf.mxu0
        %v5951 = vadd.f32 %v5862, %v5950
        %5952 = vmatmul.bf16.gmra.mxu0 %v4716
        %v5953 = vpop.f32.mrf.mxu0
        %v5954 = vadd.f32 %v5865, %v5953
        %v5955 = vpop.f32.mrf.mxu0
        %v5956 = vadd.f32 %v5867, %v5955
        %5957 = vmatmul.bf16.gmra.mxu0 %v4725
        %v5958 = vpop.f32.mrf.mxu0
        %v5959 = vadd.f32 %v5870, %v5958
        %v5960 = vpop.f32.mrf.mxu0
        %v5961 = vadd.f32 %v5872, %v5960
        %5962 = vmatmul.bf16.gmra.mxu0 %v4734
        %v5963 = vpop.f32.mrf.mxu0
        %v5964 = vadd.f32 %v5875, %v5963
        %v5965 = vpop.f32.mrf.mxu0
        %v5966 = vadd.f32 %v5877, %v5965
        %5967 = vmatmul.bf16.gmra.mxu0 %v4743
        %v5968 = vpop.f32.mrf.mxu0
        %v5969 = vadd.f32 %v5880, %v5968
        %v5970 = vpop.f32.mrf.mxu0
        %v5971 = vadd.f32 %v5882, %v5970
        %5972 = vmatmul.bf16.gmra.mxu0 %v4752
        %v5973 = vpop.f32.mrf.mxu0
        %v5974 = vadd.f32 %v5885, %v5973
        %v5975 = vpop.f32.mrf.mxu0
        %v5976 = vadd.f32 %v5887, %v5975
        %5977 = vmatmul.bf16.gmra.mxu0 %v4761
        %v5978 = vpop.f32.mrf.mxu0
        %v5979 = vadd.f32 %v5890, %v5978
        %v5980 = vpop.f32.mrf.mxu0
        %v5981 = vadd.f32 %v5892, %v5980
        %5982 = vmatmul.bf16.gmra.mxu0 %v4770
        %v5983 = vpop.f32.mrf.mxu0
        %v5984 = vadd.f32 %v5895, %v5983
        %v5985 = vpop.f32.mrf.mxu0
        %v5986 = vadd.f32 %v5897, %v5985
        %5987 = vmatmul.bf16.gmra.mxu0 %v4779
        %v5988 = vpop.f32.mrf.mxu0
        %v5989 = vadd.f32 %v5900, %v5988
        %v5990 = vpop.f32.mrf.mxu0
        %v5991 = vadd.f32 %v5902, %v5990
        %5992 = vmatmul.bf16.gmra.mxu0 %v4788
        %v5993 = vpop.f32.mrf.mxu0
        %v5994 = vadd.f32 %v5905, %v5993
        %v5995 = vpop.f32.mrf.mxu0
        %v5996 = vadd.f32 %v5907, %v5995
        %5997 = vmatmul.bf16.gmra.mxu0 %v4797
        %v5998 = vpop.f32.mrf.mxu0
        %v5999 = vadd.f32 %v5910, %v5998
        %v6000 = vpop.f32.mrf.mxu0
        %v6001 = vadd.f32 %v5912, %v6000
        %6002 = vmatmul.bf16.gmra.mxu0 %v4806
        %v6003 = vpop.f32.mrf.mxu0
        %v6004 = vadd.f32 %v5915, %v6003
        %v6005 = vpop.f32.mrf.mxu0
        %v6006 = vadd.f32 %v5917, %v6005
        %6007 = vdwg.mxu0
        %6008 = vmatpush.bf16.msra.mxu0 %v5304
        %6009 = vmatpush.bf16.msra.mxu0 %v5303
        %6010 = vmatpush.bf16.msra.mxu0 %v5302
        %6011 = vmatpush.bf16.msra.mxu0 %v5301
        %6012 = vmatpush.bf16.msra.mxu0 %v5300
        %6013 = vmatpush.bf16.msra.mxu0 %v5299
        %6014 = vmatpush.bf16.msra.mxu0 %v5298
        %6015 = vmatpush.bf16.msra.mxu0 %v5297
        %6016 = vmatmul.bf16.gmra.mxu0 %v4672
        %v6017 = vpop.f32.mrf.mxu0
        %v6018 = vadd.f32 %v5929, %v6017
        %v6019 = vpop.f32.mrf.mxu0
        %v6020 = vadd.f32 %v5931, %v6019
        %6021 = vmatmul.bf16.gmra.mxu0 %v4681
        %v6022 = vpop.f32.mrf.mxu0
        %v6023 = vadd.f32 %v5934, %v6022
        %v6024 = vpop.f32.mrf.mxu0
        %v6025 = vadd.f32 %v5936, %v6024
        %6026 = vmatmul.bf16.gmra.mxu0 %v4690
        %v6027 = vpop.f32.mrf.mxu0
        %v6028 = vadd.f32 %v5939, %v6027
        %v6029 = vpop.f32.mrf.mxu0
        %v6030 = vadd.f32 %v5941, %v6029
        %6031 = vmatmul.bf16.gmra.mxu0 %v4699
        %v6032 = vpop.f32.mrf.mxu0
        %v6033 = vadd.f32 %v5944, %v6032
        %v6034 = vpop.f32.mrf.mxu0
        %v6035 = vadd.f32 %v5946, %v6034
        %6036 = vmatmul.bf16.gmra.mxu0 %v4708
        %v6037 = vpop.f32.mrf.mxu0
        %v6038 = vadd.f32 %v5949, %v6037
        %v6039 = vpop.f32.mrf.mxu0
        %v6040 = vadd.f32 %v5951, %v6039
        %6041 = vmatmul.bf16.gmra.mxu0 %v4717
        %v6042 = vpop.f32.mrf.mxu0
        %v6043 = vadd.f32 %v5954, %v6042
        %v6044 = vpop.f32.mrf.mxu0
        %v6045 = vadd.f32 %v5956, %v6044
        %6046 = vmatmul.bf16.gmra.mxu0 %v4726
        %v6047 = vpop.f32.mrf.mxu0
        %v6048 = vadd.f32 %v5959, %v6047
        %v6049 = vpop.f32.mrf.mxu0
        %v6050 = vadd.f32 %v5961, %v6049
        %6051 = vmatmul.bf16.gmra.mxu0 %v4735
        %v6052 = vpop.f32.mrf.mxu0
        %v6053 = vadd.f32 %v5964, %v6052
        %v6054 = vpop.f32.mrf.mxu0
        %v6055 = vadd.f32 %v5966, %v6054
        %6056 = vmatmul.bf16.gmra.mxu0 %v4744
        %v6057 = vpop.f32.mrf.mxu0
        %v6058 = vadd.f32 %v5969, %v6057
        %v6059 = vpop.f32.mrf.mxu0
        %v6060 = vadd.f32 %v5971, %v6059
        %6061 = vmatmul.bf16.gmra.mxu0 %v4753
        %v6062 = vpop.f32.mrf.mxu0
        %v6063 = vadd.f32 %v5974, %v6062
        %v6064 = vpop.f32.mrf.mxu0
        %v6065 = vadd.f32 %v5976, %v6064
        %6066 = vmatmul.bf16.gmra.mxu0 %v4762
        %v6067 = vpop.f32.mrf.mxu0
        %v6068 = vadd.f32 %v5979, %v6067
        %v6069 = vpop.f32.mrf.mxu0
        %v6070 = vadd.f32 %v5981, %v6069
        %6071 = vmatmul.bf16.gmra.mxu0 %v4771
        %v6072 = vpop.f32.mrf.mxu0
        %v6073 = vadd.f32 %v5984, %v6072
        %v6074 = vpop.f32.mrf.mxu0
        %v6075 = vadd.f32 %v5986, %v6074
        %6076 = vmatmul.bf16.gmra.mxu0 %v4780
        %v6077 = vpop.f32.mrf.mxu0
        %v6078 = vadd.f32 %v5989, %v6077
        %v6079 = vpop.f32.mrf.mxu0
        %v6080 = vadd.f32 %v5991, %v6079
        %6081 = vmatmul.bf16.gmra.mxu0 %v4789
        %v6082 = vpop.f32.mrf.mxu0
        %v6083 = vadd.f32 %v5994, %v6082
        %v6084 = vpop.f32.mrf.mxu0
        %v6085 = vadd.f32 %v5996, %v6084
        %6086 = vmatmul.bf16.gmra.mxu0 %v4798
        %v6087 = vpop.f32.mrf.mxu0
        %v6088 = vadd.f32 %v5999, %v6087
        %v6089 = vpop.f32.mrf.mxu0
        %v6090 = vadd.f32 %v6001, %v6089
        %6091 = vmatmul.bf16.gmra.mxu0 %v4807
        %v6092 = vpop.f32.mrf.mxu0
        %v6093 = vadd.f32 %v6004, %v6092
        %v6094 = vpop.f32.mrf.mxu0
        %v6095 = vadd.f32 %v6006, %v6094
        %6096 = vdwg.mxu0
        %6097 = vmatpush.bf16.msra.mxu0 %v5312
        %6098 = vmatpush.bf16.msra.mxu0 %v5311
        %6099 = vmatpush.bf16.msra.mxu0 %v5310
        %6100 = vmatpush.bf16.msra.mxu0 %v5309
        %6101 = vmatpush.bf16.msra.mxu0 %v5308
        %6102 = vmatpush.bf16.msra.mxu0 %v5307
        %6103 = vmatpush.bf16.msra.mxu0 %v5306
        %6104 = vmatpush.bf16.msra.mxu0 %v5305
        %6105 = vmatmul.bf16.gmra.mxu0 %v4673
        %v6106 = vpop.f32.mrf.mxu0
        %v6107 = vadd.f32 %v6018, %v6106
        %v6108 = vpop.f32.mrf.mxu0
        %v6109 = vadd.f32 %v6020, %v6108
        %6110 = vmatmul.bf16.gmra.mxu0 %v4682
        %v6111 = vpop.f32.mrf.mxu0
        %v6112 = vadd.f32 %v6023, %v6111
        %v6113 = vpop.f32.mrf.mxu0
        %v6114 = vadd.f32 %v6025, %v6113
        %6115 = vmatmul.bf16.gmra.mxu0 %v4691
        %v6116 = vpop.f32.mrf.mxu0
        %v6117 = vadd.f32 %v6028, %v6116
        %v6118 = vpop.f32.mrf.mxu0
        %v6119 = vadd.f32 %v6030, %v6118
        %6120 = vmatmul.bf16.gmra.mxu0 %v4700
        %v6121 = vpop.f32.mrf.mxu0
        %v6122 = vadd.f32 %v6033, %v6121
        %v6123 = vpop.f32.mrf.mxu0
        %v6124 = vadd.f32 %v6035, %v6123
        %6125 = vmatmul.bf16.gmra.mxu0 %v4709
        %v6126 = vpop.f32.mrf.mxu0
        %v6127 = vadd.f32 %v6038, %v6126
        %v6128 = vpop.f32.mrf.mxu0
        %v6129 = vadd.f32 %v6040, %v6128
        %6130 = vmatmul.bf16.gmra.mxu0 %v4718
        %v6131 = vpop.f32.mrf.mxu0
        %v6132 = vadd.f32 %v6043, %v6131
        %v6133 = vpop.f32.mrf.mxu0
        %v6134 = vadd.f32 %v6045, %v6133
        %6135 = vmatmul.bf16.gmra.mxu0 %v4727
        %v6136 = vpop.f32.mrf.mxu0
        %v6137 = vadd.f32 %v6048, %v6136
        %v6138 = vpop.f32.mrf.mxu0
        %v6139 = vadd.f32 %v6050, %v6138
        %6140 = vmatmul.bf16.gmra.mxu0 %v4736
        %v6141 = vpop.f32.mrf.mxu0
        %v6142 = vadd.f32 %v6053, %v6141
        %v6143 = vpop.f32.mrf.mxu0
        %v6144 = vadd.f32 %v6055, %v6143
        %6145 = vmatmul.bf16.gmra.mxu0 %v4745
        %v6146 = vpop.f32.mrf.mxu0
        %v6147 = vadd.f32 %v6058, %v6146
        %v6148 = vpop.f32.mrf.mxu0
        %v6149 = vadd.f32 %v6060, %v6148
        %6150 = vmatmul.bf16.gmra.mxu0 %v4754
        %v6151 = vpop.f32.mrf.mxu0
        %v6152 = vadd.f32 %v6063, %v6151
        %v6153 = vpop.f32.mrf.mxu0
        %v6154 = vadd.f32 %v6065, %v6153
        %6155 = vmatmul.bf16.gmra.mxu0 %v4763
        %v6156 = vpop.f32.mrf.mxu0
        %v6157 = vadd.f32 %v6068, %v6156
        %v6158 = vpop.f32.mrf.mxu0
        %v6159 = vadd.f32 %v6070, %v6158
        %6160 = vmatmul.bf16.gmra.mxu0 %v4772
        %v6161 = vpop.f32.mrf.mxu0
        %v6162 = vadd.f32 %v6073, %v6161
        %v6163 = vpop.f32.mrf.mxu0
        %v6164 = vadd.f32 %v6075, %v6163
        %6165 = vmatmul.bf16.gmra.mxu0 %v4781
        %v6166 = vpop.f32.mrf.mxu0
        %v6167 = vadd.f32 %v6078, %v6166
        %v6168 = vpop.f32.mrf.mxu0
        %v6169 = vadd.f32 %v6080, %v6168
        %6170 = vmatmul.bf16.gmra.mxu0 %v4790
        %v6171 = vpop.f32.mrf.mxu0
        %v6172 = vadd.f32 %v6083, %v6171
        %v6173 = vpop.f32.mrf.mxu0
        %v6174 = vadd.f32 %v6085, %v6173
        %6175 = vmatmul.bf16.gmra.mxu0 %v4799
        %v6176 = vpop.f32.mrf.mxu0
        %v6177 = vadd.f32 %v6088, %v6176
        %v6178 = vpop.f32.mrf.mxu0
        %v6179 = vadd.f32 %v6090, %v6178
        %6180 = vmatmul.bf16.gmra.mxu0 %v4808
        %v6181 = vpop.f32.mrf.mxu0
        %v6182 = vadd.f32 %v6093, %v6181
        %v6183 = vpop.f32.mrf.mxu0
        %v6184 = vadd.f32 %v6095, %v6183
        %6185 = vdwg.mxu0
        %v6186 = vld [vmem:[%s5] sm:$0x1]
        %v6188 = vperm.slane %v6186, 0
        %v6190 = vmul.f32 %v6107, %v6188
        %v6191 = vmul.f32 %v6109, %v6188
        %v6192 = vmul.f32 %v6112, %v6188
        %v6193 = vmul.f32 %v6114, %v6188
        %v6194 = vmul.f32 %v6117, %v6188
        %v6195 = vmul.f32 %v6119, %v6188
        %v6196 = vmul.f32 %v6122, %v6188
        %v6197 = vmul.f32 %v6124, %v6188
        %v6198 = vmul.f32 %v6127, %v6188
        %v6199 = vmul.f32 %v6129, %v6188
        %v6200 = vmul.f32 %v6132, %v6188
        %v6201 = vmul.f32 %v6134, %v6188
        %v6202 = vmul.f32 %v6137, %v6188
        %v6203 = vmul.f32 %v6139, %v6188
        %v6204 = vmul.f32 %v6142, %v6188
        %v6205 = vmul.f32 %v6144, %v6188
        %v6206 = vmul.f32 %v6147, %v6188
        %v6207 = vmul.f32 %v6149, %v6188
        %v6208 = vmul.f32 %v6152, %v6188
        %v6209 = vmul.f32 %v6154, %v6188
        %v6210 = vmul.f32 %v6157, %v6188
        %v6211 = vmul.f32 %v6159, %v6188
        %v6212 = vmul.f32 %v6162, %v6188
        %v6213 = vmul.f32 %v6164, %v6188
        %v6214 = vmul.f32 %v6167, %v6188
        %v6215 = vmul.f32 %v6169, %v6188
        %v6216 = vmul.f32 %v6172, %v6188
        %v6217 = vmul.f32 %v6174, %v6188
        %v6218 = vmul.f32 %v6177, %v6188
        %v6219 = vmul.f32 %v6179, %v6188
        %v6220 = vmul.f32 %v6182, %v6188
        %v6221 = vmul.f32 %v6184, %v6188
        %v6222 = vld [vmem:[%s6] sm:$0x1]
        %v6224 = vperm.slane %v6222, 0
        %v6226 = vadd.f32 %v6190, %v6224
        %v6227 = vadd.f32 %v6191, %v6224
        %v6228 = vadd.f32 %v6192, %v6224
        %v6229 = vadd.f32 %v6193, %v6224
        %v6230 = vadd.f32 %v6194, %v6224
        %v6231 = vadd.f32 %v6195, %v6224
        %v6232 = vadd.f32 %v6196, %v6224
        %v6233 = vadd.f32 %v6197, %v6224
        %v6234 = vadd.f32 %v6198, %v6224
        %v6235 = vadd.f32 %v6199, %v6224
        %v6236 = vadd.f32 %v6200, %v6224
        %v6237 = vadd.f32 %v6201, %v6224
        %v6238 = vadd.f32 %v6202, %v6224
        %v6239 = vadd.f32 %v6203, %v6224
        %v6240 = vadd.f32 %v6204, %v6224
        %v6241 = vadd.f32 %v6205, %v6224
        %v6242 = vadd.f32 %v6206, %v6224
        %v6243 = vadd.f32 %v6207, %v6224
        %v6244 = vadd.f32 %v6208, %v6224
        %v6245 = vadd.f32 %v6209, %v6224
        %v6246 = vadd.f32 %v6210, %v6224
        %v6247 = vadd.f32 %v6211, %v6224
        %v6248 = vadd.f32 %v6212, %v6224
        %v6249 = vadd.f32 %v6213, %v6224
        %v6250 = vadd.f32 %v6214, %v6224
        %v6251 = vadd.f32 %v6215, %v6224
        %v6252 = vadd.f32 %v6216, %v6224
        %v6253 = vadd.f32 %v6217, %v6224
        %v6254 = vadd.f32 %v6218, %v6224
        %v6255 = vadd.f32 %v6219, %v6224
        %v6256 = vadd.f32 %v6220, %v6224
        %v6257 = vadd.f32 %v6221, %v6224
        %v6258 = vmax.f32 %v6226, 0.0
        %v6259 = vmax.f32 %v6227, 0.0
        %v6260 = vmax.f32 %v6228, 0.0
        %v6261 = vmax.f32 %v6229, 0.0
        %v6262 = vmax.f32 %v6230, 0.0
        %v6263 = vmax.f32 %v6231, 0.0
        %v6264 = vmax.f32 %v6232, 0.0
        %v6265 = vmax.f32 %v6233, 0.0
        %v6266 = vmax.f32 %v6234, 0.0
        %v6267 = vmax.f32 %v6235, 0.0
        %v6268 = vmax.f32 %v6236, 0.0
        %v6269 = vmax.f32 %v6237, 0.0
        %v6270 = vmax.f32 %v6238, 0.0
        %v6271 = vmax.f32 %v6239, 0.0
        %v6272 = vmax.f32 %v6240, 0.0
        %v6273 = vmax.f32 %v6241, 0.0
        %v6274 = vmax.f32 %v6242, 0.0
        %v6275 = vmax.f32 %v6243, 0.0
        %v6276 = vmax.f32 %v6244, 0.0
        %v6277 = vmax.f32 %v6245, 0.0
        %v6278 = vmax.f32 %v6246, 0.0
        %v6279 = vmax.f32 %v6247, 0.0
        %v6280 = vmax.f32 %v6248, 0.0
        %v6281 = vmax.f32 %v6249, 0.0
        %v6282 = vmax.f32 %v6250, 0.0
        %v6283 = vmax.f32 %v6251, 0.0
        %v6284 = vmax.f32 %v6252, 0.0
        %v6285 = vmax.f32 %v6253, 0.0
        %v6286 = vmax.f32 %v6254, 0.0
        %v6287 = vmax.f32 %v6255, 0.0
        %v6288 = vmax.f32 %v6256, 0.0
        %v6289 = vmax.f32 %v6257, 0.0
        %v6290 = vpack.c.bf16 %v6258, %v6258
        %v6291 = vpack.c.bf16 %v6259, %v6259
        %v6292 = vpack.c.bf16 %v6260, %v6260
        %v6293 = vpack.c.bf16 %v6261, %v6261
        %v6294 = vpack.c.bf16 %v6262, %v6262
        %v6295 = vpack.c.bf16 %v6263, %v6263
        %v6296 = vpack.c.bf16 %v6264, %v6264
        %v6297 = vpack.c.bf16 %v6265, %v6265
        %v6298 = vpack.c.bf16 %v6266, %v6266
        %v6299 = vpack.c.bf16 %v6267, %v6267
        %v6300 = vpack.c.bf16 %v6268, %v6268
        %v6301 = vpack.c.bf16 %v6269, %v6269
        %v6302 = vpack.c.bf16 %v6270, %v6270
        %v6303 = vpack.c.bf16 %v6271, %v6271
        %v6304 = vpack.c.bf16 %v6272, %v6272
        %v6305 = vpack.c.bf16 %v6273, %v6273
        %v6306 = vpack.c.bf16 %v6274, %v6274
        %v6307 = vpack.c.bf16 %v6275, %v6275
        %v6308 = vpack.c.bf16 %v6276, %v6276
        %v6309 = vpack.c.bf16 %v6277, %v6277
        %v6310 = vpack.c.bf16 %v6278, %v6278
        %v6311 = vpack.c.bf16 %v6279, %v6279
        %v6312 = vpack.c.bf16 %v6280, %v6280
        %v6313 = vpack.c.bf16 %v6281, %v6281
        %v6314 = vpack.c.bf16 %v6282, %v6282
        %v6315 = vpack.c.bf16 %v6283, %v6283
        %v6316 = vpack.c.bf16 %v6284, %v6284
        %v6317 = vpack.c.bf16 %v6285, %v6285
        %v6318 = vpack.c.bf16 %v6286, %v6286
        %v6319 = vpack.c.bf16 %v6287, %v6287
        %v6320 = vpack.c.bf16 %v6288, %v6288
        %v6321 = vpack.c.bf16 %v6289, %v6289
        %v6323 = vshrl.u32 %v6290, 16
        %v6325 = vrot.slane %v6323, 7
        %v6326 = vshll.u32 %v6290, 16
        %v6328 = vor.u32 %v6325, %v6326
        %v6329 = vrot.slane %v6325, 4
        %v6331 = vshrl.u32 %v6291, 16
        %v6333 = vrot.slane %v6331, 7
        %v6334 = vshll.u32 %v6291, 16
        %v6336 = vor.u32 %v6333, %v6334
        %v6337 = vsel %vm971, %v6329, %v6336
        %v6338 = vrot.slane %v6333, 4
        %v6340 = vshrl.u32 %v6292, 16
        %v6342 = vrot.slane %v6340, 7
        %v6343 = vshll.u32 %v6292, 16
        %v6345 = vor.u32 %v6342, %v6343
        %v6346 = vrot.slane %v6342, 4
        %v6348 = vshrl.u32 %v6293, 16
        %v6350 = vrot.slane %v6348, 7
        %v6351 = vshll.u32 %v6293, 16
        %v6353 = vor.u32 %v6350, %v6351
        %v6354 = vsel %vm971, %v6346, %v6353
        %v6355 = vrot.slane %v6350, 4
        %v6357 = vshrl.u32 %v6294, 16
        %v6359 = vrot.slane %v6357, 7
        %v6360 = vshll.u32 %v6294, 16
        %v6362 = vor.u32 %v6359, %v6360
        %v6363 = vrot.slane %v6359, 4
        %v6365 = vshrl.u32 %v6295, 16
        %v6367 = vrot.slane %v6365, 7
        %v6368 = vshll.u32 %v6295, 16
        %v6370 = vor.u32 %v6367, %v6368
        %v6371 = vsel %vm971, %v6363, %v6370
        %v6372 = vrot.slane %v6367, 4
        %v6374 = vshrl.u32 %v6296, 16
        %v6376 = vrot.slane %v6374, 7
        %v6377 = vshll.u32 %v6296, 16
        %v6379 = vor.u32 %v6376, %v6377
        %v6380 = vrot.slane %v6376, 4
        %v6382 = vshrl.u32 %v6297, 16
        %v6384 = vrot.slane %v6382, 7
        %v6385 = vshll.u32 %v6297, 16
        %v6387 = vor.u32 %v6384, %v6385
        %v6388 = vsel %vm971, %v6380, %v6387
        %v6389 = vrot.slane %v6384, 4
        %v6391 = vshrl.u32 %v6298, 16
        %v6393 = vrot.slane %v6391, 7
        %v6394 = vshll.u32 %v6298, 16
        %v6396 = vor.u32 %v6393, %v6394
        %v6397 = vrot.slane %v6393, 4
        %v6399 = vshrl.u32 %v6299, 16
        %v6401 = vrot.slane %v6399, 7
        %v6402 = vshll.u32 %v6299, 16
        %v6404 = vor.u32 %v6401, %v6402
        %v6405 = vsel %vm971, %v6397, %v6404
        %v6406 = vrot.slane %v6401, 4
        %v6408 = vshrl.u32 %v6300, 16
        %v6410 = vrot.slane %v6408, 7
        %v6411 = vshll.u32 %v6300, 16
        %v6413 = vor.u32 %v6410, %v6411
        %v6414 = vrot.slane %v6410, 4
        %v6416 = vshrl.u32 %v6301, 16
        %v6418 = vrot.slane %v6416, 7
        %v6419 = vshll.u32 %v6301, 16
        %v6421 = vor.u32 %v6418, %v6419
        %v6422 = vsel %vm971, %v6414, %v6421
        %v6423 = vrot.slane %v6418, 4
        %v6425 = vshrl.u32 %v6302, 16
        %v6427 = vrot.slane %v6425, 7
        %v6428 = vshll.u32 %v6302, 16
        %v6430 = vor.u32 %v6427, %v6428
        %v6431 = vrot.slane %v6427, 4
        %v6433 = vshrl.u32 %v6303, 16
        %v6435 = vrot.slane %v6433, 7
        %v6436 = vshll.u32 %v6303, 16
        %v6438 = vor.u32 %v6435, %v6436
        %v6439 = vsel %vm971, %v6431, %v6438
        %v6440 = vrot.slane %v6435, 4
        %v6442 = vshrl.u32 %v6304, 16
        %v6444 = vrot.slane %v6442, 7
        %v6445 = vshll.u32 %v6304, 16
        %v6447 = vor.u32 %v6444, %v6445
        %v6448 = vrot.slane %v6444, 4
        %v6450 = vshrl.u32 %v6305, 16
        %v6452 = vrot.slane %v6450, 7
        %v6453 = vshll.u32 %v6305, 16
        %v6455 = vor.u32 %v6452, %v6453
        %v6456 = vsel %vm971, %v6448, %v6455
        %v6457 = vrot.slane %v6452, 4
        %v6459 = vshrl.u32 %v6306, 16
        %v6461 = vrot.slane %v6459, 7
        %v6462 = vshll.u32 %v6306, 16
        %v6464 = vor.u32 %v6461, %v6462
        %v6465 = vrot.slane %v6461, 4
        %v6467 = vshrl.u32 %v6307, 16
        %v6469 = vrot.slane %v6467, 7
        %v6470 = vshll.u32 %v6307, 16
        %v6472 = vor.u32 %v6469, %v6470
        %v6473 = vsel %vm971, %v6465, %v6472
        %v6474 = vrot.slane %v6469, 4
        %v6476 = vshrl.u32 %v6308, 16
        %v6478 = vrot.slane %v6476, 7
        %v6479 = vshll.u32 %v6308, 16
        %v6481 = vor.u32 %v6478, %v6479
        %v6482 = vrot.slane %v6478, 4
        %v6484 = vshrl.u32 %v6309, 16
        %v6486 = vrot.slane %v6484, 7
        %v6487 = vshll.u32 %v6309, 16
        %v6489 = vor.u32 %v6486, %v6487
        %v6490 = vsel %vm971, %v6482, %v6489
        %v6491 = vrot.slane %v6486, 4
        %v6493 = vshrl.u32 %v6310, 16
        %v6495 = vrot.slane %v6493, 7
        %v6496 = vshll.u32 %v6310, 16
        %v6498 = vor.u32 %v6495, %v6496
        %v6499 = vrot.slane %v6495, 4
        %v6501 = vshrl.u32 %v6311, 16
        %v6503 = vrot.slane %v6501, 7
        %v6504 = vshll.u32 %v6311, 16
        %v6506 = vor.u32 %v6503, %v6504
        %v6507 = vsel %vm971, %v6499, %v6506
        %v6508 = vrot.slane %v6503, 4
        %v6510 = vshrl.u32 %v6312, 16
        %v6512 = vrot.slane %v6510, 7
        %v6513 = vshll.u32 %v6312, 16
        %v6515 = vor.u32 %v6512, %v6513
        %v6516 = vrot.slane %v6512, 4
        %v6518 = vshrl.u32 %v6313, 16
        %v6520 = vrot.slane %v6518, 7
        %v6521 = vshll.u32 %v6313, 16
        %v6523 = vor.u32 %v6520, %v6521
        %v6524 = vsel %vm971, %v6516, %v6523
        %v6525 = vrot.slane %v6520, 4
        %v6527 = vshrl.u32 %v6314, 16
        %v6529 = vrot.slane %v6527, 7
        %v6530 = vshll.u32 %v6314, 16
        %v6532 = vor.u32 %v6529, %v6530
        %v6533 = vrot.slane %v6529, 4
        %v6535 = vshrl.u32 %v6315, 16
        %v6537 = vrot.slane %v6535, 7
        %v6538 = vshll.u32 %v6315, 16
        %v6540 = vor.u32 %v6537, %v6538
        %v6541 = vsel %vm971, %v6533, %v6540
        %v6542 = vrot.slane %v6537, 4
        %v6544 = vshrl.u32 %v6316, 16
        %v6546 = vrot.slane %v6544, 7
        %v6547 = vshll.u32 %v6316, 16
        %v6549 = vor.u32 %v6546, %v6547
        %v6550 = vrot.slane %v6546, 4
        %v6552 = vshrl.u32 %v6317, 16
        %v6554 = vrot.slane %v6552, 7
        %v6555 = vshll.u32 %v6317, 16
        %v6557 = vor.u32 %v6554, %v6555
        %v6558 = vsel %vm971, %v6550, %v6557
        %v6559 = vrot.slane %v6554, 4
        %v6561 = vshrl.u32 %v6318, 16
        %v6563 = vrot.slane %v6561, 7
        %v6564 = vshll.u32 %v6318, 16
        %v6566 = vor.u32 %v6563, %v6564
        %v6567 = vrot.slane %v6563, 4
        %v6569 = vshrl.u32 %v6319, 16
        %v6571 = vrot.slane %v6569, 7
        %v6572 = vshll.u32 %v6319, 16
        %v6574 = vor.u32 %v6571, %v6572
        %v6575 = vsel %vm971, %v6567, %v6574
        %v6576 = vrot.slane %v6571, 4
        %v6578 = vshrl.u32 %v6320, 16
        %v6580 = vrot.slane %v6578, 7
        %v6581 = vshll.u32 %v6320, 16
        %v6583 = vor.u32 %v6580, %v6581
        %v6584 = vrot.slane %v6580, 4
        %v6586 = vshrl.u32 %v6321, 16
        %v6588 = vrot.slane %v6586, 7
        %v6589 = vshll.u32 %v6321, 16
        %v6591 = vor.u32 %v6588, %v6589
        %v6592 = vsel %vm971, %v6584, %v6591
        %v6593 = vrot.slane %v6588, 4
        %v6642 = vld [vmem:[%s1292] sm:$0xf]
        %v6643 = vsel %vm1295, %v6328, %v6642
        %6644 = vst [vmem:[%s1292] sm:$0xf] %v6643
        %6645 = vst [vmem:[%s1292 + $0x4] sm:$0xf] %v6337
        %v6646 = vld [vmem:[%s1292 + $0x8] sm:$0x1]
        %v6647 = vsel %vm1301, %v6338, %v6646
        %6648 = vst [vmem:[%s1292 + $0x8] sm:$0x1] %v6647
        %v6649 = vld [vmem:[%s1292 + $0xc] sm:$0xf]
        %v6650 = vsel %vm1295, %v6345, %v6649
        %6651 = vst [vmem:[%s1292 + $0xc] sm:$0xf] %v6650
        %6652 = vst [vmem:[%s1292 + $0x10] sm:$0xf] %v6354
        %v6653 = vld [vmem:[%s1292 + $0x14] sm:$0x1]
        %v6654 = vsel %vm1301, %v6355, %v6653
        %6655 = vst [vmem:[%s1292 + $0x14] sm:$0x1] %v6654
        %v6656 = vld [vmem:[%s1292 + $0x18] sm:$0xf]
        %v6657 = vsel %vm1295, %v6362, %v6656
        %6658 = vst [vmem:[%s1292 + $0x18] sm:$0xf] %v6657
        %6659 = vst [vmem:[%s1292 + $0x1c] sm:$0xf] %v6371
        %v6660 = vld [vmem:[%s1292 + $0x20] sm:$0x1]
        %v6661 = vsel %vm1301, %v6372, %v6660
        %6662 = vst [vmem:[%s1292 + $0x20] sm:$0x1] %v6661
        %v6663 = vld [vmem:[%s1292 + $0x24] sm:$0xf]
        %v6664 = vsel %vm1295, %v6379, %v6663
        %6665 = vst [vmem:[%s1292 + $0x24] sm:$0xf] %v6664
        %6666 = vst [vmem:[%s1292 + $0x28] sm:$0xf] %v6388
        %v6667 = vld [vmem:[%s1292 + $0x2c] sm:$0x1]
        %v6668 = vsel %vm1301, %v6389, %v6667
        %6669 = vst [vmem:[%s1292 + $0x2c] sm:$0x1] %v6668
        %v6670 = vld [vmem:[%s1292 + $0x30] sm:$0xf]
        %v6671 = vsel %vm1295, %v6396, %v6670
        %6672 = vst [vmem:[%s1292 + $0x30] sm:$0xf] %v6671
        %6673 = vst [vmem:[%s1292 + $0x34] sm:$0xf] %v6405
        %v6674 = vld [vmem:[%s1292 + $0x38] sm:$0x1]
        %v6675 = vsel %vm1301, %v6406, %v6674
        %6676 = vst [vmem:[%s1292 + $0x38] sm:$0x1] %v6675
        %v6677 = vld [vmem:[%s1292 + $0x3c] sm:$0xf]
        %v6678 = vsel %vm1295, %v6413, %v6677
        %6679 = vst [vmem:[%s1292 + $0x3c] sm:$0xf] %v6678
        %6680 = vst [vmem:[%s1292 + $0x40] sm:$0xf] %v6422
        %v6681 = vld [vmem:[%s1292 + $0x44] sm:$0x1]
        %v6682 = vsel %vm1301, %v6423, %v6681
        %6683 = vst [vmem:[%s1292 + $0x44] sm:$0x1] %v6682
        %v6684 = vld [vmem:[%s1292 + $0x48] sm:$0xf]
        %v6685 = vsel %vm1295, %v6430, %v6684
        %6686 = vst [vmem:[%s1292 + $0x48] sm:$0xf] %v6685
        %6687 = vst [vmem:[%s1292 + $0x4c] sm:$0xf] %v6439
        %v6688 = vld [vmem:[%s1292 + $0x50] sm:$0x1]
        %v6689 = vsel %vm1301, %v6440, %v6688
        %6690 = vst [vmem:[%s1292 + $0x50] sm:$0x1] %v6689
        %v6691 = vld [vmem:[%s1292 + $0x54] sm:$0xf]
        %v6692 = vsel %vm1295, %v6447, %v6691
        %6693 = vst [vmem:[%s1292 + $0x54] sm:$0xf] %v6692
        %6694 = vst [vmem:[%s1292 + $0x58] sm:$0xf] %v6456
        %v6695 = vld [vmem:[%s1292 + $0x5c] sm:$0x1]
        %v6696 = vsel %vm1301, %v6457, %v6695
        %6697 = vst [vmem:[%s1292 + $0x5c] sm:$0x1] %v6696
        %v6698 = vld [vmem:[%s1292 + $0x60] sm:$0xf]
        %v6699 = vsel %vm1295, %v6464, %v6698
        %6700 = vst [vmem:[%s1292 + $0x60] sm:$0xf] %v6699
        %6701 = vst [vmem:[%s1292 + $0x64] sm:$0xf] %v6473
        %v6702 = vld [vmem:[%s1292 + $0x68] sm:$0x1]
        %v6703 = vsel %vm1301, %v6474, %v6702
        %6704 = vst [vmem:[%s1292 + $0x68] sm:$0x1] %v6703
        %v6705 = vld [vmem:[%s1292 + $0x6c] sm:$0xf]
        %v6706 = vsel %vm1295, %v6481, %v6705
        %6707 = vst [vmem:[%s1292 + $0x6c] sm:$0xf] %v6706
        %6708 = vst [vmem:[%s1292 + $0x70] sm:$0xf] %v6490
        %v6709 = vld [vmem:[%s1292 + $0x74] sm:$0x1]
        %v6710 = vsel %vm1301, %v6491, %v6709
        %6711 = vst [vmem:[%s1292 + $0x74] sm:$0x1] %v6710
        %v6712 = vld [vmem:[%s1292 + $0x78] sm:$0xf]
        %v6713 = vsel %vm1295, %v6498, %v6712
        %6714 = vst [vmem:[%s1292 + $0x78] sm:$0xf] %v6713
        %6715 = vst [vmem:[%s1292 + $0x7c] sm:$0xf] %v6507
        %v6716 = vld [vmem:[%s1292 + $0x80] sm:$0x1]
        %v6717 = vsel %vm1301, %v6508, %v6716
        %6718 = vst [vmem:[%s1292 + $0x80] sm:$0x1] %v6717
        %v6719 = vld [vmem:[%s1292 + $0x84] sm:$0xf]
        %v6720 = vsel %vm1295, %v6515, %v6719
        %6721 = vst [vmem:[%s1292 + $0x84] sm:$0xf] %v6720
        %6722 = vst [vmem:[%s1292 + $0x88] sm:$0xf] %v6524
        %v6723 = vld [vmem:[%s1292 + $0x8c] sm:$0x1]
        %v6724 = vsel %vm1301, %v6525, %v6723
        %6725 = vst [vmem:[%s1292 + $0x8c] sm:$0x1] %v6724
        %v6726 = vld [vmem:[%s1292 + $0x90] sm:$0xf]
        %v6727 = vsel %vm1295, %v6532, %v6726
        %6728 = vst [vmem:[%s1292 + $0x90] sm:$0xf] %v6727
        %6729 = vst [vmem:[%s1292 + $0x94] sm:$0xf] %v6541
        %v6730 = vld [vmem:[%s1292 + $0x98] sm:$0x1]
        %v6731 = vsel %vm1301, %v6542, %v6730
        %6732 = vst [vmem:[%s1292 + $0x98] sm:$0x1] %v6731
        %v6733 = vld [vmem:[%s1292 + $0x9c] sm:$0xf]
        %v6734 = vsel %vm1295, %v6549, %v6733
        %6735 = vst [vmem:[%s1292 + $0x9c] sm:$0xf] %v6734
        %6736 = vst [vmem:[%s1292 + $0xa0] sm:$0xf] %v6558
        %v6737 = vld [vmem:[%s1292 + $0xa4] sm:$0x1]
        %v6738 = vsel %vm1301, %v6559, %v6737
        %6739 = vst [vmem:[%s1292 + $0xa4] sm:$0x1] %v6738
        %v6740 = vld [vmem:[%s1292 + $0xa8] sm:$0xf]
        %v6741 = vsel %vm1295, %v6566, %v6740
        %6742 = vst [vmem:[%s1292 + $0xa8] sm:$0xf] %v6741
        %6743 = vst [vmem:[%s1292 + $0xac] sm:$0xf] %v6575
        %v6744 = vld [vmem:[%s1292 + $0xb0] sm:$0x1]
        %v6745 = vsel %vm1301, %v6576, %v6744
        %6746 = vst [vmem:[%s1292 + $0xb0] sm:$0x1] %v6745
        %v6747 = vld [vmem:[%s1292 + $0xb4] sm:$0xf]
        %v6748 = vsel %vm1295, %v6583, %v6747
        %6749 = vst [vmem:[%s1292 + $0xb4] sm:$0xf] %v6748
        %6750 = vst [vmem:[%s1292 + $0xb8] sm:$0xf] %v6592
        %v6751 = vld [vmem:[%s1292 + $0xbc] sm:$0x1]
        %v6752 = vsel %vm1301, %v6593, %v6751
        %6753 = vst [vmem:[%s1292 + $0xbc] sm:$0x1] %v6752
        %v6754 = vld [vmem:[#allocation2] sm:$0xf]
        %v6755 = vld [vmem:[#allocation2 + $0x4] sm:$0xf]
        %v6756 = vld [vmem:[#allocation2 + $0xc] sm:$0xf]
        %v6757 = vld [vmem:[#allocation2 + $0x10] sm:$0xf]
        %v6758 = vld [vmem:[#allocation2 + $0x18] sm:$0xf]
        %v6759 = vld [vmem:[#allocation2 + $0x1c] sm:$0xf]
        %v6760 = vld [vmem:[#allocation2 + $0x24] sm:$0xf]
        %v6761 = vld [vmem:[#allocation2 + $0x28] sm:$0xf]
        %v6762 = vld [vmem:[#allocation2 + $0x30] sm:$0xf]
        %v6763 = vld [vmem:[#allocation2 + $0x34] sm:$0xf]
        %v6764 = vld [vmem:[#allocation2 + $0x3c] sm:$0xf]
        %v6765 = vld [vmem:[#allocation2 + $0x40] sm:$0xf]
        %v6766 = vld [vmem:[#allocation2 + $0x48] sm:$0xf]
        %v6767 = vld [vmem:[#allocation2 + $0x4c] sm:$0xf]
        %v6768 = vld [vmem:[#allocation2 + $0x54] sm:$0xf]
        %v6769 = vld [vmem:[#allocation2 + $0x58] sm:$0xf]
        %v6770 = vld [vmem:[#allocation2 + $0x60] sm:$0xf]
        %v6771 = vld [vmem:[#allocation2 + $0x64] sm:$0xf]
        %v6772 = vld [vmem:[#allocation2 + $0x6c] sm:$0xf]
        %v6773 = vld [vmem:[#allocation2 + $0x70] sm:$0xf]
        %v6774 = vld [vmem:[#allocation2 + $0x78] sm:$0xf]
        %v6775 = vld [vmem:[#allocation2 + $0x7c] sm:$0xf]
        %v6776 = vld [vmem:[#allocation2 + $0x84] sm:$0xf]
        %v6777 = vld [vmem:[#allocation2 + $0x88] sm:$0xf]
        %v6778 = vld [vmem:[#allocation2 + $0x90] sm:$0xf]
        %v6779 = vld [vmem:[#allocation2 + $0x94] sm:$0xf]
        %v6780 = vld [vmem:[#allocation2 + $0x9c] sm:$0xf]
        %v6781 = vld [vmem:[#allocation2 + $0xa0] sm:$0xf]
        %v6782 = vld [vmem:[#allocation2 + $0xa8] sm:$0xf]
        %v6783 = vld [vmem:[#allocation2 + $0xac] sm:$0xf]
        %v6784 = vld [vmem:[#allocation2 + $0xb4] sm:$0xf]
        %v6785 = vld [vmem:[#allocation2 + $0xb8] sm:$0xf]
        %6786 = vst [vmem:[#allocation3] sm:$0xf] %v6754
        %6787 = vst [vmem:[#allocation3 + $0x24] sm:$0xf] %v6755
        %6788 = vst [vmem:[#allocation3 + $0x48] sm:$0xf] %v6756
        %6789 = vst [vmem:[#allocation3 + $0x6c] sm:$0xf] %v6757
        %6790 = vst [vmem:[#allocation3 + $0x90] sm:$0xf] %v6758
        %6791 = vst [vmem:[#allocation3 + $0xb4] sm:$0xf] %v6759
        %6792 = vst [vmem:[#allocation3 + $0xd8] sm:$0xf] %v6760
        %6793 = vst [vmem:[#allocation3 + $0xfc] sm:$0xf] %v6761
        %6794 = vst [vmem:[#allocation3 + $0x120] sm:$0xf] %v6762
        %6795 = vst [vmem:[#allocation3 + $0x144] sm:$0xf] %v6763
        %6796 = vst [vmem:[#allocation3 + $0x168] sm:$0xf] %v6764
        %6797 = vst [vmem:[#allocation3 + $0x18c] sm:$0xf] %v6765
        %6798 = vst [vmem:[#allocation3 + $0x1b0] sm:$0xf] %v6766
        %6799 = vst [vmem:[#allocation3 + $0x1d4] sm:$0xf] %v6767
        %6800 = vst [vmem:[#allocation3 + $0x1f8] sm:$0xf] %v6768
        %6801 = vst [vmem:[#allocation3 + $0x21c] sm:$0xf] %v6769
        %6802 = vst [vmem:[#allocation3 + $0x240] sm:$0xf] %v6770
        %6803 = vst [vmem:[#allocation3 + $0x264] sm:$0xf] %v6771
        %6804 = vst [vmem:[#allocation3 + $0x288] sm:$0xf] %v6772
        %6805 = vst [vmem:[#allocation3 + $0x2ac] sm:$0xf] %v6773
        %6806 = vst [vmem:[#allocation3 + $0x2d0] sm:$0xf] %v6774
        %6807 = vst [vmem:[#allocation3 + $0x2f4] sm:$0xf] %v6775
        %6808 = vst [vmem:[#allocation3 + $0x318] sm:$0xf] %v6776
        %6809 = vst [vmem:[#allocation3 + $0x33c] sm:$0xf] %v6777
        %6810 = vst [vmem:[#allocation3 + $0x360] sm:$0xf] %v6778
        %6811 = vst [vmem:[#allocation3 + $0x384] sm:$0xf] %v6779
        %6812 = vst [vmem:[#allocation3 + $0x3a8] sm:$0xf] %v6780
        %6813 = vst [vmem:[#allocation3 + $0x3cc] sm:$0xf] %v6781
        %6814 = vst [vmem:[#allocation3 + $0x3f0] sm:$0xf] %v6782
        %6815 = vst [vmem:[#allocation3 + $0x414] sm:$0xf] %v6783
        %6816 = vst [vmem:[#allocation3 + $0x438] sm:$0xf] %v6784
        %6817 = vst [vmem:[#allocation3 + $0x45c] sm:$0xf] %v6785
        %v6818 = vld [vmem:[#allocation2] sm:$0xf]
        %v6819 = vld [vmem:[#allocation2 + $0x4] sm:$0xf]
        %v6820 = vld [vmem:[#allocation2 + $0x8] sm:$0x1]
        %v6821 = vld [vmem:[#allocation2 + $0xc] sm:$0xf]
        %v6822 = vld [vmem:[#allocation2 + $0x10] sm:$0xf]
        %v6823 = vld [vmem:[#allocation2 + $0x14] sm:$0x1]
        %v6824 = vld [vmem:[#allocation2 + $0x18] sm:$0xf]
        %v6825 = vld [vmem:[#allocation2 + $0x1c] sm:$0xf]
        %v6826 = vld [vmem:[#allocation2 + $0x20] sm:$0x1]
        %v6827 = vld [vmem:[#allocation2 + $0x24] sm:$0xf]
        %v6828 = vld [vmem:[#allocation2 + $0x28] sm:$0xf]
        %v6829 = vld [vmem:[#allocation2 + $0x2c] sm:$0x1]
        %v6830 = vld [vmem:[#allocation2 + $0x30] sm:$0xf]
        %v6831 = vld [vmem:[#allocation2 + $0x34] sm:$0xf]
        %v6832 = vld [vmem:[#allocation2 + $0x38] sm:$0x1]
        %v6833 = vld [vmem:[#allocation2 + $0x3c] sm:$0xf]
        %v6834 = vld [vmem:[#allocation2 + $0x40] sm:$0xf]
        %v6835 = vld [vmem:[#allocation2 + $0x44] sm:$0x1]
        %v6836 = vld [vmem:[#allocation2 + $0x48] sm:$0xf]
        %v6837 = vld [vmem:[#allocation2 + $0x4c] sm:$0xf]
        %v6838 = vld [vmem:[#allocation2 + $0x50] sm:$0x1]
        %v6839 = vld [vmem:[#allocation2 + $0x54] sm:$0xf]
        %v6840 = vld [vmem:[#allocation2 + $0x58] sm:$0xf]
        %v6841 = vld [vmem:[#allocation2 + $0x5c] sm:$0x1]
        %v6842 = vld [vmem:[#allocation2 + $0x60] sm:$0xf]
        %v6843 = vld [vmem:[#allocation2 + $0x64] sm:$0xf]
        %v6844 = vld [vmem:[#allocation2 + $0x68] sm:$0x1]
        %v6845 = vld [vmem:[#allocation2 + $0x6c] sm:$0xf]
        %v6846 = vld [vmem:[#allocation2 + $0x70] sm:$0xf]
        %v6847 = vld [vmem:[#allocation2 + $0x74] sm:$0x1]
        %v6848 = vld [vmem:[#allocation2 + $0x78] sm:$0xf]
        %v6849 = vld [vmem:[#allocation2 + $0x7c] sm:$0xf]
        %v6850 = vld [vmem:[#allocation2 + $0x80] sm:$0x1]
        %v6851 = vld [vmem:[#allocation2 + $0x84] sm:$0xf]
        %v6852 = vld [vmem:[#allocation2 + $0x88] sm:$0xf]
        %v6853 = vld [vmem:[#allocation2 + $0x8c] sm:$0x1]
        %v6854 = vld [vmem:[#allocation2 + $0x90] sm:$0xf]
        %v6855 = vld [vmem:[#allocation2 + $0x94] sm:$0xf]
        %v6856 = vld [vmem:[#allocation2 + $0x98] sm:$0x1]
        %v6857 = vld [vmem:[#allocation2 + $0x9c] sm:$0xf]
        %v6858 = vld [vmem:[#allocation2 + $0xa0] sm:$0xf]
        %v6859 = vld [vmem:[#allocation2 + $0xa4] sm:$0x1]
        %v6860 = vld [vmem:[#allocation2 + $0xa8] sm:$0xf]
        %v6861 = vld [vmem:[#allocation2 + $0xac] sm:$0xf]
        %v6862 = vld [vmem:[#allocation2 + $0xb0] sm:$0x1]
        %v6863 = vld [vmem:[#allocation2 + $0xb4] sm:$0xf]
        %v6864 = vld [vmem:[#allocation2 + $0xb8] sm:$0xf]
        %v6865 = vld [vmem:[#allocation2 + $0xbc] sm:$0x1]
        %v6867 = vshrl.u32 %v6818, 16
        %v6869 = vrot.slane %v6867, 4
        %v6870 = vshll.u32 %v6818, 16
        %v6872 = vrot.slane %v6870, 5
        %v6873 = vor.u32 %v6869, %v6872
        %v6874 = vrot.slane %v6873, 4
        %v6876 = vshll.u32 %v6819, 16
        %v6878 = vrot.slane %v6876, 5
        %v6879 = vsel %vm1524, %v6874, %v6878
        %v6880 = vshrl.u32 %v6819, 16
        %v6882 = vrot.slane %v6880, 4
        %v6883 = vor.u32 %v6882, %v6878
        %v6884 = vrot.slane %v6883, 4
        %v6886 = vshll.u32 %v6820, 16
        %v6888 = vrot.slane %v6886, 5
        %v6889 = vsel %vm1524, %v6884, %v6888
        %v6891 = vshrl.u32 %v6821, 16
        %v6893 = vrot.slane %v6891, 4
        %v6894 = vshll.u32 %v6821, 16
        %v6896 = vrot.slane %v6894, 5
        %v6897 = vor.u32 %v6893, %v6896
        %v6898 = vrot.slane %v6897, 4
        %v6900 = vshll.u32 %v6822, 16
        %v6902 = vrot.slane %v6900, 5
        %v6903 = vsel %vm1524, %v6898, %v6902
        %v6904 = vshrl.u32 %v6822, 16
        %v6906 = vrot.slane %v6904, 4
        %v6907 = vor.u32 %v6906, %v6902
        %v6908 = vrot.slane %v6907, 4
        %v6910 = vshll.u32 %v6823, 16
        %v6912 = vrot.slane %v6910, 5
        %v6913 = vsel %vm1524, %v6908, %v6912
        %v6915 = vshrl.u32 %v6824, 16
        %v6917 = vrot.slane %v6915, 4
        %v6918 = vshll.u32 %v6824, 16
        %v6920 = vrot.slane %v6918, 5
        %v6921 = vor.u32 %v6917, %v6920
        %v6922 = vrot.slane %v6921, 4
        %v6924 = vshll.u32 %v6825, 16
        %v6926 = vrot.slane %v6924, 5
        %v6927 = vsel %vm1524, %v6922, %v6926
        %v6928 = vshrl.u32 %v6825, 16
        %v6930 = vrot.slane %v6928, 4
        %v6931 = vor.u32 %v6930, %v6926
        %v6932 = vrot.slane %v6931, 4
        %v6934 = vshll.u32 %v6826, 16
        %v6936 = vrot.slane %v6934, 5
        %v6937 = vsel %vm1524, %v6932, %v6936
        %v6939 = vshrl.u32 %v6827, 16
        %v6941 = vrot.slane %v6939, 4
        %v6942 = vshll.u32 %v6827, 16
        %v6944 = vrot.slane %v6942, 5
        %v6945 = vor.u32 %v6941, %v6944
        %v6946 = vrot.slane %v6945, 4
        %v6948 = vshll.u32 %v6828, 16
        %v6950 = vrot.slane %v6948, 5
        %v6951 = vsel %vm1524, %v6946, %v6950
        %v6952 = vshrl.u32 %v6828, 16
        %v6954 = vrot.slane %v6952, 4
        %v6955 = vor.u32 %v6954, %v6950
        %v6956 = vrot.slane %v6955, 4
        %v6958 = vshll.u32 %v6829, 16
        %v6960 = vrot.slane %v6958, 5
        %v6961 = vsel %vm1524, %v6956, %v6960
        %v6963 = vshrl.u32 %v6830, 16
        %v6965 = vrot.slane %v6963, 4
        %v6966 = vshll.u32 %v6830, 16
        %v6968 = vrot.slane %v6966, 5
        %v6969 = vor.u32 %v6965, %v6968
        %v6970 = vrot.slane %v6969, 4
        %v6972 = vshll.u32 %v6831, 16
        %v6974 = vrot.slane %v6972, 5
        %v6975 = vsel %vm1524, %v6970, %v6974
        %v6976 = vshrl.u32 %v6831, 16
        %v6978 = vrot.slane %v6976, 4
        %v6979 = vor.u32 %v6978, %v6974
        %v6980 = vrot.slane %v6979, 4
        %v6982 = vshll.u32 %v6832, 16
        %v6984 = vrot.slane %v6982, 5
        %v6985 = vsel %vm1524, %v6980, %v6984
        %v6987 = vshrl.u32 %v6833, 16
        %v6989 = vrot.slane %v6987, 4
        %v6990 = vshll.u32 %v6833, 16
        %v6992 = vrot.slane %v6990, 5
        %v6993 = vor.u32 %v6989, %v6992
        %v6994 = vrot.slane %v6993, 4
        %v6996 = vshll.u32 %v6834, 16
        %v6998 = vrot.slane %v6996, 5
        %v6999 = vsel %vm1524, %v6994, %v6998
        %v7000 = vshrl.u32 %v6834, 16
        %v7002 = vrot.slane %v7000, 4
        %v7003 = vor.u32 %v7002, %v6998
        %v7004 = vrot.slane %v7003, 4
        %v7006 = vshll.u32 %v6835, 16
        %v7008 = vrot.slane %v7006, 5
        %v7009 = vsel %vm1524, %v7004, %v7008
        %v7011 = vshrl.u32 %v6836, 16
        %v7013 = vrot.slane %v7011, 4
        %v7014 = vshll.u32 %v6836, 16
        %v7016 = vrot.slane %v7014, 5
        %v7017 = vor.u32 %v7013, %v7016
        %v7018 = vrot.slane %v7017, 4
        %v7020 = vshll.u32 %v6837, 16
        %v7022 = vrot.slane %v7020, 5
        %v7023 = vsel %vm1524, %v7018, %v7022
        %v7024 = vshrl.u32 %v6837, 16
        %v7026 = vrot.slane %v7024, 4
        %v7027 = vor.u32 %v7026, %v7022
        %v7028 = vrot.slane %v7027, 4
        %v7030 = vshll.u32 %v6838, 16
        %v7032 = vrot.slane %v7030, 5
        %v7033 = vsel %vm1524, %v7028, %v7032
        %v7035 = vshrl.u32 %v6839, 16
        %v7037 = vrot.slane %v7035, 4
        %v7038 = vshll.u32 %v6839, 16
        %v7040 = vrot.slane %v7038, 5
        %v7041 = vor.u32 %v7037, %v7040
        %v7042 = vrot.slane %v7041, 4
        %v7044 = vshll.u32 %v6840, 16
        %v7046 = vrot.slane %v7044, 5
        %v7047 = vsel %vm1524, %v7042, %v7046
        %v7048 = vshrl.u32 %v6840, 16
        %v7050 = vrot.slane %v7048, 4
        %v7051 = vor.u32 %v7050, %v7046
        %v7052 = vrot.slane %v7051, 4
        %v7054 = vshll.u32 %v6841, 16
        %v7056 = vrot.slane %v7054, 5
        %v7057 = vsel %vm1524, %v7052, %v7056
        %v7059 = vshrl.u32 %v6842, 16
        %v7061 = vrot.slane %v7059, 4
        %v7062 = vshll.u32 %v6842, 16
        %v7064 = vrot.slane %v7062, 5
        %v7065 = vor.u32 %v7061, %v7064
        %v7066 = vrot.slane %v7065, 4
        %v7068 = vshll.u32 %v6843, 16
        %v7070 = vrot.slane %v7068, 5
        %v7071 = vsel %vm1524, %v7066, %v7070
        %v7072 = vshrl.u32 %v6843, 16
        %v7074 = vrot.slane %v7072, 4
        %v7075 = vor.u32 %v7074, %v7070
        %v7076 = vrot.slane %v7075, 4
        %v7078 = vshll.u32 %v6844, 16
        %v7080 = vrot.slane %v7078, 5
        %v7081 = vsel %vm1524, %v7076, %v7080
        %v7083 = vshrl.u32 %v6845, 16
        %v7085 = vrot.slane %v7083, 4
        %v7086 = vshll.u32 %v6845, 16
        %v7088 = vrot.slane %v7086, 5
        %v7089 = vor.u32 %v7085, %v7088
        %v7090 = vrot.slane %v7089, 4
        %v7092 = vshll.u32 %v6846, 16
        %v7094 = vrot.slane %v7092, 5
        %v7095 = vsel %vm1524, %v7090, %v7094
        %v7096 = vshrl.u32 %v6846, 16
        %v7098 = vrot.slane %v7096, 4
        %v7099 = vor.u32 %v7098, %v7094
        %v7100 = vrot.slane %v7099, 4
        %v7102 = vshll.u32 %v6847, 16
        %v7104 = vrot.slane %v7102, 5
        %v7105 = vsel %vm1524, %v7100, %v7104
        %v7107 = vshrl.u32 %v6848, 16
        %v7109 = vrot.slane %v7107, 4
        %v7110 = vshll.u32 %v6848, 16
        %v7112 = vrot.slane %v7110, 5
        %v7113 = vor.u32 %v7109, %v7112
        %v7114 = vrot.slane %v7113, 4
        %v7116 = vshll.u32 %v6849, 16
        %v7118 = vrot.slane %v7116, 5
        %v7119 = vsel %vm1524, %v7114, %v7118
        %v7120 = vshrl.u32 %v6849, 16
        %v7122 = vrot.slane %v7120, 4
        %v7123 = vor.u32 %v7122, %v7118
        %v7124 = vrot.slane %v7123, 4
        %v7126 = vshll.u32 %v6850, 16
        %v7128 = vrot.slane %v7126, 5
        %v7129 = vsel %vm1524, %v7124, %v7128
        %v7131 = vshrl.u32 %v6851, 16
        %v7133 = vrot.slane %v7131, 4
        %v7134 = vshll.u32 %v6851, 16
        %v7136 = vrot.slane %v7134, 5
        %v7137 = vor.u32 %v7133, %v7136
        %v7138 = vrot.slane %v7137, 4
        %v7140 = vshll.u32 %v6852, 16
        %v7142 = vrot.slane %v7140, 5
        %v7143 = vsel %vm1524, %v7138, %v7142
        %v7144 = vshrl.u32 %v6852, 16
        %v7146 = vrot.slane %v7144, 4
        %v7147 = vor.u32 %v7146, %v7142
        %v7148 = vrot.slane %v7147, 4
        %v7150 = vshll.u32 %v6853, 16
        %v7152 = vrot.slane %v7150, 5
        %v7153 = vsel %vm1524, %v7148, %v7152
        %v7155 = vshrl.u32 %v6854, 16
        %v7157 = vrot.slane %v7155, 4
        %v7158 = vshll.u32 %v6854, 16
        %v7160 = vrot.slane %v7158, 5
        %v7161 = vor.u32 %v7157, %v7160
        %v7162 = vrot.slane %v7161, 4
        %v7164 = vshll.u32 %v6855, 16
        %v7166 = vrot.slane %v7164, 5
        %v7167 = vsel %vm1524, %v7162, %v7166
        %v7168 = vshrl.u32 %v6855, 16
        %v7170 = vrot.slane %v7168, 4
        %v7171 = vor.u32 %v7170, %v7166
        %v7172 = vrot.slane %v7171, 4
        %v7174 = vshll.u32 %v6856, 16
        %v7176 = vrot.slane %v7174, 5
        %v7177 = vsel %vm1524, %v7172, %v7176
        %v7179 = vshrl.u32 %v6857, 16
        %v7181 = vrot.slane %v7179, 4
        %v7182 = vshll.u32 %v6857, 16
        %v7184 = vrot.slane %v7182, 5
        %v7185 = vor.u32 %v7181, %v7184
        %v7186 = vrot.slane %v7185, 4
        %v7188 = vshll.u32 %v6858, 16
        %v7190 = vrot.slane %v7188, 5
        %v7191 = vsel %vm1524, %v7186, %v7190
        %v7192 = vshrl.u32 %v6858, 16
        %v7194 = vrot.slane %v7192, 4
        %v7195 = vor.u32 %v7194, %v7190
        %v7196 = vrot.slane %v7195, 4
        %v7198 = vshll.u32 %v6859, 16
        %v7200 = vrot.slane %v7198, 5
        %v7201 = vsel %vm1524, %v7196, %v7200
        %v7203 = vshrl.u32 %v6860, 16
        %v7205 = vrot.slane %v7203, 4
        %v7206 = vshll.u32 %v6860, 16
        %v7208 = vrot.slane %v7206, 5
        %v7209 = vor.u32 %v7205, %v7208
        %v7210 = vrot.slane %v7209, 4
        %v7212 = vshll.u32 %v6861, 16
        %v7214 = vrot.slane %v7212, 5
        %v7215 = vsel %vm1524, %v7210, %v7214
        %v7216 = vshrl.u32 %v6861, 16
        %v7218 = vrot.slane %v7216, 4
        %v7219 = vor.u32 %v7218, %v7214
        %v7220 = vrot.slane %v7219, 4
        %v7222 = vshll.u32 %v6862, 16
        %v7224 = vrot.slane %v7222, 5
        %v7225 = vsel %vm1524, %v7220, %v7224
        %v7227 = vshrl.u32 %v6863, 16
        %v7229 = vrot.slane %v7227, 4
        %v7230 = vshll.u32 %v6863, 16
        %v7232 = vrot.slane %v7230, 5
        %v7233 = vor.u32 %v7229, %v7232
        %v7234 = vrot.slane %v7233, 4
        %v7236 = vshll.u32 %v6864, 16
        %v7238 = vrot.slane %v7236, 5
        %v7239 = vsel %vm1524, %v7234, %v7238
        %v7240 = vshrl.u32 %v6864, 16
        %v7242 = vrot.slane %v7240, 4
        %v7243 = vor.u32 %v7242, %v7238
        %v7244 = vrot.slane %v7243, 4
        %v7246 = vshll.u32 %v6865, 16
        %v7248 = vrot.slane %v7246, 5
        %v7249 = vsel %vm1524, %v7244, %v7248
        %7282 = vst [vmem:[#allocation3 + $0x4] sm:$0xf] %v6879
        %7283 = vst [vmem:[#allocation3 + $0x28] sm:$0xf] %v6889
        %7284 = vst [vmem:[#allocation3 + $0x4c] sm:$0xf] %v6903
        %7285 = vst [vmem:[#allocation3 + $0x70] sm:$0xf] %v6913
        %7286 = vst [vmem:[#allocation3 + $0x94] sm:$0xf] %v6927
        %7287 = vst [vmem:[#allocation3 + $0xb8] sm:$0xf] %v6937
        %7288 = vst [vmem:[#allocation3 + $0xdc] sm:$0xf] %v6951
        %7289 = vst [vmem:[#allocation3 + $0x100] sm:$0xf] %v6961
        %7290 = vst [vmem:[#allocation3 + $0x124] sm:$0xf] %v6975
        %7291 = vst [vmem:[#allocation3 + $0x148] sm:$0xf] %v6985
        %7292 = vst [vmem:[#allocation3 + $0x16c] sm:$0xf] %v6999
        %7293 = vst [vmem:[#allocation3 + $0x190] sm:$0xf] %v7009
        %7294 = vst [vmem:[#allocation3 + $0x1b4] sm:$0xf] %v7023
        %7295 = vst [vmem:[#allocation3 + $0x1d8] sm:$0xf] %v7033
        %7296 = vst [vmem:[#allocation3 + $0x1fc] sm:$0xf] %v7047
        %7297 = vst [vmem:[#allocation3 + $0x220] sm:$0xf] %v7057
        %7298 = vst [vmem:[#allocation3 + $0x244] sm:$0xf] %v7071
        %7299 = vst [vmem:[#allocation3 + $0x268] sm:$0xf] %v7081
        %7300 = vst [vmem:[#allocation3 + $0x28c] sm:$0xf] %v7095
        %7301 = vst [vmem:[#allocation3 + $0x2b0] sm:$0xf] %v7105
        %7302 = vst [vmem:[#allocation3 + $0x2d4] sm:$0xf] %v7119
        %7303 = vst [vmem:[#allocation3 + $0x2f8] sm:$0xf] %v7129
        %7304 = vst [vmem:[#allocation3 + $0x31c] sm:$0xf] %v7143
        %7305 = vst [vmem:[#allocation3 + $0x340] sm:$0xf] %v7153
        %7306 = vst [vmem:[#allocation3 + $0x364] sm:$0xf] %v7167
        %7307 = vst [vmem:[#allocation3 + $0x388] sm:$0xf] %v7177
        %7308 = vst [vmem:[#allocation3 + $0x3ac] sm:$0xf] %v7191
        %7309 = vst [vmem:[#allocation3 + $0x3d0] sm:$0xf] %v7201
        %7310 = vst [vmem:[#allocation3 + $0x3f4] sm:$0xf] %v7215
        %7311 = vst [vmem:[#allocation3 + $0x418] sm:$0xf] %v7225
        %7312 = vst [vmem:[#allocation3 + $0x43c] sm:$0xf] %v7239
        %7313 = vst [vmem:[#allocation3 + $0x460] sm:$0xf] %v7249
        %v7314 = vld [vmem:[#allocation2] sm:$0xe]
        %v7315 = vld [vmem:[#allocation2 + $0x4] sm:$0xf]
        %v7316 = vld [vmem:[#allocation2 + $0x8] sm:$0x1]
        %v7317 = vld [vmem:[#allocation2 + $0xc] sm:$0xe]
        %v7318 = vld [vmem:[#allocation2 + $0x10] sm:$0xf]
        %v7319 = vld [vmem:[#allocation2 + $0x14] sm:$0x1]
        %v7320 = vld [vmem:[#allocation2 + $0x18] sm:$0xe]
        %v7321 = vld [vmem:[#allocation2 + $0x1c] sm:$0xf]
        %v7322 = vld [vmem:[#allocation2 + $0x20] sm:$0x1]
        %v7323 = vld [vmem:[#allocation2 + $0x24] sm:$0xe]
        %v7324 = vld [vmem:[#allocation2 + $0x28] sm:$0xf]
        %v7325 = vld [vmem:[#allocation2 + $0x2c] sm:$0x1]
        %v7326 = vld [vmem:[#allocation2 + $0x30] sm:$0xe]
        %v7327 = vld [vmem:[#allocation2 + $0x34] sm:$0xf]
        %v7328 = vld [vmem:[#allocation2 + $0x38] sm:$0x1]
        %v7329 = vld [vmem:[#allocation2 + $0x3c] sm:$0xe]
        %v7330 = vld [vmem:[#allocation2 + $0x40] sm:$0xf]
        %v7331 = vld [vmem:[#allocation2 + $0x44] sm:$0x1]
        %v7332 = vld [vmem:[#allocation2 + $0x48] sm:$0xe]
        %v7333 = vld [vmem:[#allocation2 + $0x4c] sm:$0xf]
        %v7334 = vld [vmem:[#allocation2 + $0x50] sm:$0x1]
        %v7335 = vld [vmem:[#allocation2 + $0x54] sm:$0xe]
        %v7336 = vld [vmem:[#allocation2 + $0x58] sm:$0xf]
        %v7337 = vld [vmem:[#allocation2 + $0x5c] sm:$0x1]
        %v7338 = vld [vmem:[#allocation2 + $0x60] sm:$0xe]
        %v7339 = vld [vmem:[#allocation2 + $0x64] sm:$0xf]
        %v7340 = vld [vmem:[#allocation2 + $0x68] sm:$0x1]
        %v7341 = vld [vmem:[#allocation2 + $0x6c] sm:$0xe]
        %v7342 = vld [vmem:[#allocation2 + $0x70] sm:$0xf]
        %v7343 = vld [vmem:[#allocation2 + $0x74] sm:$0x1]
        %v7344 = vld [vmem:[#allocation2 + $0x78] sm:$0xe]
        %v7345 = vld [vmem:[#allocation2 + $0x7c] sm:$0xf]
        %v7346 = vld [vmem:[#allocation2 + $0x80] sm:$0x1]
        %v7347 = vld [vmem:[#allocation2 + $0x84] sm:$0xe]
        %v7348 = vld [vmem:[#allocation2 + $0x88] sm:$0xf]
        %v7349 = vld [vmem:[#allocation2 + $0x8c] sm:$0x1]
        %v7350 = vld [vmem:[#allocation2 + $0x90] sm:$0xe]
        %v7351 = vld [vmem:[#allocation2 + $0x94] sm:$0xf]
        %v7352 = vld [vmem:[#allocation2 + $0x98] sm:$0x1]
        %v7353 = vld [vmem:[#allocation2 + $0x9c] sm:$0xe]
        %v7354 = vld [vmem:[#allocation2 + $0xa0] sm:$0xf]
        %v7355 = vld [vmem:[#allocation2 + $0xa4] sm:$0x1]
        %v7356 = vld [vmem:[#allocation2 + $0xa8] sm:$0xe]
        %v7357 = vld [vmem:[#allocation2 + $0xac] sm:$0xf]
        %v7358 = vld [vmem:[#allocation2 + $0xb0] sm:$0x1]
        %v7359 = vld [vmem:[#allocation2 + $0xb4] sm:$0xe]
        %v7360 = vld [vmem:[#allocation2 + $0xb8] sm:$0xf]
        %v7361 = vld [vmem:[#allocation2 + $0xbc] sm:$0x1]
        %v7410 = vrot.slane %v7314, 5
        %v7411 = vrot.slane %v7410, 4
        %v7412 = vrot.slane %v7315, 5
        %v7413 = vsel %vm2071, %v7411, %v7412
        %v7414 = vrot.slane %v7412, 4
        %v7415 = vrot.slane %v7316, 5
        %v7416 = vsel %vm2071, %v7414, %v7415
        %v7417 = vrot.slane %v7317, 5
        %v7418 = vrot.slane %v7417, 4
        %v7419 = vrot.slane %v7318, 5
        %v7420 = vsel %vm2071, %v7418, %v7419
        %v7421 = vrot.slane %v7419, 4
        %v7422 = vrot.slane %v7319, 5
        %v7423 = vsel %vm2071, %v7421, %v7422
        %v7424 = vrot.slane %v7320, 5
        %v7425 = vrot.slane %v7424, 4
        %v7426 = vrot.slane %v7321, 5
        %v7427 = vsel %vm2071, %v7425, %v7426
        %v7428 = vrot.slane %v7426, 4
        %v7429 = vrot.slane %v7322, 5
        %v7430 = vsel %vm2071, %v7428, %v7429
        %v7431 = vrot.slane %v7323, 5
        %v7432 = vrot.slane %v7431, 4
        %v7433 = vrot.slane %v7324, 5
        %v7434 = vsel %vm2071, %v7432, %v7433
        %v7435 = vrot.slane %v7433, 4
        %v7436 = vrot.slane %v7325, 5
        %v7437 = vsel %vm2071, %v7435, %v7436
        %v7438 = vrot.slane %v7326, 5
        %v7439 = vrot.slane %v7438, 4
        %v7440 = vrot.slane %v7327, 5
        %v7441 = vsel %vm2071, %v7439, %v7440
        %v7442 = vrot.slane %v7440, 4
        %v7443 = vrot.slane %v7328, 5
        %v7444 = vsel %vm2071, %v7442, %v7443
        %v7445 = vrot.slane %v7329, 5
        %v7446 = vrot.slane %v7445, 4
        %v7447 = vrot.slane %v7330, 5
        %v7448 = vsel %vm2071, %v7446, %v7447
        %v7449 = vrot.slane %v7447, 4
        %v7450 = vrot.slane %v7331, 5
        %v7451 = vsel %vm2071, %v7449, %v7450
        %v7452 = vrot.slane %v7332, 5
        %v7453 = vrot.slane %v7452, 4
        %v7454 = vrot.slane %v7333, 5
        %v7455 = vsel %vm2071, %v7453, %v7454
        %v7456 = vrot.slane %v7454, 4
        %v7457 = vrot.slane %v7334, 5
        %v7458 = vsel %vm2071, %v7456, %v7457
        %v7459 = vrot.slane %v7335, 5
        %v7460 = vrot.slane %v7459, 4
        %v7461 = vrot.slane %v7336, 5
        %v7462 = vsel %vm2071, %v7460, %v7461
        %v7463 = vrot.slane %v7461, 4
        %v7464 = vrot.slane %v7337, 5
        %v7465 = vsel %vm2071, %v7463, %v7464
        %v7466 = vrot.slane %v7338, 5
        %v7467 = vrot.slane %v7466, 4
        %v7468 = vrot.slane %v7339, 5
        %v7469 = vsel %vm2071, %v7467, %v7468
        %v7470 = vrot.slane %v7468, 4
        %v7471 = vrot.slane %v7340, 5
        %v7472 = vsel %vm2071, %v7470, %v7471
        %v7473 = vrot.slane %v7341, 5
        %v7474 = vrot.slane %v7473, 4
        %v7475 = vrot.slane %v7342, 5
        %v7476 = vsel %vm2071, %v7474, %v7475
        %v7477 = vrot.slane %v7475, 4
        %v7478 = vrot.slane %v7343, 5
        %v7479 = vsel %vm2071, %v7477, %v7478
        %v7480 = vrot.slane %v7344, 5
        %v7481 = vrot.slane %v7480, 4
        %v7482 = vrot.slane %v7345, 5
        %v7483 = vsel %vm2071, %v7481, %v7482
        %v7484 = vrot.slane %v7482, 4
        %v7485 = vrot.slane %v7346, 5
        %v7486 = vsel %vm2071, %v7484, %v7485
        %v7487 = vrot.slane %v7347, 5
        %v7488 = vrot.slane %v7487, 4
        %v7489 = vrot.slane %v7348, 5
        %v7490 = vsel %vm2071, %v7488, %v7489
        %v7491 = vrot.slane %v7489, 4
        %v7492 = vrot.slane %v7349, 5
        %v7493 = vsel %vm2071, %v7491, %v7492
        %v7494 = vrot.slane %v7350, 5
        %v7495 = vrot.slane %v7494, 4
        %v7496 = vrot.slane %v7351, 5
        %v7497 = vsel %vm2071, %v7495, %v7496
        %v7498 = vrot.slane %v7496, 4
        %v7499 = vrot.slane %v7352, 5
        %v7500 = vsel %vm2071, %v7498, %v7499
        %v7501 = vrot.slane %v7353, 5
        %v7502 = vrot.slane %v7501, 4
        %v7503 = vrot.slane %v7354, 5
        %v7504 = vsel %vm2071, %v7502, %v7503
        %v7505 = vrot.slane %v7503, 4
        %v7506 = vrot.slane %v7355, 5
        %v7507 = vsel %vm2071, %v7505, %v7506
        %v7508 = vrot.slane %v7356, 5
        %v7509 = vrot.slane %v7508, 4
        %v7510 = vrot.slane %v7357, 5
        %v7511 = vsel %vm2071, %v7509, %v7510
        %v7512 = vrot.slane %v7510, 4
        %v7513 = vrot.slane %v7358, 5
        %v7514 = vsel %vm2071, %v7512, %v7513
        %v7515 = vrot.slane %v7359, 5
        %v7516 = vrot.slane %v7515, 4
        %v7517 = vrot.slane %v7360, 5
        %v7518 = vsel %vm2071, %v7516, %v7517
        %v7519 = vrot.slane %v7517, 4
        %v7520 = vrot.slane %v7361, 5
        %v7521 = vsel %vm2071, %v7519, %v7520
        %7554 = vst [vmem:[#allocation3 + $0x8] sm:$0xf] %v7413
        %7555 = vst [vmem:[#allocation3 + $0x2c] sm:$0xf] %v7416
        %7556 = vst [vmem:[#allocation3 + $0x50] sm:$0xf] %v7420
        %7557 = vst [vmem:[#allocation3 + $0x74] sm:$0xf] %v7423
        %7558 = vst [vmem:[#allocation3 + $0x98] sm:$0xf] %v7427
        %7559 = vst [vmem:[#allocation3 + $0xbc] sm:$0xf] %v7430
        %7560 = vst [vmem:[#allocation3 + $0xe0] sm:$0xf] %v7434
        %7561 = vst [vmem:[#allocation3 + $0x104] sm:$0xf] %v7437
        %7562 = vst [vmem:[#allocation3 + $0x128] sm:$0xf] %v7441
        %7563 = vst [vmem:[#allocation3 + $0x14c] sm:$0xf] %v7444
        %7564 = vst [vmem:[#allocation3 + $0x170] sm:$0xf] %v7448
        %7565 = vst [vmem:[#allocation3 + $0x194] sm:$0xf] %v7451
        %7566 = vst [vmem:[#allocation3 + $0x1b8] sm:$0xf] %v7455
        %7567 = vst [vmem:[#allocation3 + $0x1dc] sm:$0xf] %v7458
        %7568 = vst [vmem:[#allocation3 + $0x200] sm:$0xf] %v7462
        %7569 = vst [vmem:[#allocation3 + $0x224] sm:$0xf] %v7465
        %7570 = vst [vmem:[#allocation3 + $0x248] sm:$0xf] %v7469
        %7571 = vst [vmem:[#allocation3 + $0x26c] sm:$0xf] %v7472
        %7572 = vst [vmem:[#allocation3 + $0x290] sm:$0xf] %v7476
        %7573 = vst [vmem:[#allocation3 + $0x2b4] sm:$0xf] %v7479
        %7574 = vst [vmem:[#allocation3 + $0x2d8] sm:$0xf] %v7483
        %7575 = vst [vmem:[#allocation3 + $0x2fc] sm:$0xf] %v7486
        %7576 = vst [vmem:[#allocation3 + $0x320] sm:$0xf] %v7490
        %7577 = vst [vmem:[#allocation3 + $0x344] sm:$0xf] %v7493
        %7578 = vst [vmem:[#allocation3 + $0x368] sm:$0xf] %v7497
        %7579 = vst [vmem:[#allocation3 + $0x38c] sm:$0xf] %v7500
        %7580 = vst [vmem:[#allocation3 + $0x3b0] sm:$0xf] %v7504
        %7581 = vst [vmem:[#allocation3 + $0x3d4] sm:$0xf] %v7507
        %7582 = vst [vmem:[#allocation3 + $0x3f8] sm:$0xf] %v7511
        %7583 = vst [vmem:[#allocation3 + $0x41c] sm:$0xf] %v7514
        %7584 = vst [vmem:[#allocation3 + $0x440] sm:$0xf] %v7518
        %7585 = vst [vmem:[#allocation3 + $0x464] sm:$0xf] %v7521
        %v7586 = vld [vmem:[%s1292] sm:$0xf]
        %v7587 = vld [vmem:[%s1292 + $0x4] sm:$0xf]
        %v7588 = vld [vmem:[%s1292 + $0xc] sm:$0xf]
        %v7589 = vld [vmem:[%s1292 + $0x10] sm:$0xf]
        %v7590 = vld [vmem:[%s1292 + $0x18] sm:$0xf]
        %v7591 = vld [vmem:[%s1292 + $0x1c] sm:$0xf]
        %v7592 = vld [vmem:[%s1292 + $0x24] sm:$0xf]
        %v7593 = vld [vmem:[%s1292 + $0x28] sm:$0xf]
        %v7594 = vld [vmem:[%s1292 + $0x30] sm:$0xf]
        %v7595 = vld [vmem:[%s1292 + $0x34] sm:$0xf]
        %v7596 = vld [vmem:[%s1292 + $0x3c] sm:$0xf]
        %v7597 = vld [vmem:[%s1292 + $0x40] sm:$0xf]
        %v7598 = vld [vmem:[%s1292 + $0x48] sm:$0xf]
        %v7599 = vld [vmem:[%s1292 + $0x4c] sm:$0xf]
        %v7600 = vld [vmem:[%s1292 + $0x54] sm:$0xf]
        %v7601 = vld [vmem:[%s1292 + $0x58] sm:$0xf]
        %v7602 = vld [vmem:[%s1292 + $0x60] sm:$0xf]
        %v7603 = vld [vmem:[%s1292 + $0x64] sm:$0xf]
        %v7604 = vld [vmem:[%s1292 + $0x6c] sm:$0xf]
        %v7605 = vld [vmem:[%s1292 + $0x70] sm:$0xf]
        %v7606 = vld [vmem:[%s1292 + $0x78] sm:$0xf]
        %v7607 = vld [vmem:[%s1292 + $0x7c] sm:$0xf]
        %v7608 = vld [vmem:[%s1292 + $0x84] sm:$0xf]
        %v7609 = vld [vmem:[%s1292 + $0x88] sm:$0xf]
        %v7610 = vld [vmem:[%s1292 + $0x90] sm:$0xf]
        %v7611 = vld [vmem:[%s1292 + $0x94] sm:$0xf]
        %v7612 = vld [vmem:[%s1292 + $0x9c] sm:$0xf]
        %v7613 = vld [vmem:[%s1292 + $0xa0] sm:$0xf]
        %v7614 = vld [vmem:[%s1292 + $0xa8] sm:$0xf]
        %v7615 = vld [vmem:[%s1292 + $0xac] sm:$0xf]
        %v7616 = vld [vmem:[%s1292 + $0xb4] sm:$0xf]
        %v7617 = vld [vmem:[%s1292 + $0xb8] sm:$0xf]
        %7618 = vst [vmem:[#allocation3 + $0xc] sm:$0xf] %v7586
        %7619 = vst [vmem:[#allocation3 + $0x30] sm:$0xf] %v7587
        %7620 = vst [vmem:[#allocation3 + $0x54] sm:$0xf] %v7588
        %7621 = vst [vmem:[#allocation3 + $0x78] sm:$0xf] %v7589
        %7622 = vst [vmem:[#allocation3 + $0x9c] sm:$0xf] %v7590
        %7623 = vst [vmem:[#allocation3 + $0xc0] sm:$0xf] %v7591
        %7624 = vst [vmem:[#allocation3 + $0xe4] sm:$0xf] %v7592
        %7625 = vst [vmem:[#allocation3 + $0x108] sm:$0xf] %v7593
        %7626 = vst [vmem:[#allocation3 + $0x12c] sm:$0xf] %v7594
        %7627 = vst [vmem:[#allocation3 + $0x150] sm:$0xf] %v7595
        %7628 = vst [vmem:[#allocation3 + $0x174] sm:$0xf] %v7596
        %7629 = vst [vmem:[#allocation3 + $0x198] sm:$0xf] %v7597
        %7630 = vst [vmem:[#allocation3 + $0x1bc] sm:$0xf] %v7598
        %7631 = vst [vmem:[#allocation3 + $0x1e0] sm:$0xf] %v7599
        %7632 = vst [vmem:[#allocation3 + $0x204] sm:$0xf] %v7600
        %7633 = vst [vmem:[#allocation3 + $0x228] sm:$0xf] %v7601
        %7634 = vst [vmem:[#allocation3 + $0x24c] sm:$0xf] %v7602
        %7635 = vst [vmem:[#allocation3 + $0x270] sm:$0xf] %v7603
        %7636 = vst [vmem:[#allocation3 + $0x294] sm:$0xf] %v7604
        %7637 = vst [vmem:[#allocation3 + $0x2b8] sm:$0xf] %v7605
        %7638 = vst [vmem:[#allocation3 + $0x2dc] sm:$0xf] %v7606
        %7639 = vst [vmem:[#allocation3 + $0x300] sm:$0xf] %v7607
        %7640 = vst [vmem:[#allocation3 + $0x324] sm:$0xf] %v7608
        %7641 = vst [vmem:[#allocation3 + $0x348] sm:$0xf] %v7609
        %7642 = vst [vmem:[#allocation3 + $0x36c] sm:$0xf] %v7610
        %7643 = vst [vmem:[#allocation3 + $0x390] sm:$0xf] %v7611
        %7644 = vst [vmem:[#allocation3 + $0x3b4] sm:$0xf] %v7612
        %7645 = vst [vmem:[#allocation3 + $0x3d8] sm:$0xf] %v7613
        %7646 = vst [vmem:[#allocation3 + $0x3fc] sm:$0xf] %v7614
        %7647 = vst [vmem:[#allocation3 + $0x420] sm:$0xf] %v7615
        %7648 = vst [vmem:[#allocation3 + $0x444] sm:$0xf] %v7616
        %7649 = vst [vmem:[#allocation3 + $0x468] sm:$0xf] %v7617
        %v7650 = vld [vmem:[%s1292] sm:$0xf]
        %v7651 = vld [vmem:[%s1292 + $0x4] sm:$0xf]
        %v7652 = vld [vmem:[%s1292 + $0x8] sm:$0x1]
        %v7653 = vld [vmem:[%s1292 + $0xc] sm:$0xf]
        %v7654 = vld [vmem:[%s1292 + $0x10] sm:$0xf]
        %v7655 = vld [vmem:[%s1292 + $0x14] sm:$0x1]
        %v7656 = vld [vmem:[%s1292 + $0x18] sm:$0xf]
        %v7657 = vld [vmem:[%s1292 + $0x1c] sm:$0xf]
        %v7658 = vld [vmem:[%s1292 + $0x20] sm:$0x1]
        %v7659 = vld [vmem:[%s1292 + $0x24] sm:$0xf]
        %v7660 = vld [vmem:[%s1292 + $0x28] sm:$0xf]
        %v7661 = vld [vmem:[%s1292 + $0x2c] sm:$0x1]
        %v7662 = vld [vmem:[%s1292 + $0x30] sm:$0xf]
        %v7663 = vld [vmem:[%s1292 + $0x34] sm:$0xf]
        %v7664 = vld [vmem:[%s1292 + $0x38] sm:$0x1]
        %v7665 = vld [vmem:[%s1292 + $0x3c] sm:$0xf]
        %v7666 = vld [vmem:[%s1292 + $0x40] sm:$0xf]
        %v7667 = vld [vmem:[%s1292 + $0x44] sm:$0x1]
        %v7668 = vld [vmem:[%s1292 + $0x48] sm:$0xf]
        %v7669 = vld [vmem:[%s1292 + $0x4c] sm:$0xf]
        %v7670 = vld [vmem:[%s1292 + $0x50] sm:$0x1]
        %v7671 = vld [vmem:[%s1292 + $0x54] sm:$0xf]
        %v7672 = vld [vmem:[%s1292 + $0x58] sm:$0xf]
        %v7673 = vld [vmem:[%s1292 + $0x5c] sm:$0x1]
        %v7674 = vld [vmem:[%s1292 + $0x60] sm:$0xf]
        %v7675 = vld [vmem:[%s1292 + $0x64] sm:$0xf]
        %v7676 = vld [vmem:[%s1292 + $0x68] sm:$0x1]
        %v7677 = vld [vmem:[%s1292 + $0x6c] sm:$0xf]
        %v7678 = vld [vmem:[%s1292 + $0x70] sm:$0xf]
        %v7679 = vld [vmem:[%s1292 + $0x74] sm:$0x1]
        %v7680 = vld [vmem:[%s1292 + $0x78] sm:$0xf]
        %v7681 = vld [vmem:[%s1292 + $0x7c] sm:$0xf]
        %v7682 = vld [vmem:[%s1292 + $0x80] sm:$0x1]
        %v7683 = vld [vmem:[%s1292 + $0x84] sm:$0xf]
        %v7684 = vld [vmem:[%s1292 + $0x88] sm:$0xf]
        %v7685 = vld [vmem:[%s1292 + $0x8c] sm:$0x1]
        %v7686 = vld [vmem:[%s1292 + $0x90] sm:$0xf]
        %v7687 = vld [vmem:[%s1292 + $0x94] sm:$0xf]
        %v7688 = vld [vmem:[%s1292 + $0x98] sm:$0x1]
        %v7689 = vld [vmem:[%s1292 + $0x9c] sm:$0xf]
        %v7690 = vld [vmem:[%s1292 + $0xa0] sm:$0xf]
        %v7691 = vld [vmem:[%s1292 + $0xa4] sm:$0x1]
        %v7692 = vld [vmem:[%s1292 + $0xa8] sm:$0xf]
        %v7693 = vld [vmem:[%s1292 + $0xac] sm:$0xf]
        %v7694 = vld [vmem:[%s1292 + $0xb0] sm:$0x1]
        %v7695 = vld [vmem:[%s1292 + $0xb4] sm:$0xf]
        %v7696 = vld [vmem:[%s1292 + $0xb8] sm:$0xf]
        %v7697 = vld [vmem:[%s1292 + $0xbc] sm:$0x1]
        %v7699 = vshrl.u32 %v7650, 16
        %v7701 = vrot.slane %v7699, 4
        %v7702 = vshll.u32 %v7650, 16
        %v7704 = vrot.slane %v7702, 5
        %v7705 = vor.u32 %v7701, %v7704
        %v7706 = vrot.slane %v7705, 4
        %v7708 = vshll.u32 %v7651, 16
        %v7710 = vrot.slane %v7708, 5
        %v7711 = vsel %vm1524, %v7706, %v7710
        %v7712 = vshrl.u32 %v7651, 16
        %v7714 = vrot.slane %v7712, 4
        %v7715 = vor.u32 %v7714, %v7710
        %v7716 = vrot.slane %v7715, 4
        %v7718 = vshll.u32 %v7652, 16
        %v7720 = vrot.slane %v7718, 5
        %v7721 = vsel %vm1524, %v7716, %v7720
        %v7723 = vshrl.u32 %v7653, 16
        %v7725 = vrot.slane %v7723, 4
        %v7726 = vshll.u32 %v7653, 16
        %v7728 = vrot.slane %v7726, 5
        %v7729 = vor.u32 %v7725, %v7728
        %v7730 = vrot.slane %v7729, 4
        %v7732 = vshll.u32 %v7654, 16
        %v7734 = vrot.slane %v7732, 5
        %v7735 = vsel %vm1524, %v7730, %v7734
        %v7736 = vshrl.u32 %v7654, 16
        %v7738 = vrot.slane %v7736, 4
        %v7739 = vor.u32 %v7738, %v7734
        %v7740 = vrot.slane %v7739, 4
        %v7742 = vshll.u32 %v7655, 16
        %v7744 = vrot.slane %v7742, 5
        %v7745 = vsel %vm1524, %v7740, %v7744
        %v7747 = vshrl.u32 %v7656, 16
        %v7749 = vrot.slane %v7747, 4
        %v7750 = vshll.u32 %v7656, 16
        %v7752 = vrot.slane %v7750, 5
        %v7753 = vor.u32 %v7749, %v7752
        %v7754 = vrot.slane %v7753, 4
        %v7756 = vshll.u32 %v7657, 16
        %v7758 = vrot.slane %v7756, 5
        %v7759 = vsel %vm1524, %v7754, %v7758
        %v7760 = vshrl.u32 %v7657, 16
        %v7762 = vrot.slane %v7760, 4
        %v7763 = vor.u32 %v7762, %v7758
        %v7764 = vrot.slane %v7763, 4
        %v7766 = vshll.u32 %v7658, 16
        %v7768 = vrot.slane %v7766, 5
        %v7769 = vsel %vm1524, %v7764, %v7768
        %v7771 = vshrl.u32 %v7659, 16
        %v7773 = vrot.slane %v7771, 4
        %v7774 = vshll.u32 %v7659, 16
        %v7776 = vrot.slane %v7774, 5
        %v7777 = vor.u32 %v7773, %v7776
        %v7778 = vrot.slane %v7777, 4
        %v7780 = vshll.u32 %v7660, 16
        %v7782 = vrot.slane %v7780, 5
        %v7783 = vsel %vm1524, %v7778, %v7782
        %v7784 = vshrl.u32 %v7660, 16
        %v7786 = vrot.slane %v7784, 4
        %v7787 = vor.u32 %v7786, %v7782
        %v7788 = vrot.slane %v7787, 4
        %v7790 = vshll.u32 %v7661, 16
        %v7792 = vrot.slane %v7790, 5
        %v7793 = vsel %vm1524, %v7788, %v7792
        %v7795 = vshrl.u32 %v7662, 16
        %v7797 = vrot.slane %v7795, 4
        %v7798 = vshll.u32 %v7662, 16
        %v7800 = vrot.slane %v7798, 5
        %v7801 = vor.u32 %v7797, %v7800
        %v7802 = vrot.slane %v7801, 4
        %v7804 = vshll.u32 %v7663, 16
        %v7806 = vrot.slane %v7804, 5
        %v7807 = vsel %vm1524, %v7802, %v7806
        %v7808 = vshrl.u32 %v7663, 16
        %v7810 = vrot.slane %v7808, 4
        %v7811 = vor.u32 %v7810, %v7806
        %v7812 = vrot.slane %v7811, 4
        %v7814 = vshll.u32 %v7664, 16
        %v7816 = vrot.slane %v7814, 5
        %v7817 = vsel %vm1524, %v7812, %v7816
        %v7819 = vshrl.u32 %v7665, 16
        %v7821 = vrot.slane %v7819, 4
        %v7822 = vshll.u32 %v7665, 16
        %v7824 = vrot.slane %v7822, 5
        %v7825 = vor.u32 %v7821, %v7824
        %v7826 = vrot.slane %v7825, 4
        %v7828 = vshll.u32 %v7666, 16
        %v7830 = vrot.slane %v7828, 5
        %v7831 = vsel %vm1524, %v7826, %v7830
        %v7832 = vshrl.u32 %v7666, 16
        %v7834 = vrot.slane %v7832, 4
        %v7835 = vor.u32 %v7834, %v7830
        %v7836 = vrot.slane %v7835, 4
        %v7838 = vshll.u32 %v7667, 16
        %v7840 = vrot.slane %v7838, 5
        %v7841 = vsel %vm1524, %v7836, %v7840
        %v7843 = vshrl.u32 %v7668, 16
        %v7845 = vrot.slane %v7843, 4
        %v7846 = vshll.u32 %v7668, 16
        %v7848 = vrot.slane %v7846, 5
        %v7849 = vor.u32 %v7845, %v7848
        %v7850 = vrot.slane %v7849, 4
        %v7852 = vshll.u32 %v7669, 16
        %v7854 = vrot.slane %v7852, 5
        %v7855 = vsel %vm1524, %v7850, %v7854
        %v7856 = vshrl.u32 %v7669, 16
        %v7858 = vrot.slane %v7856, 4
        %v7859 = vor.u32 %v7858, %v7854
        %v7860 = vrot.slane %v7859, 4
        %v7862 = vshll.u32 %v7670, 16
        %v7864 = vrot.slane %v7862, 5
        %v7865 = vsel %vm1524, %v7860, %v7864
        %v7867 = vshrl.u32 %v7671, 16
        %v7869 = vrot.slane %v7867, 4
        %v7870 = vshll.u32 %v7671, 16
        %v7872 = vrot.slane %v7870, 5
        %v7873 = vor.u32 %v7869, %v7872
        %v7874 = vrot.slane %v7873, 4
        %v7876 = vshll.u32 %v7672, 16
        %v7878 = vrot.slane %v7876, 5
        %v7879 = vsel %vm1524, %v7874, %v7878
        %v7880 = vshrl.u32 %v7672, 16
        %v7882 = vrot.slane %v7880, 4
        %v7883 = vor.u32 %v7882, %v7878
        %v7884 = vrot.slane %v7883, 4
        %v7886 = vshll.u32 %v7673, 16
        %v7888 = vrot.slane %v7886, 5
        %v7889 = vsel %vm1524, %v7884, %v7888
        %v7891 = vshrl.u32 %v7674, 16
        %v7893 = vrot.slane %v7891, 4
        %v7894 = vshll.u32 %v7674, 16
        %v7896 = vrot.slane %v7894, 5
        %v7897 = vor.u32 %v7893, %v7896
        %v7898 = vrot.slane %v7897, 4
        %v7900 = vshll.u32 %v7675, 16
        %v7902 = vrot.slane %v7900, 5
        %v7903 = vsel %vm1524, %v7898, %v7902
        %v7904 = vshrl.u32 %v7675, 16
        %v7906 = vrot.slane %v7904, 4
        %v7907 = vor.u32 %v7906, %v7902
        %v7908 = vrot.slane %v7907, 4
        %v7910 = vshll.u32 %v7676, 16
        %v7912 = vrot.slane %v7910, 5
        %v7913 = vsel %vm1524, %v7908, %v7912
        %v7915 = vshrl.u32 %v7677, 16
        %v7917 = vrot.slane %v7915, 4
        %v7918 = vshll.u32 %v7677, 16
        %v7920 = vrot.slane %v7918, 5
        %v7921 = vor.u32 %v7917, %v7920
        %v7922 = vrot.slane %v7921, 4
        %v7924 = vshll.u32 %v7678, 16
        %v7926 = vrot.slane %v7924, 5
        %v7927 = vsel %vm1524, %v7922, %v7926
        %v7928 = vshrl.u32 %v7678, 16
        %v7930 = vrot.slane %v7928, 4
        %v7931 = vor.u32 %v7930, %v7926
        %v7932 = vrot.slane %v7931, 4
        %v7934 = vshll.u32 %v7679, 16
        %v7936 = vrot.slane %v7934, 5
        %v7937 = vsel %vm1524, %v7932, %v7936
        %v7939 = vshrl.u32 %v7680, 16
        %v7941 = vrot.slane %v7939, 4
        %v7942 = vshll.u32 %v7680, 16
        %v7944 = vrot.slane %v7942, 5
        %v7945 = vor.u32 %v7941, %v7944
        %v7946 = vrot.slane %v7945, 4
        %v7948 = vshll.u32 %v7681, 16
        %v7950 = vrot.slane %v7948, 5
        %v7951 = vsel %vm1524, %v7946, %v7950
        %v7952 = vshrl.u32 %v7681, 16
        %v7954 = vrot.slane %v7952, 4
        %v7955 = vor.u32 %v7954, %v7950
        %v7956 = vrot.slane %v7955, 4
        %v7958 = vshll.u32 %v7682, 16
        %v7960 = vrot.slane %v7958, 5
        %v7961 = vsel %vm1524, %v7956, %v7960
        %v7963 = vshrl.u32 %v7683, 16
        %v7965 = vrot.slane %v7963, 4
        %v7966 = vshll.u32 %v7683, 16
        %v7968 = vrot.slane %v7966, 5
        %v7969 = vor.u32 %v7965, %v7968
        %v7970 = vrot.slane %v7969, 4
        %v7972 = vshll.u32 %v7684, 16
        %v7974 = vrot.slane %v7972, 5
        %v7975 = vsel %vm1524, %v7970, %v7974
        %v7976 = vshrl.u32 %v7684, 16
        %v7978 = vrot.slane %v7976, 4
        %v7979 = vor.u32 %v7978, %v7974
        %v7980 = vrot.slane %v7979, 4
        %v7982 = vshll.u32 %v7685, 16
        %v7984 = vrot.slane %v7982, 5
        %v7985 = vsel %vm1524, %v7980, %v7984
        %v7987 = vshrl.u32 %v7686, 16
        %v7989 = vrot.slane %v7987, 4
        %v7990 = vshll.u32 %v7686, 16
        %v7992 = vrot.slane %v7990, 5
        %v7993 = vor.u32 %v7989, %v7992
        %v7994 = vrot.slane %v7993, 4
        %v7996 = vshll.u32 %v7687, 16
        %v7998 = vrot.slane %v7996, 5
        %v7999 = vsel %vm1524, %v7994, %v7998
        %v8000 = vshrl.u32 %v7687, 16
        %v8002 = vrot.slane %v8000, 4
        %v8003 = vor.u32 %v8002, %v7998
        %v8004 = vrot.slane %v8003, 4
        %v8006 = vshll.u32 %v7688, 16
        %v8008 = vrot.slane %v8006, 5
        %v8009 = vsel %vm1524, %v8004, %v8008
        %v8011 = vshrl.u32 %v7689, 16
        %v8013 = vrot.slane %v8011, 4
        %v8014 = vshll.u32 %v7689, 16
        %v8016 = vrot.slane %v8014, 5
        %v8017 = vor.u32 %v8013, %v8016
        %v8018 = vrot.slane %v8017, 4
        %v8020 = vshll.u32 %v7690, 16
        %v8022 = vrot.slane %v8020, 5
        %v8023 = vsel %vm1524, %v8018, %v8022
        %v8024 = vshrl.u32 %v7690, 16
        %v8026 = vrot.slane %v8024, 4
        %v8027 = vor.u32 %v8026, %v8022
        %v8028 = vrot.slane %v8027, 4
        %v8030 = vshll.u32 %v7691, 16
        %v8032 = vrot.slane %v8030, 5
        %v8033 = vsel %vm1524, %v8028, %v8032
        %v8035 = vshrl.u32 %v7692, 16
        %v8037 = vrot.slane %v8035, 4
        %v8038 = vshll.u32 %v7692, 16
        %v8040 = vrot.slane %v8038, 5
        %v8041 = vor.u32 %v8037, %v8040
        %v8042 = vrot.slane %v8041, 4
        %v8044 = vshll.u32 %v7693, 16
        %v8046 = vrot.slane %v8044, 5
        %v8047 = vsel %vm1524, %v8042, %v8046
        %v8048 = vshrl.u32 %v7693, 16
        %v8050 = vrot.slane %v8048, 4
        %v8051 = vor.u32 %v8050, %v8046
        %v8052 = vrot.slane %v8051, 4
        %v8054 = vshll.u32 %v7694, 16
        %v8056 = vrot.slane %v8054, 5
        %v8057 = vsel %vm1524, %v8052, %v8056
        %v8059 = vshrl.u32 %v7695, 16
        %v8061 = vrot.slane %v8059, 4
        %v8062 = vshll.u32 %v7695, 16
        %v8064 = vrot.slane %v8062, 5
        %v8065 = vor.u32 %v8061, %v8064
        %v8066 = vrot.slane %v8065, 4
        %v8068 = vshll.u32 %v7696, 16
        %v8070 = vrot.slane %v8068, 5
        %v8071 = vsel %vm1524, %v8066, %v8070
        %v8072 = vshrl.u32 %v7696, 16
        %v8074 = vrot.slane %v8072, 4
        %v8075 = vor.u32 %v8074, %v8070
        %v8076 = vrot.slane %v8075, 4
        %v8078 = vshll.u32 %v7697, 16
        %v8080 = vrot.slane %v8078, 5
        %v8081 = vsel %vm1524, %v8076, %v8080
        %8114 = vst [vmem:[#allocation3 + $0x10] sm:$0xf] %v7711
        %8115 = vst [vmem:[#allocation3 + $0x34] sm:$0xf] %v7721
        %8116 = vst [vmem:[#allocation3 + $0x58] sm:$0xf] %v7735
        %8117 = vst [vmem:[#allocation3 + $0x7c] sm:$0xf] %v7745
        %8118 = vst [vmem:[#allocation3 + $0xa0] sm:$0xf] %v7759
        %8119 = vst [vmem:[#allocation3 + $0xc4] sm:$0xf] %v7769
        %8120 = vst [vmem:[#allocation3 + $0xe8] sm:$0xf] %v7783
        %8121 = vst [vmem:[#allocation3 + $0x10c] sm:$0xf] %v7793
        %8122 = vst [vmem:[#allocation3 + $0x130] sm:$0xf] %v7807
        %8123 = vst [vmem:[#allocation3 + $0x154] sm:$0xf] %v7817
        %8124 = vst [vmem:[#allocation3 + $0x178] sm:$0xf] %v7831
        %8125 = vst [vmem:[#allocation3 + $0x19c] sm:$0xf] %v7841
        %8126 = vst [vmem:[#allocation3 + $0x1c0] sm:$0xf] %v7855
        %8127 = vst [vmem:[#allocation3 + $0x1e4] sm:$0xf] %v7865
        %8128 = vst [vmem:[#allocation3 + $0x208] sm:$0xf] %v7879
        %8129 = vst [vmem:[#allocation3 + $0x22c] sm:$0xf] %v7889
        %8130 = vst [vmem:[#allocation3 + $0x250] sm:$0xf] %v7903
        %8131 = vst [vmem:[#allocation3 + $0x274] sm:$0xf] %v7913
        %8132 = vst [vmem:[#allocation3 + $0x298] sm:$0xf] %v7927
        %8133 = vst [vmem:[#allocation3 + $0x2bc] sm:$0xf] %v7937
        %8134 = vst [vmem:[#allocation3 + $0x2e0] sm:$0xf] %v7951
        %8135 = vst [vmem:[#allocation3 + $0x304] sm:$0xf] %v7961
        %8136 = vst [vmem:[#allocation3 + $0x328] sm:$0xf] %v7975
        %8137 = vst [vmem:[#allocation3 + $0x34c] sm:$0xf] %v7985
        %8138 = vst [vmem:[#allocation3 + $0x370] sm:$0xf] %v7999
        %8139 = vst [vmem:[#allocation3 + $0x394] sm:$0xf] %v8009
        %8140 = vst [vmem:[#allocation3 + $0x3b8] sm:$0xf] %v8023
        %8141 = vst [vmem:[#allocation3 + $0x3dc] sm:$0xf] %v8033
        %8142 = vst [vmem:[#allocation3 + $0x400] sm:$0xf] %v8047
        %8143 = vst [vmem:[#allocation3 + $0x424] sm:$0xf] %v8057
        %8144 = vst [vmem:[#allocation3 + $0x448] sm:$0xf] %v8071
        %8145 = vst [vmem:[#allocation3 + $0x46c] sm:$0xf] %v8081
        %v8146 = vld [vmem:[%s1292] sm:$0xe]
        %v8147 = vld [vmem:[%s1292 + $0x4] sm:$0xf]
        %v8148 = vld [vmem:[%s1292 + $0x8] sm:$0x1]
        %v8149 = vld [vmem:[%s1292 + $0xc] sm:$0xe]
        %v8150 = vld [vmem:[%s1292 + $0x10] sm:$0xf]
        %v8151 = vld [vmem:[%s1292 + $0x14] sm:$0x1]
        %v8152 = vld [vmem:[%s1292 + $0x18] sm:$0xe]
        %v8153 = vld [vmem:[%s1292 + $0x1c] sm:$0xf]
        %v8154 = vld [vmem:[%s1292 + $0x20] sm:$0x1]
        %v8155 = vld [vmem:[%s1292 + $0x24] sm:$0xe]
        %v8156 = vld [vmem:[%s1292 + $0x28] sm:$0xf]
        %v8157 = vld [vmem:[%s1292 + $0x2c] sm:$0x1]
        %v8158 = vld [vmem:[%s1292 + $0x30] sm:$0xe]
        %v8159 = vld [vmem:[%s1292 + $0x34] sm:$0xf]
        %v8160 = vld [vmem:[%s1292 + $0x38] sm:$0x1]
        %v8161 = vld [vmem:[%s1292 + $0x3c] sm:$0xe]
        %v8162 = vld [vmem:[%s1292 + $0x40] sm:$0xf]
        %v8163 = vld [vmem:[%s1292 + $0x44] sm:$0x1]
        %v8164 = vld [vmem:[%s1292 + $0x48] sm:$0xe]
        %v8165 = vld [vmem:[%s1292 + $0x4c] sm:$0xf]
        %v8166 = vld [vmem:[%s1292 + $0x50] sm:$0x1]
        %v8167 = vld [vmem:[%s1292 + $0x54] sm:$0xe]
        %v8168 = vld [vmem:[%s1292 + $0x58] sm:$0xf]
        %v8169 = vld [vmem:[%s1292 + $0x5c] sm:$0x1]
        %v8170 = vld [vmem:[%s1292 + $0x60] sm:$0xe]
        %v8171 = vld [vmem:[%s1292 + $0x64] sm:$0xf]
        %v8172 = vld [vmem:[%s1292 + $0x68] sm:$0x1]
        %v8173 = vld [vmem:[%s1292 + $0x6c] sm:$0xe]
        %v8174 = vld [vmem:[%s1292 + $0x70] sm:$0xf]
        %v8175 = vld [vmem:[%s1292 + $0x74] sm:$0x1]
        %v8176 = vld [vmem:[%s1292 + $0x78] sm:$0xe]
        %v8177 = vld [vmem:[%s1292 + $0x7c] sm:$0xf]
        %v8178 = vld [vmem:[%s1292 + $0x80] sm:$0x1]
        %v8179 = vld [vmem:[%s1292 + $0x84] sm:$0xe]
        %v8180 = vld [vmem:[%s1292 + $0x88] sm:$0xf]
        %v8181 = vld [vmem:[%s1292 + $0x8c] sm:$0x1]
        %v8182 = vld [vmem:[%s1292 + $0x90] sm:$0xe]
        %v8183 = vld [vmem:[%s1292 + $0x94] sm:$0xf]
        %v8184 = vld [vmem:[%s1292 + $0x98] sm:$0x1]
        %v8185 = vld [vmem:[%s1292 + $0x9c] sm:$0xe]
        %v8186 = vld [vmem:[%s1292 + $0xa0] sm:$0xf]
        %v8187 = vld [vmem:[%s1292 + $0xa4] sm:$0x1]
        %v8188 = vld [vmem:[%s1292 + $0xa8] sm:$0xe]
        %v8189 = vld [vmem:[%s1292 + $0xac] sm:$0xf]
        %v8190 = vld [vmem:[%s1292 + $0xb0] sm:$0x1]
        %v8191 = vld [vmem:[%s1292 + $0xb4] sm:$0xe]
        %v8192 = vld [vmem:[%s1292 + $0xb8] sm:$0xf]
        %v8193 = vld [vmem:[%s1292 + $0xbc] sm:$0x1]
        %v8242 = vrot.slane %v8146, 5
        %v8243 = vrot.slane %v8242, 4
        %v8244 = vrot.slane %v8147, 5
        %v8245 = vsel %vm2071, %v8243, %v8244
        %v8246 = vrot.slane %v8244, 4
        %v8247 = vrot.slane %v8148, 5
        %v8248 = vsel %vm2071, %v8246, %v8247
        %v8249 = vrot.slane %v8149, 5
        %v8250 = vrot.slane %v8249, 4
        %v8251 = vrot.slane %v8150, 5
        %v8252 = vsel %vm2071, %v8250, %v8251
        %v8253 = vrot.slane %v8251, 4
        %v8254 = vrot.slane %v8151, 5
        %v8255 = vsel %vm2071, %v8253, %v8254
        %v8256 = vrot.slane %v8152, 5
        %v8257 = vrot.slane %v8256, 4
        %v8258 = vrot.slane %v8153, 5
        %v8259 = vsel %vm2071, %v8257, %v8258
        %v8260 = vrot.slane %v8258, 4
        %v8261 = vrot.slane %v8154, 5
        %v8262 = vsel %vm2071, %v8260, %v8261
        %v8263 = vrot.slane %v8155, 5
        %v8264 = vrot.slane %v8263, 4
        %v8265 = vrot.slane %v8156, 5
        %v8266 = vsel %vm2071, %v8264, %v8265
        %v8267 = vrot.slane %v8265, 4
        %v8268 = vrot.slane %v8157, 5
        %v8269 = vsel %vm2071, %v8267, %v8268
        %v8270 = vrot.slane %v8158, 5
        %v8271 = vrot.slane %v8270, 4
        %v8272 = vrot.slane %v8159, 5
        %v8273 = vsel %vm2071, %v8271, %v8272
        %v8274 = vrot.slane %v8272, 4
        %v8275 = vrot.slane %v8160, 5
        %v8276 = vsel %vm2071, %v8274, %v8275
        %v8277 = vrot.slane %v8161, 5
        %v8278 = vrot.slane %v8277, 4
        %v8279 = vrot.slane %v8162, 5
        %v8280 = vsel %vm2071, %v8278, %v8279
        %v8281 = vrot.slane %v8279, 4
        %v8282 = vrot.slane %v8163, 5
        %v8283 = vsel %vm2071, %v8281, %v8282
        %v8284 = vrot.slane %v8164, 5
        %v8285 = vrot.slane %v8284, 4
        %v8286 = vrot.slane %v8165, 5
        %v8287 = vsel %vm2071, %v8285, %v8286
        %v8288 = vrot.slane %v8286, 4
        %v8289 = vrot.slane %v8166, 5
        %v8290 = vsel %vm2071, %v8288, %v8289
        %v8291 = vrot.slane %v8167, 5
        %v8292 = vrot.slane %v8291, 4
        %v8293 = vrot.slane %v8168, 5
        %v8294 = vsel %vm2071, %v8292, %v8293
        %v8295 = vrot.slane %v8293, 4
        %v8296 = vrot.slane %v8169, 5
        %v8297 = vsel %vm2071, %v8295, %v8296
        %v8298 = vrot.slane %v8170, 5
        %v8299 = vrot.slane %v8298, 4
        %v8300 = vrot.slane %v8171, 5
        %v8301 = vsel %vm2071, %v8299, %v8300
        %v8302 = vrot.slane %v8300, 4
        %v8303 = vrot.slane %v8172, 5
        %v8304 = vsel %vm2071, %v8302, %v8303
        %v8305 = vrot.slane %v8173, 5
        %v8306 = vrot.slane %v8305, 4
        %v8307 = vrot.slane %v8174, 5
        %v8308 = vsel %vm2071, %v8306, %v8307
        %v8309 = vrot.slane %v8307, 4
        %v8310 = vrot.slane %v8175, 5
        %v8311 = vsel %vm2071, %v8309, %v8310
        %v8312 = vrot.slane %v8176, 5
        %v8313 = vrot.slane %v8312, 4
        %v8314 = vrot.slane %v8177, 5
        %v8315 = vsel %vm2071, %v8313, %v8314
        %v8316 = vrot.slane %v8314, 4
        %v8317 = vrot.slane %v8178, 5
        %v8318 = vsel %vm2071, %v8316, %v8317
        %v8319 = vrot.slane %v8179, 5
        %v8320 = vrot.slane %v8319, 4
        %v8321 = vrot.slane %v8180, 5
        %v8322 = vsel %vm2071, %v8320, %v8321
        %v8323 = vrot.slane %v8321, 4
        %v8324 = vrot.slane %v8181, 5
        %v8325 = vsel %vm2071, %v8323, %v8324
        %v8326 = vrot.slane %v8182, 5
        %v8327 = vrot.slane %v8326, 4
        %v8328 = vrot.slane %v8183, 5
        %v8329 = vsel %vm2071, %v8327, %v8328
        %v8330 = vrot.slane %v8328, 4
        %v8331 = vrot.slane %v8184, 5
        %v8332 = vsel %vm2071, %v8330, %v8331
        %v8333 = vrot.slane %v8185, 5
        %v8334 = vrot.slane %v8333, 4
        %v8335 = vrot.slane %v8186, 5
        %v8336 = vsel %vm2071, %v8334, %v8335
        %v8337 = vrot.slane %v8335, 4
        %v8338 = vrot.slane %v8187, 5
        %v8339 = vsel %vm2071, %v8337, %v8338
        %v8340 = vrot.slane %v8188, 5
        %v8341 = vrot.slane %v8340, 4
        %v8342 = vrot.slane %v8189, 5
        %v8343 = vsel %vm2071, %v8341, %v8342
        %v8344 = vrot.slane %v8342, 4
        %v8345 = vrot.slane %v8190, 5
        %v8346 = vsel %vm2071, %v8344, %v8345
        %v8347 = vrot.slane %v8191, 5
        %v8348 = vrot.slane %v8347, 4
        %v8349 = vrot.slane %v8192, 5
        %v8350 = vsel %vm2071, %v8348, %v8349
        %v8351 = vrot.slane %v8349, 4
        %v8352 = vrot.slane %v8193, 5
        %v8353 = vsel %vm2071, %v8351, %v8352
        %8386 = vst [vmem:[#allocation3 + $0x14] sm:$0xf] %v8245
        %8387 = vst [vmem:[#allocation3 + $0x38] sm:$0xf] %v8248
        %8388 = vst [vmem:[#allocation3 + $0x5c] sm:$0xf] %v8252
        %8389 = vst [vmem:[#allocation3 + $0x80] sm:$0xf] %v8255
        %8390 = vst [vmem:[#allocation3 + $0xa4] sm:$0xf] %v8259
        %8391 = vst [vmem:[#allocation3 + $0xc8] sm:$0xf] %v8262
        %8392 = vst [vmem:[#allocation3 + $0xec] sm:$0xf] %v8266
        %8393 = vst [vmem:[#allocation3 + $0x110] sm:$0xf] %v8269
        %8394 = vst [vmem:[#allocation3 + $0x134] sm:$0xf] %v8273
        %8395 = vst [vmem:[#allocation3 + $0x158] sm:$0xf] %v8276
        %8396 = vst [vmem:[#allocation3 + $0x17c] sm:$0xf] %v8280
        %8397 = vst [vmem:[#allocation3 + $0x1a0] sm:$0xf] %v8283
        %8398 = vst [vmem:[#allocation3 + $0x1c4] sm:$0xf] %v8287
        %8399 = vst [vmem:[#allocation3 + $0x1e8] sm:$0xf] %v8290
        %8400 = vst [vmem:[#allocation3 + $0x20c] sm:$0xf] %v8294
        %8401 = vst [vmem:[#allocation3 + $0x230] sm:$0xf] %v8297
        %8402 = vst [vmem:[#allocation3 + $0x254] sm:$0xf] %v8301
        %8403 = vst [vmem:[#allocation3 + $0x278] sm:$0xf] %v8304
        %8404 = vst [vmem:[#allocation3 + $0x29c] sm:$0xf] %v8308
        %8405 = vst [vmem:[#allocation3 + $0x2c0] sm:$0xf] %v8311
        %8406 = vst [vmem:[#allocation3 + $0x2e4] sm:$0xf] %v8315
        %8407 = vst [vmem:[#allocation3 + $0x308] sm:$0xf] %v8318
        %8408 = vst [vmem:[#allocation3 + $0x32c] sm:$0xf] %v8322
        %8409 = vst [vmem:[#allocation3 + $0x350] sm:$0xf] %v8325
        %8410 = vst [vmem:[#allocation3 + $0x374] sm:$0xf] %v8329
        %8411 = vst [vmem:[#allocation3 + $0x398] sm:$0xf] %v8332
        %8412 = vst [vmem:[#allocation3 + $0x3bc] sm:$0xf] %v8336
        %8413 = vst [vmem:[#allocation3 + $0x3e0] sm:$0xf] %v8339
        %8414 = vst [vmem:[#allocation3 + $0x404] sm:$0xf] %v8343
        %8415 = vst [vmem:[#allocation3 + $0x428] sm:$0xf] %v8346
        %8416 = vst [vmem:[#allocation3 + $0x44c] sm:$0xf] %v8350
        %8417 = vst [vmem:[#allocation3 + $0x470] sm:$0xf] %v8353
        %v8418 = vld [vmem:[%s3080] sm:$0xf]
        %v8419 = vld [vmem:[%s3080 + $0x4] sm:$0xf]
        %v8420 = vld [vmem:[%s3080 + $0xc] sm:$0xf]
        %v8421 = vld [vmem:[%s3080 + $0x10] sm:$0xf]
        %v8422 = vld [vmem:[%s3080 + $0x18] sm:$0xf]
        %v8423 = vld [vmem:[%s3080 + $0x1c] sm:$0xf]
        %v8424 = vld [vmem:[%s3080 + $0x24] sm:$0xf]
        %v8425 = vld [vmem:[%s3080 + $0x28] sm:$0xf]
        %v8426 = vld [vmem:[%s3080 + $0x30] sm:$0xf]
        %v8427 = vld [vmem:[%s3080 + $0x34] sm:$0xf]
        %v8428 = vld [vmem:[%s3080 + $0x3c] sm:$0xf]
        %v8429 = vld [vmem:[%s3080 + $0x40] sm:$0xf]
        %v8430 = vld [vmem:[%s3080 + $0x48] sm:$0xf]
        %v8431 = vld [vmem:[%s3080 + $0x4c] sm:$0xf]
        %v8432 = vld [vmem:[%s3080 + $0x54] sm:$0xf]
        %v8433 = vld [vmem:[%s3080 + $0x58] sm:$0xf]
        %v8434 = vld [vmem:[%s3080 + $0x60] sm:$0xf]
        %v8435 = vld [vmem:[%s3080 + $0x64] sm:$0xf]
        %v8436 = vld [vmem:[%s3080 + $0x6c] sm:$0xf]
        %v8437 = vld [vmem:[%s3080 + $0x70] sm:$0xf]
        %v8438 = vld [vmem:[%s3080 + $0x78] sm:$0xf]
        %v8439 = vld [vmem:[%s3080 + $0x7c] sm:$0xf]
        %v8440 = vld [vmem:[%s3080 + $0x84] sm:$0xf]
        %v8441 = vld [vmem:[%s3080 + $0x88] sm:$0xf]
        %v8442 = vld [vmem:[%s3080 + $0x90] sm:$0xf]
        %v8443 = vld [vmem:[%s3080 + $0x94] sm:$0xf]
        %v8444 = vld [vmem:[%s3080 + $0x9c] sm:$0xf]
        %v8445 = vld [vmem:[%s3080 + $0xa0] sm:$0xf]
        %v8446 = vld [vmem:[%s3080 + $0xa8] sm:$0xf]
        %v8447 = vld [vmem:[%s3080 + $0xac] sm:$0xf]
        %v8448 = vld [vmem:[%s3080 + $0xb4] sm:$0xf]
        %v8449 = vld [vmem:[%s3080 + $0xb8] sm:$0xf]
        %8450 = vst [vmem:[#allocation3 + $0x18] sm:$0xf] %v8418
        %8451 = vst [vmem:[#allocation3 + $0x3c] sm:$0xf] %v8419
        %8452 = vst [vmem:[#allocation3 + $0x60] sm:$0xf] %v8420
        %8453 = vst [vmem:[#allocation3 + $0x84] sm:$0xf] %v8421
        %8454 = vst [vmem:[#allocation3 + $0xa8] sm:$0xf] %v8422
        %8455 = vst [vmem:[#allocation3 + $0xcc] sm:$0xf] %v8423
        %8456 = vst [vmem:[#allocation3 + $0xf0] sm:$0xf] %v8424
        %8457 = vst [vmem:[#allocation3 + $0x114] sm:$0xf] %v8425
        %8458 = vst [vmem:[#allocation3 + $0x138] sm:$0xf] %v8426
        %8459 = vst [vmem:[#allocation3 + $0x15c] sm:$0xf] %v8427
        %8460 = vst [vmem:[#allocation3 + $0x180] sm:$0xf] %v8428
        %8461 = vst [vmem:[#allocation3 + $0x1a4] sm:$0xf] %v8429
        %8462 = vst [vmem:[#allocation3 + $0x1c8] sm:$0xf] %v8430
        %8463 = vst [vmem:[#allocation3 + $0x1ec] sm:$0xf] %v8431
        %8464 = vst [vmem:[#allocation3 + $0x210] sm:$0xf] %v8432
        %8465 = vst [vmem:[#allocation3 + $0x234] sm:$0xf] %v8433
        %8466 = vst [vmem:[#allocation3 + $0x258] sm:$0xf] %v8434
        %8467 = vst [vmem:[#allocation3 + $0x27c] sm:$0xf] %v8435
        %8468 = vst [vmem:[#allocation3 + $0x2a0] sm:$0xf] %v8436
        %8469 = vst [vmem:[#allocation3 + $0x2c4] sm:$0xf] %v8437
        %8470 = vst [vmem:[#allocation3 + $0x2e8] sm:$0xf] %v8438
        %8471 = vst [vmem:[#allocation3 + $0x30c] sm:$0xf] %v8439
        %8472 = vst [vmem:[#allocation3 + $0x330] sm:$0xf] %v8440
        %8473 = vst [vmem:[#allocation3 + $0x354] sm:$0xf] %v8441
        %8474 = vst [vmem:[#allocation3 + $0x378] sm:$0xf] %v8442
        %8475 = vst [vmem:[#allocation3 + $0x39c] sm:$0xf] %v8443
        %8476 = vst [vmem:[#allocation3 + $0x3c0] sm:$0xf] %v8444
        %8477 = vst [vmem:[#allocation3 + $0x3e4] sm:$0xf] %v8445
        %8478 = vst [vmem:[#allocation3 + $0x408] sm:$0xf] %v8446
        %8479 = vst [vmem:[#allocation3 + $0x42c] sm:$0xf] %v8447
        %8480 = vst [vmem:[#allocation3 + $0x450] sm:$0xf] %v8448
        %8481 = vst [vmem:[#allocation3 + $0x474] sm:$0xf] %v8449
        %v8482 = vld [vmem:[%s3080] sm:$0xf]
        %v8483 = vld [vmem:[%s3080 + $0x4] sm:$0xf]
        %v8484 = vld [vmem:[%s3080 + $0x8] sm:$0x1]
        %v8485 = vld [vmem:[%s3080 + $0xc] sm:$0xf]
        %v8486 = vld [vmem:[%s3080 + $0x10] sm:$0xf]
        %v8487 = vld [vmem:[%s3080 + $0x14] sm:$0x1]
        %v8488 = vld [vmem:[%s3080 + $0x18] sm:$0xf]
        %v8489 = vld [vmem:[%s3080 + $0x1c] sm:$0xf]
        %v8490 = vld [vmem:[%s3080 + $0x20] sm:$0x1]
        %v8491 = vld [vmem:[%s3080 + $0x24] sm:$0xf]
        %v8492 = vld [vmem:[%s3080 + $0x28] sm:$0xf]
        %v8493 = vld [vmem:[%s3080 + $0x2c] sm:$0x1]
        %v8494 = vld [vmem:[%s3080 + $0x30] sm:$0xf]
        %v8495 = vld [vmem:[%s3080 + $0x34] sm:$0xf]
        %v8496 = vld [vmem:[%s3080 + $0x38] sm:$0x1]
        %v8497 = vld [vmem:[%s3080 + $0x3c] sm:$0xf]
        %v8498 = vld [vmem:[%s3080 + $0x40] sm:$0xf]
        %v8499 = vld [vmem:[%s3080 + $0x44] sm:$0x1]
        %v8500 = vld [vmem:[%s3080 + $0x48] sm:$0xf]
        %v8501 = vld [vmem:[%s3080 + $0x4c] sm:$0xf]
        %v8502 = vld [vmem:[%s3080 + $0x50] sm:$0x1]
        %v8503 = vld [vmem:[%s3080 + $0x54] sm:$0xf]
        %v8504 = vld [vmem:[%s3080 + $0x58] sm:$0xf]
        %v8505 = vld [vmem:[%s3080 + $0x5c] sm:$0x1]
        %v8506 = vld [vmem:[%s3080 + $0x60] sm:$0xf]
        %v8507 = vld [vmem:[%s3080 + $0x64] sm:$0xf]
        %v8508 = vld [vmem:[%s3080 + $0x68] sm:$0x1]
        %v8509 = vld [vmem:[%s3080 + $0x6c] sm:$0xf]
        %v8510 = vld [vmem:[%s3080 + $0x70] sm:$0xf]
        %v8511 = vld [vmem:[%s3080 + $0x74] sm:$0x1]
        %v8512 = vld [vmem:[%s3080 + $0x78] sm:$0xf]
        %v8513 = vld [vmem:[%s3080 + $0x7c] sm:$0xf]
        %v8514 = vld [vmem:[%s3080 + $0x80] sm:$0x1]
        %v8515 = vld [vmem:[%s3080 + $0x84] sm:$0xf]
        %v8516 = vld [vmem:[%s3080 + $0x88] sm:$0xf]
        %v8517 = vld [vmem:[%s3080 + $0x8c] sm:$0x1]
        %v8518 = vld [vmem:[%s3080 + $0x90] sm:$0xf]
        %v8519 = vld [vmem:[%s3080 + $0x94] sm:$0xf]
        %v8520 = vld [vmem:[%s3080 + $0x98] sm:$0x1]
        %v8521 = vld [vmem:[%s3080 + $0x9c] sm:$0xf]
        %v8522 = vld [vmem:[%s3080 + $0xa0] sm:$0xf]
        %v8523 = vld [vmem:[%s3080 + $0xa4] sm:$0x1]
        %v8524 = vld [vmem:[%s3080 + $0xa8] sm:$0xf]
        %v8525 = vld [vmem:[%s3080 + $0xac] sm:$0xf]
        %v8526 = vld [vmem:[%s3080 + $0xb0] sm:$0x1]
        %v8527 = vld [vmem:[%s3080 + $0xb4] sm:$0xf]
        %v8528 = vld [vmem:[%s3080 + $0xb8] sm:$0xf]
        %v8529 = vld [vmem:[%s3080 + $0xbc] sm:$0x1]
        %v8531 = vshrl.u32 %v8482, 16
        %v8533 = vrot.slane %v8531, 4
        %v8534 = vshll.u32 %v8482, 16
        %v8536 = vrot.slane %v8534, 5
        %v8537 = vor.u32 %v8533, %v8536
        %v8538 = vrot.slane %v8537, 4
        %v8540 = vshll.u32 %v8483, 16
        %v8542 = vrot.slane %v8540, 5
        %v8543 = vsel %vm1524, %v8538, %v8542
        %v8544 = vshrl.u32 %v8483, 16
        %v8546 = vrot.slane %v8544, 4
        %v8547 = vor.u32 %v8546, %v8542
        %v8548 = vrot.slane %v8547, 4
        %v8550 = vshll.u32 %v8484, 16
        %v8552 = vrot.slane %v8550, 5
        %v8553 = vsel %vm1524, %v8548, %v8552
        %v8555 = vshrl.u32 %v8485, 16
        %v8557 = vrot.slane %v8555, 4
        %v8558 = vshll.u32 %v8485, 16
        %v8560 = vrot.slane %v8558, 5
        %v8561 = vor.u32 %v8557, %v8560
        %v8562 = vrot.slane %v8561, 4
        %v8564 = vshll.u32 %v8486, 16
        %v8566 = vrot.slane %v8564, 5
        %v8567 = vsel %vm1524, %v8562, %v8566
        %v8568 = vshrl.u32 %v8486, 16
        %v8570 = vrot.slane %v8568, 4
        %v8571 = vor.u32 %v8570, %v8566
        %v8572 = vrot.slane %v8571, 4
        %v8574 = vshll.u32 %v8487, 16
        %v8576 = vrot.slane %v8574, 5
        %v8577 = vsel %vm1524, %v8572, %v8576
        %v8579 = vshrl.u32 %v8488, 16
        %v8581 = vrot.slane %v8579, 4
        %v8582 = vshll.u32 %v8488, 16
        %v8584 = vrot.slane %v8582, 5
        %v8585 = vor.u32 %v8581, %v8584
        %v8586 = vrot.slane %v8585, 4
        %v8588 = vshll.u32 %v8489, 16
        %v8590 = vrot.slane %v8588, 5
        %v8591 = vsel %vm1524, %v8586, %v8590
        %v8592 = vshrl.u32 %v8489, 16
        %v8594 = vrot.slane %v8592, 4
        %v8595 = vor.u32 %v8594, %v8590
        %v8596 = vrot.slane %v8595, 4
        %v8598 = vshll.u32 %v8490, 16
        %v8600 = vrot.slane %v8598, 5
        %v8601 = vsel %vm1524, %v8596, %v8600
        %v8603 = vshrl.u32 %v8491, 16
        %v8605 = vrot.slane %v8603, 4
        %v8606 = vshll.u32 %v8491, 16
        %v8608 = vrot.slane %v8606, 5
        %v8609 = vor.u32 %v8605, %v8608
        %v8610 = vrot.slane %v8609, 4
        %v8612 = vshll.u32 %v8492, 16
        %v8614 = vrot.slane %v8612, 5
        %v8615 = vsel %vm1524, %v8610, %v8614
        %v8616 = vshrl.u32 %v8492, 16
        %v8618 = vrot.slane %v8616, 4
        %v8619 = vor.u32 %v8618, %v8614
        %v8620 = vrot.slane %v8619, 4
        %v8622 = vshll.u32 %v8493, 16
        %v8624 = vrot.slane %v8622, 5
        %v8625 = vsel %vm1524, %v8620, %v8624
        %v8627 = vshrl.u32 %v8494, 16
        %v8629 = vrot.slane %v8627, 4
        %v8630 = vshll.u32 %v8494, 16
        %v8632 = vrot.slane %v8630, 5
        %v8633 = vor.u32 %v8629, %v8632
        %v8634 = vrot.slane %v8633, 4
        %v8636 = vshll.u32 %v8495, 16
        %v8638 = vrot.slane %v8636, 5
        %v8639 = vsel %vm1524, %v8634, %v8638
        %v8640 = vshrl.u32 %v8495, 16
        %v8642 = vrot.slane %v8640, 4
        %v8643 = vor.u32 %v8642, %v8638
        %v8644 = vrot.slane %v8643, 4
        %v8646 = vshll.u32 %v8496, 16
        %v8648 = vrot.slane %v8646, 5
        %v8649 = vsel %vm1524, %v8644, %v8648
        %v8651 = vshrl.u32 %v8497, 16
        %v8653 = vrot.slane %v8651, 4
        %v8654 = vshll.u32 %v8497, 16
        %v8656 = vrot.slane %v8654, 5
        %v8657 = vor.u32 %v8653, %v8656
        %v8658 = vrot.slane %v8657, 4
        %v8660 = vshll.u32 %v8498, 16
        %v8662 = vrot.slane %v8660, 5
        %v8663 = vsel %vm1524, %v8658, %v8662
        %v8664 = vshrl.u32 %v8498, 16
        %v8666 = vrot.slane %v8664, 4
        %v8667 = vor.u32 %v8666, %v8662
        %v8668 = vrot.slane %v8667, 4
        %v8670 = vshll.u32 %v8499, 16
        %v8672 = vrot.slane %v8670, 5
        %v8673 = vsel %vm1524, %v8668, %v8672
        %v8675 = vshrl.u32 %v8500, 16
        %v8677 = vrot.slane %v8675, 4
        %v8678 = vshll.u32 %v8500, 16
        %v8680 = vrot.slane %v8678, 5
        %v8681 = vor.u32 %v8677, %v8680
        %v8682 = vrot.slane %v8681, 4
        %v8684 = vshll.u32 %v8501, 16
        %v8686 = vrot.slane %v8684, 5
        %v8687 = vsel %vm1524, %v8682, %v8686
        %v8688 = vshrl.u32 %v8501, 16
        %v8690 = vrot.slane %v8688, 4
        %v8691 = vor.u32 %v8690, %v8686
        %v8692 = vrot.slane %v8691, 4
        %v8694 = vshll.u32 %v8502, 16
        %v8696 = vrot.slane %v8694, 5
        %v8697 = vsel %vm1524, %v8692, %v8696
        %v8699 = vshrl.u32 %v8503, 16
        %v8701 = vrot.slane %v8699, 4
        %v8702 = vshll.u32 %v8503, 16
        %v8704 = vrot.slane %v8702, 5
        %v8705 = vor.u32 %v8701, %v8704
        %v8706 = vrot.slane %v8705, 4
        %v8708 = vshll.u32 %v8504, 16
        %v8710 = vrot.slane %v8708, 5
        %v8711 = vsel %vm1524, %v8706, %v8710
        %v8712 = vshrl.u32 %v8504, 16
        %v8714 = vrot.slane %v8712, 4
        %v8715 = vor.u32 %v8714, %v8710
        %v8716 = vrot.slane %v8715, 4
        %v8718 = vshll.u32 %v8505, 16
        %v8720 = vrot.slane %v8718, 5
        %v8721 = vsel %vm1524, %v8716, %v8720
        %v8723 = vshrl.u32 %v8506, 16
        %v8725 = vrot.slane %v8723, 4
        %v8726 = vshll.u32 %v8506, 16
        %v8728 = vrot.slane %v8726, 5
        %v8729 = vor.u32 %v8725, %v8728
        %v8730 = vrot.slane %v8729, 4
        %v8732 = vshll.u32 %v8507, 16
        %v8734 = vrot.slane %v8732, 5
        %v8735 = vsel %vm1524, %v8730, %v8734
        %v8736 = vshrl.u32 %v8507, 16
        %v8738 = vrot.slane %v8736, 4
        %v8739 = vor.u32 %v8738, %v8734
        %v8740 = vrot.slane %v8739, 4
        %v8742 = vshll.u32 %v8508, 16
        %v8744 = vrot.slane %v8742, 5
        %v8745 = vsel %vm1524, %v8740, %v8744
        %v8747 = vshrl.u32 %v8509, 16
        %v8749 = vrot.slane %v8747, 4
        %v8750 = vshll.u32 %v8509, 16
        %v8752 = vrot.slane %v8750, 5
        %v8753 = vor.u32 %v8749, %v8752
        %v8754 = vrot.slane %v8753, 4
        %v8756 = vshll.u32 %v8510, 16
        %v8758 = vrot.slane %v8756, 5
        %v8759 = vsel %vm1524, %v8754, %v8758
        %v8760 = vshrl.u32 %v8510, 16
        %v8762 = vrot.slane %v8760, 4
        %v8763 = vor.u32 %v8762, %v8758
        %v8764 = vrot.slane %v8763, 4
        %v8766 = vshll.u32 %v8511, 16
        %v8768 = vrot.slane %v8766, 5
        %v8769 = vsel %vm1524, %v8764, %v8768
        %v8771 = vshrl.u32 %v8512, 16
        %v8773 = vrot.slane %v8771, 4
        %v8774 = vshll.u32 %v8512, 16
        %v8776 = vrot.slane %v8774, 5
        %v8777 = vor.u32 %v8773, %v8776
        %v8778 = vrot.slane %v8777, 4
        %v8780 = vshll.u32 %v8513, 16
        %v8782 = vrot.slane %v8780, 5
        %v8783 = vsel %vm1524, %v8778, %v8782
        %v8784 = vshrl.u32 %v8513, 16
        %v8786 = vrot.slane %v8784, 4
        %v8787 = vor.u32 %v8786, %v8782
        %v8788 = vrot.slane %v8787, 4
        %v8790 = vshll.u32 %v8514, 16
        %v8792 = vrot.slane %v8790, 5
        %v8793 = vsel %vm1524, %v8788, %v8792
        %v8795 = vshrl.u32 %v8515, 16
        %v8797 = vrot.slane %v8795, 4
        %v8798 = vshll.u32 %v8515, 16
        %v8800 = vrot.slane %v8798, 5
        %v8801 = vor.u32 %v8797, %v8800
        %v8802 = vrot.slane %v8801, 4
        %v8804 = vshll.u32 %v8516, 16
        %v8806 = vrot.slane %v8804, 5
        %v8807 = vsel %vm1524, %v8802, %v8806
        %v8808 = vshrl.u32 %v8516, 16
        %v8810 = vrot.slane %v8808, 4
        %v8811 = vor.u32 %v8810, %v8806
        %v8812 = vrot.slane %v8811, 4
        %v8814 = vshll.u32 %v8517, 16
        %v8816 = vrot.slane %v8814, 5
        %v8817 = vsel %vm1524, %v8812, %v8816
        %v8819 = vshrl.u32 %v8518, 16
        %v8821 = vrot.slane %v8819, 4
        %v8822 = vshll.u32 %v8518, 16
        %v8824 = vrot.slane %v8822, 5
        %v8825 = vor.u32 %v8821, %v8824
        %v8826 = vrot.slane %v8825, 4
        %v8828 = vshll.u32 %v8519, 16
        %v8830 = vrot.slane %v8828, 5
        %v8831 = vsel %vm1524, %v8826, %v8830
        %v8832 = vshrl.u32 %v8519, 16
        %v8834 = vrot.slane %v8832, 4
        %v8835 = vor.u32 %v8834, %v8830
        %v8836 = vrot.slane %v8835, 4
        %v8838 = vshll.u32 %v8520, 16
        %v8840 = vrot.slane %v8838, 5
        %v8841 = vsel %vm1524, %v8836, %v8840
        %v8843 = vshrl.u32 %v8521, 16
        %v8845 = vrot.slane %v8843, 4
        %v8846 = vshll.u32 %v8521, 16
        %v8848 = vrot.slane %v8846, 5
        %v8849 = vor.u32 %v8845, %v8848
        %v8850 = vrot.slane %v8849, 4
        %v8852 = vshll.u32 %v8522, 16
        %v8854 = vrot.slane %v8852, 5
        %v8855 = vsel %vm1524, %v8850, %v8854
        %v8856 = vshrl.u32 %v8522, 16
        %v8858 = vrot.slane %v8856, 4
        %v8859 = vor.u32 %v8858, %v8854
        %v8860 = vrot.slane %v8859, 4
        %v8862 = vshll.u32 %v8523, 16
        %v8864 = vrot.slane %v8862, 5
        %v8865 = vsel %vm1524, %v8860, %v8864
        %v8867 = vshrl.u32 %v8524, 16
        %v8869 = vrot.slane %v8867, 4
        %v8870 = vshll.u32 %v8524, 16
        %v8872 = vrot.slane %v8870, 5
        %v8873 = vor.u32 %v8869, %v8872
        %v8874 = vrot.slane %v8873, 4
        %v8876 = vshll.u32 %v8525, 16
        %v8878 = vrot.slane %v8876, 5
        %v8879 = vsel %vm1524, %v8874, %v8878
        %v8880 = vshrl.u32 %v8525, 16
        %v8882 = vrot.slane %v8880, 4
        %v8883 = vor.u32 %v8882, %v8878
        %v8884 = vrot.slane %v8883, 4
        %v8886 = vshll.u32 %v8526, 16
        %v8888 = vrot.slane %v8886, 5
        %v8889 = vsel %vm1524, %v8884, %v8888
        %v8891 = vshrl.u32 %v8527, 16
        %v8893 = vrot.slane %v8891, 4
        %v8894 = vshll.u32 %v8527, 16
        %v8896 = vrot.slane %v8894, 5
        %v8897 = vor.u32 %v8893, %v8896
        %v8898 = vrot.slane %v8897, 4
        %v8900 = vshll.u32 %v8528, 16
        %v8902 = vrot.slane %v8900, 5
        %v8903 = vsel %vm1524, %v8898, %v8902
        %v8904 = vshrl.u32 %v8528, 16
        %v8906 = vrot.slane %v8904, 4
        %v8907 = vor.u32 %v8906, %v8902
        %v8908 = vrot.slane %v8907, 4
        %v8910 = vshll.u32 %v8529, 16
        %v8912 = vrot.slane %v8910, 5
        %v8913 = vsel %vm1524, %v8908, %v8912
        %8946 = vst [vmem:[#allocation3 + $0x1c] sm:$0xf] %v8543
        %8947 = vst [vmem:[#allocation3 + $0x40] sm:$0xf] %v8553
        %8948 = vst [vmem:[#allocation3 + $0x64] sm:$0xf] %v8567
        %8949 = vst [vmem:[#allocation3 + $0x88] sm:$0xf] %v8577
        %8950 = vst [vmem:[#allocation3 + $0xac] sm:$0xf] %v8591
        %8951 = vst [vmem:[#allocation3 + $0xd0] sm:$0xf] %v8601
        %8952 = vst [vmem:[#allocation3 + $0xf4] sm:$0xf] %v8615
        %8953 = vst [vmem:[#allocation3 + $0x118] sm:$0xf] %v8625
        %8954 = vst [vmem:[#allocation3 + $0x13c] sm:$0xf] %v8639
        %8955 = vst [vmem:[#allocation3 + $0x160] sm:$0xf] %v8649
        %8956 = vst [vmem:[#allocation3 + $0x184] sm:$0xf] %v8663
        %8957 = vst [vmem:[#allocation3 + $0x1a8] sm:$0xf] %v8673
        %8958 = vst [vmem:[#allocation3 + $0x1cc] sm:$0xf] %v8687
        %8959 = vst [vmem:[#allocation3 + $0x1f0] sm:$0xf] %v8697
        %8960 = vst [vmem:[#allocation3 + $0x214] sm:$0xf] %v8711
        %8961 = vst [vmem:[#allocation3 + $0x238] sm:$0xf] %v8721
        %8962 = vst [vmem:[#allocation3 + $0x25c] sm:$0xf] %v8735
        %8963 = vst [vmem:[#allocation3 + $0x280] sm:$0xf] %v8745
        %8964 = vst [vmem:[#allocation3 + $0x2a4] sm:$0xf] %v8759
        %8965 = vst [vmem:[#allocation3 + $0x2c8] sm:$0xf] %v8769
        %8966 = vst [vmem:[#allocation3 + $0x2ec] sm:$0xf] %v8783
        %8967 = vst [vmem:[#allocation3 + $0x310] sm:$0xf] %v8793
        %8968 = vst [vmem:[#allocation3 + $0x334] sm:$0xf] %v8807
        %8969 = vst [vmem:[#allocation3 + $0x358] sm:$0xf] %v8817
        %8970 = vst [vmem:[#allocation3 + $0x37c] sm:$0xf] %v8831
        %8971 = vst [vmem:[#allocation3 + $0x3a0] sm:$0xf] %v8841
        %8972 = vst [vmem:[#allocation3 + $0x3c4] sm:$0xf] %v8855
        %8973 = vst [vmem:[#allocation3 + $0x3e8] sm:$0xf] %v8865
        %8974 = vst [vmem:[#allocation3 + $0x40c] sm:$0xf] %v8879
        %8975 = vst [vmem:[#allocation3 + $0x430] sm:$0xf] %v8889
        %8976 = vst [vmem:[#allocation3 + $0x454] sm:$0xf] %v8903
        %8977 = vst [vmem:[#allocation3 + $0x478] sm:$0xf] %v8913
        %v8978 = vld [vmem:[%s3080] sm:$0xe]
        %v8979 = vld [vmem:[%s3080 + $0x4] sm:$0xf]
        %v8980 = vld [vmem:[%s3080 + $0x8] sm:$0x1]
        %v8981 = vld [vmem:[%s3080 + $0xc] sm:$0xe]
        %v8982 = vld [vmem:[%s3080 + $0x10] sm:$0xf]
        %v8983 = vld [vmem:[%s3080 + $0x14] sm:$0x1]
        %v8984 = vld [vmem:[%s3080 + $0x18] sm:$0xe]
        %v8985 = vld [vmem:[%s3080 + $0x1c] sm:$0xf]
        %v8986 = vld [vmem:[%s3080 + $0x20] sm:$0x1]
        %v8987 = vld [vmem:[%s3080 + $0x24] sm:$0xe]
        %v8988 = vld [vmem:[%s3080 + $0x28] sm:$0xf]
        %v8989 = vld [vmem:[%s3080 + $0x2c] sm:$0x1]
        %v8990 = vld [vmem:[%s3080 + $0x30] sm:$0xe]
        %v8991 = vld [vmem:[%s3080 + $0x34] sm:$0xf]
        %v8992 = vld [vmem:[%s3080 + $0x38] sm:$0x1]
        %v8993 = vld [vmem:[%s3080 + $0x3c] sm:$0xe]
        %v8994 = vld [vmem:[%s3080 + $0x40] sm:$0xf]
        %v8995 = vld [vmem:[%s3080 + $0x44] sm:$0x1]
        %v8996 = vld [vmem:[%s3080 + $0x48] sm:$0xe]
        %v8997 = vld [vmem:[%s3080 + $0x4c] sm:$0xf]
        %v8998 = vld [vmem:[%s3080 + $0x50] sm:$0x1]
        %v8999 = vld [vmem:[%s3080 + $0x54] sm:$0xe]
        %v9000 = vld [vmem:[%s3080 + $0x58] sm:$0xf]
        %v9001 = vld [vmem:[%s3080 + $0x5c] sm:$0x1]
        %v9002 = vld [vmem:[%s3080 + $0x60] sm:$0xe]
        %v9003 = vld [vmem:[%s3080 + $0x64] sm:$0xf]
        %v9004 = vld [vmem:[%s3080 + $0x68] sm:$0x1]
        %v9005 = vld [vmem:[%s3080 + $0x6c] sm:$0xe]
        %v9006 = vld [vmem:[%s3080 + $0x70] sm:$0xf]
        %v9007 = vld [vmem:[%s3080 + $0x74] sm:$0x1]
        %v9008 = vld [vmem:[%s3080 + $0x78] sm:$0xe]
        %v9009 = vld [vmem:[%s3080 + $0x7c] sm:$0xf]
        %v9010 = vld [vmem:[%s3080 + $0x80] sm:$0x1]
        %v9011 = vld [vmem:[%s3080 + $0x84] sm:$0xe]
        %v9012 = vld [vmem:[%s3080 + $0x88] sm:$0xf]
        %v9013 = vld [vmem:[%s3080 + $0x8c] sm:$0x1]
        %v9014 = vld [vmem:[%s3080 + $0x90] sm:$0xe]
        %v9015 = vld [vmem:[%s3080 + $0x94] sm:$0xf]
        %v9016 = vld [vmem:[%s3080 + $0x98] sm:$0x1]
        %v9017 = vld [vmem:[%s3080 + $0x9c] sm:$0xe]
        %v9018 = vld [vmem:[%s3080 + $0xa0] sm:$0xf]
        %v9019 = vld [vmem:[%s3080 + $0xa4] sm:$0x1]
        %v9020 = vld [vmem:[%s3080 + $0xa8] sm:$0xe]
        %v9021 = vld [vmem:[%s3080 + $0xac] sm:$0xf]
        %v9022 = vld [vmem:[%s3080 + $0xb0] sm:$0x1]
        %v9023 = vld [vmem:[%s3080 + $0xb4] sm:$0xe]
        %v9024 = vld [vmem:[%s3080 + $0xb8] sm:$0xf]
        %v9025 = vld [vmem:[%s3080 + $0xbc] sm:$0x1]
        %v9074 = vrot.slane %v8978, 5
        %v9075 = vrot.slane %v9074, 4
        %v9076 = vrot.slane %v8979, 5
        %v9077 = vsel %vm2071, %v9075, %v9076
        %v9078 = vrot.slane %v9076, 4
        %v9079 = vrot.slane %v8980, 5
        %v9080 = vsel %vm2071, %v9078, %v9079
        %v9081 = vrot.slane %v8981, 5
        %v9082 = vrot.slane %v9081, 4
        %v9083 = vrot.slane %v8982, 5
        %v9084 = vsel %vm2071, %v9082, %v9083
        %v9085 = vrot.slane %v9083, 4
        %v9086 = vrot.slane %v8983, 5
        %v9087 = vsel %vm2071, %v9085, %v9086
        %v9088 = vrot.slane %v8984, 5
        %v9089 = vrot.slane %v9088, 4
        %v9090 = vrot.slane %v8985, 5
        %v9091 = vsel %vm2071, %v9089, %v9090
        %v9092 = vrot.slane %v9090, 4
        %v9093 = vrot.slane %v8986, 5
        %v9094 = vsel %vm2071, %v9092, %v9093
        %v9095 = vrot.slane %v8987, 5
        %v9096 = vrot.slane %v9095, 4
        %v9097 = vrot.slane %v8988, 5
        %v9098 = vsel %vm2071, %v9096, %v9097
        %v9099 = vrot.slane %v9097, 4
        %v9100 = vrot.slane %v8989, 5
        %v9101 = vsel %vm2071, %v9099, %v9100
        %v9102 = vrot.slane %v8990, 5
        %v9103 = vrot.slane %v9102, 4
        %v9104 = vrot.slane %v8991, 5
        %v9105 = vsel %vm2071, %v9103, %v9104
        %v9106 = vrot.slane %v9104, 4
        %v9107 = vrot.slane %v8992, 5
        %v9108 = vsel %vm2071, %v9106, %v9107
        %v9109 = vrot.slane %v8993, 5
        %v9110 = vrot.slane %v9109, 4
        %v9111 = vrot.slane %v8994, 5
        %v9112 = vsel %vm2071, %v9110, %v9111
        %v9113 = vrot.slane %v9111, 4
        %v9114 = vrot.slane %v8995, 5
        %v9115 = vsel %vm2071, %v9113, %v9114
        %v9116 = vrot.slane %v8996, 5
        %v9117 = vrot.slane %v9116, 4
        %v9118 = vrot.slane %v8997, 5
        %v9119 = vsel %vm2071, %v9117, %v9118
        %v9120 = vrot.slane %v9118, 4
        %v9121 = vrot.slane %v8998, 5
        %v9122 = vsel %vm2071, %v9120, %v9121
        %v9123 = vrot.slane %v8999, 5
        %v9124 = vrot.slane %v9123, 4
        %v9125 = vrot.slane %v9000, 5
        %v9126 = vsel %vm2071, %v9124, %v9125
        %v9127 = vrot.slane %v9125, 4
        %v9128 = vrot.slane %v9001, 5
        %v9129 = vsel %vm2071, %v9127, %v9128
        %v9130 = vrot.slane %v9002, 5
        %v9131 = vrot.slane %v9130, 4
        %v9132 = vrot.slane %v9003, 5
        %v9133 = vsel %vm2071, %v9131, %v9132
        %v9134 = vrot.slane %v9132, 4
        %v9135 = vrot.slane %v9004, 5
        %v9136 = vsel %vm2071, %v9134, %v9135
        %v9137 = vrot.slane %v9005, 5
        %v9138 = vrot.slane %v9137, 4
        %v9139 = vrot.slane %v9006, 5
        %v9140 = vsel %vm2071, %v9138, %v9139
        %v9141 = vrot.slane %v9139, 4
        %v9142 = vrot.slane %v9007, 5
        %v9143 = vsel %vm2071, %v9141, %v9142
        %v9144 = vrot.slane %v9008, 5
        %v9145 = vrot.slane %v9144, 4
        %v9146 = vrot.slane %v9009, 5
        %v9147 = vsel %vm2071, %v9145, %v9146
        %v9148 = vrot.slane %v9146, 4
        %v9149 = vrot.slane %v9010, 5
        %v9150 = vsel %vm2071, %v9148, %v9149
        %v9151 = vrot.slane %v9011, 5
        %v9152 = vrot.slane %v9151, 4
        %v9153 = vrot.slane %v9012, 5
        %v9154 = vsel %vm2071, %v9152, %v9153
        %v9155 = vrot.slane %v9153, 4
        %v9156 = vrot.slane %v9013, 5
        %v9157 = vsel %vm2071, %v9155, %v9156
        %v9158 = vrot.slane %v9014, 5
        %v9159 = vrot.slane %v9158, 4
        %v9160 = vrot.slane %v9015, 5
        %v9161 = vsel %vm2071, %v9159, %v9160
        %v9162 = vrot.slane %v9160, 4
        %v9163 = vrot.slane %v9016, 5
        %v9164 = vsel %vm2071, %v9162, %v9163
        %v9165 = vrot.slane %v9017, 5
        %v9166 = vrot.slane %v9165, 4
        %v9167 = vrot.slane %v9018, 5
        %v9168 = vsel %vm2071, %v9166, %v9167
        %v9169 = vrot.slane %v9167, 4
        %v9170 = vrot.slane %v9019, 5
        %v9171 = vsel %vm2071, %v9169, %v9170
        %v9172 = vrot.slane %v9020, 5
        %v9173 = vrot.slane %v9172, 4
        %v9174 = vrot.slane %v9021, 5
        %v9175 = vsel %vm2071, %v9173, %v9174
        %v9176 = vrot.slane %v9174, 4
        %v9177 = vrot.slane %v9022, 5
        %v9178 = vsel %vm2071, %v9176, %v9177
        %v9179 = vrot.slane %v9023, 5
        %v9180 = vrot.slane %v9179, 4
        %v9181 = vrot.slane %v9024, 5
        %v9182 = vsel %vm2071, %v9180, %v9181
        %v9183 = vrot.slane %v9181, 4
        %v9184 = vrot.slane %v9025, 5
        %v9185 = vsel %vm2071, %v9183, %v9184
        %9218 = vst [vmem:[#allocation3 + $0x20] sm:$0xf] %v9077
        %9219 = vst [vmem:[#allocation3 + $0x44] sm:$0xf] %v9080
        %9220 = vst [vmem:[#allocation3 + $0x68] sm:$0xf] %v9084
        %9221 = vst [vmem:[#allocation3 + $0x8c] sm:$0xf] %v9087
        %9222 = vst [vmem:[#allocation3 + $0xb0] sm:$0xf] %v9091
        %9223 = vst [vmem:[#allocation3 + $0xd4] sm:$0xf] %v9094
        %9224 = vst [vmem:[#allocation3 + $0xf8] sm:$0xf] %v9098
        %9225 = vst [vmem:[#allocation3 + $0x11c] sm:$0xf] %v9101
        %9226 = vst [vmem:[#allocation3 + $0x140] sm:$0xf] %v9105
        %9227 = vst [vmem:[#allocation3 + $0x164] sm:$0xf] %v9108
        %9228 = vst [vmem:[#allocation3 + $0x188] sm:$0xf] %v9112
        %9229 = vst [vmem:[#allocation3 + $0x1ac] sm:$0xf] %v9115
        %9230 = vst [vmem:[#allocation3 + $0x1d0] sm:$0xf] %v9119
        %9231 = vst [vmem:[#allocation3 + $0x1f4] sm:$0xf] %v9122
        %9232 = vst [vmem:[#allocation3 + $0x218] sm:$0xf] %v9126
        %9233 = vst [vmem:[#allocation3 + $0x23c] sm:$0xf] %v9129
        %9234 = vst [vmem:[#allocation3 + $0x260] sm:$0xf] %v9133
        %9235 = vst [vmem:[#allocation3 + $0x284] sm:$0xf] %v9136
        %9236 = vst [vmem:[#allocation3 + $0x2a8] sm:$0xf] %v9140
        %9237 = vst [vmem:[#allocation3 + $0x2cc] sm:$0xf] %v9143
        %9238 = vst [vmem:[#allocation3 + $0x2f0] sm:$0xf] %v9147
        %9239 = vst [vmem:[#allocation3 + $0x314] sm:$0xf] %v9150
        %9240 = vst [vmem:[#allocation3 + $0x338] sm:$0xf] %v9154
        %9241 = vst [vmem:[#allocation3 + $0x35c] sm:$0xf] %v9157
        %9242 = vst [vmem:[#allocation3 + $0x380] sm:$0xf] %v9161
        %9243 = vst [vmem:[#allocation3 + $0x3a4] sm:$0xf] %v9164
        %9244 = vst [vmem:[#allocation3 + $0x3c8] sm:$0xf] %v9168
        %9245 = vst [vmem:[#allocation3 + $0x3ec] sm:$0xf] %v9171
        %9246 = vst [vmem:[#allocation3 + $0x410] sm:$0xf] %v9175
        %9247 = vst [vmem:[#allocation3 + $0x434] sm:$0xf] %v9178
        %9248 = vst [vmem:[#allocation3 + $0x458] sm:$0xf] %v9182
        %9249 = vst [vmem:[#allocation3 + $0x47c] sm:$0xf] %v9185
        %v9250 = vld [vmem:[#allocation3] sm:$0xff]
        %v9251 = vld [vmem:[#allocation3 + $0x8] sm:$0xff]
        %v9252 = vld [vmem:[#allocation3 + $0x10] sm:$0xff]
        %v9253 = vld [vmem:[#allocation3 + $0x18] sm:$0xff]
        %v9254 = vld [vmem:[#allocation3 + $0x20] sm:$0xf]
        %v9255 = vld [vmem:[#allocation3 + $0x24] sm:$0xff]
        %v9256 = vld [vmem:[#allocation3 + $0x2c] sm:$0xff]
        %v9257 = vld [vmem:[#allocation3 + $0x34] sm:$0xff]
        %v9258 = vld [vmem:[#allocation3 + $0x3c] sm:$0xff]
        %v9259 = vld [vmem:[#allocation3 + $0x44] sm:$0xf]
        %v9260 = vld [vmem:[#allocation3 + $0x48] sm:$0xff]
        %v9261 = vld [vmem:[#allocation3 + $0x50] sm:$0xff]
        %v9262 = vld [vmem:[#allocation3 + $0x58] sm:$0xff]
        %v9263 = vld [vmem:[#allocation3 + $0x60] sm:$0xff]
        %v9264 = vld [vmem:[#allocation3 + $0x68] sm:$0xf]
        %v9265 = vld [vmem:[#allocation3 + $0x6c] sm:$0xff]
        %v9266 = vld [vmem:[#allocation3 + $0x74] sm:$0xff]
        %v9267 = vld [vmem:[#allocation3 + $0x7c] sm:$0xff]
        %v9268 = vld [vmem:[#allocation3 + $0x84] sm:$0xff]
        %v9269 = vld [vmem:[#allocation3 + $0x8c] sm:$0xf]
        %v9270 = vld [vmem:[#allocation3 + $0x90] sm:$0xff]
        %v9271 = vld [vmem:[#allocation3 + $0x98] sm:$0xff]
        %v9272 = vld [vmem:[#allocation3 + $0xa0] sm:$0xff]
        %v9273 = vld [vmem:[#allocation3 + $0xa8] sm:$0xff]
        %v9274 = vld [vmem:[#allocation3 + $0xb0] sm:$0xf]
        %v9275 = vld [vmem:[#allocation3 + $0xb4] sm:$0xff]
        %v9276 = vld [vmem:[#allocation3 + $0xbc] sm:$0xff]
        %v9277 = vld [vmem:[#allocation3 + $0xc4] sm:$0xff]
        %v9278 = vld [vmem:[#allocation3 + $0xcc] sm:$0xff]
        %v9279 = vld [vmem:[#allocation3 + $0xd4] sm:$0xf]
        %v9280 = vld [vmem:[#allocation3 + $0xd8] sm:$0xff]
        %v9281 = vld [vmem:[#allocation3 + $0xe0] sm:$0xff]
        %v9282 = vld [vmem:[#allocation3 + $0xe8] sm:$0xff]
        %v9283 = vld [vmem:[#allocation3 + $0xf0] sm:$0xff]
        %v9284 = vld [vmem:[#allocation3 + $0xf8] sm:$0xf]
        %v9285 = vld [vmem:[#allocation3 + $0xfc] sm:$0xff]
        %v9286 = vld [vmem:[#allocation3 + $0x104] sm:$0xff]
        %v9287 = vld [vmem:[#allocation3 + $0x10c] sm:$0xff]
        %v9288 = vld [vmem:[#allocation3 + $0x114] sm:$0xff]
        %v9289 = vld [vmem:[#allocation3 + $0x11c] sm:$0xf]
        %v9290 = vld [vmem:[#allocation3 + $0x120] sm:$0xff]
        %v9291 = vld [vmem:[#allocation3 + $0x128] sm:$0xff]
        %v9292 = vld [vmem:[#allocation3 + $0x130] sm:$0xff]
        %v9293 = vld [vmem:[#allocation3 + $0x138] sm:$0xff]
        %v9294 = vld [vmem:[#allocation3 + $0x140] sm:$0xf]
        %v9295 = vld [vmem:[#allocation3 + $0x144] sm:$0xff]
        %v9296 = vld [vmem:[#allocation3 + $0x14c] sm:$0xff]
        %v9297 = vld [vmem:[#allocation3 + $0x154] sm:$0xff]
        %v9298 = vld [vmem:[#allocation3 + $0x15c] sm:$0xff]
        %v9299 = vld [vmem:[#allocation3 + $0x164] sm:$0xf]
        %v9300 = vld [vmem:[#allocation3 + $0x168] sm:$0xff]
        %v9301 = vld [vmem:[#allocation3 + $0x170] sm:$0xff]
        %v9302 = vld [vmem:[#allocation3 + $0x178] sm:$0xff]
        %v9303 = vld [vmem:[#allocation3 + $0x180] sm:$0xff]
        %v9304 = vld [vmem:[#allocation3 + $0x188] sm:$0xf]
        %v9305 = vld [vmem:[#allocation3 + $0x18c] sm:$0xff]
        %v9306 = vld [vmem:[#allocation3 + $0x194] sm:$0xff]
        %v9307 = vld [vmem:[#allocation3 + $0x19c] sm:$0xff]
        %v9308 = vld [vmem:[#allocation3 + $0x1a4] sm:$0xff]
        %v9309 = vld [vmem:[#allocation3 + $0x1ac] sm:$0xf]
        %v9310 = vld [vmem:[#allocation3 + $0x1b0] sm:$0xff]
        %v9311 = vld [vmem:[#allocation3 + $0x1b8] sm:$0xff]
        %v9312 = vld [vmem:[#allocation3 + $0x1c0] sm:$0xff]
        %v9313 = vld [vmem:[#allocation3 + $0x1c8] sm:$0xff]
        %v9314 = vld [vmem:[#allocation3 + $0x1d0] sm:$0xf]
        %v9315 = vld [vmem:[#allocation3 + $0x1d4] sm:$0xff]
        %v9316 = vld [vmem:[#allocation3 + $0x1dc] sm:$0xff]
        %v9317 = vld [vmem:[#allocation3 + $0x1e4] sm:$0xff]
        %v9318 = vld [vmem:[#allocation3 + $0x1ec] sm:$0xff]
        %v9319 = vld [vmem:[#allocation3 + $0x1f4] sm:$0xf]
        %v9320 = vld [vmem:[#allocation3 + $0x1f8] sm:$0xff]
        %v9321 = vld [vmem:[#allocation3 + $0x200] sm:$0xff]
        %v9322 = vld [vmem:[#allocation3 + $0x208] sm:$0xff]
        %v9323 = vld [vmem:[#allocation3 + $0x210] sm:$0xff]
        %v9324 = vld [vmem:[#allocation3 + $0x218] sm:$0xf]
        %v9325 = vld [vmem:[#allocation3 + $0x21c] sm:$0xff]
        %v9326 = vld [vmem:[#allocation3 + $0x224] sm:$0xff]
        %v9327 = vld [vmem:[#allocation3 + $0x22c] sm:$0xff]
        %v9328 = vld [vmem:[#allocation3 + $0x234] sm:$0xff]
        %v9329 = vld [vmem:[#allocation3 + $0x23c] sm:$0xf]
        %v9330 = vld [vmem:[#allocation3 + $0x240] sm:$0xff]
        %v9331 = vld [vmem:[#allocation3 + $0x248] sm:$0xff]
        %v9332 = vld [vmem:[#allocation3 + $0x250] sm:$0xff]
        %v9333 = vld [vmem:[#allocation3 + $0x258] sm:$0xff]
        %v9334 = vld [vmem:[#allocation3 + $0x260] sm:$0xf]
        %v9335 = vld [vmem:[#allocation3 + $0x264] sm:$0xff]
        %v9336 = vld [vmem:[#allocation3 + $0x26c] sm:$0xff]
        %v9337 = vld [vmem:[#allocation3 + $0x274] sm:$0xff]
        %v9338 = vld [vmem:[#allocation3 + $0x27c] sm:$0xff]
        %v9339 = vld [vmem:[#allocation3 + $0x284] sm:$0xf]
        %v9340 = vld [vmem:[#allocation3 + $0x288] sm:$0xff]
        %v9341 = vld [vmem:[#allocation3 + $0x290] sm:$0xff]
        %v9342 = vld [vmem:[#allocation3 + $0x298] sm:$0xff]
        %v9343 = vld [vmem:[#allocation3 + $0x2a0] sm:$0xff]
        %v9344 = vld [vmem:[#allocation3 + $0x2a8] sm:$0xf]
        %v9345 = vld [vmem:[#allocation3 + $0x2ac] sm:$0xff]
        %v9346 = vld [vmem:[#allocation3 + $0x2b4] sm:$0xff]
        %v9347 = vld [vmem:[#allocation3 + $0x2bc] sm:$0xff]
        %v9348 = vld [vmem:[#allocation3 + $0x2c4] sm:$0xff]
        %v9349 = vld [vmem:[#allocation3 + $0x2cc] sm:$0xf]
        %v9350 = vld [vmem:[#allocation3 + $0x2d0] sm:$0xff]
        %v9351 = vld [vmem:[#allocation3 + $0x2d8] sm:$0xff]
        %v9352 = vld [vmem:[#allocation3 + $0x2e0] sm:$0xff]
        %v9353 = vld [vmem:[#allocation3 + $0x2e8] sm:$0xff]
        %v9354 = vld [vmem:[#allocation3 + $0x2f0] sm:$0xf]
        %v9355 = vld [vmem:[#allocation3 + $0x2f4] sm:$0xff]
        %v9356 = vld [vmem:[#allocation3 + $0x2fc] sm:$0xff]
        %v9357 = vld [vmem:[#allocation3 + $0x304] sm:$0xff]
        %v9358 = vld [vmem:[#allocation3 + $0x30c] sm:$0xff]
        %v9359 = vld [vmem:[#allocation3 + $0x314] sm:$0xf]
        %v9360 = vld [vmem:[#allocation3 + $0x318] sm:$0xff]
        %v9361 = vld [vmem:[#allocation3 + $0x320] sm:$0xff]
        %v9362 = vld [vmem:[#allocation3 + $0x328] sm:$0xff]
        %v9363 = vld [vmem:[#allocation3 + $0x330] sm:$0xff]
        %v9364 = vld [vmem:[#allocation3 + $0x338] sm:$0xf]
        %v9365 = vld [vmem:[#allocation3 + $0x33c] sm:$0xff]
        %v9366 = vld [vmem:[#allocation3 + $0x344] sm:$0xff]
        %v9367 = vld [vmem:[#allocation3 + $0x34c] sm:$0xff]
        %v9368 = vld [vmem:[#allocation3 + $0x354] sm:$0xff]
        %v9369 = vld [vmem:[#allocation3 + $0x35c] sm:$0xf]
        %v9370 = vld [vmem:[#allocation3 + $0x360] sm:$0xff]
        %v9371 = vld [vmem:[#allocation3 + $0x368] sm:$0xff]
        %v9372 = vld [vmem:[#allocation3 + $0x370] sm:$0xff]
        %v9373 = vld [vmem:[#allocation3 + $0x378] sm:$0xff]
        %v9374 = vld [vmem:[#allocation3 + $0x380] sm:$0xf]
        %v9375 = vld [vmem:[#allocation3 + $0x384] sm:$0xff]
        %v9376 = vld [vmem:[#allocation3 + $0x38c] sm:$0xff]
        %v9377 = vld [vmem:[#allocation3 + $0x394] sm:$0xff]
        %v9378 = vld [vmem:[#allocation3 + $0x39c] sm:$0xff]
        %v9379 = vld [vmem:[#allocation3 + $0x3a4] sm:$0xf]
        %v9380 = vld [vmem:[#allocation3 + $0x3a8] sm:$0xff]
        %v9381 = vld [vmem:[#allocation3 + $0x3b0] sm:$0xff]
        %v9382 = vld [vmem:[#allocation3 + $0x3b8] sm:$0xff]
        %v9383 = vld [vmem:[#allocation3 + $0x3c0] sm:$0xff]
        %v9384 = vld [vmem:[#allocation3 + $0x3c8] sm:$0xf]
        %v9385 = vld [vmem:[#allocation3 + $0x3cc] sm:$0xff]
        %v9386 = vld [vmem:[#allocation3 + $0x3d4] sm:$0xff]
        %v9387 = vld [vmem:[#allocation3 + $0x3dc] sm:$0xff]
        %v9388 = vld [vmem:[#allocation3 + $0x3e4] sm:$0xff]
        %v9389 = vld [vmem:[#allocation3 + $0x3ec] sm:$0xf]
        %v9390 = vld [vmem:[#allocation3 + $0x3f0] sm:$0xff]
        %v9391 = vld [vmem:[#allocation3 + $0x3f8] sm:$0xff]
        %v9392 = vld [vmem:[#allocation3 + $0x400] sm:$0xff]
        %v9393 = vld [vmem:[#allocation3 + $0x408] sm:$0xff]
        %v9394 = vld [vmem:[#allocation3 + $0x410] sm:$0xf]
        %v9395 = vld [vmem:[#allocation3 + $0x414] sm:$0xff]
        %v9396 = vld [vmem:[#allocation3 + $0x41c] sm:$0xff]
        %v9397 = vld [vmem:[#allocation3 + $0x424] sm:$0xff]
        %v9398 = vld [vmem:[#allocation3 + $0x42c] sm:$0xff]
        %v9399 = vld [vmem:[#allocation3 + $0x434] sm:$0xf]
        %v9400 = vld [vmem:[#allocation3 + $0x438] sm:$0xff]
        %v9401 = vld [vmem:[#allocation3 + $0x440] sm:$0xff]
        %v9402 = vld [vmem:[#allocation3 + $0x448] sm:$0xff]
        %v9403 = vld [vmem:[#allocation3 + $0x450] sm:$0xff]
        %v9404 = vld [vmem:[#allocation3 + $0x458] sm:$0xf]
        %v9405 = vld [vmem:[#allocation3 + $0x45c] sm:$0xff]
        %v9406 = vld [vmem:[#allocation3 + $0x464] sm:$0xff]
        %v9407 = vld [vmem:[#allocation3 + $0x46c] sm:$0xff]
        %v9408 = vld [vmem:[#allocation3 + $0x474] sm:$0xff]
        %v9409 = vld [vmem:[#allocation3 + $0x47c] sm:$0xf]
        %v9410 = vld [vmem:[%s7] sm:$0xf]
        %v9411 = vld [vmem:[%s7 + $0x4] sm:$0xf]
        %v9412 = vld [vmem:[%s7 + $0x8] sm:$0xf]
        %v9413 = vld [vmem:[%s7 + $0xc] sm:$0xf]
        %v9414 = vld [vmem:[%s7 + $0x10] sm:$0xf]
        %v9415 = vld [vmem:[%s7 + $0x14] sm:$0xf]
        %v9416 = vld [vmem:[%s7 + $0x18] sm:$0xf]
        %v9417 = vld [vmem:[%s7 + $0x1c] sm:$0xf]
        %v9418 = vld [vmem:[%s7 + $0x20] sm:$0xf]
        %v9419 = vld [vmem:[%s7 + $0x24] sm:$0xf]
        %v9420 = vld [vmem:[%s7 + $0x28] sm:$0xf]
        %v9421 = vld [vmem:[%s7 + $0x2c] sm:$0xf]
        %v9422 = vld [vmem:[%s7 + $0x30] sm:$0xf]
        %v9423 = vld [vmem:[%s7 + $0x34] sm:$0xf]
        %v9424 = vld [vmem:[%s7 + $0x38] sm:$0xf]
        %v9425 = vld [vmem:[%s7 + $0x3c] sm:$0xf]
        %v9426 = vld [vmem:[%s7 + $0x40] sm:$0xf]
        %v9427 = vld [vmem:[%s7 + $0x44] sm:$0xf]
        %v9428 = vld [vmem:[%s7 + $0x48] sm:$0xf]
        %v9429 = vld [vmem:[%s7 + $0x4c] sm:$0xf]
        %v9430 = vld [vmem:[%s7 + $0x50] sm:$0xf]
        %v9431 = vld [vmem:[%s7 + $0x54] sm:$0xf]
        %v9432 = vld [vmem:[%s7 + $0x58] sm:$0xf]
        %v9433 = vld [vmem:[%s7 + $0x5c] sm:$0xf]
        %v9434 = vld [vmem:[%s7 + $0x60] sm:$0xf]
        %v9435 = vld [vmem:[%s7 + $0x64] sm:$0xf]
        %v9436 = vld [vmem:[%s7 + $0x68] sm:$0xf]
        %v9437 = vld [vmem:[%s7 + $0x6c] sm:$0xf]
        %v9438 = vld [vmem:[%s7 + $0x70] sm:$0xf]
        %v9439 = vld [vmem:[%s7 + $0x74] sm:$0xf]
        %v9440 = vld [vmem:[%s7 + $0x78] sm:$0xf]
        %v9441 = vld [vmem:[%s7 + $0x7c] sm:$0xf]
        %v9442 = vld [vmem:[%s7 + $0x80] sm:$0xf]
        %v9443 = vld [vmem:[%s7 + $0x84] sm:$0xf]
        %v9444 = vld [vmem:[%s7 + $0x88] sm:$0xf]
        %v9445 = vld [vmem:[%s7 + $0x8c] sm:$0xf]
        %v9446 = vld [vmem:[%s7 + $0x90] sm:$0xf]
        %v9447 = vld [vmem:[%s7 + $0x94] sm:$0xf]
        %v9448 = vld [vmem:[%s7 + $0x98] sm:$0xf]
        %v9449 = vld [vmem:[%s7 + $0x9c] sm:$0xf]
        %v9450 = vld [vmem:[%s7 + $0xa0] sm:$0xf]
        %v9451 = vld [vmem:[%s7 + $0xa4] sm:$0xf]
        %v9452 = vld [vmem:[%s7 + $0xa8] sm:$0xf]
        %v9453 = vld [vmem:[%s7 + $0xac] sm:$0xf]
        %v9454 = vld [vmem:[%s7 + $0xb0] sm:$0xf]
        %v9455 = vld [vmem:[%s7 + $0xb4] sm:$0xf]
        %v9456 = vld [vmem:[%s7 + $0xb8] sm:$0xf]
        %v9457 = vld [vmem:[%s7 + $0xbc] sm:$0xf]
        %v9458 = vld [vmem:[%s7 + $0xc0] sm:$0xf]
        %v9459 = vld [vmem:[%s7 + $0xc4] sm:$0xf]
        %v9460 = vld [vmem:[%s7 + $0xc8] sm:$0xf]
        %v9461 = vld [vmem:[%s7 + $0xcc] sm:$0xf]
        %v9462 = vld [vmem:[%s7 + $0xd0] sm:$0xf]
        %v9463 = vld [vmem:[%s7 + $0xd4] sm:$0xf]
        %v9464 = vld [vmem:[%s7 + $0xd8] sm:$0xf]
        %v9465 = vld [vmem:[%s7 + $0xdc] sm:$0xf]
        %v9466 = vld [vmem:[%s7 + $0xe0] sm:$0xf]
        %v9467 = vld [vmem:[%s7 + $0xe4] sm:$0xf]
        %v9468 = vld [vmem:[%s7 + $0xe8] sm:$0xf]
        %v9469 = vld [vmem:[%s7 + $0xec] sm:$0xf]
        %v9470 = vld [vmem:[%s7 + $0xf0] sm:$0xf]
        %v9471 = vld [vmem:[%s7 + $0xf4] sm:$0xf]
        %v9472 = vld [vmem:[%s7 + $0xf8] sm:$0xf]
        %v9473 = vld [vmem:[%s7 + $0xfc] sm:$0xf]
        %v9474 = vld [vmem:[%s7 + $0x100] sm:$0xf]
        %v9475 = vld [vmem:[%s7 + $0x104] sm:$0xf]
        %v9476 = vld [vmem:[%s7 + $0x108] sm:$0xf]
        %v9477 = vld [vmem:[%s7 + $0x10c] sm:$0xf]
        %v9478 = vld [vmem:[%s7 + $0x110] sm:$0xf]
        %v9479 = vld [vmem:[%s7 + $0x114] sm:$0xf]
        %v9480 = vld [vmem:[%s7 + $0x118] sm:$0xf]
        %v9481 = vld [vmem:[%s7 + $0x11c] sm:$0xf]
        %v9482 = vld [vmem:[%s7 + $0x120] sm:$0xf]
        %v9483 = vld [vmem:[%s7 + $0x124] sm:$0xf]
        %v9484 = vld [vmem:[%s7 + $0x128] sm:$0xf]
        %v9485 = vld [vmem:[%s7 + $0x12c] sm:$0xf]
        %v9486 = vld [vmem:[%s7 + $0x130] sm:$0xf]
        %v9487 = vld [vmem:[%s7 + $0x134] sm:$0xf]
        %v9488 = vld [vmem:[%s7 + $0x138] sm:$0xf]
        %v9489 = vld [vmem:[%s7 + $0x13c] sm:$0xf]
        %v9490 = vld [vmem:[%s7 + $0x140] sm:$0xf]
        %v9491 = vld [vmem:[%s7 + $0x144] sm:$0xf]
        %v9492 = vld [vmem:[%s7 + $0x148] sm:$0xf]
        %v9493 = vld [vmem:[%s7 + $0x14c] sm:$0xf]
        %v9494 = vld [vmem:[%s7 + $0x150] sm:$0xf]
        %v9495 = vld [vmem:[%s7 + $0x154] sm:$0xf]
        %v9496 = vld [vmem:[%s7 + $0x158] sm:$0xf]
        %v9497 = vld [vmem:[%s7 + $0x15c] sm:$0xf]
        %v9498 = vld [vmem:[%s7 + $0x160] sm:$0xf]
        %v9499 = vld [vmem:[%s7 + $0x164] sm:$0xf]
        %v9500 = vld [vmem:[%s7 + $0x168] sm:$0xf]
        %v9501 = vld [vmem:[%s7 + $0x16c] sm:$0xf]
        %v9502 = vld [vmem:[%s7 + $0x170] sm:$0xf]
        %v9503 = vld [vmem:[%s7 + $0x174] sm:$0xf]
        %v9504 = vld [vmem:[%s7 + $0x178] sm:$0xf]
        %v9505 = vld [vmem:[%s7 + $0x17c] sm:$0xf]
        %v9506 = vld [vmem:[%s7 + $0x180] sm:$0xf]
        %v9507 = vld [vmem:[%s7 + $0x184] sm:$0xf]
        %v9508 = vld [vmem:[%s7 + $0x188] sm:$0xf]
        %v9509 = vld [vmem:[%s7 + $0x18c] sm:$0xf]
        %v9510 = vld [vmem:[%s7 + $0x190] sm:$0xf]
        %v9511 = vld [vmem:[%s7 + $0x194] sm:$0xf]
        %v9512 = vld [vmem:[%s7 + $0x198] sm:$0xf]
        %v9513 = vld [vmem:[%s7 + $0x19c] sm:$0xf]
        %v9514 = vld [vmem:[%s7 + $0x1a0] sm:$0xf]
        %v9515 = vld [vmem:[%s7 + $0x1a4] sm:$0xf]
        %v9516 = vld [vmem:[%s7 + $0x1a8] sm:$0xf]
        %v9517 = vld [vmem:[%s7 + $0x1ac] sm:$0xf]
        %v9518 = vld [vmem:[%s7 + $0x1b0] sm:$0xf]
        %v9519 = vld [vmem:[%s7 + $0x1b4] sm:$0xf]
        %v9520 = vld [vmem:[%s7 + $0x1b8] sm:$0xf]
        %v9521 = vld [vmem:[%s7 + $0x1bc] sm:$0xf]
        %v9522 = vld [vmem:[%s7 + $0x1c0] sm:$0xf]
        %v9523 = vld [vmem:[%s7 + $0x1c4] sm:$0xf]
        %v9524 = vld [vmem:[%s7 + $0x1c8] sm:$0xf]
        %v9525 = vld [vmem:[%s7 + $0x1cc] sm:$0xf]
        %v9526 = vld [vmem:[%s7 + $0x1d0] sm:$0xf]
        %v9527 = vld [vmem:[%s7 + $0x1d4] sm:$0xf]
        %v9528 = vld [vmem:[%s7 + $0x1d8] sm:$0xf]
        %v9529 = vld [vmem:[%s7 + $0x1dc] sm:$0xf]
        %v9530 = vld [vmem:[%s7 + $0x1e0] sm:$0xf]
        %v9531 = vld [vmem:[%s7 + $0x1e4] sm:$0xf]
        %v9532 = vld [vmem:[%s7 + $0x1e8] sm:$0xf]
        %v9533 = vld [vmem:[%s7 + $0x1ec] sm:$0xf]
        %v9534 = vld [vmem:[%s7 + $0x1f0] sm:$0xf]
        %v9535 = vld [vmem:[%s7 + $0x1f4] sm:$0xf]
        %v9536 = vld [vmem:[%s7 + $0x1f8] sm:$0xf]
        %v9537 = vld [vmem:[%s7 + $0x1fc] sm:$0xf]
        %v9538 = vld [vmem:[%s7 + $0x200] sm:$0xf]
        %v9539 = vld [vmem:[%s7 + $0x204] sm:$0xf]
        %v9540 = vld [vmem:[%s7 + $0x208] sm:$0xf]
        %v9541 = vld [vmem:[%s7 + $0x20c] sm:$0xf]
        %v9542 = vld [vmem:[%s7 + $0x210] sm:$0xf]
        %v9543 = vld [vmem:[%s7 + $0x214] sm:$0xf]
        %v9544 = vld [vmem:[%s7 + $0x218] sm:$0xf]
        %v9545 = vld [vmem:[%s7 + $0x21c] sm:$0xf]
        %v9546 = vld [vmem:[%s7 + $0x220] sm:$0xf]
        %v9547 = vld [vmem:[%s7 + $0x224] sm:$0xf]
        %v9548 = vld [vmem:[%s7 + $0x228] sm:$0xf]
        %v9549 = vld [vmem:[%s7 + $0x22c] sm:$0xf]
        %v9550 = vld [vmem:[%s7 + $0x230] sm:$0xf]
        %v9551 = vld [vmem:[%s7 + $0x234] sm:$0xf]
        %v9552 = vld [vmem:[%s7 + $0x238] sm:$0xf]
        %v9553 = vld [vmem:[%s7 + $0x23c] sm:$0xf]
        %v9714 = vunpack.c.l.b16 %v9250
        %v9715 = vunpack.c.h.b16 %v9250
        %v9716 = vunpack.c.l.b16 %v9251
        %v9717 = vunpack.c.h.b16 %v9251
        %v9718 = vunpack.c.l.b16 %v9252
        %v9719 = vunpack.c.h.b16 %v9252
        %v9720 = vunpack.c.l.b16 %v9253
        %v9721 = vunpack.c.h.b16 %v9253
        %v9722 = vunpack.c.l.b16 %v9254
        %v9723 = vunpack.c.l.b16 %v9255
        %v9724 = vunpack.c.h.b16 %v9255
        %v9725 = vunpack.c.l.b16 %v9256
        %v9726 = vunpack.c.h.b16 %v9256
        %v9727 = vunpack.c.l.b16 %v9257
        %v9728 = vunpack.c.h.b16 %v9257
        %v9729 = vunpack.c.l.b16 %v9258
        %v9730 = vunpack.c.h.b16 %v9258
        %v9731 = vunpack.c.l.b16 %v9259
        %v9732 = vunpack.c.l.b16 %v9260
        %v9733 = vunpack.c.h.b16 %v9260
        %v9734 = vunpack.c.l.b16 %v9261
        %v9735 = vunpack.c.h.b16 %v9261
        %v9736 = vunpack.c.l.b16 %v9262
        %v9737 = vunpack.c.h.b16 %v9262
        %v9738 = vunpack.c.l.b16 %v9263
        %v9739 = vunpack.c.h.b16 %v9263
        %v9740 = vunpack.c.l.b16 %v9264
        %v9741 = vunpack.c.l.b16 %v9265
        %v9742 = vunpack.c.h.b16 %v9265
        %v9743 = vunpack.c.l.b16 %v9266
        %v9744 = vunpack.c.h.b16 %v9266
        %v9745 = vunpack.c.l.b16 %v9267
        %v9746 = vunpack.c.h.b16 %v9267
        %v9747 = vunpack.c.l.b16 %v9268
        %v9748 = vunpack.c.h.b16 %v9268
        %v9749 = vunpack.c.l.b16 %v9269
        %v9750 = vunpack.c.l.b16 %v9270
        %v9751 = vunpack.c.h.b16 %v9270
        %v9752 = vunpack.c.l.b16 %v9271
        %v9753 = vunpack.c.h.b16 %v9271
        %v9754 = vunpack.c.l.b16 %v9272
        %v9755 = vunpack.c.h.b16 %v9272
        %v9756 = vunpack.c.l.b16 %v9273
        %v9757 = vunpack.c.h.b16 %v9273
        %v9758 = vunpack.c.l.b16 %v9274
        %v9759 = vunpack.c.l.b16 %v9275
        %v9760 = vunpack.c.h.b16 %v9275
        %v9761 = vunpack.c.l.b16 %v9276
        %v9762 = vunpack.c.h.b16 %v9276
        %v9763 = vunpack.c.l.b16 %v9277
        %v9764 = vunpack.c.h.b16 %v9277
        %v9765 = vunpack.c.l.b16 %v9278
        %v9766 = vunpack.c.h.b16 %v9278
        %v9767 = vunpack.c.l.b16 %v9279
        %v9768 = vunpack.c.l.b16 %v9280
        %v9769 = vunpack.c.h.b16 %v9280
        %v9770 = vunpack.c.l.b16 %v9281
        %v9771 = vunpack.c.h.b16 %v9281
        %v9772 = vunpack.c.l.b16 %v9282
        %v9773 = vunpack.c.h.b16 %v9282
        %v9774 = vunpack.c.l.b16 %v9283
        %v9775 = vunpack.c.h.b16 %v9283
        %v9776 = vunpack.c.l.b16 %v9284
        %v9777 = vunpack.c.l.b16 %v9285
        %v9778 = vunpack.c.h.b16 %v9285
        %v9779 = vunpack.c.l.b16 %v9286
        %v9780 = vunpack.c.h.b16 %v9286
        %v9781 = vunpack.c.l.b16 %v9287
        %v9782 = vunpack.c.h.b16 %v9287
        %v9783 = vunpack.c.l.b16 %v9288
        %v9784 = vunpack.c.h.b16 %v9288
        %v9785 = vunpack.c.l.b16 %v9289
        %v9786 = vunpack.c.l.b16 %v9290
        %v9787 = vunpack.c.h.b16 %v9290
        %v9788 = vunpack.c.l.b16 %v9291
        %v9789 = vunpack.c.h.b16 %v9291
        %v9790 = vunpack.c.l.b16 %v9292
        %v9791 = vunpack.c.h.b16 %v9292
        %v9792 = vunpack.c.l.b16 %v9293
        %v9793 = vunpack.c.h.b16 %v9293
        %v9794 = vunpack.c.l.b16 %v9294
        %v9795 = vunpack.c.l.b16 %v9295
        %v9796 = vunpack.c.h.b16 %v9295
        %v9797 = vunpack.c.l.b16 %v9296
        %v9798 = vunpack.c.h.b16 %v9296
        %v9799 = vunpack.c.l.b16 %v9297
        %v9800 = vunpack.c.h.b16 %v9297
        %v9801 = vunpack.c.l.b16 %v9298
        %v9802 = vunpack.c.h.b16 %v9298
        %v9803 = vunpack.c.l.b16 %v9299
        %v9804 = vunpack.c.l.b16 %v9300
        %v9805 = vunpack.c.h.b16 %v9300
        %v9806 = vunpack.c.l.b16 %v9301
        %v9807 = vunpack.c.h.b16 %v9301
        %v9808 = vunpack.c.l.b16 %v9302
        %v9809 = vunpack.c.h.b16 %v9302
        %v9810 = vunpack.c.l.b16 %v9303
        %v9811 = vunpack.c.h.b16 %v9303
        %v9812 = vunpack.c.l.b16 %v9304
        %v9813 = vunpack.c.l.b16 %v9305
        %v9814 = vunpack.c.h.b16 %v9305
        %v9815 = vunpack.c.l.b16 %v9306
        %v9816 = vunpack.c.h.b16 %v9306
        %v9817 = vunpack.c.l.b16 %v9307
        %v9818 = vunpack.c.h.b16 %v9307
        %v9819 = vunpack.c.l.b16 %v9308
        %v9820 = vunpack.c.h.b16 %v9308
        %v9821 = vunpack.c.l.b16 %v9309
        %v9822 = vunpack.c.l.b16 %v9310
        %v9823 = vunpack.c.h.b16 %v9310
        %v9824 = vunpack.c.l.b16 %v9311
        %v9825 = vunpack.c.h.b16 %v9311
        %v9826 = vunpack.c.l.b16 %v9312
        %v9827 = vunpack.c.h.b16 %v9312
        %v9828 = vunpack.c.l.b16 %v9313
        %v9829 = vunpack.c.h.b16 %v9313
        %v9830 = vunpack.c.l.b16 %v9314
        %v9831 = vunpack.c.l.b16 %v9315
        %v9832 = vunpack.c.h.b16 %v9315
        %v9833 = vunpack.c.l.b16 %v9316
        %v9834 = vunpack.c.h.b16 %v9316
        %v9835 = vunpack.c.l.b16 %v9317
        %v9836 = vunpack.c.h.b16 %v9317
        %v9837 = vunpack.c.l.b16 %v9318
        %v9838 = vunpack.c.h.b16 %v9318
        %v9839 = vunpack.c.l.b16 %v9319
        %v9840 = vunpack.c.l.b16 %v9320
        %v9841 = vunpack.c.h.b16 %v9320
        %v9842 = vunpack.c.l.b16 %v9321
        %v9843 = vunpack.c.h.b16 %v9321
        %v9844 = vunpack.c.l.b16 %v9322
        %v9845 = vunpack.c.h.b16 %v9322
        %v9846 = vunpack.c.l.b16 %v9323
        %v9847 = vunpack.c.h.b16 %v9323
        %v9848 = vunpack.c.l.b16 %v9324
        %v9849 = vunpack.c.l.b16 %v9325
        %v9850 = vunpack.c.h.b16 %v9325
        %v9851 = vunpack.c.l.b16 %v9326
        %v9852 = vunpack.c.h.b16 %v9326
        %v9853 = vunpack.c.l.b16 %v9327
        %v9854 = vunpack.c.h.b16 %v9327
        %v9855 = vunpack.c.l.b16 %v9328
        %v9856 = vunpack.c.h.b16 %v9328
        %v9857 = vunpack.c.l.b16 %v9329
        %v9858 = vunpack.c.l.b16 %v9330
        %v9859 = vunpack.c.h.b16 %v9330
        %v9860 = vunpack.c.l.b16 %v9331
        %v9861 = vunpack.c.h.b16 %v9331
        %v9862 = vunpack.c.l.b16 %v9332
        %v9863 = vunpack.c.h.b16 %v9332
        %v9864 = vunpack.c.l.b16 %v9333
        %v9865 = vunpack.c.h.b16 %v9333
        %v9866 = vunpack.c.l.b16 %v9334
        %v9867 = vunpack.c.l.b16 %v9335
        %v9868 = vunpack.c.h.b16 %v9335
        %v9869 = vunpack.c.l.b16 %v9336
        %v9870 = vunpack.c.h.b16 %v9336
        %v9871 = vunpack.c.l.b16 %v9337
        %v9872 = vunpack.c.h.b16 %v9337
        %v9873 = vunpack.c.l.b16 %v9338
        %v9874 = vunpack.c.h.b16 %v9338
        %v9875 = vunpack.c.l.b16 %v9339
        %v9876 = vunpack.c.l.b16 %v9340
        %v9877 = vunpack.c.h.b16 %v9340
        %v9878 = vunpack.c.l.b16 %v9341
        %v9879 = vunpack.c.h.b16 %v9341
        %v9880 = vunpack.c.l.b16 %v9342
        %v9881 = vunpack.c.h.b16 %v9342
        %v9882 = vunpack.c.l.b16 %v9343
        %v9883 = vunpack.c.h.b16 %v9343
        %v9884 = vunpack.c.l.b16 %v9344
        %v9885 = vunpack.c.l.b16 %v9345
        %v9886 = vunpack.c.h.b16 %v9345
        %v9887 = vunpack.c.l.b16 %v9346
        %v9888 = vunpack.c.h.b16 %v9346
        %v9889 = vunpack.c.l.b16 %v9347
        %v9890 = vunpack.c.h.b16 %v9347
        %v9891 = vunpack.c.l.b16 %v9348
        %v9892 = vunpack.c.h.b16 %v9348
        %v9893 = vunpack.c.l.b16 %v9349
        %v9894 = vunpack.c.l.b16 %v9350
        %v9895 = vunpack.c.h.b16 %v9350
        %v9896 = vunpack.c.l.b16 %v9351
        %v9897 = vunpack.c.h.b16 %v9351
        %v9898 = vunpack.c.l.b16 %v9352
        %v9899 = vunpack.c.h.b16 %v9352
        %v9900 = vunpack.c.l.b16 %v9353
        %v9901 = vunpack.c.h.b16 %v9353
        %v9902 = vunpack.c.l.b16 %v9354
        %v9903 = vunpack.c.l.b16 %v9355
        %v9904 = vunpack.c.h.b16 %v9355
        %v9905 = vunpack.c.l.b16 %v9356
        %v9906 = vunpack.c.h.b16 %v9356
        %v9907 = vunpack.c.l.b16 %v9357
        %v9908 = vunpack.c.h.b16 %v9357
        %v9909 = vunpack.c.l.b16 %v9358
        %v9910 = vunpack.c.h.b16 %v9358
        %v9911 = vunpack.c.l.b16 %v9359
        %v9912 = vunpack.c.l.b16 %v9360
        %v9913 = vunpack.c.h.b16 %v9360
        %v9914 = vunpack.c.l.b16 %v9361
        %v9915 = vunpack.c.h.b16 %v9361
        %v9916 = vunpack.c.l.b16 %v9362
        %v9917 = vunpack.c.h.b16 %v9362
        %v9918 = vunpack.c.l.b16 %v9363
        %v9919 = vunpack.c.h.b16 %v9363
        %v9920 = vunpack.c.l.b16 %v9364
        %v9921 = vunpack.c.l.b16 %v9365
        %v9922 = vunpack.c.h.b16 %v9365
        %v9923 = vunpack.c.l.b16 %v9366
        %v9924 = vunpack.c.h.b16 %v9366
        %v9925 = vunpack.c.l.b16 %v9367
        %v9926 = vunpack.c.h.b16 %v9367
        %v9927 = vunpack.c.l.b16 %v9368
        %v9928 = vunpack.c.h.b16 %v9368
        %v9929 = vunpack.c.l.b16 %v9369
        %v9930 = vunpack.c.l.b16 %v9370
        %v9931 = vunpack.c.h.b16 %v9370
        %v9932 = vunpack.c.l.b16 %v9371
        %v9933 = vunpack.c.h.b16 %v9371
        %v9934 = vunpack.c.l.b16 %v9372
        %v9935 = vunpack.c.h.b16 %v9372
        %v9936 = vunpack.c.l.b16 %v9373
        %v9937 = vunpack.c.h.b16 %v9373
        %v9938 = vunpack.c.l.b16 %v9374
        %v9939 = vunpack.c.l.b16 %v9375
        %v9940 = vunpack.c.h.b16 %v9375
        %v9941 = vunpack.c.l.b16 %v9376
        %v9942 = vunpack.c.h.b16 %v9376
        %v9943 = vunpack.c.l.b16 %v9377
        %v9944 = vunpack.c.h.b16 %v9377
        %v9945 = vunpack.c.l.b16 %v9378
        %v9946 = vunpack.c.h.b16 %v9378
        %v9947 = vunpack.c.l.b16 %v9379
        %v9948 = vunpack.c.l.b16 %v9380
        %v9949 = vunpack.c.h.b16 %v9380
        %v9950 = vunpack.c.l.b16 %v9381
        %v9951 = vunpack.c.h.b16 %v9381
        %v9952 = vunpack.c.l.b16 %v9382
        %v9953 = vunpack.c.h.b16 %v9382
        %v9954 = vunpack.c.l.b16 %v9383
        %v9955 = vunpack.c.h.b16 %v9383
        %v9956 = vunpack.c.l.b16 %v9384
        %v9957 = vunpack.c.l.b16 %v9385
        %v9958 = vunpack.c.h.b16 %v9385
        %v9959 = vunpack.c.l.b16 %v9386
        %v9960 = vunpack.c.h.b16 %v9386
        %v9961 = vunpack.c.l.b16 %v9387
        %v9962 = vunpack.c.h.b16 %v9387
        %v9963 = vunpack.c.l.b16 %v9388
        %v9964 = vunpack.c.h.b16 %v9388
        %v9965 = vunpack.c.l.b16 %v9389
        %v9966 = vunpack.c.l.b16 %v9390
        %v9967 = vunpack.c.h.b16 %v9390
        %v9968 = vunpack.c.l.b16 %v9391
        %v9969 = vunpack.c.h.b16 %v9391
        %v9970 = vunpack.c.l.b16 %v9392
        %v9971 = vunpack.c.h.b16 %v9392
        %v9972 = vunpack.c.l.b16 %v9393
        %v9973 = vunpack.c.h.b16 %v9393
        %v9974 = vunpack.c.l.b16 %v9394
        %v9975 = vunpack.c.l.b16 %v9395
        %v9976 = vunpack.c.h.b16 %v9395
        %v9977 = vunpack.c.l.b16 %v9396
        %v9978 = vunpack.c.h.b16 %v9396
        %v9979 = vunpack.c.l.b16 %v9397
        %v9980 = vunpack.c.h.b16 %v9397
        %v9981 = vunpack.c.l.b16 %v9398
        %v9982 = vunpack.c.h.b16 %v9398
        %v9983 = vunpack.c.l.b16 %v9399
        %v9984 = vunpack.c.l.b16 %v9400
        %v9985 = vunpack.c.h.b16 %v9400
        %v9986 = vunpack.c.l.b16 %v9401
        %v9987 = vunpack.c.h.b16 %v9401
        %v9988 = vunpack.c.l.b16 %v9402
        %v9989 = vunpack.c.h.b16 %v9402
        %v9990 = vunpack.c.l.b16 %v9403
        %v9991 = vunpack.c.h.b16 %v9403
        %v9992 = vunpack.c.l.b16 %v9404
        %v9993 = vunpack.c.l.b16 %v9405
        %v9994 = vunpack.c.h.b16 %v9405
        %v9995 = vunpack.c.l.b16 %v9406
        %v9996 = vunpack.c.h.b16 %v9406
        %v9997 = vunpack.c.l.b16 %v9407
        %v9998 = vunpack.c.h.b16 %v9407
        %v9999 = vunpack.c.l.b16 %v9408
        %v10000 = vunpack.c.h.b16 %v9408
        %v10001 = vunpack.c.l.b16 %v9409
        %v10002 = vpack.c.b16 %v9723, %v9714
        %v10003 = vpack.c.b16 %v9724, %v9715
        %v10004 = vpack.c.b16 %v9725, %v9716
        %v10005 = vpack.c.b16 %v9726, %v9717
        %v10006 = vpack.c.b16 %v9727, %v9718
        %v10007 = vpack.c.b16 %v9728, %v9719
        %v10008 = vpack.c.b16 %v9729, %v9720
        %v10009 = vpack.c.b16 %v9730, %v9721
        %v10010 = vpack.c.b16 %v9731, %v9722
        %v10011 = vpack.c.b16 %v9741, %v9732
        %v10012 = vpack.c.b16 %v9742, %v9733
        %v10013 = vpack.c.b16 %v9743, %v9734
        %v10014 = vpack.c.b16 %v9744, %v9735
        %v10015 = vpack.c.b16 %v9745, %v9736
        %v10016 = vpack.c.b16 %v9746, %v9737
        %v10017 = vpack.c.b16 %v9747, %v9738
        %v10018 = vpack.c.b16 %v9748, %v9739
        %v10019 = vpack.c.b16 %v9749, %v9740
        %v10020 = vpack.c.b16 %v9759, %v9750
        %v10021 = vpack.c.b16 %v9760, %v9751
        %v10022 = vpack.c.b16 %v9761, %v9752
        %v10023 = vpack.c.b16 %v9762, %v9753
        %v10024 = vpack.c.b16 %v9763, %v9754
        %v10025 = vpack.c.b16 %v9764, %v9755
        %v10026 = vpack.c.b16 %v9765, %v9756
        %v10027 = vpack.c.b16 %v9766, %v9757
        %v10028 = vpack.c.b16 %v9767, %v9758
        %v10029 = vpack.c.b16 %v9777, %v9768
        %v10030 = vpack.c.b16 %v9778, %v9769
        %v10031 = vpack.c.b16 %v9779, %v9770
        %v10032 = vpack.c.b16 %v9780, %v9771
        %v10033 = vpack.c.b16 %v9781, %v9772
        %v10034 = vpack.c.b16 %v9782, %v9773
        %v10035 = vpack.c.b16 %v9783, %v9774
        %v10036 = vpack.c.b16 %v9784, %v9775
        %v10037 = vpack.c.b16 %v9785, %v9776
        %v10038 = vpack.c.b16 %v9795, %v9786
        %v10039 = vpack.c.b16 %v9796, %v9787
        %v10040 = vpack.c.b16 %v9797, %v9788
        %v10041 = vpack.c.b16 %v9798, %v9789
        %v10042 = vpack.c.b16 %v9799, %v9790
        %v10043 = vpack.c.b16 %v9800, %v9791
        %v10044 = vpack.c.b16 %v9801, %v9792
        %v10045 = vpack.c.b16 %v9802, %v9793
        %v10046 = vpack.c.b16 %v9803, %v9794
        %v10047 = vpack.c.b16 %v9813, %v9804
        %v10048 = vpack.c.b16 %v9814, %v9805
        %v10049 = vpack.c.b16 %v9815, %v9806
        %v10050 = vpack.c.b16 %v9816, %v9807
        %v10051 = vpack.c.b16 %v9817, %v9808
        %v10052 = vpack.c.b16 %v9818, %v9809
        %v10053 = vpack.c.b16 %v9819, %v9810
        %v10054 = vpack.c.b16 %v9820, %v9811
        %v10055 = vpack.c.b16 %v9821, %v9812
        %v10056 = vpack.c.b16 %v9831, %v9822
        %v10057 = vpack.c.b16 %v9832, %v9823
        %v10058 = vpack.c.b16 %v9833, %v9824
        %v10059 = vpack.c.b16 %v9834, %v9825
        %v10060 = vpack.c.b16 %v9835, %v9826
        %v10061 = vpack.c.b16 %v9836, %v9827
        %v10062 = vpack.c.b16 %v9837, %v9828
        %v10063 = vpack.c.b16 %v9838, %v9829
        %v10064 = vpack.c.b16 %v9839, %v9830
        %v10065 = vpack.c.b16 %v9849, %v9840
        %v10066 = vpack.c.b16 %v9850, %v9841
        %v10067 = vpack.c.b16 %v9851, %v9842
        %v10068 = vpack.c.b16 %v9852, %v9843
        %v10069 = vpack.c.b16 %v9853, %v9844
        %v10070 = vpack.c.b16 %v9854, %v9845
        %v10071 = vpack.c.b16 %v9855, %v9846
        %v10072 = vpack.c.b16 %v9856, %v9847
        %v10073 = vpack.c.b16 %v9857, %v9848
        %v10074 = vpack.c.b16 %v9867, %v9858
        %v10075 = vpack.c.b16 %v9868, %v9859
        %v10076 = vpack.c.b16 %v9869, %v9860
        %v10077 = vpack.c.b16 %v9870, %v9861
        %v10078 = vpack.c.b16 %v9871, %v9862
        %v10079 = vpack.c.b16 %v9872, %v9863
        %v10080 = vpack.c.b16 %v9873, %v9864
        %v10081 = vpack.c.b16 %v9874, %v9865
        %v10082 = vpack.c.b16 %v9875, %v9866
        %v10083 = vpack.c.b16 %v9885, %v9876
        %v10084 = vpack.c.b16 %v9886, %v9877
        %v10085 = vpack.c.b16 %v9887, %v9878
        %v10086 = vpack.c.b16 %v9888, %v9879
        %v10087 = vpack.c.b16 %v9889, %v9880
        %v10088 = vpack.c.b16 %v9890, %v9881
        %v10089 = vpack.c.b16 %v9891, %v9882
        %v10090 = vpack.c.b16 %v9892, %v9883
        %v10091 = vpack.c.b16 %v9893, %v9884
        %v10092 = vpack.c.b16 %v9903, %v9894
        %v10093 = vpack.c.b16 %v9904, %v9895
        %v10094 = vpack.c.b16 %v9905, %v9896
        %v10095 = vpack.c.b16 %v9906, %v9897
        %v10096 = vpack.c.b16 %v9907, %v9898
        %v10097 = vpack.c.b16 %v9908, %v9899
        %v10098 = vpack.c.b16 %v9909, %v9900
        %v10099 = vpack.c.b16 %v9910, %v9901
        %v10100 = vpack.c.b16 %v9911, %v9902
        %v10101 = vpack.c.b16 %v9921, %v9912
        %v10102 = vpack.c.b16 %v9922, %v9913
        %v10103 = vpack.c.b16 %v9923, %v9914
        %v10104 = vpack.c.b16 %v9924, %v9915
        %v10105 = vpack.c.b16 %v9925, %v9916
        %v10106 = vpack.c.b16 %v9926, %v9917
        %v10107 = vpack.c.b16 %v9927, %v9918
        %v10108 = vpack.c.b16 %v9928, %v9919
        %v10109 = vpack.c.b16 %v9929, %v9920
        %v10110 = vpack.c.b16 %v9939, %v9930
        %v10111 = vpack.c.b16 %v9940, %v9931
        %v10112 = vpack.c.b16 %v9941, %v9932
        %v10113 = vpack.c.b16 %v9942, %v9933
        %v10114 = vpack.c.b16 %v9943, %v9934
        %v10115 = vpack.c.b16 %v9944, %v9935
        %v10116 = vpack.c.b16 %v9945, %v9936
        %v10117 = vpack.c.b16 %v9946, %v9937
        %v10118 = vpack.c.b16 %v9947, %v9938
        %v10119 = vpack.c.b16 %v9957, %v9948
        %v10120 = vpack.c.b16 %v9958, %v9949
        %v10121 = vpack.c.b16 %v9959, %v9950
        %v10122 = vpack.c.b16 %v9960, %v9951
        %v10123 = vpack.c.b16 %v9961, %v9952
        %v10124 = vpack.c.b16 %v9962, %v9953
        %v10125 = vpack.c.b16 %v9963, %v9954
        %v10126 = vpack.c.b16 %v9964, %v9955
        %v10127 = vpack.c.b16 %v9965, %v9956
        %v10128 = vpack.c.b16 %v9975, %v9966
        %v10129 = vpack.c.b16 %v9976, %v9967
        %v10130 = vpack.c.b16 %v9977, %v9968
        %v10131 = vpack.c.b16 %v9978, %v9969
        %v10132 = vpack.c.b16 %v9979, %v9970
        %v10133 = vpack.c.b16 %v9980, %v9971
        %v10134 = vpack.c.b16 %v9981, %v9972
        %v10135 = vpack.c.b16 %v9982, %v9973
        %v10136 = vpack.c.b16 %v9983, %v9974
        %v10137 = vpack.c.b16 %v9993, %v9984
        %v10138 = vpack.c.b16 %v9994, %v9985
        %v10139 = vpack.c.b16 %v9995, %v9986
        %v10140 = vpack.c.b16 %v9996, %v9987
        %v10141 = vpack.c.b16 %v9997, %v9988
        %v10142 = vpack.c.b16 %v9998, %v9989
        %v10143 = vpack.c.b16 %v9999, %v9990
        %v10144 = vpack.c.b16 %v10000, %v9991
        %v10145 = vpack.c.b16 %v10001, %v9992
        %v10434 = vunpack.c.l.b16 %v9410
        %v10435 = vunpack.c.l.b16 %v9411
        %v10436 = vunpack.c.l.b16 %v9412
        %v10437 = vunpack.c.l.b16 %v9413
        %v10438 = vunpack.c.l.b16 %v9414
        %v10439 = vunpack.c.l.b16 %v9415
        %v10440 = vunpack.c.l.b16 %v9416
        %v10441 = vunpack.c.l.b16 %v9417
        %v10442 = vunpack.c.l.b16 %v9418
        %v10443 = vunpack.c.l.b16 %v9419
        %v10444 = vunpack.c.l.b16 %v9420
        %v10445 = vunpack.c.l.b16 %v9421
        %v10446 = vunpack.c.l.b16 %v9422
        %v10447 = vunpack.c.l.b16 %v9423
        %v10448 = vunpack.c.l.b16 %v9424
        %v10449 = vunpack.c.l.b16 %v9425
        %v10450 = vunpack.c.l.b16 %v9426
        %v10451 = vunpack.c.l.b16 %v9427
        %v10452 = vunpack.c.l.b16 %v9428
        %v10453 = vunpack.c.l.b16 %v9429
        %v10454 = vunpack.c.l.b16 %v9430
        %v10455 = vunpack.c.l.b16 %v9431
        %v10456 = vunpack.c.l.b16 %v9432
        %v10457 = vunpack.c.l.b16 %v9433
        %v10458 = vunpack.c.l.b16 %v9434
        %v10459 = vunpack.c.l.b16 %v9435
        %v10460 = vunpack.c.l.b16 %v9436
        %v10461 = vunpack.c.l.b16 %v9437
        %v10462 = vunpack.c.l.b16 %v9438
        %v10463 = vunpack.c.l.b16 %v9439
        %v10464 = vunpack.c.l.b16 %v9440
        %v10465 = vunpack.c.l.b16 %v9441
        %v10466 = vunpack.c.l.b16 %v9442
        %v10467 = vunpack.c.l.b16 %v9443
        %v10468 = vunpack.c.l.b16 %v9444
        %v10469 = vunpack.c.l.b16 %v9445
        %v10470 = vunpack.c.l.b16 %v9446
        %v10471 = vunpack.c.l.b16 %v9447
        %v10472 = vunpack.c.l.b16 %v9448
        %v10473 = vunpack.c.l.b16 %v9449
        %v10474 = vunpack.c.l.b16 %v9450
        %v10475 = vunpack.c.l.b16 %v9451
        %v10476 = vunpack.c.l.b16 %v9452
        %v10477 = vunpack.c.l.b16 %v9453
        %v10478 = vunpack.c.l.b16 %v9454
        %v10479 = vunpack.c.l.b16 %v9455
        %v10480 = vunpack.c.l.b16 %v9456
        %v10481 = vunpack.c.l.b16 %v9457
        %v10482 = vunpack.c.l.b16 %v9458
        %v10483 = vunpack.c.l.b16 %v9459
        %v10484 = vunpack.c.l.b16 %v9460
        %v10485 = vunpack.c.l.b16 %v9461
        %v10486 = vunpack.c.l.b16 %v9462
        %v10487 = vunpack.c.l.b16 %v9463
        %v10488 = vunpack.c.l.b16 %v9464
        %v10489 = vunpack.c.l.b16 %v9465
        %v10490 = vunpack.c.l.b16 %v9466
        %v10491 = vunpack.c.l.b16 %v9467
        %v10492 = vunpack.c.l.b16 %v9468
        %v10493 = vunpack.c.l.b16 %v9469
        %v10494 = vunpack.c.l.b16 %v9470
        %v10495 = vunpack.c.l.b16 %v9471
        %v10496 = vunpack.c.l.b16 %v9472
        %v10497 = vunpack.c.l.b16 %v9473
        %v10498 = vunpack.c.l.b16 %v9474
        %v10499 = vunpack.c.l.b16 %v9475
        %v10500 = vunpack.c.l.b16 %v9476
        %v10501 = vunpack.c.l.b16 %v9477
        %v10502 = vunpack.c.l.b16 %v9478
        %v10503 = vunpack.c.l.b16 %v9479
        %v10504 = vunpack.c.l.b16 %v9480
        %v10505 = vunpack.c.l.b16 %v9481
        %v10506 = vunpack.c.l.b16 %v9482
        %v10507 = vunpack.c.l.b16 %v9483
        %v10508 = vunpack.c.l.b16 %v9484
        %v10509 = vunpack.c.l.b16 %v9485
        %v10510 = vunpack.c.l.b16 %v9486
        %v10511 = vunpack.c.l.b16 %v9487
        %v10512 = vunpack.c.l.b16 %v9488
        %v10513 = vunpack.c.l.b16 %v9489
        %v10514 = vunpack.c.l.b16 %v9490
        %v10515 = vunpack.c.l.b16 %v9491
        %v10516 = vunpack.c.l.b16 %v9492
        %v10517 = vunpack.c.l.b16 %v9493
        %v10518 = vunpack.c.l.b16 %v9494
        %v10519 = vunpack.c.l.b16 %v9495
        %v10520 = vunpack.c.l.b16 %v9496
        %v10521 = vunpack.c.l.b16 %v9497
        %v10522 = vunpack.c.l.b16 %v9498
        %v10523 = vunpack.c.l.b16 %v9499
        %v10524 = vunpack.c.l.b16 %v9500
        %v10525 = vunpack.c.l.b16 %v9501
        %v10526 = vunpack.c.l.b16 %v9502
        %v10527 = vunpack.c.l.b16 %v9503
        %v10528 = vunpack.c.l.b16 %v9504
        %v10529 = vunpack.c.l.b16 %v9505
        %v10530 = vunpack.c.l.b16 %v9506
        %v10531 = vunpack.c.l.b16 %v9507
        %v10532 = vunpack.c.l.b16 %v9508
        %v10533 = vunpack.c.l.b16 %v9509
        %v10534 = vunpack.c.l.b16 %v9510
        %v10535 = vunpack.c.l.b16 %v9511
        %v10536 = vunpack.c.l.b16 %v9512
        %v10537 = vunpack.c.l.b16 %v9513
        %v10538 = vunpack.c.l.b16 %v9514
        %v10539 = vunpack.c.l.b16 %v9515
        %v10540 = vunpack.c.l.b16 %v9516
        %v10541 = vunpack.c.l.b16 %v9517
        %v10542 = vunpack.c.l.b16 %v9518
        %v10543 = vunpack.c.l.b16 %v9519
        %v10544 = vunpack.c.l.b16 %v9520
        %v10545 = vunpack.c.l.b16 %v9521
        %v10546 = vunpack.c.l.b16 %v9522
        %v10547 = vunpack.c.l.b16 %v9523
        %v10548 = vunpack.c.l.b16 %v9524
        %v10549 = vunpack.c.l.b16 %v9525
        %v10550 = vunpack.c.l.b16 %v9526
        %v10551 = vunpack.c.l.b16 %v9527
        %v10552 = vunpack.c.l.b16 %v9528
        %v10553 = vunpack.c.l.b16 %v9529
        %v10554 = vunpack.c.l.b16 %v9530
        %v10555 = vunpack.c.l.b16 %v9531
        %v10556 = vunpack.c.l.b16 %v9532
        %v10557 = vunpack.c.l.b16 %v9533
        %v10558 = vunpack.c.l.b16 %v9534
        %v10559 = vunpack.c.l.b16 %v9535
        %v10560 = vunpack.c.l.b16 %v9536
        %v10561 = vunpack.c.l.b16 %v9537
        %v10562 = vunpack.c.l.b16 %v9538
        %v10563 = vunpack.c.l.b16 %v9539
        %v10564 = vunpack.c.l.b16 %v9540
        %v10565 = vunpack.c.l.b16 %v9541
        %v10566 = vunpack.c.l.b16 %v9542
        %v10567 = vunpack.c.l.b16 %v9543
        %v10568 = vunpack.c.l.b16 %v9544
        %v10569 = vunpack.c.l.b16 %v9545
        %v10570 = vunpack.c.l.b16 %v9546
        %v10571 = vunpack.c.l.b16 %v9547
        %v10572 = vunpack.c.l.b16 %v9548
        %v10573 = vunpack.c.l.b16 %v9549
        %v10574 = vunpack.c.l.b16 %v9550
        %v10575 = vunpack.c.l.b16 %v9551
        %v10576 = vunpack.c.l.b16 %v9552
        %v10577 = vunpack.c.l.b16 %v9553
        %v10578 = vpack.c.b16 %v10435, %v10434
        %v10579 = vpack.c.b16 %v10437, %v10436
        %v10580 = vpack.c.b16 %v10439, %v10438
        %v10581 = vpack.c.b16 %v10441, %v10440
        %v10582 = vpack.c.b16 %v10443, %v10442
        %v10583 = vpack.c.b16 %v10445, %v10444
        %v10584 = vpack.c.b16 %v10447, %v10446
        %v10585 = vpack.c.b16 %v10449, %v10448
        %v10586 = vpack.c.b16 %v10451, %v10450
        %v10587 = vpack.c.b16 %v10453, %v10452
        %v10588 = vpack.c.b16 %v10455, %v10454
        %v10589 = vpack.c.b16 %v10457, %v10456
        %v10590 = vpack.c.b16 %v10459, %v10458
        %v10591 = vpack.c.b16 %v10461, %v10460
        %v10592 = vpack.c.b16 %v10463, %v10462
        %v10593 = vpack.c.b16 %v10465, %v10464
        %v10594 = vpack.c.b16 %v10467, %v10466
        %v10595 = vpack.c.b16 %v10469, %v10468
        %v10596 = vpack.c.b16 %v10471, %v10470
        %v10597 = vpack.c.b16 %v10473, %v10472
        %v10598 = vpack.c.b16 %v10475, %v10474
        %v10599 = vpack.c.b16 %v10477, %v10476
        %v10600 = vpack.c.b16 %v10479, %v10478
        %v10601 = vpack.c.b16 %v10481, %v10480
        %v10602 = vpack.c.b16 %v10483, %v10482
        %v10603 = vpack.c.b16 %v10485, %v10484
        %v10604 = vpack.c.b16 %v10487, %v10486
        %v10605 = vpack.c.b16 %v10489, %v10488
        %v10606 = vpack.c.b16 %v10491, %v10490
        %v10607 = vpack.c.b16 %v10493, %v10492
        %v10608 = vpack.c.b16 %v10495, %v10494
        %v10609 = vpack.c.b16 %v10497, %v10496
        %v10610 = vpack.c.b16 %v10499, %v10498
        %v10611 = vpack.c.b16 %v10501, %v10500
        %v10612 = vpack.c.b16 %v10503, %v10502
        %v10613 = vpack.c.b16 %v10505, %v10504
        %v10614 = vpack.c.b16 %v10507, %v10506
        %v10615 = vpack.c.b16 %v10509, %v10508
        %v10616 = vpack.c.b16 %v10511, %v10510
        %v10617 = vpack.c.b16 %v10513, %v10512
        %v10618 = vpack.c.b16 %v10515, %v10514
        %v10619 = vpack.c.b16 %v10517, %v10516
        %v10620 = vpack.c.b16 %v10519, %v10518
        %v10621 = vpack.c.b16 %v10521, %v10520
        %v10622 = vpack.c.b16 %v10523, %v10522
        %v10623 = vpack.c.b16 %v10525, %v10524
        %v10624 = vpack.c.b16 %v10527, %v10526
        %v10625 = vpack.c.b16 %v10529, %v10528
        %v10626 = vpack.c.b16 %v10531, %v10530
        %v10627 = vpack.c.b16 %v10533, %v10532
        %v10628 = vpack.c.b16 %v10535, %v10534
        %v10629 = vpack.c.b16 %v10537, %v10536
        %v10630 = vpack.c.b16 %v10539, %v10538
        %v10631 = vpack.c.b16 %v10541, %v10540
        %v10632 = vpack.c.b16 %v10543, %v10542
        %v10633 = vpack.c.b16 %v10545, %v10544
        %v10634 = vpack.c.b16 %v10547, %v10546
        %v10635 = vpack.c.b16 %v10549, %v10548
        %v10636 = vpack.c.b16 %v10551, %v10550
        %v10637 = vpack.c.b16 %v10553, %v10552
        %v10638 = vpack.c.b16 %v10555, %v10554
        %v10639 = vpack.c.b16 %v10557, %v10556
        %v10640 = vpack.c.b16 %v10559, %v10558
        %v10641 = vpack.c.b16 %v10561, %v10560
        %v10642 = vpack.c.b16 %v10563, %v10562
        %v10643 = vpack.c.b16 %v10565, %v10564
        %v10644 = vpack.c.b16 %v10567, %v10566
        %v10645 = vpack.c.b16 %v10569, %v10568
        %v10646 = vpack.c.b16 %v10571, %v10570
        %v10647 = vpack.c.b16 %v10573, %v10572
        %v10648 = vpack.c.b16 %v10575, %v10574
        %v10649 = vpack.c.b16 %v10577, %v10576
        %10722 = vmatpush.bf16.msra.mxu0 %v10585
        %10723 = vmatpush.bf16.msra.mxu0 %v10584
        %10724 = vmatpush.bf16.msra.mxu0 %v10583
        %10725 = vmatpush.bf16.msra.mxu0 %v10582
        %10726 = vmatpush.bf16.msra.mxu0 %v10581
        %10727 = vmatpush.bf16.msra.mxu0 %v10580
        %10728 = vmatpush.bf16.msra.mxu0 %v10579
        %10729 = vmatpush.bf16.msra.mxu0 %v10578
        %10730 = vmatmul.bf16.gmra.mxu0 %v10002
        %v10731 = vpop.f32.mrf.mxu0
        %v10732 = vadd.f32 0.0, %v10731
        %v10733 = vpop.f32.mrf.mxu0
        %v10734 = vadd.f32 0.0, %v10733
        %10735 = vmatmul.bf16.gmra.mxu0 %v10011
        %v10736 = vpop.f32.mrf.mxu0
        %v10737 = vadd.f32 0.0, %v10736
        %v10738 = vpop.f32.mrf.mxu0
        %v10739 = vadd.f32 0.0, %v10738
        %10740 = vmatmul.bf16.gmra.mxu0 %v10020
        %v10741 = vpop.f32.mrf.mxu0
        %v10742 = vadd.f32 0.0, %v10741
        %v10743 = vpop.f32.mrf.mxu0
        %v10744 = vadd.f32 0.0, %v10743
        %10745 = vmatmul.bf16.gmra.mxu0 %v10029
        %v10746 = vpop.f32.mrf.mxu0
        %v10747 = vadd.f32 0.0, %v10746
        %v10748 = vpop.f32.mrf.mxu0
        %v10749 = vadd.f32 0.0, %v10748
        %10750 = vmatmul.bf16.gmra.mxu0 %v10038
        %v10751 = vpop.f32.mrf.mxu0
        %v10752 = vadd.f32 0.0, %v10751
        %v10753 = vpop.f32.mrf.mxu0
        %v10754 = vadd.f32 0.0, %v10753
        %10755 = vmatmul.bf16.gmra.mxu0 %v10047
        %v10756 = vpop.f32.mrf.mxu0
        %v10757 = vadd.f32 0.0, %v10756
        %v10758 = vpop.f32.mrf.mxu0
        %v10759 = vadd.f32 0.0, %v10758
        %10760 = vmatmul.bf16.gmra.mxu0 %v10056
        %v10761 = vpop.f32.mrf.mxu0
        %v10762 = vadd.f32 0.0, %v10761
        %v10763 = vpop.f32.mrf.mxu0
        %v10764 = vadd.f32 0.0, %v10763
        %10765 = vmatmul.bf16.gmra.mxu0 %v10065
        %v10766 = vpop.f32.mrf.mxu0
        %v10767 = vadd.f32 0.0, %v10766
        %v10768 = vpop.f32.mrf.mxu0
        %v10769 = vadd.f32 0.0, %v10768
        %10770 = vmatmul.bf16.gmra.mxu0 %v10074
        %v10771 = vpop.f32.mrf.mxu0
        %v10772 = vadd.f32 0.0, %v10771
        %v10773 = vpop.f32.mrf.mxu0
        %v10774 = vadd.f32 0.0, %v10773
        %10775 = vmatmul.bf16.gmra.mxu0 %v10083
        %v10776 = vpop.f32.mrf.mxu0
        %v10777 = vadd.f32 0.0, %v10776
        %v10778 = vpop.f32.mrf.mxu0
        %v10779 = vadd.f32 0.0, %v10778
        %10780 = vmatmul.bf16.gmra.mxu0 %v10092
        %v10781 = vpop.f32.mrf.mxu0
        %v10782 = vadd.f32 0.0, %v10781
        %v10783 = vpop.f32.mrf.mxu0
        %v10784 = vadd.f32 0.0, %v10783
        %10785 = vmatmul.bf16.gmra.mxu0 %v10101
        %v10786 = vpop.f32.mrf.mxu0
        %v10787 = vadd.f32 0.0, %v10786
        %v10788 = vpop.f32.mrf.mxu0
        %v10789 = vadd.f32 0.0, %v10788
        %10790 = vmatmul.bf16.gmra.mxu0 %v10110
        %v10791 = vpop.f32.mrf.mxu0
        %v10792 = vadd.f32 0.0, %v10791
        %v10793 = vpop.f32.mrf.mxu0
        %v10794 = vadd.f32 0.0, %v10793
        %10795 = vmatmul.bf16.gmra.mxu0 %v10119
        %v10796 = vpop.f32.mrf.mxu0
        %v10797 = vadd.f32 0.0, %v10796
        %v10798 = vpop.f32.mrf.mxu0
        %v10799 = vadd.f32 0.0, %v10798
        %10800 = vmatmul.bf16.gmra.mxu0 %v10128
        %v10801 = vpop.f32.mrf.mxu0
        %v10802 = vadd.f32 0.0, %v10801
        %v10803 = vpop.f32.mrf.mxu0
        %v10804 = vadd.f32 0.0, %v10803
        %10805 = vmatmul.bf16.gmra.mxu0 %v10137
        %v10806 = vpop.f32.mrf.mxu0
        %v10807 = vadd.f32 0.0, %v10806
        %v10808 = vpop.f32.mrf.mxu0
        %v10809 = vadd.f32 0.0, %v10808
        %10810 = vdwg.mxu0
        %10811 = vmatpush.bf16.msra.mxu0 %v10593
        %10812 = vmatpush.bf16.msra.mxu0 %v10592
        %10813 = vmatpush.bf16.msra.mxu0 %v10591
        %10814 = vmatpush.bf16.msra.mxu0 %v10590
        %10815 = vmatpush.bf16.msra.mxu0 %v10589
        %10816 = vmatpush.bf16.msra.mxu0 %v10588
        %10817 = vmatpush.bf16.msra.mxu0 %v10587
        %10818 = vmatpush.bf16.msra.mxu0 %v10586
        %10819 = vmatmul.bf16.gmra.mxu0 %v10003
        %v10820 = vpop.f32.mrf.mxu0
        %v10821 = vadd.f32 %v10732, %v10820
        %v10822 = vpop.f32.mrf.mxu0
        %v10823 = vadd.f32 %v10734, %v10822
        %10824 = vmatmul.bf16.gmra.mxu0 %v10012
        %v10825 = vpop.f32.mrf.mxu0
        %v10826 = vadd.f32 %v10737, %v10825
        %v10827 = vpop.f32.mrf.mxu0
        %v10828 = vadd.f32 %v10739, %v10827
        %10829 = vmatmul.bf16.gmra.mxu0 %v10021
        %v10830 = vpop.f32.mrf.mxu0
        %v10831 = vadd.f32 %v10742, %v10830
        %v10832 = vpop.f32.mrf.mxu0
        %v10833 = vadd.f32 %v10744, %v10832
        %10834 = vmatmul.bf16.gmra.mxu0 %v10030
        %v10835 = vpop.f32.mrf.mxu0
        %v10836 = vadd.f32 %v10747, %v10835
        %v10837 = vpop.f32.mrf.mxu0
        %v10838 = vadd.f32 %v10749, %v10837
        %10839 = vmatmul.bf16.gmra.mxu0 %v10039
        %v10840 = vpop.f32.mrf.mxu0
        %v10841 = vadd.f32 %v10752, %v10840
        %v10842 = vpop.f32.mrf.mxu0
        %v10843 = vadd.f32 %v10754, %v10842
        %10844 = vmatmul.bf16.gmra.mxu0 %v10048
        %v10845 = vpop.f32.mrf.mxu0
        %v10846 = vadd.f32 %v10757, %v10845
        %v10847 = vpop.f32.mrf.mxu0
        %v10848 = vadd.f32 %v10759, %v10847
        %10849 = vmatmul.bf16.gmra.mxu0 %v10057
        %v10850 = vpop.f32.mrf.mxu0
        %v10851 = vadd.f32 %v10762, %v10850
        %v10852 = vpop.f32.mrf.mxu0
        %v10853 = vadd.f32 %v10764, %v10852
        %10854 = vmatmul.bf16.gmra.mxu0 %v10066
        %v10855 = vpop.f32.mrf.mxu0
        %v10856 = vadd.f32 %v10767, %v10855
        %v10857 = vpop.f32.mrf.mxu0
        %v10858 = vadd.f32 %v10769, %v10857
        %10859 = vmatmul.bf16.gmra.mxu0 %v10075
        %v10860 = vpop.f32.mrf.mxu0
        %v10861 = vadd.f32 %v10772, %v10860
        %v10862 = vpop.f32.mrf.mxu0
        %v10863 = vadd.f32 %v10774, %v10862
        %10864 = vmatmul.bf16.gmra.mxu0 %v10084
        %v10865 = vpop.f32.mrf.mxu0
        %v10866 = vadd.f32 %v10777, %v10865
        %v10867 = vpop.f32.mrf.mxu0
        %v10868 = vadd.f32 %v10779, %v10867
        %10869 = vmatmul.bf16.gmra.mxu0 %v10093
        %v10870 = vpop.f32.mrf.mxu0
        %v10871 = vadd.f32 %v10782, %v10870
        %v10872 = vpop.f32.mrf.mxu0
        %v10873 = vadd.f32 %v10784, %v10872
        %10874 = vmatmul.bf16.gmra.mxu0 %v10102
        %v10875 = vpop.f32.mrf.mxu0
        %v10876 = vadd.f32 %v10787, %v10875
        %v10877 = vpop.f32.mrf.mxu0
        %v10878 = vadd.f32 %v10789, %v10877
        %10879 = vmatmul.bf16.gmra.mxu0 %v10111
        %v10880 = vpop.f32.mrf.mxu0
        %v10881 = vadd.f32 %v10792, %v10880
        %v10882 = vpop.f32.mrf.mxu0
        %v10883 = vadd.f32 %v10794, %v10882
        %10884 = vmatmul.bf16.gmra.mxu0 %v10120
        %v10885 = vpop.f32.mrf.mxu0
        %v10886 = vadd.f32 %v10797, %v10885
        %v10887 = vpop.f32.mrf.mxu0
        %v10888 = vadd.f32 %v10799, %v10887
        %10889 = vmatmul.bf16.gmra.mxu0 %v10129
        %v10890 = vpop.f32.mrf.mxu0
        %v10891 = vadd.f32 %v10802, %v10890
        %v10892 = vpop.f32.mrf.mxu0
        %v10893 = vadd.f32 %v10804, %v10892
        %10894 = vmatmul.bf16.gmra.mxu0 %v10138
        %v10895 = vpop.f32.mrf.mxu0
        %v10896 = vadd.f32 %v10807, %v10895
        %v10897 = vpop.f32.mrf.mxu0
        %v10898 = vadd.f32 %v10809, %v10897
        %10899 = vdwg.mxu0
        %10900 = vmatpush.bf16.msra.mxu0 %v10601
        %10901 = vmatpush.bf16.msra.mxu0 %v10600
        %10902 = vmatpush.bf16.msra.mxu0 %v10599
        %10903 = vmatpush.bf16.msra.mxu0 %v10598
        %10904 = vmatpush.bf16.msra.mxu0 %v10597
        %10905 = vmatpush.bf16.msra.mxu0 %v10596
        %10906 = vmatpush.bf16.msra.mxu0 %v10595
        %10907 = vmatpush.bf16.msra.mxu0 %v10594
        %10908 = vmatmul.bf16.gmra.mxu0 %v10004
        %v10909 = vpop.f32.mrf.mxu0
        %v10910 = vadd.f32 %v10821, %v10909
        %v10911 = vpop.f32.mrf.mxu0
        %v10912 = vadd.f32 %v10823, %v10911
        %10913 = vmatmul.bf16.gmra.mxu0 %v10013
        %v10914 = vpop.f32.mrf.mxu0
        %v10915 = vadd.f32 %v10826, %v10914
        %v10916 = vpop.f32.mrf.mxu0
        %v10917 = vadd.f32 %v10828, %v10916
        %10918 = vmatmul.bf16.gmra.mxu0 %v10022
        %v10919 = vpop.f32.mrf.mxu0
        %v10920 = vadd.f32 %v10831, %v10919
        %v10921 = vpop.f32.mrf.mxu0
        %v10922 = vadd.f32 %v10833, %v10921
        %10923 = vmatmul.bf16.gmra.mxu0 %v10031
        %v10924 = vpop.f32.mrf.mxu0
        %v10925 = vadd.f32 %v10836, %v10924
        %v10926 = vpop.f32.mrf.mxu0
        %v10927 = vadd.f32 %v10838, %v10926
        %10928 = vmatmul.bf16.gmra.mxu0 %v10040
        %v10929 = vpop.f32.mrf.mxu0
        %v10930 = vadd.f32 %v10841, %v10929
        %v10931 = vpop.f32.mrf.mxu0
        %v10932 = vadd.f32 %v10843, %v10931
        %10933 = vmatmul.bf16.gmra.mxu0 %v10049
        %v10934 = vpop.f32.mrf.mxu0
        %v10935 = vadd.f32 %v10846, %v10934
        %v10936 = vpop.f32.mrf.mxu0
        %v10937 = vadd.f32 %v10848, %v10936
        %10938 = vmatmul.bf16.gmra.mxu0 %v10058
        %v10939 = vpop.f32.mrf.mxu0
        %v10940 = vadd.f32 %v10851, %v10939
        %v10941 = vpop.f32.mrf.mxu0
        %v10942 = vadd.f32 %v10853, %v10941
        %10943 = vmatmul.bf16.gmra.mxu0 %v10067
        %v10944 = vpop.f32.mrf.mxu0
        %v10945 = vadd.f32 %v10856, %v10944
        %v10946 = vpop.f32.mrf.mxu0
        %v10947 = vadd.f32 %v10858, %v10946
        %10948 = vmatmul.bf16.gmra.mxu0 %v10076
        %v10949 = vpop.f32.mrf.mxu0
        %v10950 = vadd.f32 %v10861, %v10949
        %v10951 = vpop.f32.mrf.mxu0
        %v10952 = vadd.f32 %v10863, %v10951
        %10953 = vmatmul.bf16.gmra.mxu0 %v10085
        %v10954 = vpop.f32.mrf.mxu0
        %v10955 = vadd.f32 %v10866, %v10954
        %v10956 = vpop.f32.mrf.mxu0
        %v10957 = vadd.f32 %v10868, %v10956
        %10958 = vmatmul.bf16.gmra.mxu0 %v10094
        %v10959 = vpop.f32.mrf.mxu0
        %v10960 = vadd.f32 %v10871, %v10959
        %v10961 = vpop.f32.mrf.mxu0
        %v10962 = vadd.f32 %v10873, %v10961
        %10963 = vmatmul.bf16.gmra.mxu0 %v10103
        %v10964 = vpop.f32.mrf.mxu0
        %v10965 = vadd.f32 %v10876, %v10964
        %v10966 = vpop.f32.mrf.mxu0
        %v10967 = vadd.f32 %v10878, %v10966
        %10968 = vmatmul.bf16.gmra.mxu0 %v10112
        %v10969 = vpop.f32.mrf.mxu0
        %v10970 = vadd.f32 %v10881, %v10969
        %v10971 = vpop.f32.mrf.mxu0
        %v10972 = vadd.f32 %v10883, %v10971
        %10973 = vmatmul.bf16.gmra.mxu0 %v10121
        %v10974 = vpop.f32.mrf.mxu0
        %v10975 = vadd.f32 %v10886, %v10974
        %v10976 = vpop.f32.mrf.mxu0
        %v10977 = vadd.f32 %v10888, %v10976
        %10978 = vmatmul.bf16.gmra.mxu0 %v10130
        %v10979 = vpop.f32.mrf.mxu0
        %v10980 = vadd.f32 %v10891, %v10979
        %v10981 = vpop.f32.mrf.mxu0
        %v10982 = vadd.f32 %v10893, %v10981
        %10983 = vmatmul.bf16.gmra.mxu0 %v10139
        %v10984 = vpop.f32.mrf.mxu0
        %v10985 = vadd.f32 %v10896, %v10984
        %v10986 = vpop.f32.mrf.mxu0
        %v10987 = vadd.f32 %v10898, %v10986
        %10988 = vdwg.mxu0
        %10989 = vmatpush.bf16.msra.mxu0 %v10609
        %10990 = vmatpush.bf16.msra.mxu0 %v10608
        %10991 = vmatpush.bf16.msra.mxu0 %v10607
        %10992 = vmatpush.bf16.msra.mxu0 %v10606
        %10993 = vmatpush.bf16.msra.mxu0 %v10605
        %10994 = vmatpush.bf16.msra.mxu0 %v10604
        %10995 = vmatpush.bf16.msra.mxu0 %v10603
        %10996 = vmatpush.bf16.msra.mxu0 %v10602
        %10997 = vmatmul.bf16.gmra.mxu0 %v10005
        %v10998 = vpop.f32.mrf.mxu0
        %v10999 = vadd.f32 %v10910, %v10998
        %v11000 = vpop.f32.mrf.mxu0
        %v11001 = vadd.f32 %v10912, %v11000
        %11002 = vmatmul.bf16.gmra.mxu0 %v10014
        %v11003 = vpop.f32.mrf.mxu0
        %v11004 = vadd.f32 %v10915, %v11003
        %v11005 = vpop.f32.mrf.mxu0
        %v11006 = vadd.f32 %v10917, %v11005
        %11007 = vmatmul.bf16.gmra.mxu0 %v10023
        %v11008 = vpop.f32.mrf.mxu0
        %v11009 = vadd.f32 %v10920, %v11008
        %v11010 = vpop.f32.mrf.mxu0
        %v11011 = vadd.f32 %v10922, %v11010
        %11012 = vmatmul.bf16.gmra.mxu0 %v10032
        %v11013 = vpop.f32.mrf.mxu0
        %v11014 = vadd.f32 %v10925, %v11013
        %v11015 = vpop.f32.mrf.mxu0
        %v11016 = vadd.f32 %v10927, %v11015
        %11017 = vmatmul.bf16.gmra.mxu0 %v10041
        %v11018 = vpop.f32.mrf.mxu0
        %v11019 = vadd.f32 %v10930, %v11018
        %v11020 = vpop.f32.mrf.mxu0
        %v11021 = vadd.f32 %v10932, %v11020
        %11022 = vmatmul.bf16.gmra.mxu0 %v10050
        %v11023 = vpop.f32.mrf.mxu0
        %v11024 = vadd.f32 %v10935, %v11023
        %v11025 = vpop.f32.mrf.mxu0
        %v11026 = vadd.f32 %v10937, %v11025
        %11027 = vmatmul.bf16.gmra.mxu0 %v10059
        %v11028 = vpop.f32.mrf.mxu0
        %v11029 = vadd.f32 %v10940, %v11028
        %v11030 = vpop.f32.mrf.mxu0
        %v11031 = vadd.f32 %v10942, %v11030
        %11032 = vmatmul.bf16.gmra.mxu0 %v10068
        %v11033 = vpop.f32.mrf.mxu0
        %v11034 = vadd.f32 %v10945, %v11033
        %v11035 = vpop.f32.mrf.mxu0
        %v11036 = vadd.f32 %v10947, %v11035
        %11037 = vmatmul.bf16.gmra.mxu0 %v10077
        %v11038 = vpop.f32.mrf.mxu0
        %v11039 = vadd.f32 %v10950, %v11038
        %v11040 = vpop.f32.mrf.mxu0
        %v11041 = vadd.f32 %v10952, %v11040
        %11042 = vmatmul.bf16.gmra.mxu0 %v10086
        %v11043 = vpop.f32.mrf.mxu0
        %v11044 = vadd.f32 %v10955, %v11043
        %v11045 = vpop.f32.mrf.mxu0
        %v11046 = vadd.f32 %v10957, %v11045
        %11047 = vmatmul.bf16.gmra.mxu0 %v10095
        %v11048 = vpop.f32.mrf.mxu0
        %v11049 = vadd.f32 %v10960, %v11048
        %v11050 = vpop.f32.mrf.mxu0
        %v11051 = vadd.f32 %v10962, %v11050
        %11052 = vmatmul.bf16.gmra.mxu0 %v10104
        %v11053 = vpop.f32.mrf.mxu0
        %v11054 = vadd.f32 %v10965, %v11053
        %v11055 = vpop.f32.mrf.mxu0
        %v11056 = vadd.f32 %v10967, %v11055
        %11057 = vmatmul.bf16.gmra.mxu0 %v10113
        %v11058 = vpop.f32.mrf.mxu0
        %v11059 = vadd.f32 %v10970, %v11058
        %v11060 = vpop.f32.mrf.mxu0
        %v11061 = vadd.f32 %v10972, %v11060
        %11062 = vmatmul.bf16.gmra.mxu0 %v10122
        %v11063 = vpop.f32.mrf.mxu0
        %v11064 = vadd.f32 %v10975, %v11063
        %v11065 = vpop.f32.mrf.mxu0
        %v11066 = vadd.f32 %v10977, %v11065
        %11067 = vmatmul.bf16.gmra.mxu0 %v10131
        %v11068 = vpop.f32.mrf.mxu0
        %v11069 = vadd.f32 %v10980, %v11068
        %v11070 = vpop.f32.mrf.mxu0
        %v11071 = vadd.f32 %v10982, %v11070
        %11072 = vmatmul.bf16.gmra.mxu0 %v10140
        %v11073 = vpop.f32.mrf.mxu0
        %v11074 = vadd.f32 %v10985, %v11073
        %v11075 = vpop.f32.mrf.mxu0
        %v11076 = vadd.f32 %v10987, %v11075
        %11077 = vdwg.mxu0
        %11078 = vmatpush.bf16.msra.mxu0 %v10617
        %11079 = vmatpush.bf16.msra.mxu0 %v10616
        %11080 = vmatpush.bf16.msra.mxu0 %v10615
        %11081 = vmatpush.bf16.msra.mxu0 %v10614
        %11082 = vmatpush.bf16.msra.mxu0 %v10613
        %11083 = vmatpush.bf16.msra.mxu0 %v10612
        %11084 = vmatpush.bf16.msra.mxu0 %v10611
        %11085 = vmatpush.bf16.msra.mxu0 %v10610
        %11086 = vmatmul.bf16.gmra.mxu0 %v10006
        %v11087 = vpop.f32.mrf.mxu0
        %v11088 = vadd.f32 %v10999, %v11087
        %v11089 = vpop.f32.mrf.mxu0
        %v11090 = vadd.f32 %v11001, %v11089
        %11091 = vmatmul.bf16.gmra.mxu0 %v10015
        %v11092 = vpop.f32.mrf.mxu0
        %v11093 = vadd.f32 %v11004, %v11092
        %v11094 = vpop.f32.mrf.mxu0
        %v11095 = vadd.f32 %v11006, %v11094
        %11096 = vmatmul.bf16.gmra.mxu0 %v10024
        %v11097 = vpop.f32.mrf.mxu0
        %v11098 = vadd.f32 %v11009, %v11097
        %v11099 = vpop.f32.mrf.mxu0
        %v11100 = vadd.f32 %v11011, %v11099
        %11101 = vmatmul.bf16.gmra.mxu0 %v10033
        %v11102 = vpop.f32.mrf.mxu0
        %v11103 = vadd.f32 %v11014, %v11102
        %v11104 = vpop.f32.mrf.mxu0
        %v11105 = vadd.f32 %v11016, %v11104
        %11106 = vmatmul.bf16.gmra.mxu0 %v10042
        %v11107 = vpop.f32.mrf.mxu0
        %v11108 = vadd.f32 %v11019, %v11107
        %v11109 = vpop.f32.mrf.mxu0
        %v11110 = vadd.f32 %v11021, %v11109
        %11111 = vmatmul.bf16.gmra.mxu0 %v10051
        %v11112 = vpop.f32.mrf.mxu0
        %v11113 = vadd.f32 %v11024, %v11112
        %v11114 = vpop.f32.mrf.mxu0
        %v11115 = vadd.f32 %v11026, %v11114
        %11116 = vmatmul.bf16.gmra.mxu0 %v10060
        %v11117 = vpop.f32.mrf.mxu0
        %v11118 = vadd.f32 %v11029, %v11117
        %v11119 = vpop.f32.mrf.mxu0
        %v11120 = vadd.f32 %v11031, %v11119
        %11121 = vmatmul.bf16.gmra.mxu0 %v10069
        %v11122 = vpop.f32.mrf.mxu0
        %v11123 = vadd.f32 %v11034, %v11122
        %v11124 = vpop.f32.mrf.mxu0
        %v11125 = vadd.f32 %v11036, %v11124
        %11126 = vmatmul.bf16.gmra.mxu0 %v10078
        %v11127 = vpop.f32.mrf.mxu0
        %v11128 = vadd.f32 %v11039, %v11127
        %v11129 = vpop.f32.mrf.mxu0
        %v11130 = vadd.f32 %v11041, %v11129
        %11131 = vmatmul.bf16.gmra.mxu0 %v10087
        %v11132 = vpop.f32.mrf.mxu0
        %v11133 = vadd.f32 %v11044, %v11132
        %v11134 = vpop.f32.mrf.mxu0
        %v11135 = vadd.f32 %v11046, %v11134
        %11136 = vmatmul.bf16.gmra.mxu0 %v10096
        %v11137 = vpop.f32.mrf.mxu0
        %v11138 = vadd.f32 %v11049, %v11137
        %v11139 = vpop.f32.mrf.mxu0
        %v11140 = vadd.f32 %v11051, %v11139
        %11141 = vmatmul.bf16.gmra.mxu0 %v10105
        %v11142 = vpop.f32.mrf.mxu0
        %v11143 = vadd.f32 %v11054, %v11142
        %v11144 = vpop.f32.mrf.mxu0
        %v11145 = vadd.f32 %v11056, %v11144
        %11146 = vmatmul.bf16.gmra.mxu0 %v10114
        %v11147 = vpop.f32.mrf.mxu0
        %v11148 = vadd.f32 %v11059, %v11147
        %v11149 = vpop.f32.mrf.mxu0
        %v11150 = vadd.f32 %v11061, %v11149
        %11151 = vmatmul.bf16.gmra.mxu0 %v10123
        %v11152 = vpop.f32.mrf.mxu0
        %v11153 = vadd.f32 %v11064, %v11152
        %v11154 = vpop.f32.mrf.mxu0
        %v11155 = vadd.f32 %v11066, %v11154
        %11156 = vmatmul.bf16.gmra.mxu0 %v10132
        %v11157 = vpop.f32.mrf.mxu0
        %v11158 = vadd.f32 %v11069, %v11157
        %v11159 = vpop.f32.mrf.mxu0
        %v11160 = vadd.f32 %v11071, %v11159
        %11161 = vmatmul.bf16.gmra.mxu0 %v10141
        %v11162 = vpop.f32.mrf.mxu0
        %v11163 = vadd.f32 %v11074, %v11162
        %v11164 = vpop.f32.mrf.mxu0
        %v11165 = vadd.f32 %v11076, %v11164
        %11166 = vdwg.mxu0
        %11167 = vmatpush.bf16.msra.mxu0 %v10625
        %11168 = vmatpush.bf16.msra.mxu0 %v10624
        %11169 = vmatpush.bf16.msra.mxu0 %v10623
        %11170 = vmatpush.bf16.msra.mxu0 %v10622
        %11171 = vmatpush.bf16.msra.mxu0 %v10621
        %11172 = vmatpush.bf16.msra.mxu0 %v10620
        %11173 = vmatpush.bf16.msra.mxu0 %v10619
        %11174 = vmatpush.bf16.msra.mxu0 %v10618
        %11175 = vmatmul.bf16.gmra.mxu0 %v10007
        %v11176 = vpop.f32.mrf.mxu0
        %v11177 = vadd.f32 %v11088, %v11176
        %v11178 = vpop.f32.mrf.mxu0
        %v11179 = vadd.f32 %v11090, %v11178
        %11180 = vmatmul.bf16.gmra.mxu0 %v10016
        %v11181 = vpop.f32.mrf.mxu0
        %v11182 = vadd.f32 %v11093, %v11181
        %v11183 = vpop.f32.mrf.mxu0
        %v11184 = vadd.f32 %v11095, %v11183
        %11185 = vmatmul.bf16.gmra.mxu0 %v10025
        %v11186 = vpop.f32.mrf.mxu0
        %v11187 = vadd.f32 %v11098, %v11186
        %v11188 = vpop.f32.mrf.mxu0
        %v11189 = vadd.f32 %v11100, %v11188
        %11190 = vmatmul.bf16.gmra.mxu0 %v10034
        %v11191 = vpop.f32.mrf.mxu0
        %v11192 = vadd.f32 %v11103, %v11191
        %v11193 = vpop.f32.mrf.mxu0
        %v11194 = vadd.f32 %v11105, %v11193
        %11195 = vmatmul.bf16.gmra.mxu0 %v10043
        %v11196 = vpop.f32.mrf.mxu0
        %v11197 = vadd.f32 %v11108, %v11196
        %v11198 = vpop.f32.mrf.mxu0
        %v11199 = vadd.f32 %v11110, %v11198
        %11200 = vmatmul.bf16.gmra.mxu0 %v10052
        %v11201 = vpop.f32.mrf.mxu0
        %v11202 = vadd.f32 %v11113, %v11201
        %v11203 = vpop.f32.mrf.mxu0
        %v11204 = vadd.f32 %v11115, %v11203
        %11205 = vmatmul.bf16.gmra.mxu0 %v10061
        %v11206 = vpop.f32.mrf.mxu0
        %v11207 = vadd.f32 %v11118, %v11206
        %v11208 = vpop.f32.mrf.mxu0
        %v11209 = vadd.f32 %v11120, %v11208
        %11210 = vmatmul.bf16.gmra.mxu0 %v10070
        %v11211 = vpop.f32.mrf.mxu0
        %v11212 = vadd.f32 %v11123, %v11211
        %v11213 = vpop.f32.mrf.mxu0
        %v11214 = vadd.f32 %v11125, %v11213
        %11215 = vmatmul.bf16.gmra.mxu0 %v10079
        %v11216 = vpop.f32.mrf.mxu0
        %v11217 = vadd.f32 %v11128, %v11216
        %v11218 = vpop.f32.mrf.mxu0
        %v11219 = vadd.f32 %v11130, %v11218
        %11220 = vmatmul.bf16.gmra.mxu0 %v10088
        %v11221 = vpop.f32.mrf.mxu0
        %v11222 = vadd.f32 %v11133, %v11221
        %v11223 = vpop.f32.mrf.mxu0
        %v11224 = vadd.f32 %v11135, %v11223
        %11225 = vmatmul.bf16.gmra.mxu0 %v10097
        %v11226 = vpop.f32.mrf.mxu0
        %v11227 = vadd.f32 %v11138, %v11226
        %v11228 = vpop.f32.mrf.mxu0
        %v11229 = vadd.f32 %v11140, %v11228
        %11230 = vmatmul.bf16.gmra.mxu0 %v10106
        %v11231 = vpop.f32.mrf.mxu0
        %v11232 = vadd.f32 %v11143, %v11231
        %v11233 = vpop.f32.mrf.mxu0
        %v11234 = vadd.f32 %v11145, %v11233
        %11235 = vmatmul.bf16.gmra.mxu0 %v10115
        %v11236 = vpop.f32.mrf.mxu0
        %v11237 = vadd.f32 %v11148, %v11236
        %v11238 = vpop.f32.mrf.mxu0
        %v11239 = vadd.f32 %v11150, %v11238
        %11240 = vmatmul.bf16.gmra.mxu0 %v10124
        %v11241 = vpop.f32.mrf.mxu0
        %v11242 = vadd.f32 %v11153, %v11241
        %v11243 = vpop.f32.mrf.mxu0
        %v11244 = vadd.f32 %v11155, %v11243
        %11245 = vmatmul.bf16.gmra.mxu0 %v10133
        %v11246 = vpop.f32.mrf.mxu0
        %v11247 = vadd.f32 %v11158, %v11246
        %v11248 = vpop.f32.mrf.mxu0
        %v11249 = vadd.f32 %v11160, %v11248
        %11250 = vmatmul.bf16.gmra.mxu0 %v10142
        %v11251 = vpop.f32.mrf.mxu0
        %v11252 = vadd.f32 %v11163, %v11251
        %v11253 = vpop.f32.mrf.mxu0
        %v11254 = vadd.f32 %v11165, %v11253
        %11255 = vdwg.mxu0
        %11256 = vmatpush.bf16.msra.mxu0 %v10633
        %11257 = vmatpush.bf16.msra.mxu0 %v10632
        %11258 = vmatpush.bf16.msra.mxu0 %v10631
        %11259 = vmatpush.bf16.msra.mxu0 %v10630
        %11260 = vmatpush.bf16.msra.mxu0 %v10629
        %11261 = vmatpush.bf16.msra.mxu0 %v10628
        %11262 = vmatpush.bf16.msra.mxu0 %v10627
        %11263 = vmatpush.bf16.msra.mxu0 %v10626
        %11264 = vmatmul.bf16.gmra.mxu0 %v10008
        %v11265 = vpop.f32.mrf.mxu0
        %v11266 = vadd.f32 %v11177, %v11265
        %v11267 = vpop.f32.mrf.mxu0
        %v11268 = vadd.f32 %v11179, %v11267
        %11269 = vmatmul.bf16.gmra.mxu0 %v10017
        %v11270 = vpop.f32.mrf.mxu0
        %v11271 = vadd.f32 %v11182, %v11270
        %v11272 = vpop.f32.mrf.mxu0
        %v11273 = vadd.f32 %v11184, %v11272
        %11274 = vmatmul.bf16.gmra.mxu0 %v10026
        %v11275 = vpop.f32.mrf.mxu0
        %v11276 = vadd.f32 %v11187, %v11275
        %v11277 = vpop.f32.mrf.mxu0
        %v11278 = vadd.f32 %v11189, %v11277
        %11279 = vmatmul.bf16.gmra.mxu0 %v10035
        %v11280 = vpop.f32.mrf.mxu0
        %v11281 = vadd.f32 %v11192, %v11280
        %v11282 = vpop.f32.mrf.mxu0
        %v11283 = vadd.f32 %v11194, %v11282
        %11284 = vmatmul.bf16.gmra.mxu0 %v10044
        %v11285 = vpop.f32.mrf.mxu0
        %v11286 = vadd.f32 %v11197, %v11285
        %v11287 = vpop.f32.mrf.mxu0
        %v11288 = vadd.f32 %v11199, %v11287
        %11289 = vmatmul.bf16.gmra.mxu0 %v10053
        %v11290 = vpop.f32.mrf.mxu0
        %v11291 = vadd.f32 %v11202, %v11290
        %v11292 = vpop.f32.mrf.mxu0
        %v11293 = vadd.f32 %v11204, %v11292
        %11294 = vmatmul.bf16.gmra.mxu0 %v10062
        %v11295 = vpop.f32.mrf.mxu0
        %v11296 = vadd.f32 %v11207, %v11295
        %v11297 = vpop.f32.mrf.mxu0
        %v11298 = vadd.f32 %v11209, %v11297
        %11299 = vmatmul.bf16.gmra.mxu0 %v10071
        %v11300 = vpop.f32.mrf.mxu0
        %v11301 = vadd.f32 %v11212, %v11300
        %v11302 = vpop.f32.mrf.mxu0
        %v11303 = vadd.f32 %v11214, %v11302
        %11304 = vmatmul.bf16.gmra.mxu0 %v10080
        %v11305 = vpop.f32.mrf.mxu0
        %v11306 = vadd.f32 %v11217, %v11305
        %v11307 = vpop.f32.mrf.mxu0
        %v11308 = vadd.f32 %v11219, %v11307
        %11309 = vmatmul.bf16.gmra.mxu0 %v10089
        %v11310 = vpop.f32.mrf.mxu0
        %v11311 = vadd.f32 %v11222, %v11310
        %v11312 = vpop.f32.mrf.mxu0
        %v11313 = vadd.f32 %v11224, %v11312
        %11314 = vmatmul.bf16.gmra.mxu0 %v10098
        %v11315 = vpop.f32.mrf.mxu0
        %v11316 = vadd.f32 %v11227, %v11315
        %v11317 = vpop.f32.mrf.mxu0
        %v11318 = vadd.f32 %v11229, %v11317
        %11319 = vmatmul.bf16.gmra.mxu0 %v10107
        %v11320 = vpop.f32.mrf.mxu0
        %v11321 = vadd.f32 %v11232, %v11320
        %v11322 = vpop.f32.mrf.mxu0
        %v11323 = vadd.f32 %v11234, %v11322
        %11324 = vmatmul.bf16.gmra.mxu0 %v10116
        %v11325 = vpop.f32.mrf.mxu0
        %v11326 = vadd.f32 %v11237, %v11325
        %v11327 = vpop.f32.mrf.mxu0
        %v11328 = vadd.f32 %v11239, %v11327
        %11329 = vmatmul.bf16.gmra.mxu0 %v10125
        %v11330 = vpop.f32.mrf.mxu0
        %v11331 = vadd.f32 %v11242, %v11330
        %v11332 = vpop.f32.mrf.mxu0
        %v11333 = vadd.f32 %v11244, %v11332
        %11334 = vmatmul.bf16.gmra.mxu0 %v10134
        %v11335 = vpop.f32.mrf.mxu0
        %v11336 = vadd.f32 %v11247, %v11335
        %v11337 = vpop.f32.mrf.mxu0
        %v11338 = vadd.f32 %v11249, %v11337
        %11339 = vmatmul.bf16.gmra.mxu0 %v10143
        %v11340 = vpop.f32.mrf.mxu0
        %v11341 = vadd.f32 %v11252, %v11340
        %v11342 = vpop.f32.mrf.mxu0
        %v11343 = vadd.f32 %v11254, %v11342
        %11344 = vdwg.mxu0
        %11345 = vmatpush.bf16.msra.mxu0 %v10641
        %11346 = vmatpush.bf16.msra.mxu0 %v10640
        %11347 = vmatpush.bf16.msra.mxu0 %v10639
        %11348 = vmatpush.bf16.msra.mxu0 %v10638
        %11349 = vmatpush.bf16.msra.mxu0 %v10637
        %11350 = vmatpush.bf16.msra.mxu0 %v10636
        %11351 = vmatpush.bf16.msra.mxu0 %v10635
        %11352 = vmatpush.bf16.msra.mxu0 %v10634
        %11353 = vmatmul.bf16.gmra.mxu0 %v10009
        %v11354 = vpop.f32.mrf.mxu0
        %v11355 = vadd.f32 %v11266, %v11354
        %v11356 = vpop.f32.mrf.mxu0
        %v11357 = vadd.f32 %v11268, %v11356
        %11358 = vmatmul.bf16.gmra.mxu0 %v10018
        %v11359 = vpop.f32.mrf.mxu0
        %v11360 = vadd.f32 %v11271, %v11359
        %v11361 = vpop.f32.mrf.mxu0
        %v11362 = vadd.f32 %v11273, %v11361
        %11363 = vmatmul.bf16.gmra.mxu0 %v10027
        %v11364 = vpop.f32.mrf.mxu0
        %v11365 = vadd.f32 %v11276, %v11364
        %v11366 = vpop.f32.mrf.mxu0
        %v11367 = vadd.f32 %v11278, %v11366
        %11368 = vmatmul.bf16.gmra.mxu0 %v10036
        %v11369 = vpop.f32.mrf.mxu0
        %v11370 = vadd.f32 %v11281, %v11369
        %v11371 = vpop.f32.mrf.mxu0
        %v11372 = vadd.f32 %v11283, %v11371
        %11373 = vmatmul.bf16.gmra.mxu0 %v10045
        %v11374 = vpop.f32.mrf.mxu0
        %v11375 = vadd.f32 %v11286, %v11374
        %v11376 = vpop.f32.mrf.mxu0
        %v11377 = vadd.f32 %v11288, %v11376
        %11378 = vmatmul.bf16.gmra.mxu0 %v10054
        %v11379 = vpop.f32.mrf.mxu0
        %v11380 = vadd.f32 %v11291, %v11379
        %v11381 = vpop.f32.mrf.mxu0
        %v11382 = vadd.f32 %v11293, %v11381
        %11383 = vmatmul.bf16.gmra.mxu0 %v10063
        %v11384 = vpop.f32.mrf.mxu0
        %v11385 = vadd.f32 %v11296, %v11384
        %v11386 = vpop.f32.mrf.mxu0
        %v11387 = vadd.f32 %v11298, %v11386
        %11388 = vmatmul.bf16.gmra.mxu0 %v10072
        %v11389 = vpop.f32.mrf.mxu0
        %v11390 = vadd.f32 %v11301, %v11389
        %v11391 = vpop.f32.mrf.mxu0
        %v11392 = vadd.f32 %v11303, %v11391
        %11393 = vmatmul.bf16.gmra.mxu0 %v10081
        %v11394 = vpop.f32.mrf.mxu0
        %v11395 = vadd.f32 %v11306, %v11394
        %v11396 = vpop.f32.mrf.mxu0
        %v11397 = vadd.f32 %v11308, %v11396
        %11398 = vmatmul.bf16.gmra.mxu0 %v10090
        %v11399 = vpop.f32.mrf.mxu0
        %v11400 = vadd.f32 %v11311, %v11399
        %v11401 = vpop.f32.mrf.mxu0
        %v11402 = vadd.f32 %v11313, %v11401
        %11403 = vmatmul.bf16.gmra.mxu0 %v10099
        %v11404 = vpop.f32.mrf.mxu0
        %v11405 = vadd.f32 %v11316, %v11404
        %v11406 = vpop.f32.mrf.mxu0
        %v11407 = vadd.f32 %v11318, %v11406
        %11408 = vmatmul.bf16.gmra.mxu0 %v10108
        %v11409 = vpop.f32.mrf.mxu0
        %v11410 = vadd.f32 %v11321, %v11409
        %v11411 = vpop.f32.mrf.mxu0
        %v11412 = vadd.f32 %v11323, %v11411
        %11413 = vmatmul.bf16.gmra.mxu0 %v10117
        %v11414 = vpop.f32.mrf.mxu0
        %v11415 = vadd.f32 %v11326, %v11414
        %v11416 = vpop.f32.mrf.mxu0
        %v11417 = vadd.f32 %v11328, %v11416
        %11418 = vmatmul.bf16.gmra.mxu0 %v10126
        %v11419 = vpop.f32.mrf.mxu0
        %v11420 = vadd.f32 %v11331, %v11419
        %v11421 = vpop.f32.mrf.mxu0
        %v11422 = vadd.f32 %v11333, %v11421
        %11423 = vmatmul.bf16.gmra.mxu0 %v10135
        %v11424 = vpop.f32.mrf.mxu0
        %v11425 = vadd.f32 %v11336, %v11424
        %v11426 = vpop.f32.mrf.mxu0
        %v11427 = vadd.f32 %v11338, %v11426
        %11428 = vmatmul.bf16.gmra.mxu0 %v10144
        %v11429 = vpop.f32.mrf.mxu0
        %v11430 = vadd.f32 %v11341, %v11429
        %v11431 = vpop.f32.mrf.mxu0
        %v11432 = vadd.f32 %v11343, %v11431
        %11433 = vdwg.mxu0
        %11434 = vmatpush.bf16.msra.mxu0 %v10649
        %11435 = vmatpush.bf16.msra.mxu0 %v10648
        %11436 = vmatpush.bf16.msra.mxu0 %v10647
        %11437 = vmatpush.bf16.msra.mxu0 %v10646
        %11438 = vmatpush.bf16.msra.mxu0 %v10645
        %11439 = vmatpush.bf16.msra.mxu0 %v10644
        %11440 = vmatpush.bf16.msra.mxu0 %v10643
        %11441 = vmatpush.bf16.msra.mxu0 %v10642
        %11442 = vmatmul.bf16.gmra.mxu0 %v10010
        %v11443 = vpop.f32.mrf.mxu0
        %v11444 = vadd.f32 %v11355, %v11443
        %v11445 = vpop.f32.mrf.mxu0
        %v11446 = vadd.f32 %v11357, %v11445
        %11447 = vmatmul.bf16.gmra.mxu0 %v10019
        %v11448 = vpop.f32.mrf.mxu0
        %v11449 = vadd.f32 %v11360, %v11448
        %v11450 = vpop.f32.mrf.mxu0
        %v11451 = vadd.f32 %v11362, %v11450
        %11452 = vmatmul.bf16.gmra.mxu0 %v10028
        %v11453 = vpop.f32.mrf.mxu0
        %v11454 = vadd.f32 %v11365, %v11453
        %v11455 = vpop.f32.mrf.mxu0
        %v11456 = vadd.f32 %v11367, %v11455
        %11457 = vmatmul.bf16.gmra.mxu0 %v10037
        %v11458 = vpop.f32.mrf.mxu0
        %v11459 = vadd.f32 %v11370, %v11458
        %v11460 = vpop.f32.mrf.mxu0
        %v11461 = vadd.f32 %v11372, %v11460
        %11462 = vmatmul.bf16.gmra.mxu0 %v10046
        %v11463 = vpop.f32.mrf.mxu0
        %v11464 = vadd.f32 %v11375, %v11463
        %v11465 = vpop.f32.mrf.mxu0
        %v11466 = vadd.f32 %v11377, %v11465
        %11467 = vmatmul.bf16.gmra.mxu0 %v10055
        %v11468 = vpop.f32.mrf.mxu0
        %v11469 = vadd.f32 %v11380, %v11468
        %v11470 = vpop.f32.mrf.mxu0
        %v11471 = vadd.f32 %v11382, %v11470
        %11472 = vmatmul.bf16.gmra.mxu0 %v10064
        %v11473 = vpop.f32.mrf.mxu0
        %v11474 = vadd.f32 %v11385, %v11473
        %v11475 = vpop.f32.mrf.mxu0
        %v11476 = vadd.f32 %v11387, %v11475
        %11477 = vmatmul.bf16.gmra.mxu0 %v10073
        %v11478 = vpop.f32.mrf.mxu0
        %v11479 = vadd.f32 %v11390, %v11478
        %v11480 = vpop.f32.mrf.mxu0
        %v11481 = vadd.f32 %v11392, %v11480
        %11482 = vmatmul.bf16.gmra.mxu0 %v10082
        %v11483 = vpop.f32.mrf.mxu0
        %v11484 = vadd.f32 %v11395, %v11483
        %v11485 = vpop.f32.mrf.mxu0
        %v11486 = vadd.f32 %v11397, %v11485
        %11487 = vmatmul.bf16.gmra.mxu0 %v10091
        %v11488 = vpop.f32.mrf.mxu0
        %v11489 = vadd.f32 %v11400, %v11488
        %v11490 = vpop.f32.mrf.mxu0
        %v11491 = vadd.f32 %v11402, %v11490
        %11492 = vmatmul.bf16.gmra.mxu0 %v10100
        %v11493 = vpop.f32.mrf.mxu0
        %v11494 = vadd.f32 %v11405, %v11493
        %v11495 = vpop.f32.mrf.mxu0
        %v11496 = vadd.f32 %v11407, %v11495
        %11497 = vmatmul.bf16.gmra.mxu0 %v10109
        %v11498 = vpop.f32.mrf.mxu0
        %v11499 = vadd.f32 %v11410, %v11498
        %v11500 = vpop.f32.mrf.mxu0
        %v11501 = vadd.f32 %v11412, %v11500
        %11502 = vmatmul.bf16.gmra.mxu0 %v10118
        %v11503 = vpop.f32.mrf.mxu0
        %v11504 = vadd.f32 %v11415, %v11503
        %v11505 = vpop.f32.mrf.mxu0
        %v11506 = vadd.f32 %v11417, %v11505
        %11507 = vmatmul.bf16.gmra.mxu0 %v10127
        %v11508 = vpop.f32.mrf.mxu0
        %v11509 = vadd.f32 %v11420, %v11508
        %v11510 = vpop.f32.mrf.mxu0
        %v11511 = vadd.f32 %v11422, %v11510
        %11512 = vmatmul.bf16.gmra.mxu0 %v10136
        %v11513 = vpop.f32.mrf.mxu0
        %v11514 = vadd.f32 %v11425, %v11513
        %v11515 = vpop.f32.mrf.mxu0
        %v11516 = vadd.f32 %v11427, %v11515
        %11517 = vmatmul.bf16.gmra.mxu0 %v10145
        %v11518 = vpop.f32.mrf.mxu0
        %v11519 = vadd.f32 %v11430, %v11518
        %v11520 = vpop.f32.mrf.mxu0
        %v11521 = vadd.f32 %v11432, %v11520
        %11522 = vdwg.mxu0
        %v11523 = vld [vmem:[%s8] sm:$0x1]
        %v11525 = vperm.slane %v11523, 0
        %v11527 = vmul.f32 %v11444, %v11525
        %v11528 = vmul.f32 %v11446, %v11525
        %v11529 = vmul.f32 %v11449, %v11525
        %v11530 = vmul.f32 %v11451, %v11525
        %v11531 = vmul.f32 %v11454, %v11525
        %v11532 = vmul.f32 %v11456, %v11525
        %v11533 = vmul.f32 %v11459, %v11525
        %v11534 = vmul.f32 %v11461, %v11525
        %v11535 = vmul.f32 %v11464, %v11525
        %v11536 = vmul.f32 %v11466, %v11525
        %v11537 = vmul.f32 %v11469, %v11525
        %v11538 = vmul.f32 %v11471, %v11525
        %v11539 = vmul.f32 %v11474, %v11525
        %v11540 = vmul.f32 %v11476, %v11525
        %v11541 = vmul.f32 %v11479, %v11525
        %v11542 = vmul.f32 %v11481, %v11525
        %v11543 = vmul.f32 %v11484, %v11525
        %v11544 = vmul.f32 %v11486, %v11525
        %v11545 = vmul.f32 %v11489, %v11525
        %v11546 = vmul.f32 %v11491, %v11525
        %v11547 = vmul.f32 %v11494, %v11525
        %v11548 = vmul.f32 %v11496, %v11525
        %v11549 = vmul.f32 %v11499, %v11525
        %v11550 = vmul.f32 %v11501, %v11525
        %v11551 = vmul.f32 %v11504, %v11525
        %v11552 = vmul.f32 %v11506, %v11525
        %v11553 = vmul.f32 %v11509, %v11525
        %v11554 = vmul.f32 %v11511, %v11525
        %v11555 = vmul.f32 %v11514, %v11525
        %v11556 = vmul.f32 %v11516, %v11525
        %v11557 = vmul.f32 %v11519, %v11525
        %v11558 = vmul.f32 %v11521, %v11525
        %v11559 = vld [vmem:[%s9] sm:$0x1]
        %v11561 = vperm.slane %v11559, 0
        %v11563 = vadd.f32 %v11527, %v11561
        %v11564 = vadd.f32 %v11528, %v11561
        %v11565 = vadd.f32 %v11529, %v11561
        %v11566 = vadd.f32 %v11530, %v11561
        %v11567 = vadd.f32 %v11531, %v11561
        %v11568 = vadd.f32 %v11532, %v11561
        %v11569 = vadd.f32 %v11533, %v11561
        %v11570 = vadd.f32 %v11534, %v11561
        %v11571 = vadd.f32 %v11535, %v11561
        %v11572 = vadd.f32 %v11536, %v11561
        %v11573 = vadd.f32 %v11537, %v11561
        %v11574 = vadd.f32 %v11538, %v11561
        %v11575 = vadd.f32 %v11539, %v11561
        %v11576 = vadd.f32 %v11540, %v11561
        %v11577 = vadd.f32 %v11541, %v11561
        %v11578 = vadd.f32 %v11542, %v11561
        %v11579 = vadd.f32 %v11543, %v11561
        %v11580 = vadd.f32 %v11544, %v11561
        %v11581 = vadd.f32 %v11545, %v11561
        %v11582 = vadd.f32 %v11546, %v11561
        %v11583 = vadd.f32 %v11547, %v11561
        %v11584 = vadd.f32 %v11548, %v11561
        %v11585 = vadd.f32 %v11549, %v11561
        %v11586 = vadd.f32 %v11550, %v11561
        %v11587 = vadd.f32 %v11551, %v11561
        %v11588 = vadd.f32 %v11552, %v11561
        %v11589 = vadd.f32 %v11553, %v11561
        %v11590 = vadd.f32 %v11554, %v11561
        %v11591 = vadd.f32 %v11555, %v11561
        %v11592 = vadd.f32 %v11556, %v11561
        %v11593 = vadd.f32 %v11557, %v11561
        %v11594 = vadd.f32 %v11558, %v11561
        %v11595 = vld [vmem:[#allocation4] sm:$0xff]
        %v11596 = vld [vmem:[#allocation4 + $0x8] sm:$0xff]
        %v11597 = vld [vmem:[#allocation4 + $0x10] sm:$0xff]
        %v11598 = vld [vmem:[#allocation4 + $0x18] sm:$0xff]
        %v11599 = vld [vmem:[#allocation4 + $0x20] sm:$0xff]
        %v11600 = vld [vmem:[#allocation4 + $0x28] sm:$0xff]
        %v11601 = vld [vmem:[#allocation4 + $0x30] sm:$0xff]
        %v11602 = vld [vmem:[#allocation4 + $0x38] sm:$0xff]
        %v11603 = vld [vmem:[#allocation4 + $0x40] sm:$0xff]
        %v11604 = vld [vmem:[#allocation4 + $0x48] sm:$0xff]
        %v11605 = vld [vmem:[#allocation4 + $0x50] sm:$0xff]
        %v11606 = vld [vmem:[#allocation4 + $0x58] sm:$0xff]
        %v11607 = vld [vmem:[#allocation4 + $0x60] sm:$0xff]
        %v11608 = vld [vmem:[#allocation4 + $0x68] sm:$0xff]
        %v11609 = vld [vmem:[#allocation4 + $0x70] sm:$0xff]
        %v11610 = vld [vmem:[#allocation4 + $0x78] sm:$0xff]
        %v11611 = vld [vmem:[#allocation4 + $0x80] sm:$0xff]
        %v11612 = vld [vmem:[#allocation4 + $0x88] sm:$0xff]
        %v11613 = vld [vmem:[#allocation4 + $0x90] sm:$0xff]
        %v11614 = vld [vmem:[#allocation4 + $0x98] sm:$0xff]
        %v11615 = vld [vmem:[#allocation4 + $0xa0] sm:$0xff]
        %v11616 = vld [vmem:[#allocation4 + $0xa8] sm:$0xff]
        %v11617 = vld [vmem:[#allocation4 + $0xb0] sm:$0xff]
        %v11618 = vld [vmem:[#allocation4 + $0xb8] sm:$0xff]
        %v11619 = vld [vmem:[#allocation4 + $0xc0] sm:$0xff]
        %v11620 = vld [vmem:[#allocation4 + $0xc8] sm:$0xff]
        %v11621 = vld [vmem:[#allocation4 + $0xd0] sm:$0xff]
        %v11622 = vld [vmem:[#allocation4 + $0xd8] sm:$0xff]
        %v11623 = vld [vmem:[#allocation4 + $0xe0] sm:$0xff]
        %v11624 = vld [vmem:[#allocation4 + $0xe8] sm:$0xff]
        %v11625 = vld [vmem:[#allocation4 + $0xf0] sm:$0xff]
        %v11626 = vld [vmem:[#allocation4 + $0xf8] sm:$0xff]
        %v11627 = vadd.f32 %v11563, %v11595
        %v11628 = vadd.f32 %v11564, %v11596
        %v11629 = vadd.f32 %v11565, %v11597
        %v11630 = vadd.f32 %v11566, %v11598
        %v11631 = vadd.f32 %v11567, %v11599
        %v11632 = vadd.f32 %v11568, %v11600
        %v11633 = vadd.f32 %v11569, %v11601
        %v11634 = vadd.f32 %v11570, %v11602
        %v11635 = vadd.f32 %v11571, %v11603
        %v11636 = vadd.f32 %v11572, %v11604
        %v11637 = vadd.f32 %v11573, %v11605
        %v11638 = vadd.f32 %v11574, %v11606
        %v11639 = vadd.f32 %v11575, %v11607
        %v11640 = vadd.f32 %v11576, %v11608
        %v11641 = vadd.f32 %v11577, %v11609
        %v11642 = vadd.f32 %v11578, %v11610
        %v11643 = vadd.f32 %v11579, %v11611
        %v11644 = vadd.f32 %v11580, %v11612
        %v11645 = vadd.f32 %v11581, %v11613
        %v11646 = vadd.f32 %v11582, %v11614
        %v11647 = vadd.f32 %v11583, %v11615
        %v11648 = vadd.f32 %v11584, %v11616
        %v11649 = vadd.f32 %v11585, %v11617
        %v11650 = vadd.f32 %v11586, %v11618
        %v11651 = vadd.f32 %v11587, %v11619
        %v11652 = vadd.f32 %v11588, %v11620
        %v11653 = vadd.f32 %v11589, %v11621
        %v11654 = vadd.f32 %v11590, %v11622
        %v11655 = vadd.f32 %v11591, %v11623
        %v11656 = vadd.f32 %v11592, %v11624
        %v11657 = vadd.f32 %v11593, %v11625
        %v11658 = vadd.f32 %v11594, %v11626
        %v11659 = vmax.f32 %v11627, 0.0
        %v11660 = vmax.f32 %v11628, 0.0
        %v11661 = vmax.f32 %v11629, 0.0
        %v11662 = vmax.f32 %v11630, 0.0
        %v11663 = vmax.f32 %v11631, 0.0
        %v11664 = vmax.f32 %v11632, 0.0
        %v11665 = vmax.f32 %v11633, 0.0
        %v11666 = vmax.f32 %v11634, 0.0
        %v11667 = vmax.f32 %v11635, 0.0
        %v11668 = vmax.f32 %v11636, 0.0
        %v11669 = vmax.f32 %v11637, 0.0
        %v11670 = vmax.f32 %v11638, 0.0
        %v11671 = vmax.f32 %v11639, 0.0
        %v11672 = vmax.f32 %v11640, 0.0
        %v11673 = vmax.f32 %v11641, 0.0
        %v11674 = vmax.f32 %v11642, 0.0
        %v11675 = vmax.f32 %v11643, 0.0
        %v11676 = vmax.f32 %v11644, 0.0
        %v11677 = vmax.f32 %v11645, 0.0
        %v11678 = vmax.f32 %v11646, 0.0
        %v11679 = vmax.f32 %v11647, 0.0
        %v11680 = vmax.f32 %v11648, 0.0
        %v11681 = vmax.f32 %v11649, 0.0
        %v11682 = vmax.f32 %v11650, 0.0
        %v11683 = vmax.f32 %v11651, 0.0
        %v11684 = vmax.f32 %v11652, 0.0
        %v11685 = vmax.f32 %v11653, 0.0
        %v11686 = vmax.f32 %v11654, 0.0
        %v11687 = vmax.f32 %v11655, 0.0
        %v11688 = vmax.f32 %v11656, 0.0
        %v11689 = vmax.f32 %v11657, 0.0
        %v11690 = vmax.f32 %v11658, 0.0
        %v11691 = vadd.f32 %v11659, %v11660
        %v11692 = vadd.f32 %v11691, %v11661
        %v11693 = vadd.f32 %v11692, %v11662
        %v11694 = vadd.f32 %v11693, %v11663
        %v11695 = vadd.f32 %v11694, %v11664
        %v11696 = vadd.f32 %v11695, %v11665
        %v11697 = vadd.f32 %v11696, %v11666
        %v11698 = vadd.f32 %v11697, %v11667
        %v11699 = vadd.f32 %v11698, %v11668
        %v11700 = vadd.f32 %v11699, %v11669
        %v11701 = vadd.f32 %v11700, %v11670
        %v11702 = vadd.f32 %v11701, %v11671
        %v11703 = vadd.f32 %v11702, %v11672
        %v11704 = vadd.f32 %v11703, %v11673
        %v11705 = vadd.f32 %v11704, %v11674
        %v11706 = vadd.f32 %v11705, %v11675
        %v11707 = vadd.f32 %v11706, %v11676
        %v11708 = vadd.f32 %v11707, %v11677
        %v11709 = vadd.f32 %v11708, %v11678
        %v11710 = vadd.f32 %v11709, %v11679
        %v11711 = vadd.f32 %v11710, %v11680
        %v11712 = vadd.f32 %v11711, %v11681
        %v11713 = vadd.f32 %v11712, %v11682
        %v11714 = vadd.f32 %v11713, %v11683
        %v11715 = vadd.f32 %v11714, %v11684
        %v11716 = vadd.f32 %v11715, %v11685
        %v11717 = vadd.f32 %v11716, %v11686
        %v11718 = vadd.f32 %v11717, %v11687
        %v11719 = vadd.f32 %v11718, %v11688
        %v11720 = vadd.f32 %v11719, %v11689
        %v11721 = vadd.f32 %v11720, %v11690
        %v11722 = vrot.slane %v11721, 4
        %v11723 = vadd.f32 %v11721, %v11722
        %v11724 = vrot.slane %v11723, 2
        %v11725 = vadd.f32 %v11723, %v11724
        %v11726 = vrot.slane %v11725, 1
        %v11727 = vadd.f32 %v11725, %v11726
        %v11728 = vmul.f32 %v11727, 0.00390625
        %v11729 = vpack.c.bf16 %v11728, %v11728
        %v11730 = vld [vmem:[%s10] sm:$0xf]
        %v11731 = vld [vmem:[%s10 + $0x4] sm:$0xf]
        %v11732 = vld [vmem:[%s10 + $0x8] sm:$0xf]
        %v11733 = vld [vmem:[%s10 + $0xc] sm:$0xf]
        %v11734 = vld [vmem:[%s10 + $0x10] sm:$0xf]
        %v11735 = vld [vmem:[%s10 + $0x14] sm:$0xf]
        %v11736 = vld [vmem:[%s10 + $0x18] sm:$0xf]
        %v11737 = vld [vmem:[%s10 + $0x1c] sm:$0xf]
        %v11738 = vld [vmem:[%s10 + $0x20] sm:$0xf]
        %v11739 = vld [vmem:[%s10 + $0x24] sm:$0xf]
        %v11740 = vld [vmem:[%s10 + $0x28] sm:$0xf]
        %v11741 = vld [vmem:[%s10 + $0x2c] sm:$0xf]
        %v11742 = vld [vmem:[%s10 + $0x30] sm:$0xf]
        %v11743 = vld [vmem:[%s10 + $0x34] sm:$0xf]
        %v11744 = vld [vmem:[%s10 + $0x38] sm:$0xf]
        %v11745 = vld [vmem:[%s10 + $0x3c] sm:$0xf]
        %v11746 = vld [vmem:[%s11] sm:$0x1]
        %v11763 = vunpack.c.l.b16 %v11730
        %v11764 = vunpack.c.l.b16 %v11731
        %v11765 = vunpack.c.l.b16 %v11732
        %v11766 = vunpack.c.l.b16 %v11733
        %v11767 = vunpack.c.l.b16 %v11734
        %v11768 = vunpack.c.l.b16 %v11735
        %v11769 = vunpack.c.l.b16 %v11736
        %v11770 = vunpack.c.l.b16 %v11737
        %v11771 = vunpack.c.l.b16 %v11738
        %v11772 = vunpack.c.l.b16 %v11739
        %v11773 = vunpack.c.l.b16 %v11740
        %v11774 = vunpack.c.l.b16 %v11741
        %v11775 = vunpack.c.l.b16 %v11742
        %v11776 = vunpack.c.l.b16 %v11743
        %v11777 = vunpack.c.l.b16 %v11744
        %v11778 = vunpack.c.l.b16 %v11745
        %v11779 = vpack.c.b16 %v11764, %v11763
        %v11780 = vpack.c.b16 %v11766, %v11765
        %v11781 = vpack.c.b16 %v11768, %v11767
        %v11782 = vpack.c.b16 %v11770, %v11769
        %v11783 = vpack.c.b16 %v11772, %v11771
        %v11784 = vpack.c.b16 %v11774, %v11773
        %v11785 = vpack.c.b16 %v11776, %v11775
        %v11786 = vpack.c.b16 %v11778, %v11777
        %11795 = vmatpush.bf16.msra.mxu0 %v11786
        %11796 = vmatpush.bf16.msra.mxu0 %v11785
        %11797 = vmatpush.bf16.msra.mxu0 %v11784
        %11798 = vmatpush.bf16.msra.mxu0 %v11783
        %11799 = vmatpush.bf16.msra.mxu0 %v11782
        %11800 = vmatpush.bf16.msra.mxu0 %v11781
        %11801 = vmatpush.bf16.msra.mxu0 %v11780
        %11802 = vmatpush.bf16.msra.mxu0 %v11779
        %11803 = vmatmul.bf16.gmra.mxu0 %v11729
        %v11804 = vpop.f32.mrf.mxu0
        %v11805 = vadd.f32 %v11746, %v11804
        %v11806 = vpop.f32.mrf.mxu0
        %11807 = vdwg.mxu0
        %v11808 = vmax.f32 %v11805, 0.0
        %v11809 = vpack.c.bf16 %v11808, %v11808
        %v11810 = vld [vmem:[%s12] sm:$0xf]
        %v11811 = vld [vmem:[%s12 + $0x4] sm:$0xf]
        %v11812 = vld [vmem:[%s12 + $0x8] sm:$0xf]
        %v11813 = vld [vmem:[%s12 + $0xc] sm:$0xf]
        %v11814 = vld [vmem:[%s12 + $0x10] sm:$0xf]
        %v11815 = vld [vmem:[%s12 + $0x14] sm:$0xf]
        %v11816 = vld [vmem:[%s12 + $0x18] sm:$0xf]
        %v11817 = vld [vmem:[%s12 + $0x1c] sm:$0xf]
        %v11818 = vld [vmem:[%s12 + $0x20] sm:$0xf]
        %v11819 = vld [vmem:[%s12 + $0x24] sm:$0xf]
        %v11820 = vld [vmem:[%s12 + $0x28] sm:$0xf]
        %v11821 = vld [vmem:[%s12 + $0x2c] sm:$0xf]
        %v11822 = vld [vmem:[%s12 + $0x30] sm:$0xf]
        %v11823 = vld [vmem:[%s12 + $0x34] sm:$0xf]
        %v11824 = vld [vmem:[%s12 + $0x38] sm:$0xf]
        %v11825 = vld [vmem:[%s12 + $0x3c] sm:$0xf]
        %v11826 = vld [vmem:[%s13] sm:$0x1]
        %v11843 = vunpack.c.l.b16 %v11810
        %v11844 = vunpack.c.l.b16 %v11811
        %v11845 = vunpack.c.l.b16 %v11812
        %v11846 = vunpack.c.l.b16 %v11813
        %v11847 = vunpack.c.l.b16 %v11814
        %v11848 = vunpack.c.l.b16 %v11815
        %v11849 = vunpack.c.l.b16 %v11816
        %v11850 = vunpack.c.l.b16 %v11817
        %v11851 = vunpack.c.l.b16 %v11818
        %v11852 = vunpack.c.l.b16 %v11819
        %v11853 = vunpack.c.l.b16 %v11820
        %v11854 = vunpack.c.l.b16 %v11821
        %v11855 = vunpack.c.l.b16 %v11822
        %v11856 = vunpack.c.l.b16 %v11823
        %v11857 = vunpack.c.l.b16 %v11824
        %v11858 = vunpack.c.l.b16 %v11825
        %v11859 = vpack.c.b16 %v11844, %v11843
        %v11860 = vpack.c.b16 %v11846, %v11845
        %v11861 = vpack.c.b16 %v11848, %v11847
        %v11862 = vpack.c.b16 %v11850, %v11849
        %v11863 = vpack.c.b16 %v11852, %v11851
        %v11864 = vpack.c.b16 %v11854, %v11853
        %v11865 = vpack.c.b16 %v11856, %v11855
        %v11866 = vpack.c.b16 %v11858, %v11857
        %11875 = vmatpush.bf16.msra.mxu0 %v11866
        %11876 = vmatpush.bf16.msra.mxu0 %v11865
        %11877 = vmatpush.bf16.msra.mxu0 %v11864
        %11878 = vmatpush.bf16.msra.mxu0 %v11863
        %11879 = vmatpush.bf16.msra.mxu0 %v11862
        %11880 = vmatpush.bf16.msra.mxu0 %v11861
        %11881 = vmatpush.bf16.msra.mxu0 %v11860
        %11882 = vmatpush.bf16.msra.mxu0 %v11859
        %11883 = vmatmul.bf16.gmra.mxu0 %v11809
        %v11884 = vpop.f32.mrf.mxu0
        %v11885 = vadd.f32 %v11826, %v11884
        %v11886 = vpop.f32.mrf.mxu0
        %11887 = vdwg.mxu0
        %11888 = vst [vmem:[%s459] sm:$0x1] %v11885
        %s11889 = sand.u32 %s335, 1
        %s11890 = scalar_lea.sflag [#allocation6], %s11889
        %s11891 = sand.u32 %s335, 1
        %s11892 = scalar_lea.vmem [#allocation5], %s11891
        // Predicated region
        $region77: #{simclr_forward.1} parent=75 // pred_check
          %p11893 = pneg %p345
        $region78: #{simclr_forward.1} parent=75 // pred_check_branch
          %11895 = sbr.rel (%p11893) target = $region80
        $region79: #{simclr_forward.1} parent=75 // pred_region
          %11897 = vsyncadd %s11890, 0
          %s11898 = scalar_lea.hbm %s14, %s28
          %s11900 = sshll.u32 %s11892, 4
          %s11901 = int_to_ptr.vmem [resolvable:$true] %s11900
          %s11902 = sshll.u32 %s11898, 4
          %s11903 = int_to_ptr.hbm [resolvable:$true] %s11902
          %11905 = dma.vmem_to_hbm [thread:$0]  %s11901, 16, %s11903, %s11890
        $region80: #{simclr_forward.1} parent=75 // pred_fallthru
          _
      $region76: #{simclr_forward.1} parent=5 // pred_fallthru
        _
      %p11906 = scmp.le.s32.totalorder 2, %s23
      // Predicated region
      $region81: #{simclr_forward.1} parent=5 // pred_check
        %p11907 = pneg %p11906
      $region82: #{simclr_forward.1} parent=5 // pred_check_branch
        %11909 = sbr.rel (%p11907) target = $region84
      $region83: #{simclr_forward.1} parent=5 // pred_region
        %s11910 = ssub.s32 %s23, 2
        // Predicated region
        $region85: #{simclr_forward.1} parent=83 // pred_check
          %p11911 = pneg %p351
        $region86: #{simclr_forward.1} parent=83 // pred_check_branch
          %11913 = sbr.rel (%p11911) target = $region88
        $region87: #{simclr_forward.1} parent=83 // pred_region
          %s11914 = sand.u32 %s336, 1
          %s11915 = scalar_lea.sflag [#allocation6], %s11914
          %s11916 = sand.u32 %s336, 1
          %s11917 = scalar_lea.vmem [#allocation5], %s11916
          %11919 = dma.done %s11915, 16
        $region88: #{simclr_forward.1} parent=83 // pred_fallthru
          _
      $region84: #{simclr_forward.1} parent=5 // pred_fallthru
        _
    $region6: #{simclr_forward.1} parent=1 // loop_footer
      %s27 = sadd.s32 1, %s23
    $region7: #{simclr_forward.1} parent=1 // loop_footer_branch
      %22 = sbr.rel target = $region3
    $region8: #{simclr_forward.1} parent=1 // loop_exit
      _
    %11920 = vsyncpa [#allocation6], 1
    %s11921 = scalar_lea.sflag [#allocation6], 1
    %11922 = vsyncpa %s11921, 1

</llo_original>
